<compile_context>
chip_gen: v5e
topology: v5e:2x2
jax: 0.10.0
libtpu: 0.0.40
codegen_flags: <defaults>
</compile_context>

<pallas_src>
import functools

import jax
import jax.numpy as jnp
from jax.experimental import pallas as pl
from jax.experimental.pallas import tpu as pltpu


_TAPS = tuple((dy, dx) for dy in range(3) for dx in range(3))


# ----------------------------------------------------------------------------
# Fused kernel: conv1 -> LeakyReLU -> conv2 -> LeakyReLU -> conv3 on one stripe
# ----------------------------------------------------------------------------
def _fused_denoiser_kernel(x_ref, w1_ref, b1_ref, w2_ref, b2_ref, w3_ref, b3_ref,
                           o_ref, y1_ref, *, TR, H, W, C, CE):
    """Processes one (batch, row-stripe) grid cell entirely in VMEM.

    x_ref  : (1, 1, TR+4, W+4, C)  input stripe with a 2-row/2-col zero halo
    w1_ref : (C, 9, CE)            conv1 weights  w1[ci, dy*3+dx, co]
    w2_ref : (9, CE, CE)           conv2 weights  w2[dy*3+dx, ci, co]
    w3_ref : (CE, C)               conv3 (1x1) weights
    o_ref  : (1, 1, TR*W, C)       flattened output stripe
    y1_ref : (TR+2, W+2, CE)       VMEM staging of conv1 activations (+1 halo)
    """
    s = pl.program_id(1)
    rows1 = TR + 2          # conv2 needs a +/-1 row halo of conv1 activations
    cols1 = W + 2           # ... and a +/-1 col halo
    m2 = TR * W

    # ---------------- conv1: 3x3, C -> CE (VPU broadcast MACs, f32) -----------
    acc1 = jnp.zeros((rows1, cols1, CE), jnp.float32) + b1_ref[...].astype(jnp.float32)
    for k, (dy, dx) in enumerate(_TAPS):
        xw = x_ref[0, 0, dy:dy + rows1, dx:dx + cols1, :].astype(jnp.float32)
        for c in range(C):
            wv = w1_ref[c, k:k + 1, :].astype(jnp.float32)        # (1, CE), kept 2-D
            acc1 = acc1 + xw[:, :, c:c + 1] * wv[None, :, :]
    y1 = jnp.where(acc1 > 0, acc1, 0.2 * acc1)                    # LeakyReLU(0.2)

    # conv2's zero padding: y1 entries outside the image must be exact zeros
    # (also masks stripe-halo rows outside the image and ragged bottom rows).
    r_ids = jax.lax.broadcasted_iota(jnp.int32, (rows1, cols1, 1), 0)
    c_ids = jax.lax.broadcasted_iota(jnp.int32, (rows1, cols1, 1), 1)
    img_row = s * TR - 1 + r_ids
    valid = (img_row >= 0) & (img_row < H) & (c_ids >= 1) & (c_ids <= W)
    y1_ref[...] = jnp.where(valid, y1, 0.0).astype(y1_ref.dtype)

    # ---------------- conv2: 3x3, CE -> CE (9 shifted MXU matmuls) ------------
    acc2 = jnp.zeros((m2, CE), jnp.float32)
    for k, (dy, dx) in enumerate(_TAPS):
        win = y1_ref[dy:dy + TR, dx:dx + W, :]                    # (TR, W, CE)
        acc2 = acc2 + jnp.dot(win.reshape(m2, CE), w2_ref[k],
                              preferred_element_type=jnp.float32)
    acc2 = acc2 + b2_ref[...].astype(jnp.float32)
    y2 = jnp.where(acc2 > 0, acc2, 0.2 * acc2)

    # ---------------- conv3: 1x1, CE -> C (fused; no HBM round trip) ----------
    y3 = jnp.dot(y2.astype(w3_ref.dtype), w3_ref[...],
                 preferred_element_type=jnp.float32) + b3_ref[...].astype(jnp.float32)
    o_ref[0, 0] = y3.astype(o_ref.dtype)


# ----------------------------------------------------------------------------
# Wrapper: stripe construction, pallas_call, output re-layout
# ----------------------------------------------------------------------------
def network_forward(x_nchw, params, *, compute_dtype=jnp.bfloat16, block_area=4096):
    """Pallas-backed forward pass.  Input/output in NCHW (PyTorch semantics)."""
    B, C, H, W = x_nchw.shape
    CE = params["b1"].shape[-1]

    # Stripe height: big enough to amortize per-step overhead, small enough that
    # all fused intermediates fit VMEM on every TPU generation (v7x: 64 MiB
    # physical / 32 MiB default-scoped).
    TR = max(8, block_area // max(W, 1))
    TR = (TR // 8) * 8
    if TR >= H:
        TR = H
    S = -(-H // TR)
    Hp = S * TR

    # Pad only the tiny C-channel input: 2-row/2-col conv halo + ragged tail.
    x_nhwc = jnp.transpose(x_nchw, (0, 2, 3, 1))
    xp = jnp.pad(x_nhwc, ((0, 0), (2, 2 + Hp - H), (2, 2), (0, 0)))
    stripes = jnp.stack([xp[:, s * TR:s * TR + TR + 4, :, :] for s in range(S)],
                        axis=1)                                   # (B,S,TR+4,W+4,C)
    stripes = stripes.astype(compute_dtype)

    w1 = params["w1"].astype(compute_dtype)
    w2 = params["w2"].astype(compute_dtype)
    w3 = params["w3"].astype(compute_dtype)
    b1 = params["b1"].astype(jnp.float32)
    b2 = params["b2"].astype(jnp.float32)
    b3 = params["b3"].astype(jnp.float32)

    m2 = TR * W
    kernel = functools.partial(_fused_denoiser_kernel, TR=TR, H=H, W=W, C=C, CE=CE)

    out = pl.pallas_call(
        kernel,
        out_shape=jax.ShapeDtypeStruct((B, S, m2, C), x_nchw.dtype),
        grid=(B, S),
        in_specs=[
            pl.BlockSpec((1, 1, TR + 4, W + 4, C), lambda b, s: (b, s, 0, 0, 0)),
            pl.BlockSpec((C, 9, CE), lambda b, s: (0, 0, 0)),     # weights stay
            pl.BlockSpec((1, CE), lambda b, s: (0, 0)),           # resident in
            pl.BlockSpec((9, CE, CE), lambda b, s: (0, 0, 0)),    # VMEM across
            pl.BlockSpec((1, CE), lambda b, s: (0, 0)),           # the grid
            pl.BlockSpec((CE, C), lambda b, s: (0, 0)),
            pl.BlockSpec((1, C), lambda b, s: (0, 0)),
        ],
        out_specs=pl.BlockSpec((1, 1, m2, C), lambda b, s: (b, s, 0, 0)),
        scratch_shapes=[pltpu.VMEM((TR + 2, W + 2, CE), compute_dtype)],
        compiler_params=pltpu.CompilerParams(
            dimension_semantics=("parallel", "parallel"),
            vmem_limit_bytes=32 * 1024 * 1024,
        ),
    )(stripes, w1, b1, w2, b2, w3, b3)

    # Tiny output re-layout back to NCHW; for n_chan==1 this is just a reshape.
    out = out.reshape(B, S, TR, W, C)
    out = jnp.moveaxis(out, -1, 1).reshape(B, C, Hp, W)
    return out[:, :, :H, :]


# ----------------------------------------------------------------------------
# Parameter init (PyTorch-style uniform(-1/sqrt(fan_in), 1/sqrt(fan_in)))
# ----------------------------------------------------------------------------
def init_params(key, n_chan, chan_embed=48, dtype=jnp.float32):
    ks = jax.random.split(key, 6)

    def u(k, shape, fan_in):
        bound = float(fan_in) ** -0.5
        return jax.random.uniform(k, shape, dtype, -bound, bound)

    return {
        "w1": u(ks[0], (n_chan, 9, chan_embed), 9 * n_chan),          # [ci, tap, co]
        "b1": u(ks[1], (1, chan_embed), 9 * n_chan),
        "w2": u(ks[2], (9, chan_embed, chan_embed), 9 * chan_embed),  # [tap, ci, co]
        "b2": u(ks[3], (1, chan_embed), 9 * chan_embed),
        "w3": u(ks[4], (chan_embed, n_chan), chan_embed),             # [ci, co]
        "b3": u(ks[5], (1, n_chan), chan_embed),
    }


# ----------------------------------------------------------------------------
# Pure-JAX reference (lax.conv) for correctness checking
# ----------------------------------------------------------------------------
def _reference_forward(x_nchw, params):
    x = jnp.transpose(x_nchw, (0, 2, 3, 1)).astype(jnp.float32)
    C = x.shape[-1]
    CE = params["b1"].shape[-1]
    dn = ("NHWC", "HWIO", "NHWC")

    def conv(v, w, b, pad):
        return jax.lax.conv_general_dilated(
            v, w, (1, 1), pad, dimension_numbers=dn) + b.reshape(1, 1, 1, -1)

    def lrelu(v):
        return jnp.where(v > 0, v, 0.2 * v)

    w1 = jnp.transpose(params["w1"].reshape(C, 3, 3, CE), (1, 2, 0, 3))
    w2 = params["w2"].reshape(3, 3, CE, CE)
    w3 = params["w3"].reshape(1, 1, CE, C)

    y = lrelu(conv(x, w1, params["b1"], "SAME"))
    y = lrelu(conv(y, w2, params["b2"], "SAME"))
    y = conv(y, w3, params["b3"], "VALID")
    return jnp.transpose(y, (0, 3, 1, 2))


if __name__ == "__main__":
    key = jax.random.PRNGKey(0)
    k_x, k_p, k_x2, k_p2 = jax.random.split(key, 4)

    # --- main config: single-channel image, as in Figure5f (default bf16 MXU) ---
    n_chan, chan_embed = 1, 48
    B, H, W = 1, 16, 16
    x = jax.random.normal(k_x, (B, n_chan, H, W), jnp.float32)
    params = init_params(k_p, n_chan, chan_embed)
    ref = _reference_forward(x, params)

    out = jax.block_until_ready(jax.jit(network_forward)(x, params))
    assert out.shape == (B, n_chan, H, W), out.shape
    err = float(jnp.max(jnp.abs(out - ref)))
    assert err < 1e-1, f"bf16 path: max abs error vs lax.conv reference = {err}"

    # --- generality + exact-f32 check: multi-channel, batch>1, forced small
    #     stripes with a ragged last stripe ---
    B2, C2, H2, W2 = 2, 3, 20, 24
    x2 = jax.random.normal(k_x2, (B2, C2, H2, W2), jnp.float32)
    params2 = init_params(k_p2, C2, chan_embed)
    ref2 = _reference_forward(x2, params2)
    fwd2 = jax.jit(functools.partial(network_forward,
                                     compute_dtype=jnp.float32, block_area=256))
    out2 = jax.block_until_ready(fwd2(x2, params2))
    assert out2.shape == (B2, C2, H2, W2), out2.shape
    err2 = float(jnp.max(jnp.abs(out2 - ref2)))
    assert err2 < 1e-3, f"f32 striped path: max abs error vs lax.conv reference = {err2}"

    print("KERNEL_OK")
</pallas_src>

<mosaic_0001>
module attributes {stable_mosaic.version = 11 : i64} {
  func.func @_fused_denoiser_kernel(%arg0: i32, %arg1: i32, %arg2: memref<1x1x20x20x1xbf16, #tpu.memory_space<vmem>>, %arg3: memref<1x9x48xbf16, #tpu.memory_space<vmem>>, %arg4: memref<1x48xf32, #tpu.memory_space<vmem>>, %arg5: memref<9x48x48xbf16, #tpu.memory_space<vmem>>, %arg6: memref<1x48xf32, #tpu.memory_space<vmem>>, %arg7: memref<48x1xbf16, #tpu.memory_space<vmem>>, %arg8: memref<1x1xf32, #tpu.memory_space<vmem>>, %arg9: memref<1x1x256x1xf32, #tpu.memory_space<vmem>>, %arg10: memref<18x18x48xbf16, #tpu.memory_space<vmem>>) attributes {dimension_semantics = [#tpu.dimension_semantics<parallel>, #tpu.dimension_semantics<parallel>], iteration_bounds = array<i64: 1, 1>, scalar_prefetch = 0 : i64, scratch_operands = 1 : i64, tpu.core_type = #tpu.core_type<tc>, window_params = [{transform_indices = @transform_0, window_bounds = array<i64: 1, 1, 20, 20, 1>}, {pipeline_mode = #tpu.pipeline_mode<synchronous>, transform_indices = @transform_1, window_bounds = array<i64: 1, 9, 48>}, {pipeline_mode = #tpu.pipeline_mode<synchronous>, transform_indices = @transform_2, window_bounds = array<i64: 1, 48>}, {pipeline_mode = #tpu.pipeline_mode<synchronous>, transform_indices = @transform_3, window_bounds = array<i64: 9, 48, 48>}, {pipeline_mode = #tpu.pipeline_mode<synchronous>, transform_indices = @transform_4, window_bounds = array<i64: 1, 48>}, {pipeline_mode = #tpu.pipeline_mode<synchronous>, transform_indices = @transform_5, window_bounds = array<i64: 48, 1>}, {pipeline_mode = #tpu.pipeline_mode<synchronous>, transform_indices = @transform_6, window_bounds = array<i64: 1, 1>}, {transform_indices = @transform_7, window_bounds = array<i64: 1, 1, 256, 1>}]} {
    %cst = arith.constant 0.000000e+00 : f32
    %0 = vector.broadcast %cst : f32 to vector<18x18x48xf32>
    %c0 = arith.constant 0 : index
    %c0_0 = arith.constant 0 : index
    %1 = vector.load %arg4[%c0, %c0_0] : memref<1x48xf32, #tpu.memory_space<vmem>>, vector<1x48xf32>
    %2 = vector.shape_cast %1 : vector<1x48xf32> to vector<1x1x48xf32>
    %3 = vector.broadcast %2 : vector<1x1x48xf32> to vector<18x18x48xf32>
    %4 = arith.addf %0, %3 : vector<18x18x48xf32>
    %c0_1 = arith.constant 0 : index
    %c0_2 = arith.constant 0 : index
    %c0_3 = arith.constant 0 : index
    %c0_4 = arith.constant 0 : index
    %c0_5 = arith.constant 0 : index
    %5 = vector.load %arg2[%c0_1, %c0_2, %c0_3, %c0_4, %c0_5] : memref<1x1x20x20x1xbf16, #tpu.memory_space<vmem>>, vector<1x1x18x18x1xbf16>
    %6 = vector.shape_cast %5 : vector<1x1x18x18x1xbf16> to vector<18x18x1xbf16>
    %7 = arith.extf %6 : vector<18x18x1xbf16> to vector<18x18x1xf32>
    %c0_6 = arith.constant 0 : index
    %c0_7 = arith.constant 0 : index
    %c0_8 = arith.constant 0 : index
    %8 = vector.load %arg3[%c0_6, %c0_7, %c0_8] : memref<1x9x48xbf16, #tpu.memory_space<vmem>>, vector<1x1x48xbf16>
    %9 = vector.shape_cast %8 : vector<1x1x48xbf16> to vector<1x48xbf16>
    %10 = arith.extf %9 : vector<1x48xbf16> to vector<1x48xf32>
    %11 = vector.shape_cast %10 : vector<1x48xf32> to vector<1x1x48xf32>
    %12 = vector.broadcast %7 : vector<18x18x1xf32> to vector<18x18x48xf32>
    %13 = vector.broadcast %11 : vector<1x1x48xf32> to vector<18x18x48xf32>
    %14 = arith.mulf %12, %13 : vector<18x18x48xf32>
    %15 = arith.addf %4, %14 : vector<18x18x48xf32>
    %c0_9 = arith.constant 0 : index
    %c0_10 = arith.constant 0 : index
    %c0_11 = arith.constant 0 : index
    %c1 = arith.constant 1 : index
    %c0_12 = arith.constant 0 : index
    %16 = vector.load %arg2[%c0_9, %c0_10, %c0_11, %c1, %c0_12] : memref<1x1x20x20x1xbf16, #tpu.memory_space<vmem>>, vector<1x1x18x18x1xbf16>
    %17 = vector.shape_cast %16 : vector<1x1x18x18x1xbf16> to vector<18x18x1xbf16>
    %18 = arith.extf %17 : vector<18x18x1xbf16> to vector<18x18x1xf32>
    %c0_13 = arith.constant 0 : index
    %c1_14 = arith.constant 1 : index
    %c0_15 = arith.constant 0 : index
    %19 = vector.load %arg3[%c0_13, %c1_14, %c0_15] : memref<1x9x48xbf16, #tpu.memory_space<vmem>>, vector<1x1x48xbf16>
    %20 = vector.shape_cast %19 : vector<1x1x48xbf16> to vector<1x48xbf16>
    %21 = arith.extf %20 : vector<1x48xbf16> to vector<1x48xf32>
    %22 = vector.shape_cast %21 : vector<1x48xf32> to vector<1x1x48xf32>
    %23 = vector.broadcast %18 : vector<18x18x1xf32> to vector<18x18x48xf32>
    %24 = vector.broadcast %22 : vector<1x1x48xf32> to vector<18x18x48xf32>
    %25 = arith.mulf %23, %24 : vector<18x18x48xf32>
    %26 = arith.addf %15, %25 : vector<18x18x48xf32>
    %c0_16 = arith.constant 0 : index
    %c0_17 = arith.constant 0 : index
    %c0_18 = arith.constant 0 : index
    %c2 = arith.constant 2 : index
    %c0_19 = arith.constant 0 : index
    %27 = vector.load %arg2[%c0_16, %c0_17, %c0_18, %c2, %c0_19] : memref<1x1x20x20x1xbf16, #tpu.memory_space<vmem>>, vector<1x1x18x18x1xbf16>
    %28 = vector.shape_cast %27 : vector<1x1x18x18x1xbf16> to vector<18x18x1xbf16>
    %29 = arith.extf %28 : vector<18x18x1xbf16> to vector<18x18x1xf32>
    %c0_20 = arith.constant 0 : index
    %c2_21 = arith.constant 2 : index
    %c0_22 = arith.constant 0 : index
    %30 = vector.load %arg3[%c0_20, %c2_21, %c0_22] : memref<1x9x48xbf16, #tpu.memory_space<vmem>>, vector<1x1x48xbf16>
    %31 = vector.shape_cast %30 : vector<1x1x48xbf16> to vector<1x48xbf16>
    %32 = arith.extf %31 : vector<1x48xbf16> to vector<1x48xf32>
    %33 = vector.shape_cast %32 : vector<1x48xf32> to vector<1x1x48xf32>
    %34 = vector.broadcast %29 : vector<18x18x1xf32> to vector<18x18x48xf32>
    %35 = vector.broadcast %33 : vector<1x1x48xf32> to vector<18x18x48xf32>
    %36 = arith.mulf %34, %35 : vector<18x18x48xf32>
    %37 = arith.addf %26, %36 : vector<18x18x48xf32>
    %c0_23 = arith.constant 0 : index
    %c0_24 = arith.constant 0 : index
    %c1_25 = arith.constant 1 : index
    %c0_26 = arith.constant 0 : index
    %c0_27 = arith.constant 0 : index
    %38 = vector.load %arg2[%c0_23, %c0_24, %c1_25, %c0_26, %c0_27] : memref<1x1x20x20x1xbf16, #tpu.memory_space<vmem>>, vector<1x1x18x18x1xbf16>
    %39 = vector.shape_cast %38 : vector<1x1x18x18x1xbf16> to vector<18x18x1xbf16>
    %40 = arith.extf %39 : vector<18x18x1xbf16> to vector<18x18x1xf32>
    %c0_28 = arith.constant 0 : index
    %c3 = arith.constant 3 : index
    %c0_29 = arith.constant 0 : index
    %41 = vector.load %arg3[%c0_28, %c3, %c0_29] : memref<1x9x48xbf16, #tpu.memory_space<vmem>>, vector<1x1x48xbf16>
    %42 = vector.shape_cast %41 : vector<1x1x48xbf16> to vector<1x48xbf16>
    %43 = arith.extf %42 : vector<1x48xbf16> to vector<1x48xf32>
    %44 = vector.shape_cast %43 : vector<1x48xf32> to vector<1x1x48xf32>
    %45 = vector.broadcast %40 : vector<18x18x1xf32> to vector<18x18x48xf32>
    %46 = vector.broadcast %44 : vector<1x1x48xf32> to vector<18x18x48xf32>
    %47 = arith.mulf %45, %46 : vector<18x18x48xf32>
    %48 = arith.addf %37, %47 : vector<18x18x48xf32>
    %c0_30 = arith.constant 0 : index
    %c0_31 = arith.constant 0 : index
    %c1_32 = arith.constant 1 : index
    %c1_33 = arith.constant 1 : index
    %c0_34 = arith.constant 0 : index
    %49 = vector.load %arg2[%c0_30, %c0_31, %c1_32, %c1_33, %c0_34] : memref<1x1x20x20x1xbf16, #tpu.memory_space<vmem>>, vector<1x1x18x18x1xbf16>
    %50 = vector.shape_cast %49 : vector<1x1x18x18x1xbf16> to vector<18x18x1xbf16>
    %51 = arith.extf %50 : vector<18x18x1xbf16> to vector<18x18x1xf32>
    %c0_35 = arith.constant 0 : index
    %c4 = arith.constant 4 : index
    %c0_36 = arith.constant 0 : index
    %52 = vector.load %arg3[%c0_35, %c4, %c0_36] : memref<1x9x48xbf16, #tpu.memory_space<vmem>>, vector<1x1x48xbf16>
    %53 = vector.shape_cast %52 : vector<1x1x48xbf16> to vector<1x48xbf16>
    %54 = arith.extf %53 : vector<1x48xbf16> to vector<1x48xf32>
    %55 = vector.shape_cast %54 : vector<1x48xf32> to vector<1x1x48xf32>
    %56 = vector.broadcast %51 : vector<18x18x1xf32> to vector<18x18x48xf32>
    %57 = vector.broadcast %55 : vector<1x1x48xf32> to vector<18x18x48xf32>
    %58 = arith.mulf %56, %57 : vector<18x18x48xf32>
    %59 = arith.addf %48, %58 : vector<18x18x48xf32>
    %c0_37 = arith.constant 0 : index
    %c0_38 = arith.constant 0 : index
    %c1_39 = arith.constant 1 : index
    %c2_40 = arith.constant 2 : index
    %c0_41 = arith.constant 0 : index
    %60 = vector.load %arg2[%c0_37, %c0_38, %c1_39, %c2_40, %c0_41] : memref<1x1x20x20x1xbf16, #tpu.memory_space<vmem>>, vector<1x1x18x18x1xbf16>
    %61 = vector.shape_cast %60 : vector<1x1x18x18x1xbf16> to vector<18x18x1xbf16>
    %62 = arith.extf %61 : vector<18x18x1xbf16> to vector<18x18x1xf32>
    %c0_42 = arith.constant 0 : index
    %c5 = arith.constant 5 : index
    %c0_43 = arith.constant 0 : index
    %63 = vector.load %arg3[%c0_42, %c5, %c0_43] : memref<1x9x48xbf16, #tpu.memory_space<vmem>>, vector<1x1x48xbf16>
    %64 = vector.shape_cast %63 : vector<1x1x48xbf16> to vector<1x48xbf16>
    %65 = arith.extf %64 : vector<1x48xbf16> to vector<1x48xf32>
    %66 = vector.shape_cast %65 : vector<1x48xf32> to vector<1x1x48xf32>
    %67 = vector.broadcast %62 : vector<18x18x1xf32> to vector<18x18x48xf32>
    %68 = vector.broadcast %66 : vector<1x1x48xf32> to vector<18x18x48xf32>
    %69 = arith.mulf %67, %68 : vector<18x18x48xf32>
    %70 = arith.addf %59, %69 : vector<18x18x48xf32>
    %c0_44 = arith.constant 0 : index
    %c0_45 = arith.constant 0 : index
    %c2_46 = arith.constant 2 : index
    %c0_47 = arith.constant 0 : index
    %c0_48 = arith.constant 0 : index
    %71 = vector.load %arg2[%c0_44, %c0_45, %c2_46, %c0_47, %c0_48] : memref<1x1x20x20x1xbf16, #tpu.memory_space<vmem>>, vector<1x1x18x18x1xbf16>
    %72 = vector.shape_cast %71 : vector<1x1x18x18x1xbf16> to vector<18x18x1xbf16>
    %73 = arith.extf %72 : vector<18x18x1xbf16> to vector<18x18x1xf32>
    %c0_49 = arith.constant 0 : index
    %c6 = arith.constant 6 : index
    %c0_50 = arith.constant 0 : index
    %74 = vector.load %arg3[%c0_49, %c6, %c0_50] : memref<1x9x48xbf16, #tpu.memory_space<vmem>>, vector<1x1x48xbf16>
    %75 = vector.shape_cast %74 : vector<1x1x48xbf16> to vector<1x48xbf16>
    %76 = arith.extf %75 : vector<1x48xbf16> to vector<1x48xf32>
    %77 = vector.shape_cast %76 : vector<1x48xf32> to vector<1x1x48xf32>
    %78 = vector.broadcast %73 : vector<18x18x1xf32> to vector<18x18x48xf32>
    %79 = vector.broadcast %77 : vector<1x1x48xf32> to vector<18x18x48xf32>
    %80 = arith.mulf %78, %79 : vector<18x18x48xf32>
    %81 = arith.addf %70, %80 : vector<18x18x48xf32>
    %c0_51 = arith.constant 0 : index
    %c0_52 = arith.constant 0 : index
    %c2_53 = arith.constant 2 : index
    %c1_54 = arith.constant 1 : index
    %c0_55 = arith.constant 0 : index
    %82 = vector.load %arg2[%c0_51, %c0_52, %c2_53, %c1_54, %c0_55] : memref<1x1x20x20x1xbf16, #tpu.memory_space<vmem>>, vector<1x1x18x18x1xbf16>
    %83 = vector.shape_cast %82 : vector<1x1x18x18x1xbf16> to vector<18x18x1xbf16>
    %84 = arith.extf %83 : vector<18x18x1xbf16> to vector<18x18x1xf32>
    %c0_56 = arith.constant 0 : index
    %c7 = arith.constant 7 : index
    %c0_57 = arith.constant 0 : index
    %85 = vector.load %arg3[%c0_56, %c7, %c0_57] : memref<1x9x48xbf16, #tpu.memory_space<vmem>>, vector<1x1x48xbf16>
    %86 = vector.shape_cast %85 : vector<1x1x48xbf16> to vector<1x48xbf16>
    %87 = arith.extf %86 : vector<1x48xbf16> to vector<1x48xf32>
    %88 = vector.shape_cast %87 : vector<1x48xf32> to vector<1x1x48xf32>
    %89 = vector.broadcast %84 : vector<18x18x1xf32> to vector<18x18x48xf32>
    %90 = vector.broadcast %88 : vector<1x1x48xf32> to vector<18x18x48xf32>
    %91 = arith.mulf %89, %90 : vector<18x18x48xf32>
    %92 = arith.addf %81, %91 : vector<18x18x48xf32>
    %c0_58 = arith.constant 0 : index
    %c0_59 = arith.constant 0 : index
    %c2_60 = arith.constant 2 : index
    %c2_61 = arith.constant 2 : index
    %c0_62 = arith.constant 0 : index
    %93 = vector.load %arg2[%c0_58, %c0_59, %c2_60, %c2_61, %c0_62] : memref<1x1x20x20x1xbf16, #tpu.memory_space<vmem>>, vector<1x1x18x18x1xbf16>
    %94 = vector.shape_cast %93 : vector<1x1x18x18x1xbf16> to vector<18x18x1xbf16>
    %95 = arith.extf %94 : vector<18x18x1xbf16> to vector<18x18x1xf32>
    %c0_63 = arith.constant 0 : index
    %c8 = arith.constant 8 : index
    %c0_64 = arith.constant 0 : index
    %96 = vector.load %arg3[%c0_63, %c8, %c0_64] : memref<1x9x48xbf16, #tpu.memory_space<vmem>>, vector<1x1x48xbf16>
    %97 = vector.shape_cast %96 : vector<1x1x48xbf16> to vector<1x48xbf16>
    %98 = arith.extf %97 : vector<1x48xbf16> to vector<1x48xf32>
    %99 = vector.shape_cast %98 : vector<1x48xf32> to vector<1x1x48xf32>
    %100 = vector.broadcast %95 : vector<18x18x1xf32> to vector<18x18x48xf32>
    %101 = vector.broadcast %99 : vector<1x1x48xf32> to vector<18x18x48xf32>
    %102 = arith.mulf %100, %101 : vector<18x18x48xf32>
    %103 = arith.addf %92, %102 : vector<18x18x48xf32>
    %cst_65 = arith.constant 0.000000e+00 : f32
    %104 = vector.broadcast %cst_65 : f32 to vector<18x18x48xf32>
    %105 = arith.cmpf ogt, %103, %104 : vector<18x18x48xf32>
    %cst_66 = arith.constant 2.000000e-01 : f32
    %106 = vector.broadcast %cst_66 : f32 to vector<18x18x48xf32>
    %107 = arith.mulf %106, %103 : vector<18x18x48xf32>
    %108 = arith.select %105, %103, %107 : vector<18x18x48xi1>, vector<18x18x48xf32>
    %109 = tpu.iota {dimensions = array<i32: 0>} : vector<18x18x1xi32>
    %110 = tpu.iota {dimensions = array<i32: 1>} : vector<18x18x1xi32>
    %c16_i32 = arith.constant 16 : i32
    %111 = arith.muli %arg1, %c16_i32 : i32
    %c1_i32 = arith.constant 1 : i32
    %112 = arith.subi %111, %c1_i32 : i32
    %113 = vector.broadcast %112 : i32 to vector<18x18x1xi32>
    %114 = arith.addi %113, %109 : vector<18x18x1xi32>
    %c0_i32 = arith.constant 0 : i32
    %115 = vector.broadcast %c0_i32 : i32 to vector<18x18x1xi32>
    %116 = arith.cmpi sge, %114, %115 : vector<18x18x1xi32>
    %c16_i32_67 = arith.constant 16 : i32
    %117 = vector.broadcast %c16_i32_67 : i32 to vector<18x18x1xi32>
    %118 = arith.cmpi slt, %114, %117 : vector<18x18x1xi32>
    %119 = arith.andi %116, %118 : vector<18x18x1xi1>
    %c1_i32_68 = arith.constant 1 : i32
    %120 = vector.broadcast %c1_i32_68 : i32 to vector<18x18x1xi32>
    %121 = arith.cmpi sge, %110, %120 : vector<18x18x1xi32>
    %122 = arith.andi %119, %121 : vector<18x18x1xi1>
    %c16_i32_69 = arith.constant 16 : i32
    %123 = vector.broadcast %c16_i32_69 : i32 to vector<18x18x1xi32>
    %124 = arith.cmpi sle, %110, %123 : vector<18x18x1xi32>
    %125 = arith.andi %122, %124 : vector<18x18x1xi1>
    %cst_70 = arith.constant 0.000000e+00 : f32
    %126 = vector.shape_cast %125 : vector<18x18x1xi1> to vector<18x18x1xi1>
    %127 = vector.broadcast %126 : vector<18x18x1xi1> to vector<18x18x48xi1>
    %128 = vector.broadcast %cst_70 : f32 to vector<18x18x48xf32>
    %129 = arith.select %127, %108, %128 : vector<18x18x48xi1>, vector<18x18x48xf32>
    %130 = arith.truncf %129 : vector<18x18x48xf32> to vector<18x18x48xbf16>
    %c0_71 = arith.constant 0 : index
    %c0_72 = arith.constant 0 : index
    %c0_73 = arith.constant 0 : index
    %131 = vector.load %arg10[%c0_71, %c0_72, %c0_73] : memref<18x18x48xbf16, #tpu.memory_space<vmem>>, vector<18x18x48xbf16>
    tpu.vector_store %arg10[%c0_71, %c0_72, %c0_73], %130 {strides = array<i32>} : memref<18x18x48xbf16, #tpu.memory_space<vmem>>, vector<18x18x48xbf16>,
    %cst_74 = arith.constant 0.000000e+00 : f32
    %132 = vector.broadcast %cst_74 : f32 to vector<256x48xf32>
    %c0_75 = arith.constant 0 : index
    %c0_76 = arith.constant 0 : index
    %c0_77 = arith.constant 0 : index
    %133 = vector.load %arg10[%c0_75, %c0_76, %c0_77] : memref<18x18x48xbf16, #tpu.memory_space<vmem>>, vector<16x16x48xbf16>
    %134 = vector.shape_cast %133 : vector<16x16x48xbf16> to vector<256x48xbf16>
    %c0_78 = arith.constant 0 : index
    %c0_79 = arith.constant 0 : index
    %c0_80 = arith.constant 0 : index
    %135 = vector.load %arg5[%c0_78, %c0_79, %c0_80] : memref<9x48x48xbf16, #tpu.memory_space<vmem>>, vector<1x48x48xbf16>
    %136 = vector.shape_cast %135 : vector<1x48x48xbf16> to vector<48x48xbf16>
    %cst_81 = arith.constant dense<0.000000e+00> : vector<256x48xf32>
    %137 = tpu.matmul %134, %136, %cst_81 {dimension_numbers = #tpu.dot_dimension_numbers<[1], [0], [0], [1], [0, 0, 1, 1], [], []>} : vector<256x48xbf16>, vector<48x48xbf16>, vector<256x48xf32> -> vector<256x48xf32>
    %138 = arith.addf %132, %137 : vector<256x48xf32>
    %c0_82 = arith.constant 0 : index
    %c1_83 = arith.constant 1 : index
    %c0_84 = arith.constant 0 : index
    %139 = vector.load %arg10[%c0_82, %c1_83, %c0_84] : memref<18x18x48xbf16, #tpu.memory_space<vmem>>, vector<16x16x48xbf16>
    %140 = vector.shape_cast %139 : vector<16x16x48xbf16> to vector<256x48xbf16>
    %c1_85 = arith.constant 1 : index
    %c0_86 = arith.constant 0 : index
    %c0_87 = arith.constant 0 : index
    %141 = vector.load %arg5[%c1_85, %c0_86, %c0_87] : memref<9x48x48xbf16, #tpu.memory_space<vmem>>, vector<1x48x48xbf16>
    %142 = vector.shape_cast %141 : vector<1x48x48xbf16> to vector<48x48xbf16>
    %cst_88 = arith.constant dense<0.000000e+00> : vector<256x48xf32>
    %143 = tpu.matmul %140, %142, %cst_88 {dimension_numbers = #tpu.dot_dimension_numbers<[1], [0], [0], [1], [0, 0, 1, 1], [], []>} : vector<256x48xbf16>, vector<48x48xbf16>, vector<256x48xf32> -> vector<256x48xf32>
    %144 = arith.addf %138, %143 : vector<256x48xf32>
    %c0_89 = arith.constant 0 : index
    %c2_90 = arith.constant 2 : index
    %c0_91 = arith.constant 0 : index
    %145 = vector.load %arg10[%c0_89, %c2_90, %c0_91] : memref<18x18x48xbf16, #tpu.memory_space<vmem>>, vector<16x16x48xbf16>
    %146 = vector.shape_cast %145 : vector<16x16x48xbf16> to vector<256x48xbf16>
    %c2_92 = arith.constant 2 : index
    %c0_93 = arith.constant 0 : index
    %c0_94 = arith.constant 0 : index
    %147 = vector.load %arg5[%c2_92, %c0_93, %c0_94] : memref<9x48x48xbf16, #tpu.memory_space<vmem>>, vector<1x48x48xbf16>
    %148 = vector.shape_cast %147 : vector<1x48x48xbf16> to vector<48x48xbf16>
    %cst_95 = arith.constant dense<0.000000e+00> : vector<256x48xf32>
    %149 = tpu.matmul %146, %148, %cst_95 {dimension_numbers = #tpu.dot_dimension_numbers<[1], [0], [0], [1], [0, 0, 1, 1], [], []>} : vector<256x48xbf16>, vector<48x48xbf16>, vector<256x48xf32> -> vector<256x48xf32>
    %150 = arith.addf %144, %149 : vector<256x48xf32>
    %c1_96 = arith.constant 1 : index
    %c0_97 = arith.constant 0 : index
    %c0_98 = arith.constant 0 : index
    %151 = vector.load %arg10[%c1_96, %c0_97, %c0_98] : memref<18x18x48xbf16, #tpu.memory_space<vmem>>, vector<16x16x48xbf16>
    %152 = vector.shape_cast %151 : vector<16x16x48xbf16> to vector<256x48xbf16>
    %c3_99 = arith.constant 3 : index
    %c0_100 = arith.constant 0 : index
    %c0_101 = arith.constant 0 : index
    %153 = vector.load %arg5[%c3_99, %c0_100, %c0_101] : memref<9x48x48xbf16, #tpu.memory_space<vmem>>, vector<1x48x48xbf16>
    %154 = vector.shape_cast %153 : vector<1x48x48xbf16> to vector<48x48xbf16>
    %cst_102 = arith.constant dense<0.000000e+00> : vector<256x48xf32>
    %155 = tpu.matmul %152, %154, %cst_102 {dimension_numbers = #tpu.dot_dimension_numbers<[1], [0], [0], [1], [0, 0, 1, 1], [], []>} : vector<256x48xbf16>, vector<48x48xbf16>, vector<256x48xf32> -> vector<256x48xf32>
    %156 = arith.addf %150, %155 : vector<256x48xf32>
    %c1_103 = arith.constant 1 : index
    %c1_104 = arith.constant 1 : index
    %c0_105 = arith.constant 0 : index
    %157 = vector.load %arg10[%c1_103, %c1_104, %c0_105] : memref<18x18x48xbf16, #tpu.memory_space<vmem>>, vector<16x16x48xbf16>
    %158 = vector.shape_cast %157 : vector<16x16x48xbf16> to vector<256x48xbf16>
    %c4_106 = arith.constant 4 : index
    %c0_107 = arith.constant 0 : index
    %c0_108 = arith.constant 0 : index
    %159 = vector.load %arg5[%c4_106, %c0_107, %c0_108] : memref<9x48x48xbf16, #tpu.memory_space<vmem>>, vector<1x48x48xbf16>
    %160 = vector.shape_cast %159 : vector<1x48x48xbf16> to vector<48x48xbf16>
    %cst_109 = arith.constant dense<0.000000e+00> : vector<256x48xf32>
    %161 = tpu.matmul %158, %160, %cst_109 {dimension_numbers = #tpu.dot_dimension_numbers<[1], [0], [0], [1], [0, 0, 1, 1], [], []>} : vector<256x48xbf16>, vector<48x48xbf16>, vector<256x48xf32> -> vector<256x48xf32>
    %162 = arith.addf %156, %161 : vector<256x48xf32>
    %c1_110 = arith.constant 1 : index
    %c2_111 = arith.constant 2 : index
    %c0_112 = arith.constant 0 : index
    %163 = vector.load %arg10[%c1_110, %c2_111, %c0_112] : memref<18x18x48xbf16, #tpu.memory_space<vmem>>, vector<16x16x48xbf16>
    %164 = vector.shape_cast %163 : vector<16x16x48xbf16> to vector<256x48xbf16>
    %c5_113 = arith.constant 5 : index
    %c0_114 = arith.constant 0 : index
    %c0_115 = arith.constant 0 : index
    %165 = vector.load %arg5[%c5_113, %c0_114, %c0_115] : memref<9x48x48xbf16, #tpu.memory_space<vmem>>, vector<1x48x48xbf16>
    %166 = vector.shape_cast %165 : vector<1x48x48xbf16> to vector<48x48xbf16>
    %cst_116 = arith.constant dense<0.000000e+00> : vector<256x48xf32>
    %167 = tpu.matmul %164, %166, %cst_116 {dimension_numbers = #tpu.dot_dimension_numbers<[1], [0], [0], [1], [0, 0, 1, 1], [], []>} : vector<256x48xbf16>, vector<48x48xbf16>, vector<256x48xf32> -> vector<256x48xf32>
    %168 = arith.addf %162, %167 : vector<256x48xf32>
    %c2_117 = arith.constant 2 : index
    %c0_118 = arith.constant 0 : index
    %c0_119 = arith.constant 0 : index
    %169 = vector.load %arg10[%c2_117, %c0_118, %c0_119] : memref<18x18x48xbf16, #tpu.memory_space<vmem>>, vector<16x16x48xbf16>
    %170 = vector.shape_cast %169 : vector<16x16x48xbf16> to vector<256x48xbf16>
    %c6_120 = arith.constant 6 : index
    %c0_121 = arith.constant 0 : index
    %c0_122 = arith.constant 0 : index
    %171 = vector.load %arg5[%c6_120, %c0_121, %c0_122] : memref<9x48x48xbf16, #tpu.memory_space<vmem>>, vector<1x48x48xbf16>
    %172 = vector.shape_cast %171 : vector<1x48x48xbf16> to vector<48x48xbf16>
    %cst_123 = arith.constant dense<0.000000e+00> : vector<256x48xf32>
    %173 = tpu.matmul %170, %172, %cst_123 {dimension_numbers = #tpu.dot_dimension_numbers<[1], [0], [0], [1], [0, 0, 1, 1], [], []>} : vector<256x48xbf16>, vector<48x48xbf16>, vector<256x48xf32> -> vector<256x48xf32>
    %174 = arith.addf %168, %173 : vector<256x48xf32>
    %c2_124 = arith.constant 2 : index
    %c1_125 = arith.constant 1 : index
    %c0_126 = arith.constant 0 : index
    %175 = vector.load %arg10[%c2_124, %c1_125, %c0_126] : memref<18x18x48xbf16, #tpu.memory_space<vmem>>, vector<16x16x48xbf16>
    %176 = vector.shape_cast %175 : vector<16x16x48xbf16> to vector<256x48xbf16>
    %c7_127 = arith.constant 7 : index
    %c0_128 = arith.constant 0 : index
    %c0_129 = arith.constant 0 : index
    %177 = vector.load %arg5[%c7_127, %c0_128, %c0_129] : memref<9x48x48xbf16, #tpu.memory_space<vmem>>, vector<1x48x48xbf16>
    %178 = vector.shape_cast %177 : vector<1x48x48xbf16> to vector<48x48xbf16>
    %cst_130 = arith.constant dense<0.000000e+00> : vector<256x48xf32>
    %179 = tpu.matmul %176, %178, %cst_130 {dimension_numbers = #tpu.dot_dimension_numbers<[1], [0], [0], [1], [0, 0, 1, 1], [], []>} : vector<256x48xbf16>, vector<48x48xbf16>, vector<256x48xf32> -> vector<256x48xf32>
    %180 = arith.addf %174, %179 : vector<256x48xf32>
    %c2_131 = arith.constant 2 : index
    %c2_132 = arith.constant 2 : index
    %c0_133 = arith.constant 0 : index
    %181 = vector.load %arg10[%c2_131, %c2_132, %c0_133] : memref<18x18x48xbf16, #tpu.memory_space<vmem>>, vector<16x16x48xbf16>
    %182 = vector.shape_cast %181 : vector<16x16x48xbf16> to vector<256x48xbf16>
    %c8_134 = arith.constant 8 : index
    %c0_135 = arith.constant 0 : index
    %c0_136 = arith.constant 0 : index
    %183 = vector.load %arg5[%c8_134, %c0_135, %c0_136] : memref<9x48x48xbf16, #tpu.memory_space<vmem>>, vector<1x48x48xbf16>
    %184 = vector.shape_cast %183 : vector<1x48x48xbf16> to vector<48x48xbf16>
    %cst_137 = arith.constant dense<0.000000e+00> : vector<256x48xf32>
    %185 = tpu.matmul %182, %184, %cst_137 {dimension_numbers = #tpu.dot_dimension_numbers<[1], [0], [0], [1], [0, 0, 1, 1], [], []>} : vector<256x48xbf16>, vector<48x48xbf16>, vector<256x48xf32> -> vector<256x48xf32>
    %186 = arith.addf %180, %185 : vector<256x48xf32>
    %c0_138 = arith.constant 0 : index
    %c0_139 = arith.constant 0 : index
    %187 = vector.load %arg6[%c0_138, %c0_139] : memref<1x48xf32, #tpu.memory_space<vmem>>, vector<1x48xf32>
    %188 = vector.broadcast %187 : vector<1x48xf32> to vector<256x48xf32>
    %189 = arith.addf %186, %188 : vector<256x48xf32>
    %cst_140 = arith.constant 0.000000e+00 : f32
    %190 = vector.broadcast %cst_140 : f32 to vector<256x48xf32>
    %191 = arith.cmpf ogt, %189, %190 : vector<256x48xf32>
    %cst_141 = arith.constant 2.000000e-01 : f32
    %192 = vector.broadcast %cst_141 : f32 to vector<256x48xf32>
    %193 = arith.mulf %192, %189 : vector<256x48xf32>
    %194 = arith.select %191, %189, %193 : vector<256x48xi1>, vector<256x48xf32>
    %195 = arith.truncf %194 : vector<256x48xf32> to vector<256x48xbf16>
    %c0_142 = arith.constant 0 : index
    %c0_143 = arith.constant 0 : index
    %196 = vector.load %arg7[%c0_142, %c0_143] : memref<48x1xbf16, #tpu.memory_space<vmem>>, vector<48x1xbf16>
    %cst_144 = arith.constant dense<0.000000e+00> : vector<256x1xf32>
    %197 = tpu.matmul %195, %196, %cst_144 {dimension_numbers = #tpu.dot_dimension_numbers<[1], [0], [0], [1], [0, 0, 1, 1], [], []>} : vector<256x48xbf16>, vector<48x1xbf16>, vector<256x1xf32> -> vector<256x1xf32>
    %c0_145 = arith.constant 0 : index
    %c0_146 = arith.constant 0 : index
    %198 = vector.load %arg8[%c0_145, %c0_146] : memref<1x1xf32, #tpu.memory_space<vmem>>, vector<1x1xf32>
    %199 = vector.broadcast %198 : vector<1x1xf32> to vector<256x1xf32>
    %200 = arith.addf %197, %199 : vector<256x1xf32>
    %c0_147 = arith.constant 0 : index
    %c0_148 = arith.constant 0 : index
    %c0_149 = arith.constant 0 : index
    %c0_150 = arith.constant 0 : index
    %201 = vector.load %arg9[%c0_147, %c0_148, %c0_149, %c0_150] : memref<1x1x256x1xf32, #tpu.memory_space<vmem>>, vector<1x1x256x1xf32>
    %202 = vector.shape_cast %201 : vector<1x1x256x1xf32> to vector<256x1xf32>
    %203 = vector.shape_cast %200 : vector<256x1xf32> to vector<1x1x256x1xf32>
    tpu.vector_store %arg9[%c0_147, %c0_148, %c0_149, %c0_150], %203 {strides = array<i32>} : memref<1x1x256x1xf32, #tpu.memory_space<vmem>>, vector<1x1x256x1xf32>,
    return
  }
  func.func @transform_0(%arg0: i32, %arg1: i32) -> (i32, i32, i32, i32, i32) {
    %c0_i32 = arith.constant 0 : i32
    %c0_i32_0 = arith.constant 0 : i32
    %c0_i32_1 = arith.constant 0 : i32
    %c0_i32_2 = arith.constant 0 : i32
    return %arg0, %arg1, %c0_i32, %c0_i32_0, %c0_i32_1 : i32, i32, i32, i32, i32
  }
  func.func @transform_1(%arg0: i32, %arg1: i32) -> (i32, i32, i32) {
    %c0_i32 = arith.constant 0 : i32
    %c0_i32_0 = arith.constant 0 : i32
    %c0_i32_1 = arith.constant 0 : i32
    %c0_i32_2 = arith.constant 0 : i32
    return %c0_i32, %c0_i32_0, %c0_i32_1 : i32, i32, i32
  }
  func.func @transform_2(%arg0: i32, %arg1: i32) -> (i32, i32) {
    %c0_i32 = arith.constant 0 : i32
    %c0_i32_0 = arith.constant 0 : i32
    %c0_i32_1 = arith.constant 0 : i32
    return %c0_i32, %c0_i32_0 : i32, i32
  }
  func.func @transform_3(%arg0: i32, %arg1: i32) -> (i32, i32, i32) {
    %c0_i32 = arith.constant 0 : i32
    %c0_i32_0 = arith.constant 0 : i32
    %c0_i32_1 = arith.constant 0 : i32
    %c0_i32_2 = arith.constant 0 : i32
    return %c0_i32, %c0_i32_0, %c0_i32_1 : i32, i32, i32
  }
  func.func @transform_4(%arg0: i32, %arg1: i32) -> (i32, i32) {
    %c0_i32 = arith.constant 0 : i32
    %c0_i32_0 = arith.constant 0 : i32
    %c0_i32_1 = arith.constant 0 : i32
    return %c0_i32, %c0_i32_0 : i32, i32
  }
  func.func @transform_5(%arg0: i32, %arg1: i32) -> (i32, i32) {
    %c0_i32 = arith.constant 0 : i32
    %c0_i32_0 = arith.constant 0 : i32
    %c0_i32_1 = arith.constant 0 : i32
    return %c0_i32, %c0_i32_0 : i32, i32
  }
  func.func @transform_6(%arg0: i32, %arg1: i32) -> (i32, i32) {
    %c0_i32 = arith.constant 0 : i32
    %c0_i32_0 = arith.constant 0 : i32
    %c0_i32_1 = arith.constant 0 : i32
    return %c0_i32, %c0_i32_0 : i32, i32
  }
  func.func @transform_7(%arg0: i32, %arg1: i32) -> (i32, i32, i32, i32) {
    %c0_i32 = arith.constant 0 : i32
    %c0_i32_0 = arith.constant 0 : i32
    %c0_i32_1 = arith.constant 0 : i32
    return %arg0, %arg1, %c0_i32, %c0_i32_0 : i32, i32, i32, i32
  }
}

</mosaic_0001>

<llo_original>
// kernel: network_forward.1
$region0: #{network_forward.1}
  #allocation0 [shape = 'u32[]', space=smem, size = 0x4, offset = 0x4, fixed_abs, tag = 'smem constant byte address 0x4 - core index']
  #allocation1 [shape = 'u32[72,128]{1,0:T(1,128)}', space=vmem, size = 0x9000, scoped, tag = 'internal scratch']
  #allocation2 [shape = 'bf16[18,18,48]{2,1,0:T(8,128)(2,1)}', space=vmem, size = 0x1b000, scoped, tag = 'scratch operand']
  #allocation3 [shape = 'f32[1,1]{1,0:T(1,128)S(1)}', space=vmem, size = 0x200, scoped, tag = 'scoped memory for network_forward.1']
  %s0 = inlined_call_operand.vmem [shape: bf16[1,1,20,20,1], index: 0, kind: input, shape index: {}]
  %s1 = inlined_call_operand.vmem [shape: bf16[1,9,48], index: 1, kind: input, shape index: {}]
  %s2 = inlined_call_operand.vmem [shape: f32[1,48], index: 2, kind: input, shape index: {}]
  %s3 = inlined_call_operand.vmem [shape: bf16[9,48,48], index: 3, kind: input, shape index: {}]
  %s4 = inlined_call_operand.vmem [shape: f32[1,48], index: 4, kind: input, shape index: {}]
  %s5 = inlined_call_operand.vmem [shape: bf16[48,1], index: 5, kind: input, shape index: {}]
  %s6 = inlined_call_operand.<no memory space> [shape: f32[1,1], index: 6, kind: input, shape index: {}]
  %s7 = inlined_call_operand.vmem [shape: f32[1,1,256,1], index: 7, kind: output, shape index: {}]
  %s8 = sld [smem:[#allocation0]]
  $region38: #{network_forward.1} parent=0
    _
  %s10 = ssub.s32 1, %s8
  %s11 = scalar_select 0, %s10, %s8
  %v12 = vstv %s6
  %13 = vst [vmem:[#allocation3] sm:$0x1] %v12
  // Predicated region
  $region2: #{network_forward.1} parent=0 // pred_check
    _
  $region3: #{network_forward.1} parent=0 // pred_check_branch
    %15 = sbr.rel (0) target = $region5
  $region4: #{network_forward.1} parent=0 // pred_region
    _
  $region5: #{network_forward.1} parent=0 // pred_fallthru
    _
  // Predicated region
  $region6: #{network_forward.1} parent=0 // pred_check
    _
  $region7: #{network_forward.1} parent=0 // pred_check_branch
    %17 = sbr.rel (0) target = $region9
  $region8: #{network_forward.1} parent=0 // pred_region
    _
  $region9: #{network_forward.1} parent=0 // pred_fallthru
    _
  // Predicated region
  $region10: #{network_forward.1} parent=0 // pred_check
    _
  $region11: #{network_forward.1} parent=0 // pred_check_branch
    %19 = sbr.rel (0) target = $region13
  $region12: #{network_forward.1} parent=0 // pred_region
    _
  $region13: #{network_forward.1} parent=0 // pred_fallthru
    _
  // Predicated region
  $region14: #{network_forward.1} parent=0 // pred_check
    _
  $region15: #{network_forward.1} parent=0 // pred_check_branch
    %21 = sbr.rel (0) target = $region17
  $region16: #{network_forward.1} parent=0 // pred_region
    _
  $region17: #{network_forward.1} parent=0 // pred_fallthru
    _
  // Predicated region
  $region18: #{network_forward.1} parent=0 // pred_check
    _
  $region19: #{network_forward.1} parent=0 // pred_check_branch
    %23 = sbr.rel (0) target = $region21
  $region20: #{network_forward.1} parent=0 // pred_region
    _
  $region21: #{network_forward.1} parent=0 // pred_fallthru
    _
  // Predicated region
  $region22: #{network_forward.1} parent=0 // pred_check
    _
  $region23: #{network_forward.1} parent=0 // pred_check_branch
    %25 = sbr.rel (0) target = $region25
  $region24: #{network_forward.1} parent=0 // pred_region
    _
  $region25: #{network_forward.1} parent=0 // pred_fallthru
    _
  // Predicated region
  $region26: #{network_forward.1} parent=0 // pred_check
    _
  $region27: #{network_forward.1} parent=0 // pred_check_branch
    %27 = sbr.rel (0) target = $region29
  $region28: #{network_forward.1} parent=0 // pred_region
    _
  $region29: #{network_forward.1} parent=0 // pred_fallthru
    _
  %v29 = vld [vmem:[%s2] sm:$0x1]
  %v31 = vperm.slane %v29, 0
  %v33 = vadd.f32 %v31, 0.0
  %v34 = vld [vmem:[%s0] sm:$0xf]
  %v35 = vld [vmem:[%s0 + $0x4] sm:$0xf]
  %v36 = vld [vmem:[%s0 + $0x8] sm:$0x1]
  %v37 = vld [vmem:[%s0 + $0xc] sm:$0xf]
  %v38 = vld [vmem:[%s0 + $0x10] sm:$0xf]
  %v39 = vld [vmem:[%s0 + $0x14] sm:$0x1]
  %v40 = vld [vmem:[%s0 + $0x18] sm:$0xf]
  %v41 = vld [vmem:[%s0 + $0x1c] sm:$0xf]
  %v42 = vld [vmem:[%s0 + $0x20] sm:$0x1]
  %v43 = vld [vmem:[%s0 + $0x24] sm:$0xf]
  %v44 = vld [vmem:[%s0 + $0x28] sm:$0xf]
  %v45 = vld [vmem:[%s0 + $0x2c] sm:$0x1]
  %v46 = vld [vmem:[%s0 + $0x30] sm:$0xf]
  %v47 = vld [vmem:[%s0 + $0x34] sm:$0xf]
  %v48 = vld [vmem:[%s0 + $0x38] sm:$0x1]
  %v49 = vld [vmem:[%s0 + $0x3c] sm:$0xf]
  %v50 = vld [vmem:[%s0 + $0x40] sm:$0xf]
  %v51 = vld [vmem:[%s0 + $0x44] sm:$0x1]
  %v52 = vld [vmem:[%s0 + $0x48] sm:$0xf]
  %v53 = vld [vmem:[%s0 + $0x4c] sm:$0xf]
  %v54 = vld [vmem:[%s0 + $0x50] sm:$0x1]
  %v55 = vld [vmem:[%s0 + $0x54] sm:$0xf]
  %v56 = vld [vmem:[%s0 + $0x58] sm:$0xf]
  %v57 = vld [vmem:[%s0 + $0x5c] sm:$0x1]
  %v58 = vld [vmem:[%s0 + $0x60] sm:$0xf]
  %v59 = vld [vmem:[%s0 + $0x64] sm:$0xf]
  %v60 = vld [vmem:[%s0 + $0x68] sm:$0x1]
  %v61 = vld [vmem:[%s0 + $0x6c] sm:$0xf]
  %v62 = vld [vmem:[%s0 + $0x70] sm:$0xf]
  %v63 = vld [vmem:[%s0 + $0x74] sm:$0x1]
  %v64 = vld [vmem:[%s0 + $0x78] sm:$0xf]
  %v65 = vld [vmem:[%s0 + $0x7c] sm:$0xf]
  %v66 = vld [vmem:[%s0 + $0x80] sm:$0x1]
  %v67 = vld [vmem:[%s0 + $0x84] sm:$0xf]
  %v68 = vld [vmem:[%s0 + $0x88] sm:$0xf]
  %v69 = vld [vmem:[%s0 + $0x8c] sm:$0x1]
  %v70 = vld [vmem:[%s0 + $0x90] sm:$0xf]
  %v71 = vld [vmem:[%s0 + $0x94] sm:$0xf]
  %v72 = vld [vmem:[%s0 + $0x98] sm:$0x1]
  %v73 = vld [vmem:[%s0 + $0x9c] sm:$0xf]
  %v74 = vld [vmem:[%s0 + $0xa0] sm:$0xf]
  %v75 = vld [vmem:[%s0 + $0xa4] sm:$0x1]
  %v76 = vld [vmem:[%s0 + $0xa8] sm:$0xf]
  %v77 = vld [vmem:[%s0 + $0xac] sm:$0xf]
  %v78 = vld [vmem:[%s0 + $0xb0] sm:$0x1]
  %v79 = vld [vmem:[%s0 + $0xb4] sm:$0xf]
  %v80 = vld [vmem:[%s0 + $0xb8] sm:$0xf]
  %v81 = vld [vmem:[%s0 + $0xbc] sm:$0x1]
  %v82 = vld [vmem:[%s0 + $0xc0] sm:$0xf]
  %v83 = vld [vmem:[%s0 + $0xc4] sm:$0xf]
  %v84 = vld [vmem:[%s0 + $0xc8] sm:$0x1]
  %v85 = vld [vmem:[%s0 + $0xcc] sm:$0xf]
  %v86 = vld [vmem:[%s0 + $0xd0] sm:$0xf]
  %v87 = vld [vmem:[%s0 + $0xd4] sm:$0x1]
  %v88 = vunpack.c.l.bf16 %v34
  %v89 = vunpack.c.l.bf16 %v35
  %v90 = vunpack.c.l.bf16 %v36
  %v91 = vunpack.c.l.bf16 %v37
  %v92 = vunpack.c.l.bf16 %v38
  %v93 = vunpack.c.l.bf16 %v39
  %v94 = vunpack.c.l.bf16 %v40
  %v95 = vunpack.c.l.bf16 %v41
  %v96 = vunpack.c.l.bf16 %v42
  %v97 = vunpack.c.l.bf16 %v43
  %v98 = vunpack.c.l.bf16 %v44
  %v99 = vunpack.c.l.bf16 %v45
  %v100 = vunpack.c.l.bf16 %v46
  %v101 = vunpack.c.l.bf16 %v47
  %v102 = vunpack.c.l.bf16 %v48
  %v103 = vunpack.c.l.bf16 %v49
  %v104 = vunpack.c.l.bf16 %v50
  %v105 = vunpack.c.l.bf16 %v51
  %v106 = vunpack.c.l.bf16 %v52
  %v107 = vunpack.c.l.bf16 %v53
  %v108 = vunpack.c.l.bf16 %v54
  %v109 = vunpack.c.l.bf16 %v55
  %v110 = vunpack.c.l.bf16 %v56
  %v111 = vunpack.c.l.bf16 %v57
  %v112 = vunpack.c.l.bf16 %v58
  %v113 = vunpack.c.l.bf16 %v59
  %v114 = vunpack.c.l.bf16 %v60
  %v115 = vunpack.c.l.bf16 %v61
  %v116 = vunpack.c.l.bf16 %v62
  %v117 = vunpack.c.l.bf16 %v63
  %v118 = vunpack.c.l.bf16 %v64
  %v119 = vunpack.c.l.bf16 %v65
  %v120 = vunpack.c.l.bf16 %v66
  %v121 = vunpack.c.l.bf16 %v67
  %v122 = vunpack.c.l.bf16 %v68
  %v123 = vunpack.c.l.bf16 %v69
  %v124 = vunpack.c.l.bf16 %v70
  %v125 = vunpack.c.l.bf16 %v71
  %v126 = vunpack.c.l.bf16 %v72
  %v127 = vunpack.c.l.bf16 %v73
  %v128 = vunpack.c.l.bf16 %v74
  %v129 = vunpack.c.l.bf16 %v75
  %v130 = vunpack.c.l.bf16 %v76
  %v131 = vunpack.c.l.bf16 %v77
  %v132 = vunpack.c.l.bf16 %v78
  %v133 = vunpack.c.l.bf16 %v79
  %v134 = vunpack.c.l.bf16 %v80
  %v135 = vunpack.c.l.bf16 %v81
  %v136 = vunpack.c.l.bf16 %v82
  %v137 = vunpack.c.l.bf16 %v83
  %v138 = vunpack.c.l.bf16 %v84
  %v139 = vunpack.c.l.bf16 %v85
  %v140 = vunpack.c.l.bf16 %v86
  %v141 = vunpack.c.l.bf16 %v87
  %v142 = vld [vmem:[%s1] sm:$0x1]
  %v143 = vunpack.c.l.bf16 %v142
  %145 = vset.pattern.permute.xlu0 0
  %146 = vperm.xlu0 %145, %v88
  %v147 = vpop.permute.xlu0 %146
  %150 = vset.pattern.permute.xlu0 0
  %151 = vperm.xlu0 %150, %v89
  %v152 = vpop.permute.xlu0 %151
  %155 = vset.pattern.permute.xlu0 0
  %156 = vperm.xlu0 %155, %v90
  %v157 = vpop.permute.xlu0 %156
  %160 = vset.pattern.permute.xlu0 0
  %161 = vperm.xlu0 %160, %v91
  %v162 = vpop.permute.xlu0 %161
  %165 = vset.pattern.permute.xlu0 0
  %166 = vperm.xlu0 %165, %v92
  %v167 = vpop.permute.xlu0 %166
  %170 = vset.pattern.permute.xlu0 0
  %171 = vperm.xlu0 %170, %v93
  %v172 = vpop.permute.xlu0 %171
  %175 = vset.pattern.permute.xlu0 0
  %176 = vperm.xlu0 %175, %v94
  %v177 = vpop.permute.xlu0 %176
  %180 = vset.pattern.permute.xlu0 0
  %181 = vperm.xlu0 %180, %v95
  %v182 = vpop.permute.xlu0 %181
  %185 = vset.pattern.permute.xlu0 0
  %186 = vperm.xlu0 %185, %v96
  %v187 = vpop.permute.xlu0 %186
  %190 = vset.pattern.permute.xlu0 0
  %191 = vperm.xlu0 %190, %v97
  %v192 = vpop.permute.xlu0 %191
  %195 = vset.pattern.permute.xlu0 0
  %196 = vperm.xlu0 %195, %v98
  %v197 = vpop.permute.xlu0 %196
  %200 = vset.pattern.permute.xlu0 0
  %201 = vperm.xlu0 %200, %v99
  %v202 = vpop.permute.xlu0 %201
  %205 = vset.pattern.permute.xlu0 0
  %206 = vperm.xlu0 %205, %v100
  %v207 = vpop.permute.xlu0 %206
  %210 = vset.pattern.permute.xlu0 0
  %211 = vperm.xlu0 %210, %v101
  %v212 = vpop.permute.xlu0 %211
  %215 = vset.pattern.permute.xlu0 0
  %216 = vperm.xlu0 %215, %v102
  %v217 = vpop.permute.xlu0 %216
  %220 = vset.pattern.permute.xlu0 0
  %221 = vperm.xlu0 %220, %v103
  %v222 = vpop.permute.xlu0 %221
  %225 = vset.pattern.permute.xlu0 0
  %226 = vperm.xlu0 %225, %v104
  %v227 = vpop.permute.xlu0 %226
  %230 = vset.pattern.permute.xlu0 0
  %231 = vperm.xlu0 %230, %v105
  %v232 = vpop.permute.xlu0 %231
  %235 = vset.pattern.permute.xlu0 0
  %236 = vperm.xlu0 %235, %v106
  %v237 = vpop.permute.xlu0 %236
  %240 = vset.pattern.permute.xlu0 0
  %241 = vperm.xlu0 %240, %v107
  %v242 = vpop.permute.xlu0 %241
  %245 = vset.pattern.permute.xlu0 0
  %246 = vperm.xlu0 %245, %v108
  %v247 = vpop.permute.xlu0 %246
  %250 = vset.pattern.permute.xlu0 0
  %251 = vperm.xlu0 %250, %v109
  %v252 = vpop.permute.xlu0 %251
  %255 = vset.pattern.permute.xlu0 0
  %256 = vperm.xlu0 %255, %v110
  %v257 = vpop.permute.xlu0 %256
  %260 = vset.pattern.permute.xlu0 0
  %261 = vperm.xlu0 %260, %v111
  %v262 = vpop.permute.xlu0 %261
  %265 = vset.pattern.permute.xlu0 0
  %266 = vperm.xlu0 %265, %v112
  %v267 = vpop.permute.xlu0 %266
  %270 = vset.pattern.permute.xlu0 0
  %271 = vperm.xlu0 %270, %v113
  %v272 = vpop.permute.xlu0 %271
  %275 = vset.pattern.permute.xlu0 0
  %276 = vperm.xlu0 %275, %v114
  %v277 = vpop.permute.xlu0 %276
  %280 = vset.pattern.permute.xlu0 0
  %281 = vperm.xlu0 %280, %v115
  %v282 = vpop.permute.xlu0 %281
  %285 = vset.pattern.permute.xlu0 0
  %286 = vperm.xlu0 %285, %v116
  %v287 = vpop.permute.xlu0 %286
  %290 = vset.pattern.permute.xlu0 0
  %291 = vperm.xlu0 %290, %v117
  %v292 = vpop.permute.xlu0 %291
  %295 = vset.pattern.permute.xlu0 0
  %296 = vperm.xlu0 %295, %v118
  %v297 = vpop.permute.xlu0 %296
  %300 = vset.pattern.permute.xlu0 0
  %301 = vperm.xlu0 %300, %v119
  %v302 = vpop.permute.xlu0 %301
  %305 = vset.pattern.permute.xlu0 0
  %306 = vperm.xlu0 %305, %v120
  %v307 = vpop.permute.xlu0 %306
  %310 = vset.pattern.permute.xlu0 0
  %311 = vperm.xlu0 %310, %v121
  %v312 = vpop.permute.xlu0 %311
  %315 = vset.pattern.permute.xlu0 0
  %316 = vperm.xlu0 %315, %v122
  %v317 = vpop.permute.xlu0 %316
  %320 = vset.pattern.permute.xlu0 0
  %321 = vperm.xlu0 %320, %v123
  %v322 = vpop.permute.xlu0 %321
  %325 = vset.pattern.permute.xlu0 0
  %326 = vperm.xlu0 %325, %v124
  %v327 = vpop.permute.xlu0 %326
  %330 = vset.pattern.permute.xlu0 0
  %331 = vperm.xlu0 %330, %v125
  %v332 = vpop.permute.xlu0 %331
  %335 = vset.pattern.permute.xlu0 0
  %336 = vperm.xlu0 %335, %v126
  %v337 = vpop.permute.xlu0 %336
  %340 = vset.pattern.permute.xlu0 0
  %341 = vperm.xlu0 %340, %v127
  %v342 = vpop.permute.xlu0 %341
  %345 = vset.pattern.permute.xlu0 0
  %346 = vperm.xlu0 %345, %v128
  %v347 = vpop.permute.xlu0 %346
  %350 = vset.pattern.permute.xlu0 0
  %351 = vperm.xlu0 %350, %v129
  %v352 = vpop.permute.xlu0 %351
  %355 = vset.pattern.permute.xlu0 0
  %356 = vperm.xlu0 %355, %v130
  %v357 = vpop.permute.xlu0 %356
  %360 = vset.pattern.permute.xlu0 0
  %361 = vperm.xlu0 %360, %v131
  %v362 = vpop.permute.xlu0 %361
  %365 = vset.pattern.permute.xlu0 0
  %366 = vperm.xlu0 %365, %v132
  %v367 = vpop.permute.xlu0 %366
  %370 = vset.pattern.permute.xlu0 0
  %371 = vperm.xlu0 %370, %v133
  %v372 = vpop.permute.xlu0 %371
  %375 = vset.pattern.permute.xlu0 0
  %376 = vperm.xlu0 %375, %v134
  %v377 = vpop.permute.xlu0 %376
  %380 = vset.pattern.permute.xlu0 0
  %381 = vperm.xlu0 %380, %v135
  %v382 = vpop.permute.xlu0 %381
  %385 = vset.pattern.permute.xlu0 0
  %386 = vperm.xlu0 %385, %v136
  %v387 = vpop.permute.xlu0 %386
  %390 = vset.pattern.permute.xlu0 0
  %391 = vperm.xlu0 %390, %v137
  %v392 = vpop.permute.xlu0 %391
  %395 = vset.pattern.permute.xlu0 0
  %396 = vperm.xlu0 %395, %v138
  %v397 = vpop.permute.xlu0 %396
  %400 = vset.pattern.permute.xlu0 0
  %401 = vperm.xlu0 %400, %v139
  %v402 = vpop.permute.xlu0 %401
  %405 = vset.pattern.permute.xlu0 0
  %406 = vperm.xlu0 %405, %v140
  %v407 = vpop.permute.xlu0 %406
  %410 = vset.pattern.permute.xlu0 0
  %411 = vperm.xlu0 %410, %v141
  %v412 = vpop.permute.xlu0 %411
  %v414 = vperm.slane %v143, 0
  %v415 = vmul.f32 %v147, %v414
  %v416 = vmul.f32 %v152, %v414
  %v417 = vmul.f32 %v157, %v414
  %v418 = vmul.f32 %v162, %v414
  %v419 = vmul.f32 %v167, %v414
  %v420 = vmul.f32 %v172, %v414
  %v421 = vmul.f32 %v177, %v414
  %v422 = vmul.f32 %v182, %v414
  %v423 = vmul.f32 %v187, %v414
  %v424 = vmul.f32 %v192, %v414
  %v425 = vmul.f32 %v197, %v414
  %v426 = vmul.f32 %v202, %v414
  %v427 = vmul.f32 %v207, %v414
  %v428 = vmul.f32 %v212, %v414
  %v429 = vmul.f32 %v217, %v414
  %v430 = vmul.f32 %v222, %v414
  %v431 = vmul.f32 %v227, %v414
  %v432 = vmul.f32 %v232, %v414
  %v433 = vmul.f32 %v237, %v414
  %v434 = vmul.f32 %v242, %v414
  %v435 = vmul.f32 %v247, %v414
  %v436 = vmul.f32 %v252, %v414
  %v437 = vmul.f32 %v257, %v414
  %v438 = vmul.f32 %v262, %v414
  %v439 = vmul.f32 %v267, %v414
  %v440 = vmul.f32 %v272, %v414
  %v441 = vmul.f32 %v277, %v414
  %v442 = vmul.f32 %v282, %v414
  %v443 = vmul.f32 %v287, %v414
  %v444 = vmul.f32 %v292, %v414
  %v445 = vmul.f32 %v297, %v414
  %v446 = vmul.f32 %v302, %v414
  %v447 = vmul.f32 %v307, %v414
  %v448 = vmul.f32 %v312, %v414
  %v449 = vmul.f32 %v317, %v414
  %v450 = vmul.f32 %v322, %v414
  %v451 = vmul.f32 %v327, %v414
  %v452 = vmul.f32 %v332, %v414
  %v453 = vmul.f32 %v337, %v414
  %v454 = vmul.f32 %v342, %v414
  %v455 = vmul.f32 %v347, %v414
  %v456 = vmul.f32 %v352, %v414
  %v457 = vmul.f32 %v357, %v414
  %v458 = vmul.f32 %v362, %v414
  %v459 = vmul.f32 %v367, %v414
  %v460 = vmul.f32 %v372, %v414
  %v461 = vmul.f32 %v377, %v414
  %v462 = vmul.f32 %v382, %v414
  %v463 = vmul.f32 %v387, %v414
  %v464 = vmul.f32 %v392, %v414
  %v465 = vmul.f32 %v397, %v414
  %v466 = vmul.f32 %v402, %v414
  %v467 = vmul.f32 %v407, %v414
  %v468 = vmul.f32 %v412, %v414
  %v469 = vadd.f32 %v33, %v415
  %v470 = vadd.f32 %v33, %v416
  %v471 = vadd.f32 %v33, %v417
  %v472 = vadd.f32 %v33, %v418
  %v473 = vadd.f32 %v33, %v419
  %v474 = vadd.f32 %v33, %v420
  %v475 = vadd.f32 %v33, %v421
  %v476 = vadd.f32 %v33, %v422
  %v477 = vadd.f32 %v33, %v423
  %v478 = vadd.f32 %v33, %v424
  %v479 = vadd.f32 %v33, %v425
  %v480 = vadd.f32 %v33, %v426
  %v481 = vadd.f32 %v33, %v427
  %v482 = vadd.f32 %v33, %v428
  %v483 = vadd.f32 %v33, %v429
  %v484 = vadd.f32 %v33, %v430
  %v485 = vadd.f32 %v33, %v431
  %v486 = vadd.f32 %v33, %v432
  %v487 = vadd.f32 %v33, %v433
  %v488 = vadd.f32 %v33, %v434
  %v489 = vadd.f32 %v33, %v435
  %v490 = vadd.f32 %v33, %v436
  %v491 = vadd.f32 %v33, %v437
  %v492 = vadd.f32 %v33, %v438
  %v493 = vadd.f32 %v33, %v439
  %v494 = vadd.f32 %v33, %v440
  %v495 = vadd.f32 %v33, %v441
  %v496 = vadd.f32 %v33, %v442
  %v497 = vadd.f32 %v33, %v443
  %v498 = vadd.f32 %v33, %v444
  %v499 = vadd.f32 %v33, %v445
  %v500 = vadd.f32 %v33, %v446
  %v501 = vadd.f32 %v33, %v447
  %v502 = vadd.f32 %v33, %v448
  %v503 = vadd.f32 %v33, %v449
  %v504 = vadd.f32 %v33, %v450
  %v505 = vadd.f32 %v33, %v451
  %v506 = vadd.f32 %v33, %v452
  %v507 = vadd.f32 %v33, %v453
  %v508 = vadd.f32 %v33, %v454
  %v509 = vadd.f32 %v33, %v455
  %v510 = vadd.f32 %v33, %v456
  %v511 = vadd.f32 %v33, %v457
  %v512 = vadd.f32 %v33, %v458
  %v513 = vadd.f32 %v33, %v459
  %v514 = vadd.f32 %v33, %v460
  %v515 = vadd.f32 %v33, %v461
  %v516 = vadd.f32 %v33, %v462
  %v517 = vadd.f32 %v33, %v463
  %v518 = vadd.f32 %v33, %v464
  %v519 = vadd.f32 %v33, %v465
  %v520 = vadd.f32 %v33, %v466
  %v521 = vadd.f32 %v33, %v467
  %v522 = vadd.f32 %v33, %v468
  %v523 = vld [vmem:[%s0 + $0x8] sm:$0x3]
  %v524 = vld [vmem:[%s0 + $0x14] sm:$0x3]
  %v525 = vld [vmem:[%s0 + $0x20] sm:$0x3]
  %v526 = vld [vmem:[%s0 + $0x2c] sm:$0x3]
  %v527 = vld [vmem:[%s0 + $0x38] sm:$0x3]
  %v528 = vld [vmem:[%s0 + $0x44] sm:$0x3]
  %v529 = vld [vmem:[%s0 + $0x50] sm:$0x3]
  %v530 = vld [vmem:[%s0 + $0x5c] sm:$0x3]
  %v531 = vld [vmem:[%s0 + $0x68] sm:$0x3]
  %v532 = vld [vmem:[%s0 + $0x74] sm:$0x3]
  %v533 = vld [vmem:[%s0 + $0x80] sm:$0x3]
  %v534 = vld [vmem:[%s0 + $0x8c] sm:$0x3]
  %v535 = vld [vmem:[%s0 + $0x98] sm:$0x3]
  %v536 = vld [vmem:[%s0 + $0xa4] sm:$0x3]
  %v537 = vld [vmem:[%s0 + $0xb0] sm:$0x3]
  %v538 = vld [vmem:[%s0 + $0xbc] sm:$0x3]
  %v539 = vld [vmem:[%s0 + $0xc8] sm:$0x3]
  %v540 = vld [vmem:[%s0 + $0xd4] sm:$0x3]
  %v541 = vunpack.c.l.bf16 %v523
  %v542 = vunpack.c.l.bf16 %v524
  %v543 = vunpack.c.l.bf16 %v525
  %v544 = vunpack.c.l.bf16 %v526
  %v545 = vunpack.c.l.bf16 %v527
  %v546 = vunpack.c.l.bf16 %v528
  %v547 = vunpack.c.l.bf16 %v529
  %v548 = vunpack.c.l.bf16 %v530
  %v549 = vunpack.c.l.bf16 %v531
  %v550 = vunpack.c.l.bf16 %v532
  %v551 = vunpack.c.l.bf16 %v533
  %v552 = vunpack.c.l.bf16 %v534
  %v553 = vunpack.c.l.bf16 %v535
  %v554 = vunpack.c.l.bf16 %v536
  %v555 = vunpack.c.l.bf16 %v537
  %v556 = vunpack.c.l.bf16 %v538
  %v557 = vunpack.c.l.bf16 %v539
  %v558 = vunpack.c.l.bf16 %v540
  %560 = vset.pattern.permute.xlu0 0
  %561 = vperm.xlu0 %560, %v541
  %v562 = vpop.permute.xlu0 %561
  %565 = vset.pattern.permute.xlu0 0
  %566 = vperm.xlu0 %565, %v542
  %v567 = vpop.permute.xlu0 %566
  %570 = vset.pattern.permute.xlu0 0
  %571 = vperm.xlu0 %570, %v543
  %v572 = vpop.permute.xlu0 %571
  %575 = vset.pattern.permute.xlu0 0
  %576 = vperm.xlu0 %575, %v544
  %v577 = vpop.permute.xlu0 %576
  %580 = vset.pattern.permute.xlu0 0
  %581 = vperm.xlu0 %580, %v545
  %v582 = vpop.permute.xlu0 %581
  %585 = vset.pattern.permute.xlu0 0
  %586 = vperm.xlu0 %585, %v546
  %v587 = vpop.permute.xlu0 %586
  %590 = vset.pattern.permute.xlu0 0
  %591 = vperm.xlu0 %590, %v547
  %v592 = vpop.permute.xlu0 %591
  %595 = vset.pattern.permute.xlu0 0
  %596 = vperm.xlu0 %595, %v548
  %v597 = vpop.permute.xlu0 %596
  %600 = vset.pattern.permute.xlu0 0
  %601 = vperm.xlu0 %600, %v549
  %v602 = vpop.permute.xlu0 %601
  %605 = vset.pattern.permute.xlu0 0
  %606 = vperm.xlu0 %605, %v550
  %v607 = vpop.permute.xlu0 %606
  %610 = vset.pattern.permute.xlu0 0
  %611 = vperm.xlu0 %610, %v551
  %v612 = vpop.permute.xlu0 %611
  %615 = vset.pattern.permute.xlu0 0
  %616 = vperm.xlu0 %615, %v552
  %v617 = vpop.permute.xlu0 %616
  %620 = vset.pattern.permute.xlu0 0
  %621 = vperm.xlu0 %620, %v553
  %v622 = vpop.permute.xlu0 %621
  %625 = vset.pattern.permute.xlu0 0
  %626 = vperm.xlu0 %625, %v554
  %v627 = vpop.permute.xlu0 %626
  %630 = vset.pattern.permute.xlu0 0
  %631 = vperm.xlu0 %630, %v555
  %v632 = vpop.permute.xlu0 %631
  %635 = vset.pattern.permute.xlu0 0
  %636 = vperm.xlu0 %635, %v556
  %v637 = vpop.permute.xlu0 %636
  %640 = vset.pattern.permute.xlu0 0
  %641 = vperm.xlu0 %640, %v557
  %v642 = vpop.permute.xlu0 %641
  %645 = vset.pattern.permute.xlu0 0
  %646 = vperm.xlu0 %645, %v558
  %v647 = vpop.permute.xlu0 %646
  %v649 = vperm.slane %v143, 1
  %v650 = vmul.f32 %v147, %v649
  %v651 = vmul.f32 %v152, %v649
  %v652 = vmul.f32 %v562, %v649
  %v653 = vmul.f32 %v162, %v649
  %v654 = vmul.f32 %v167, %v649
  %v655 = vmul.f32 %v567, %v649
  %v656 = vmul.f32 %v177, %v649
  %v657 = vmul.f32 %v182, %v649
  %v658 = vmul.f32 %v572, %v649
  %v659 = vmul.f32 %v192, %v649
  %v660 = vmul.f32 %v197, %v649
  %v661 = vmul.f32 %v577, %v649
  %v662 = vmul.f32 %v207, %v649
  %v663 = vmul.f32 %v212, %v649
  %v664 = vmul.f32 %v582, %v649
  %v665 = vmul.f32 %v222, %v649
  %v666 = vmul.f32 %v227, %v649
  %v667 = vmul.f32 %v587, %v649
  %v668 = vmul.f32 %v237, %v649
  %v669 = vmul.f32 %v242, %v649
  %v670 = vmul.f32 %v592, %v649
  %v671 = vmul.f32 %v252, %v649
  %v672 = vmul.f32 %v257, %v649
  %v673 = vmul.f32 %v597, %v649
  %v674 = vmul.f32 %v267, %v649
  %v675 = vmul.f32 %v272, %v649
  %v676 = vmul.f32 %v602, %v649
  %v677 = vmul.f32 %v282, %v649
  %v678 = vmul.f32 %v287, %v649
  %v679 = vmul.f32 %v607, %v649
  %v680 = vmul.f32 %v297, %v649
  %v681 = vmul.f32 %v302, %v649
  %v682 = vmul.f32 %v612, %v649
  %v683 = vmul.f32 %v312, %v649
  %v684 = vmul.f32 %v317, %v649
  %v685 = vmul.f32 %v617, %v649
  %v686 = vmul.f32 %v327, %v649
  %v687 = vmul.f32 %v332, %v649
  %v688 = vmul.f32 %v622, %v649
  %v689 = vmul.f32 %v342, %v649
  %v690 = vmul.f32 %v347, %v649
  %v691 = vmul.f32 %v627, %v649
  %v692 = vmul.f32 %v357, %v649
  %v693 = vmul.f32 %v362, %v649
  %v694 = vmul.f32 %v632, %v649
  %v695 = vmul.f32 %v372, %v649
  %v696 = vmul.f32 %v377, %v649
  %v697 = vmul.f32 %v637, %v649
  %v698 = vmul.f32 %v387, %v649
  %v699 = vmul.f32 %v392, %v649
  %v700 = vmul.f32 %v642, %v649
  %v701 = vmul.f32 %v402, %v649
  %v702 = vmul.f32 %v407, %v649
  %v703 = vmul.f32 %v647, %v649
  %vm758 = vcmask 1046528
  %v759 = vrot.slane %v650, 1
  %v760 = vrot.slane %v651, 1
  %v761 = vsel %vm758, %v759, %v760
  %v762 = vrot.slane %v652, 1
  %v763 = vsel %vm758, %v760, %v762
  %v764 = vrot.slane %v653, 1
  %v765 = vrot.slane %v654, 1
  %v766 = vsel %vm758, %v764, %v765
  %v767 = vrot.slane %v655, 1
  %v768 = vsel %vm758, %v765, %v767
  %v769 = vrot.slane %v656, 1
  %v770 = vrot.slane %v657, 1
  %v771 = vsel %vm758, %v769, %v770
  %v772 = vrot.slane %v658, 1
  %v773 = vsel %vm758, %v770, %v772
  %v774 = vrot.slane %v659, 1
  %v775 = vrot.slane %v660, 1
  %v776 = vsel %vm758, %v774, %v775
  %v777 = vrot.slane %v661, 1
  %v778 = vsel %vm758, %v775, %v777
  %v779 = vrot.slane %v662, 1
  %v780 = vrot.slane %v663, 1
  %v781 = vsel %vm758, %v779, %v780
  %v782 = vrot.slane %v664, 1
  %v783 = vsel %vm758, %v780, %v782
  %v784 = vrot.slane %v665, 1
  %v785 = vrot.slane %v666, 1
  %v786 = vsel %vm758, %v784, %v785
  %v787 = vrot.slane %v667, 1
  %v788 = vsel %vm758, %v785, %v787
  %v789 = vrot.slane %v668, 1
  %v790 = vrot.slane %v669, 1
  %v791 = vsel %vm758, %v789, %v790
  %v792 = vrot.slane %v670, 1
  %v793 = vsel %vm758, %v790, %v792
  %v794 = vrot.slane %v671, 1
  %v795 = vrot.slane %v672, 1
  %v796 = vsel %vm758, %v794, %v795
  %v797 = vrot.slane %v673, 1
  %v798 = vsel %vm758, %v795, %v797
  %v799 = vrot.slane %v674, 1
  %v800 = vrot.slane %v675, 1
  %v801 = vsel %vm758, %v799, %v800
  %v802 = vrot.slane %v676, 1
  %v803 = vsel %vm758, %v800, %v802
  %v804 = vrot.slane %v677, 1
  %v805 = vrot.slane %v678, 1
  %v806 = vsel %vm758, %v804, %v805
  %v807 = vrot.slane %v679, 1
  %v808 = vsel %vm758, %v805, %v807
  %v809 = vrot.slane %v680, 1
  %v810 = vrot.slane %v681, 1
  %v811 = vsel %vm758, %v809, %v810
  %v812 = vrot.slane %v682, 1
  %v813 = vsel %vm758, %v810, %v812
  %v814 = vrot.slane %v683, 1
  %v815 = vrot.slane %v684, 1
  %v816 = vsel %vm758, %v814, %v815
  %v817 = vrot.slane %v685, 1
  %v818 = vsel %vm758, %v815, %v817
  %v819 = vrot.slane %v686, 1
  %v820 = vrot.slane %v687, 1
  %v821 = vsel %vm758, %v819, %v820
  %v822 = vrot.slane %v688, 1
  %v823 = vsel %vm758, %v820, %v822
  %v824 = vrot.slane %v689, 1
  %v825 = vrot.slane %v690, 1
  %v826 = vsel %vm758, %v824, %v825
  %v827 = vrot.slane %v691, 1
  %v828 = vsel %vm758, %v825, %v827
  %v829 = vrot.slane %v692, 1
  %v830 = vrot.slane %v693, 1
  %v831 = vsel %vm758, %v829, %v830
  %v832 = vrot.slane %v694, 1
  %v833 = vsel %vm758, %v830, %v832
  %v834 = vrot.slane %v695, 1
  %v835 = vrot.slane %v696, 1
  %v836 = vsel %vm758, %v834, %v835
  %v837 = vrot.slane %v697, 1
  %v838 = vsel %vm758, %v835, %v837
  %v839 = vrot.slane %v698, 1
  %v840 = vrot.slane %v699, 1
  %v841 = vsel %vm758, %v839, %v840
  %v842 = vrot.slane %v700, 1
  %v843 = vsel %vm758, %v840, %v842
  %v844 = vrot.slane %v701, 1
  %v845 = vrot.slane %v702, 1
  %v846 = vsel %vm758, %v844, %v845
  %v847 = vrot.slane %v703, 1
  %v848 = vsel %vm758, %v845, %v847
  %v903 = vadd.f32 %v469, %v761
  %v904 = vadd.f32 %v470, %v763
  %v905 = vadd.f32 %v471, %v762
  %v906 = vadd.f32 %v472, %v766
  %v907 = vadd.f32 %v473, %v768
  %v908 = vadd.f32 %v474, %v767
  %v909 = vadd.f32 %v475, %v771
  %v910 = vadd.f32 %v476, %v773
  %v911 = vadd.f32 %v477, %v772
  %v912 = vadd.f32 %v478, %v776
  %v913 = vadd.f32 %v479, %v778
  %v914 = vadd.f32 %v480, %v777
  %v915 = vadd.f32 %v481, %v781
  %v916 = vadd.f32 %v482, %v783
  %v917 = vadd.f32 %v483, %v782
  %v918 = vadd.f32 %v484, %v786
  %v919 = vadd.f32 %v485, %v788
  %v920 = vadd.f32 %v486, %v787
  %v921 = vadd.f32 %v487, %v791
  %v922 = vadd.f32 %v488, %v793
  %v923 = vadd.f32 %v489, %v792
  %v924 = vadd.f32 %v490, %v796
  %v925 = vadd.f32 %v491, %v798
  %v926 = vadd.f32 %v492, %v797
  %v927 = vadd.f32 %v493, %v801
  %v928 = vadd.f32 %v494, %v803
  %v929 = vadd.f32 %v495, %v802
  %v930 = vadd.f32 %v496, %v806
  %v931 = vadd.f32 %v497, %v808
  %v932 = vadd.f32 %v498, %v807
  %v933 = vadd.f32 %v499, %v811
  %v934 = vadd.f32 %v500, %v813
  %v935 = vadd.f32 %v501, %v812
  %v936 = vadd.f32 %v502, %v816
  %v937 = vadd.f32 %v503, %v818
  %v938 = vadd.f32 %v504, %v817
  %v939 = vadd.f32 %v505, %v821
  %v940 = vadd.f32 %v506, %v823
  %v941 = vadd.f32 %v507, %v822
  %v942 = vadd.f32 %v508, %v826
  %v943 = vadd.f32 %v509, %v828
  %v944 = vadd.f32 %v510, %v827
  %v945 = vadd.f32 %v511, %v831
  %v946 = vadd.f32 %v512, %v833
  %v947 = vadd.f32 %v513, %v832
  %v948 = vadd.f32 %v514, %v836
  %v949 = vadd.f32 %v515, %v838
  %v950 = vadd.f32 %v516, %v837
  %v951 = vadd.f32 %v517, %v841
  %v952 = vadd.f32 %v518, %v843
  %v953 = vadd.f32 %v519, %v842
  %v954 = vadd.f32 %v520, %v846
  %v955 = vadd.f32 %v521, %v848
  %v956 = vadd.f32 %v522, %v847
  %v957 = vld [vmem:[%s0] sm:$0xe]
  %v958 = vld [vmem:[%s0 + $0xc] sm:$0xe]
  %v959 = vld [vmem:[%s0 + $0x18] sm:$0xe]
  %v960 = vld [vmem:[%s0 + $0x24] sm:$0xe]
  %v961 = vld [vmem:[%s0 + $0x30] sm:$0xe]
  %v962 = vld [vmem:[%s0 + $0x3c] sm:$0xe]
  %v963 = vld [vmem:[%s0 + $0x48] sm:$0xe]
  %v964 = vld [vmem:[%s0 + $0x54] sm:$0xe]
  %v965 = vld [vmem:[%s0 + $0x60] sm:$0xe]
  %v966 = vld [vmem:[%s0 + $0x6c] sm:$0xe]
  %v967 = vld [vmem:[%s0 + $0x78] sm:$0xe]
  %v968 = vld [vmem:[%s0 + $0x84] sm:$0xe]
  %v969 = vld [vmem:[%s0 + $0x90] sm:$0xe]
  %v970 = vld [vmem:[%s0 + $0x9c] sm:$0xe]
  %v971 = vld [vmem:[%s0 + $0xa8] sm:$0xe]
  %v972 = vld [vmem:[%s0 + $0xb4] sm:$0xe]
  %v973 = vld [vmem:[%s0 + $0xc0] sm:$0xe]
  %v974 = vld [vmem:[%s0 + $0xcc] sm:$0xe]
  %v975 = vunpack.c.l.bf16 %v957
  %v976 = vunpack.c.l.bf16 %v958
  %v977 = vunpack.c.l.bf16 %v959
  %v978 = vunpack.c.l.bf16 %v960
  %v979 = vunpack.c.l.bf16 %v961
  %v980 = vunpack.c.l.bf16 %v962
  %v981 = vunpack.c.l.bf16 %v963
  %v982 = vunpack.c.l.bf16 %v964
  %v983 = vunpack.c.l.bf16 %v965
  %v984 = vunpack.c.l.bf16 %v966
  %v985 = vunpack.c.l.bf16 %v967
  %v986 = vunpack.c.l.bf16 %v968
  %v987 = vunpack.c.l.bf16 %v969
  %v988 = vunpack.c.l.bf16 %v970
  %v989 = vunpack.c.l.bf16 %v971
  %v990 = vunpack.c.l.bf16 %v972
  %v991 = vunpack.c.l.bf16 %v973
  %v992 = vunpack.c.l.bf16 %v974
  %v993 = vld [vmem:[%s1] sm:$0x2]
  %v994 = vunpack.c.l.bf16 %v993
  %996 = vset.pattern.permute.xlu0 0
  %997 = vperm.xlu0 %996, %v975
  %v998 = vpop.permute.xlu0 %997
  %1001 = vset.pattern.permute.xlu0 0
  %1002 = vperm.xlu0 %1001, %v976
  %v1003 = vpop.permute.xlu0 %1002
  %1006 = vset.pattern.permute.xlu0 0
  %1007 = vperm.xlu0 %1006, %v977
  %v1008 = vpop.permute.xlu0 %1007
  %1011 = vset.pattern.permute.xlu0 0
  %1012 = vperm.xlu0 %1011, %v978
  %v1013 = vpop.permute.xlu0 %1012
  %1016 = vset.pattern.permute.xlu0 0
  %1017 = vperm.xlu0 %1016, %v979
  %v1018 = vpop.permute.xlu0 %1017
  %1021 = vset.pattern.permute.xlu0 0
  %1022 = vperm.xlu0 %1021, %v980
  %v1023 = vpop.permute.xlu0 %1022
  %1026 = vset.pattern.permute.xlu0 0
  %1027 = vperm.xlu0 %1026, %v981
  %v1028 = vpop.permute.xlu0 %1027
  %1031 = vset.pattern.permute.xlu0 0
  %1032 = vperm.xlu0 %1031, %v982
  %v1033 = vpop.permute.xlu0 %1032
  %1036 = vset.pattern.permute.xlu0 0
  %1037 = vperm.xlu0 %1036, %v983
  %v1038 = vpop.permute.xlu0 %1037
  %1041 = vset.pattern.permute.xlu0 0
  %1042 = vperm.xlu0 %1041, %v984
  %v1043 = vpop.permute.xlu0 %1042
  %1046 = vset.pattern.permute.xlu0 0
  %1047 = vperm.xlu0 %1046, %v985
  %v1048 = vpop.permute.xlu0 %1047
  %1051 = vset.pattern.permute.xlu0 0
  %1052 = vperm.xlu0 %1051, %v986
  %v1053 = vpop.permute.xlu0 %1052
  %1056 = vset.pattern.permute.xlu0 0
  %1057 = vperm.xlu0 %1056, %v987
  %v1058 = vpop.permute.xlu0 %1057
  %1061 = vset.pattern.permute.xlu0 0
  %1062 = vperm.xlu0 %1061, %v988
  %v1063 = vpop.permute.xlu0 %1062
  %1066 = vset.pattern.permute.xlu0 0
  %1067 = vperm.xlu0 %1066, %v989
  %v1068 = vpop.permute.xlu0 %1067
  %1071 = vset.pattern.permute.xlu0 0
  %1072 = vperm.xlu0 %1071, %v990
  %v1073 = vpop.permute.xlu0 %1072
  %1076 = vset.pattern.permute.xlu0 0
  %1077 = vperm.xlu0 %1076, %v991
  %v1078 = vpop.permute.xlu0 %1077
  %1081 = vset.pattern.permute.xlu0 0
  %1082 = vperm.xlu0 %1081, %v992
  %v1083 = vpop.permute.xlu0 %1082
  %v1085 = vperm.slane %v994, 2
  %v1086 = vmul.f32 %v998, %v1085
  %v1087 = vmul.f32 %v152, %v1085
  %v1088 = vmul.f32 %v562, %v1085
  %v1089 = vmul.f32 %v1003, %v1085
  %v1090 = vmul.f32 %v167, %v1085
  %v1091 = vmul.f32 %v567, %v1085
  %v1092 = vmul.f32 %v1008, %v1085
  %v1093 = vmul.f32 %v182, %v1085
  %v1094 = vmul.f32 %v572, %v1085
  %v1095 = vmul.f32 %v1013, %v1085
  %v1096 = vmul.f32 %v197, %v1085
  %v1097 = vmul.f32 %v577, %v1085
  %v1098 = vmul.f32 %v1018, %v1085
  %v1099 = vmul.f32 %v212, %v1085
  %v1100 = vmul.f32 %v582, %v1085
  %v1101 = vmul.f32 %v1023, %v1085
  %v1102 = vmul.f32 %v227, %v1085
  %v1103 = vmul.f32 %v587, %v1085
  %v1104 = vmul.f32 %v1028, %v1085
  %v1105 = vmul.f32 %v242, %v1085
  %v1106 = vmul.f32 %v592, %v1085
  %v1107 = vmul.f32 %v1033, %v1085
  %v1108 = vmul.f32 %v257, %v1085
  %v1109 = vmul.f32 %v597, %v1085
  %v1110 = vmul.f32 %v1038, %v1085
  %v1111 = vmul.f32 %v272, %v1085
  %v1112 = vmul.f32 %v602, %v1085
  %v1113 = vmul.f32 %v1043, %v1085
  %v1114 = vmul.f32 %v287, %v1085
  %v1115 = vmul.f32 %v607, %v1085
  %v1116 = vmul.f32 %v1048, %v1085
  %v1117 = vmul.f32 %v302, %v1085
  %v1118 = vmul.f32 %v612, %v1085
  %v1119 = vmul.f32 %v1053, %v1085
  %v1120 = vmul.f32 %v317, %v1085
  %v1121 = vmul.f32 %v617, %v1085
  %v1122 = vmul.f32 %v1058, %v1085
  %v1123 = vmul.f32 %v332, %v1085
  %v1124 = vmul.f32 %v622, %v1085
  %v1125 = vmul.f32 %v1063, %v1085
  %v1126 = vmul.f32 %v347, %v1085
  %v1127 = vmul.f32 %v627, %v1085
  %v1128 = vmul.f32 %v1068, %v1085
  %v1129 = vmul.f32 %v362, %v1085
  %v1130 = vmul.f32 %v632, %v1085
  %v1131 = vmul.f32 %v1073, %v1085
  %v1132 = vmul.f32 %v377, %v1085
  %v1133 = vmul.f32 %v637, %v1085
  %v1134 = vmul.f32 %v1078, %v1085
  %v1135 = vmul.f32 %v392, %v1085
  %v1136 = vmul.f32 %v642, %v1085
  %v1137 = vmul.f32 %v1083, %v1085
  %v1138 = vmul.f32 %v407, %v1085
  %v1139 = vmul.f32 %v647, %v1085
  %vm1194 = vcmask 1045504
  %v1195 = vrot.slane %v1086, 2
  %v1196 = vrot.slane %v1087, 2
  %v1197 = vsel %vm1194, %v1195, %v1196
  %v1198 = vrot.slane %v1088, 2
  %v1199 = vsel %vm1194, %v1196, %v1198
  %v1200 = vrot.slane %v1089, 2
  %v1201 = vrot.slane %v1090, 2
  %v1202 = vsel %vm1194, %v1200, %v1201
  %v1203 = vrot.slane %v1091, 2
  %v1204 = vsel %vm1194, %v1201, %v1203
  %v1205 = vrot.slane %v1092, 2
  %v1206 = vrot.slane %v1093, 2
  %v1207 = vsel %vm1194, %v1205, %v1206
  %v1208 = vrot.slane %v1094, 2
  %v1209 = vsel %vm1194, %v1206, %v1208
  %v1210 = vrot.slane %v1095, 2
  %v1211 = vrot.slane %v1096, 2
  %v1212 = vsel %vm1194, %v1210, %v1211
  %v1213 = vrot.slane %v1097, 2
  %v1214 = vsel %vm1194, %v1211, %v1213
  %v1215 = vrot.slane %v1098, 2
  %v1216 = vrot.slane %v1099, 2
  %v1217 = vsel %vm1194, %v1215, %v1216
  %v1218 = vrot.slane %v1100, 2
  %v1219 = vsel %vm1194, %v1216, %v1218
  %v1220 = vrot.slane %v1101, 2
  %v1221 = vrot.slane %v1102, 2
  %v1222 = vsel %vm1194, %v1220, %v1221
  %v1223 = vrot.slane %v1103, 2
  %v1224 = vsel %vm1194, %v1221, %v1223
  %v1225 = vrot.slane %v1104, 2
  %v1226 = vrot.slane %v1105, 2
  %v1227 = vsel %vm1194, %v1225, %v1226
  %v1228 = vrot.slane %v1106, 2
  %v1229 = vsel %vm1194, %v1226, %v1228
  %v1230 = vrot.slane %v1107, 2
  %v1231 = vrot.slane %v1108, 2
  %v1232 = vsel %vm1194, %v1230, %v1231
  %v1233 = vrot.slane %v1109, 2
  %v1234 = vsel %vm1194, %v1231, %v1233
  %v1235 = vrot.slane %v1110, 2
  %v1236 = vrot.slane %v1111, 2
  %v1237 = vsel %vm1194, %v1235, %v1236
  %v1238 = vrot.slane %v1112, 2
  %v1239 = vsel %vm1194, %v1236, %v1238
  %v1240 = vrot.slane %v1113, 2
  %v1241 = vrot.slane %v1114, 2
  %v1242 = vsel %vm1194, %v1240, %v1241
  %v1243 = vrot.slane %v1115, 2
  %v1244 = vsel %vm1194, %v1241, %v1243
  %v1245 = vrot.slane %v1116, 2
  %v1246 = vrot.slane %v1117, 2
  %v1247 = vsel %vm1194, %v1245, %v1246
  %v1248 = vrot.slane %v1118, 2
  %v1249 = vsel %vm1194, %v1246, %v1248
  %v1250 = vrot.slane %v1119, 2
  %v1251 = vrot.slane %v1120, 2
  %v1252 = vsel %vm1194, %v1250, %v1251
  %v1253 = vrot.slane %v1121, 2
  %v1254 = vsel %vm1194, %v1251, %v1253
  %v1255 = vrot.slane %v1122, 2
  %v1256 = vrot.slane %v1123, 2
  %v1257 = vsel %vm1194, %v1255, %v1256
  %v1258 = vrot.slane %v1124, 2
  %v1259 = vsel %vm1194, %v1256, %v1258
  %v1260 = vrot.slane %v1125, 2
  %v1261 = vrot.slane %v1126, 2
  %v1262 = vsel %vm1194, %v1260, %v1261
  %v1263 = vrot.slane %v1127, 2
  %v1264 = vsel %vm1194, %v1261, %v1263
  %v1265 = vrot.slane %v1128, 2
  %v1266 = vrot.slane %v1129, 2
  %v1267 = vsel %vm1194, %v1265, %v1266
  %v1268 = vrot.slane %v1130, 2
  %v1269 = vsel %vm1194, %v1266, %v1268
  %v1270 = vrot.slane %v1131, 2
  %v1271 = vrot.slane %v1132, 2
  %v1272 = vsel %vm1194, %v1270, %v1271
  %v1273 = vrot.slane %v1133, 2
  %v1274 = vsel %vm1194, %v1271, %v1273
  %v1275 = vrot.slane %v1134, 2
  %v1276 = vrot.slane %v1135, 2
  %v1277 = vsel %vm1194, %v1275, %v1276
  %v1278 = vrot.slane %v1136, 2
  %v1279 = vsel %vm1194, %v1276, %v1278
  %v1280 = vrot.slane %v1137, 2
  %v1281 = vrot.slane %v1138, 2
  %v1282 = vsel %vm1194, %v1280, %v1281
  %v1283 = vrot.slane %v1139, 2
  %v1284 = vsel %vm1194, %v1281, %v1283
  %v1339 = vadd.f32 %v903, %v1197
  %v1340 = vadd.f32 %v904, %v1199
  %v1341 = vadd.f32 %v905, %v1198
  %v1342 = vadd.f32 %v906, %v1202
  %v1343 = vadd.f32 %v907, %v1204
  %v1344 = vadd.f32 %v908, %v1203
  %v1345 = vadd.f32 %v909, %v1207
  %v1346 = vadd.f32 %v910, %v1209
  %v1347 = vadd.f32 %v911, %v1208
  %v1348 = vadd.f32 %v912, %v1212
  %v1349 = vadd.f32 %v913, %v1214
  %v1350 = vadd.f32 %v914, %v1213
  %v1351 = vadd.f32 %v915, %v1217
  %v1352 = vadd.f32 %v916, %v1219
  %v1353 = vadd.f32 %v917, %v1218
  %v1354 = vadd.f32 %v918, %v1222
  %v1355 = vadd.f32 %v919, %v1224
  %v1356 = vadd.f32 %v920, %v1223
  %v1357 = vadd.f32 %v921, %v1227
  %v1358 = vadd.f32 %v922, %v1229
  %v1359 = vadd.f32 %v923, %v1228
  %v1360 = vadd.f32 %v924, %v1232
  %v1361 = vadd.f32 %v925, %v1234
  %v1362 = vadd.f32 %v926, %v1233
  %v1363 = vadd.f32 %v927, %v1237
  %v1364 = vadd.f32 %v928, %v1239
  %v1365 = vadd.f32 %v929, %v1238
  %v1366 = vadd.f32 %v930, %v1242
  %v1367 = vadd.f32 %v931, %v1244
  %v1368 = vadd.f32 %v932, %v1243
  %v1369 = vadd.f32 %v933, %v1247
  %v1370 = vadd.f32 %v934, %v1249
  %v1371 = vadd.f32 %v935, %v1248
  %v1372 = vadd.f32 %v936, %v1252
  %v1373 = vadd.f32 %v937, %v1254
  %v1374 = vadd.f32 %v938, %v1253
  %v1375 = vadd.f32 %v939, %v1257
  %v1376 = vadd.f32 %v940, %v1259
  %v1377 = vadd.f32 %v941, %v1258
  %v1378 = vadd.f32 %v942, %v1262
  %v1379 = vadd.f32 %v943, %v1264
  %v1380 = vadd.f32 %v944, %v1263
  %v1381 = vadd.f32 %v945, %v1267
  %v1382 = vadd.f32 %v946, %v1269
  %v1383 = vadd.f32 %v947, %v1268
  %v1384 = vadd.f32 %v948, %v1272
  %v1385 = vadd.f32 %v949, %v1274
  %v1386 = vadd.f32 %v950, %v1273
  %v1387 = vadd.f32 %v951, %v1277
  %v1388 = vadd.f32 %v952, %v1279
  %v1389 = vadd.f32 %v953, %v1278
  %v1390 = vadd.f32 %v954, %v1282
  %v1391 = vadd.f32 %v955, %v1284
  %v1392 = vadd.f32 %v956, %v1283
  %s1393 = scalar_lea.vmem %s0, 12
  %v1394 = vld [vmem:[%s1393] sm:$0xf]
  %v1395 = vld [vmem:[%s1393 + $0x4] sm:$0xf]
  %v1396 = vld [vmem:[%s1393 + $0x8] sm:$0x1]
  %v1397 = vld [vmem:[%s1393 + $0xc] sm:$0xf]
  %v1398 = vld [vmem:[%s1393 + $0x10] sm:$0xf]
  %v1399 = vld [vmem:[%s1393 + $0x14] sm:$0x1]
  %v1400 = vld [vmem:[%s1393 + $0x18] sm:$0xf]
  %v1401 = vld [vmem:[%s1393 + $0x1c] sm:$0xf]
  %v1402 = vld [vmem:[%s1393 + $0x20] sm:$0x1]
  %v1403 = vld [vmem:[%s1393 + $0x24] sm:$0xf]
  %v1404 = vld [vmem:[%s1393 + $0x28] sm:$0xf]
  %v1405 = vld [vmem:[%s1393 + $0x2c] sm:$0x1]
  %v1406 = vld [vmem:[%s1393 + $0x30] sm:$0xf]
  %v1407 = vld [vmem:[%s1393 + $0x34] sm:$0xf]
  %v1408 = vld [vmem:[%s1393 + $0x38] sm:$0x1]
  %v1409 = vld [vmem:[%s1393 + $0x3c] sm:$0xf]
  %v1410 = vld [vmem:[%s1393 + $0x40] sm:$0xf]
  %v1411 = vld [vmem:[%s1393 + $0x44] sm:$0x1]
  %v1412 = vld [vmem:[%s1393 + $0x48] sm:$0xf]
  %v1413 = vld [vmem:[%s1393 + $0x4c] sm:$0xf]
  %v1414 = vld [vmem:[%s1393 + $0x50] sm:$0x1]
  %v1415 = vld [vmem:[%s1393 + $0x54] sm:$0xf]
  %v1416 = vld [vmem:[%s1393 + $0x58] sm:$0xf]
  %v1417 = vld [vmem:[%s1393 + $0x5c] sm:$0x1]
  %v1418 = vld [vmem:[%s1393 + $0x60] sm:$0xf]
  %v1419 = vld [vmem:[%s1393 + $0x64] sm:$0xf]
  %v1420 = vld [vmem:[%s1393 + $0x68] sm:$0x1]
  %v1421 = vld [vmem:[%s1393 + $0x6c] sm:$0xf]
  %v1422 = vld [vmem:[%s1393 + $0x70] sm:$0xf]
  %v1423 = vld [vmem:[%s1393 + $0x74] sm:$0x1]
  %v1424 = vld [vmem:[%s1393 + $0x78] sm:$0xf]
  %v1425 = vld [vmem:[%s1393 + $0x7c] sm:$0xf]
  %v1426 = vld [vmem:[%s1393 + $0x80] sm:$0x1]
  %v1427 = vld [vmem:[%s1393 + $0x84] sm:$0xf]
  %v1428 = vld [vmem:[%s1393 + $0x88] sm:$0xf]
  %v1429 = vld [vmem:[%s1393 + $0x8c] sm:$0x1]
  %v1430 = vld [vmem:[%s1393 + $0x90] sm:$0xf]
  %v1431 = vld [vmem:[%s1393 + $0x94] sm:$0xf]
  %v1432 = vld [vmem:[%s1393 + $0x98] sm:$0x1]
  %v1433 = vld [vmem:[%s1393 + $0x9c] sm:$0xf]
  %v1434 = vld [vmem:[%s1393 + $0xa0] sm:$0xf]
  %v1435 = vld [vmem:[%s1393 + $0xa4] sm:$0x1]
  %v1436 = vld [vmem:[%s1393 + $0xa8] sm:$0xf]
  %v1437 = vld [vmem:[%s1393 + $0xac] sm:$0xf]
  %v1438 = vld [vmem:[%s1393 + $0xb0] sm:$0x1]
  %v1439 = vld [vmem:[%s1393 + $0xb4] sm:$0xf]
  %v1440 = vld [vmem:[%s1393 + $0xb8] sm:$0xf]
  %v1441 = vld [vmem:[%s1393 + $0xbc] sm:$0x1]
  %v1442 = vld [vmem:[%s1393 + $0xc0] sm:$0xf]
  %v1443 = vld [vmem:[%s1393 + $0xc4] sm:$0xf]
  %v1444 = vld [vmem:[%s1393 + $0xc8] sm:$0x1]
  %v1445 = vld [vmem:[%s1393 + $0xcc] sm:$0xf]
  %v1446 = vld [vmem:[%s1393 + $0xd0] sm:$0xf]
  %v1447 = vld [vmem:[%s1393 + $0xd4] sm:$0x1]
  %v1448 = vunpack.c.l.bf16 %v1394
  %v1449 = vunpack.c.l.bf16 %v1395
  %v1450 = vunpack.c.l.bf16 %v1396
  %v1451 = vunpack.c.l.bf16 %v1397
  %v1452 = vunpack.c.l.bf16 %v1398
  %v1453 = vunpack.c.l.bf16 %v1399
  %v1454 = vunpack.c.l.bf16 %v1400
  %v1455 = vunpack.c.l.bf16 %v1401
  %v1456 = vunpack.c.l.bf16 %v1402
  %v1457 = vunpack.c.l.bf16 %v1403
  %v1458 = vunpack.c.l.bf16 %v1404
  %v1459 = vunpack.c.l.bf16 %v1405
  %v1460 = vunpack.c.l.bf16 %v1406
  %v1461 = vunpack.c.l.bf16 %v1407
  %v1462 = vunpack.c.l.bf16 %v1408
  %v1463 = vunpack.c.l.bf16 %v1409
  %v1464 = vunpack.c.l.bf16 %v1410
  %v1465 = vunpack.c.l.bf16 %v1411
  %v1466 = vunpack.c.l.bf16 %v1412
  %v1467 = vunpack.c.l.bf16 %v1413
  %v1468 = vunpack.c.l.bf16 %v1414
  %v1469 = vunpack.c.l.bf16 %v1415
  %v1470 = vunpack.c.l.bf16 %v1416
  %v1471 = vunpack.c.l.bf16 %v1417
  %v1472 = vunpack.c.l.bf16 %v1418
  %v1473 = vunpack.c.l.bf16 %v1419
  %v1474 = vunpack.c.l.bf16 %v1420
  %v1475 = vunpack.c.l.bf16 %v1421
  %v1476 = vunpack.c.l.bf16 %v1422
  %v1477 = vunpack.c.l.bf16 %v1423
  %v1478 = vunpack.c.l.bf16 %v1424
  %v1479 = vunpack.c.l.bf16 %v1425
  %v1480 = vunpack.c.l.bf16 %v1426
  %v1481 = vunpack.c.l.bf16 %v1427
  %v1482 = vunpack.c.l.bf16 %v1428
  %v1483 = vunpack.c.l.bf16 %v1429
  %v1484 = vunpack.c.l.bf16 %v1430
  %v1485 = vunpack.c.l.bf16 %v1431
  %v1486 = vunpack.c.l.bf16 %v1432
  %v1487 = vunpack.c.l.bf16 %v1433
  %v1488 = vunpack.c.l.bf16 %v1434
  %v1489 = vunpack.c.l.bf16 %v1435
  %v1490 = vunpack.c.l.bf16 %v1436
  %v1491 = vunpack.c.l.bf16 %v1437
  %v1492 = vunpack.c.l.bf16 %v1438
  %v1493 = vunpack.c.l.bf16 %v1439
  %v1494 = vunpack.c.l.bf16 %v1440
  %v1495 = vunpack.c.l.bf16 %v1441
  %v1496 = vunpack.c.l.bf16 %v1442
  %v1497 = vunpack.c.l.bf16 %v1443
  %v1498 = vunpack.c.l.bf16 %v1444
  %v1499 = vunpack.c.l.bf16 %v1445
  %v1500 = vunpack.c.l.bf16 %v1446
  %v1501 = vunpack.c.l.bf16 %v1447
  %1503 = vset.pattern.permute.xlu0 0
  %1504 = vperm.xlu0 %1503, %v1448
  %v1505 = vpop.permute.xlu0 %1504
  %1508 = vset.pattern.permute.xlu0 0
  %1509 = vperm.xlu0 %1508, %v1449
  %v1510 = vpop.permute.xlu0 %1509
  %1513 = vset.pattern.permute.xlu0 0
  %1514 = vperm.xlu0 %1513, %v1450
  %v1515 = vpop.permute.xlu0 %1514
  %1518 = vset.pattern.permute.xlu0 0
  %1519 = vperm.xlu0 %1518, %v1451
  %v1520 = vpop.permute.xlu0 %1519
  %1523 = vset.pattern.permute.xlu0 0
  %1524 = vperm.xlu0 %1523, %v1452
  %v1525 = vpop.permute.xlu0 %1524
  %1528 = vset.pattern.permute.xlu0 0
  %1529 = vperm.xlu0 %1528, %v1453
  %v1530 = vpop.permute.xlu0 %1529
  %1533 = vset.pattern.permute.xlu0 0
  %1534 = vperm.xlu0 %1533, %v1454
  %v1535 = vpop.permute.xlu0 %1534
  %1538 = vset.pattern.permute.xlu0 0
  %1539 = vperm.xlu0 %1538, %v1455
  %v1540 = vpop.permute.xlu0 %1539
  %1543 = vset.pattern.permute.xlu0 0
  %1544 = vperm.xlu0 %1543, %v1456
  %v1545 = vpop.permute.xlu0 %1544
  %1548 = vset.pattern.permute.xlu0 0
  %1549 = vperm.xlu0 %1548, %v1457
  %v1550 = vpop.permute.xlu0 %1549
  %1553 = vset.pattern.permute.xlu0 0
  %1554 = vperm.xlu0 %1553, %v1458
  %v1555 = vpop.permute.xlu0 %1554
  %1558 = vset.pattern.permute.xlu0 0
  %1559 = vperm.xlu0 %1558, %v1459
  %v1560 = vpop.permute.xlu0 %1559
  %1563 = vset.pattern.permute.xlu0 0
  %1564 = vperm.xlu0 %1563, %v1460
  %v1565 = vpop.permute.xlu0 %1564
  %1568 = vset.pattern.permute.xlu0 0
  %1569 = vperm.xlu0 %1568, %v1461
  %v1570 = vpop.permute.xlu0 %1569
  %1573 = vset.pattern.permute.xlu0 0
  %1574 = vperm.xlu0 %1573, %v1462
  %v1575 = vpop.permute.xlu0 %1574
  %1578 = vset.pattern.permute.xlu0 0
  %1579 = vperm.xlu0 %1578, %v1463
  %v1580 = vpop.permute.xlu0 %1579
  %1583 = vset.pattern.permute.xlu0 0
  %1584 = vperm.xlu0 %1583, %v1464
  %v1585 = vpop.permute.xlu0 %1584
  %1588 = vset.pattern.permute.xlu0 0
  %1589 = vperm.xlu0 %1588, %v1465
  %v1590 = vpop.permute.xlu0 %1589
  %1593 = vset.pattern.permute.xlu0 0
  %1594 = vperm.xlu0 %1593, %v1466
  %v1595 = vpop.permute.xlu0 %1594
  %1598 = vset.pattern.permute.xlu0 0
  %1599 = vperm.xlu0 %1598, %v1467
  %v1600 = vpop.permute.xlu0 %1599
  %1603 = vset.pattern.permute.xlu0 0
  %1604 = vperm.xlu0 %1603, %v1468
  %v1605 = vpop.permute.xlu0 %1604
  %1608 = vset.pattern.permute.xlu0 0
  %1609 = vperm.xlu0 %1608, %v1469
  %v1610 = vpop.permute.xlu0 %1609
  %1613 = vset.pattern.permute.xlu0 0
  %1614 = vperm.xlu0 %1613, %v1470
  %v1615 = vpop.permute.xlu0 %1614
  %1618 = vset.pattern.permute.xlu0 0
  %1619 = vperm.xlu0 %1618, %v1471
  %v1620 = vpop.permute.xlu0 %1619
  %1623 = vset.pattern.permute.xlu0 0
  %1624 = vperm.xlu0 %1623, %v1472
  %v1625 = vpop.permute.xlu0 %1624
  %1628 = vset.pattern.permute.xlu0 0
  %1629 = vperm.xlu0 %1628, %v1473
  %v1630 = vpop.permute.xlu0 %1629
  %1633 = vset.pattern.permute.xlu0 0
  %1634 = vperm.xlu0 %1633, %v1474
  %v1635 = vpop.permute.xlu0 %1634
  %1638 = vset.pattern.permute.xlu0 0
  %1639 = vperm.xlu0 %1638, %v1475
  %v1640 = vpop.permute.xlu0 %1639
  %1643 = vset.pattern.permute.xlu0 0
  %1644 = vperm.xlu0 %1643, %v1476
  %v1645 = vpop.permute.xlu0 %1644
  %1648 = vset.pattern.permute.xlu0 0
  %1649 = vperm.xlu0 %1648, %v1477
  %v1650 = vpop.permute.xlu0 %1649
  %1653 = vset.pattern.permute.xlu0 0
  %1654 = vperm.xlu0 %1653, %v1478
  %v1655 = vpop.permute.xlu0 %1654
  %1658 = vset.pattern.permute.xlu0 0
  %1659 = vperm.xlu0 %1658, %v1479
  %v1660 = vpop.permute.xlu0 %1659
  %1663 = vset.pattern.permute.xlu0 0
  %1664 = vperm.xlu0 %1663, %v1480
  %v1665 = vpop.permute.xlu0 %1664
  %1668 = vset.pattern.permute.xlu0 0
  %1669 = vperm.xlu0 %1668, %v1481
  %v1670 = vpop.permute.xlu0 %1669
  %1673 = vset.pattern.permute.xlu0 0
  %1674 = vperm.xlu0 %1673, %v1482
  %v1675 = vpop.permute.xlu0 %1674
  %1678 = vset.pattern.permute.xlu0 0
  %1679 = vperm.xlu0 %1678, %v1483
  %v1680 = vpop.permute.xlu0 %1679
  %1683 = vset.pattern.permute.xlu0 0
  %1684 = vperm.xlu0 %1683, %v1484
  %v1685 = vpop.permute.xlu0 %1684
  %1688 = vset.pattern.permute.xlu0 0
  %1689 = vperm.xlu0 %1688, %v1485
  %v1690 = vpop.permute.xlu0 %1689
  %1693 = vset.pattern.permute.xlu0 0
  %1694 = vperm.xlu0 %1693, %v1486
  %v1695 = vpop.permute.xlu0 %1694
  %1698 = vset.pattern.permute.xlu0 0
  %1699 = vperm.xlu0 %1698, %v1487
  %v1700 = vpop.permute.xlu0 %1699
  %1703 = vset.pattern.permute.xlu0 0
  %1704 = vperm.xlu0 %1703, %v1488
  %v1705 = vpop.permute.xlu0 %1704
  %1708 = vset.pattern.permute.xlu0 0
  %1709 = vperm.xlu0 %1708, %v1489
  %v1710 = vpop.permute.xlu0 %1709
  %1713 = vset.pattern.permute.xlu0 0
  %1714 = vperm.xlu0 %1713, %v1490
  %v1715 = vpop.permute.xlu0 %1714
  %1718 = vset.pattern.permute.xlu0 0
  %1719 = vperm.xlu0 %1718, %v1491
  %v1720 = vpop.permute.xlu0 %1719
  %1723 = vset.pattern.permute.xlu0 0
  %1724 = vperm.xlu0 %1723, %v1492
  %v1725 = vpop.permute.xlu0 %1724
  %1728 = vset.pattern.permute.xlu0 0
  %1729 = vperm.xlu0 %1728, %v1493
  %v1730 = vpop.permute.xlu0 %1729
  %1733 = vset.pattern.permute.xlu0 0
  %1734 = vperm.xlu0 %1733, %v1494
  %v1735 = vpop.permute.xlu0 %1734
  %1738 = vset.pattern.permute.xlu0 0
  %1739 = vperm.xlu0 %1738, %v1495
  %v1740 = vpop.permute.xlu0 %1739
  %1743 = vset.pattern.permute.xlu0 0
  %1744 = vperm.xlu0 %1743, %v1496
  %v1745 = vpop.permute.xlu0 %1744
  %1748 = vset.pattern.permute.xlu0 0
  %1749 = vperm.xlu0 %1748, %v1497
  %v1750 = vpop.permute.xlu0 %1749
  %1753 = vset.pattern.permute.xlu0 0
  %1754 = vperm.xlu0 %1753, %v1498
  %v1755 = vpop.permute.xlu0 %1754
  %1758 = vset.pattern.permute.xlu0 0
  %1759 = vperm.xlu0 %1758, %v1499
  %v1760 = vpop.permute.xlu0 %1759
  %1763 = vset.pattern.permute.xlu0 0
  %1764 = vperm.xlu0 %1763, %v1500
  %v1765 = vpop.permute.xlu0 %1764
  %1768 = vset.pattern.permute.xlu0 0
  %1769 = vperm.xlu0 %1768, %v1501
  %v1770 = vpop.permute.xlu0 %1769
  %v1772 = vperm.slane %v994, 3
  %v1773 = vmul.f32 %v1505, %v1772
  %v1774 = vmul.f32 %v1510, %v1772
  %v1775 = vmul.f32 %v1515, %v1772
  %v1776 = vmul.f32 %v1520, %v1772
  %v1777 = vmul.f32 %v1525, %v1772
  %v1778 = vmul.f32 %v1530, %v1772
  %v1779 = vmul.f32 %v1535, %v1772
  %v1780 = vmul.f32 %v1540, %v1772
  %v1781 = vmul.f32 %v1545, %v1772
  %v1782 = vmul.f32 %v1550, %v1772
  %v1783 = vmul.f32 %v1555, %v1772
  %v1784 = vmul.f32 %v1560, %v1772
  %v1785 = vmul.f32 %v1565, %v1772
  %v1786 = vmul.f32 %v1570, %v1772
  %v1787 = vmul.f32 %v1575, %v1772
  %v1788 = vmul.f32 %v1580, %v1772
  %v1789 = vmul.f32 %v1585, %v1772
  %v1790 = vmul.f32 %v1590, %v1772
  %v1791 = vmul.f32 %v1595, %v1772
  %v1792 = vmul.f32 %v1600, %v1772
  %v1793 = vmul.f32 %v1605, %v1772
  %v1794 = vmul.f32 %v1610, %v1772
  %v1795 = vmul.f32 %v1615, %v1772
  %v1796 = vmul.f32 %v1620, %v1772
  %v1797 = vmul.f32 %v1625, %v1772
  %v1798 = vmul.f32 %v1630, %v1772
  %v1799 = vmul.f32 %v1635, %v1772
  %v1800 = vmul.f32 %v1640, %v1772
  %v1801 = vmul.f32 %v1645, %v1772
  %v1802 = vmul.f32 %v1650, %v1772
  %v1803 = vmul.f32 %v1655, %v1772
  %v1804 = vmul.f32 %v1660, %v1772
  %v1805 = vmul.f32 %v1665, %v1772
  %v1806 = vmul.f32 %v1670, %v1772
  %v1807 = vmul.f32 %v1675, %v1772
  %v1808 = vmul.f32 %v1680, %v1772
  %v1809 = vmul.f32 %v1685, %v1772
  %v1810 = vmul.f32 %v1690, %v1772
  %v1811 = vmul.f32 %v1695, %v1772
  %v1812 = vmul.f32 %v1700, %v1772
  %v1813 = vmul.f32 %v1705, %v1772
  %v1814 = vmul.f32 %v1710, %v1772
  %v1815 = vmul.f32 %v1715, %v1772
  %v1816 = vmul.f32 %v1720, %v1772
  %v1817 = vmul.f32 %v1725, %v1772
  %v1818 = vmul.f32 %v1730, %v1772
  %v1819 = vmul.f32 %v1735, %v1772
  %v1820 = vmul.f32 %v1740, %v1772
  %v1821 = vmul.f32 %v1745, %v1772
  %v1822 = vmul.f32 %v1750, %v1772
  %v1823 = vmul.f32 %v1755, %v1772
  %v1824 = vmul.f32 %v1760, %v1772
  %v1825 = vmul.f32 %v1765, %v1772
  %v1826 = vmul.f32 %v1770, %v1772
  %v1827 = vadd.f32 %v1339, %v1773
  %v1828 = vadd.f32 %v1340, %v1774
  %v1829 = vadd.f32 %v1341, %v1775
  %v1830 = vadd.f32 %v1342, %v1776
  %v1831 = vadd.f32 %v1343, %v1777
  %v1832 = vadd.f32 %v1344, %v1778
  %v1833 = vadd.f32 %v1345, %v1779
  %v1834 = vadd.f32 %v1346, %v1780
  %v1835 = vadd.f32 %v1347, %v1781
  %v1836 = vadd.f32 %v1348, %v1782
  %v1837 = vadd.f32 %v1349, %v1783
  %v1838 = vadd.f32 %v1350, %v1784
  %v1839 = vadd.f32 %v1351, %v1785
  %v1840 = vadd.f32 %v1352, %v1786
  %v1841 = vadd.f32 %v1353, %v1787
  %v1842 = vadd.f32 %v1354, %v1788
  %v1843 = vadd.f32 %v1355, %v1789
  %v1844 = vadd.f32 %v1356, %v1790
  %v1845 = vadd.f32 %v1357, %v1791
  %v1846 = vadd.f32 %v1358, %v1792
  %v1847 = vadd.f32 %v1359, %v1793
  %v1848 = vadd.f32 %v1360, %v1794
  %v1849 = vadd.f32 %v1361, %v1795
  %v1850 = vadd.f32 %v1362, %v1796
  %v1851 = vadd.f32 %v1363, %v1797
  %v1852 = vadd.f32 %v1364, %v1798
  %v1853 = vadd.f32 %v1365, %v1799
  %v1854 = vadd.f32 %v1366, %v1800
  %v1855 = vadd.f32 %v1367, %v1801
  %v1856 = vadd.f32 %v1368, %v1802
  %v1857 = vadd.f32 %v1369, %v1803
  %v1858 = vadd.f32 %v1370, %v1804
  %v1859 = vadd.f32 %v1371, %v1805
  %v1860 = vadd.f32 %v1372, %v1806
  %v1861 = vadd.f32 %v1373, %v1807
  %v1862 = vadd.f32 %v1374, %v1808
  %v1863 = vadd.f32 %v1375, %v1809
  %v1864 = vadd.f32 %v1376, %v1810
  %v1865 = vadd.f32 %v1377, %v1811
  %v1866 = vadd.f32 %v1378, %v1812
  %v1867 = vadd.f32 %v1379, %v1813
  %v1868 = vadd.f32 %v1380, %v1814
  %v1869 = vadd.f32 %v1381, %v1815
  %v1870 = vadd.f32 %v1382, %v1816
  %v1871 = vadd.f32 %v1383, %v1817
  %v1872 = vadd.f32 %v1384, %v1818
  %v1873 = vadd.f32 %v1385, %v1819
  %v1874 = vadd.f32 %v1386, %v1820
  %v1875 = vadd.f32 %v1387, %v1821
  %v1876 = vadd.f32 %v1388, %v1822
  %v1877 = vadd.f32 %v1389, %v1823
  %v1878 = vadd.f32 %v1390, %v1824
  %v1879 = vadd.f32 %v1391, %v1825
  %v1880 = vadd.f32 %v1392, %v1826
  %v1881 = vld [vmem:[%s1393 + $0x8] sm:$0x3]
  %v1882 = vld [vmem:[%s1393 + $0x14] sm:$0x3]
  %v1883 = vld [vmem:[%s1393 + $0x20] sm:$0x3]
  %v1884 = vld [vmem:[%s1393 + $0x2c] sm:$0x3]
  %v1885 = vld [vmem:[%s1393 + $0x38] sm:$0x3]
  %v1886 = vld [vmem:[%s1393 + $0x44] sm:$0x3]
  %v1887 = vld [vmem:[%s1393 + $0x50] sm:$0x3]
  %v1888 = vld [vmem:[%s1393 + $0x5c] sm:$0x3]
  %v1889 = vld [vmem:[%s1393 + $0x68] sm:$0x3]
  %v1890 = vld [vmem:[%s1393 + $0x74] sm:$0x3]
  %v1891 = vld [vmem:[%s1393 + $0x80] sm:$0x3]
  %v1892 = vld [vmem:[%s1393 + $0x8c] sm:$0x3]
  %v1893 = vld [vmem:[%s1393 + $0x98] sm:$0x3]
  %v1894 = vld [vmem:[%s1393 + $0xa4] sm:$0x3]
  %v1895 = vld [vmem:[%s1393 + $0xb0] sm:$0x3]
  %v1896 = vld [vmem:[%s1393 + $0xbc] sm:$0x3]
  %v1897 = vld [vmem:[%s1393 + $0xc8] sm:$0x3]
  %v1898 = vld [vmem:[%s1393 + $0xd4] sm:$0x3]
  %v1899 = vunpack.c.l.bf16 %v1881
  %v1900 = vunpack.c.l.bf16 %v1882
  %v1901 = vunpack.c.l.bf16 %v1883
  %v1902 = vunpack.c.l.bf16 %v1884
  %v1903 = vunpack.c.l.bf16 %v1885
  %v1904 = vunpack.c.l.bf16 %v1886
  %v1905 = vunpack.c.l.bf16 %v1887
  %v1906 = vunpack.c.l.bf16 %v1888
  %v1907 = vunpack.c.l.bf16 %v1889
  %v1908 = vunpack.c.l.bf16 %v1890
  %v1909 = vunpack.c.l.bf16 %v1891
  %v1910 = vunpack.c.l.bf16 %v1892
  %v1911 = vunpack.c.l.bf16 %v1893
  %v1912 = vunpack.c.l.bf16 %v1894
  %v1913 = vunpack.c.l.bf16 %v1895
  %v1914 = vunpack.c.l.bf16 %v1896
  %v1915 = vunpack.c.l.bf16 %v1897
  %v1916 = vunpack.c.l.bf16 %v1898
  %v1917 = vld [vmem:[%s1] sm:$0x4]
  %v1918 = vunpack.c.l.bf16 %v1917
  %1920 = vset.pattern.permute.xlu0 0
  %1921 = vperm.xlu0 %1920, %v1899
  %v1922 = vpop.permute.xlu0 %1921
  %1925 = vset.pattern.permute.xlu0 0
  %1926 = vperm.xlu0 %1925, %v1900
  %v1927 = vpop.permute.xlu0 %1926
  %1930 = vset.pattern.permute.xlu0 0
  %1931 = vperm.xlu0 %1930, %v1901
  %v1932 = vpop.permute.xlu0 %1931
  %1935 = vset.pattern.permute.xlu0 0
  %1936 = vperm.xlu0 %1935, %v1902
  %v1937 = vpop.permute.xlu0 %1936
  %1940 = vset.pattern.permute.xlu0 0
  %1941 = vperm.xlu0 %1940, %v1903
  %v1942 = vpop.permute.xlu0 %1941
  %1945 = vset.pattern.permute.xlu0 0
  %1946 = vperm.xlu0 %1945, %v1904
  %v1947 = vpop.permute.xlu0 %1946
  %1950 = vset.pattern.permute.xlu0 0
  %1951 = vperm.xlu0 %1950, %v1905
  %v1952 = vpop.permute.xlu0 %1951
  %1955 = vset.pattern.permute.xlu0 0
  %1956 = vperm.xlu0 %1955, %v1906
  %v1957 = vpop.permute.xlu0 %1956
  %1960 = vset.pattern.permute.xlu0 0
  %1961 = vperm.xlu0 %1960, %v1907
  %v1962 = vpop.permute.xlu0 %1961
  %1965 = vset.pattern.permute.xlu0 0
  %1966 = vperm.xlu0 %1965, %v1908
  %v1967 = vpop.permute.xlu0 %1966
  %1970 = vset.pattern.permute.xlu0 0
  %1971 = vperm.xlu0 %1970, %v1909
  %v1972 = vpop.permute.xlu0 %1971
  %1975 = vset.pattern.permute.xlu0 0
  %1976 = vperm.xlu0 %1975, %v1910
  %v1977 = vpop.permute.xlu0 %1976
  %1980 = vset.pattern.permute.xlu0 0
  %1981 = vperm.xlu0 %1980, %v1911
  %v1982 = vpop.permute.xlu0 %1981
  %1985 = vset.pattern.permute.xlu0 0
  %1986 = vperm.xlu0 %1985, %v1912
  %v1987 = vpop.permute.xlu0 %1986
  %1990 = vset.pattern.permute.xlu0 0
  %1991 = vperm.xlu0 %1990, %v1913
  %v1992 = vpop.permute.xlu0 %1991
  %1995 = vset.pattern.permute.xlu0 0
  %1996 = vperm.xlu0 %1995, %v1914
  %v1997 = vpop.permute.xlu0 %1996
  %2000 = vset.pattern.permute.xlu0 0
  %2001 = vperm.xlu0 %2000, %v1915
  %v2002 = vpop.permute.xlu0 %2001
  %2005 = vset.pattern.permute.xlu0 0
  %2006 = vperm.xlu0 %2005, %v1916
  %v2007 = vpop.permute.xlu0 %2006
  %v2009 = vperm.slane %v1918, 4
  %v2010 = vmul.f32 %v1505, %v2009
  %v2011 = vmul.f32 %v1510, %v2009
  %v2012 = vmul.f32 %v1922, %v2009
  %v2013 = vmul.f32 %v1520, %v2009
  %v2014 = vmul.f32 %v1525, %v2009
  %v2015 = vmul.f32 %v1927, %v2009
  %v2016 = vmul.f32 %v1535, %v2009
  %v2017 = vmul.f32 %v1540, %v2009
  %v2018 = vmul.f32 %v1932, %v2009
  %v2019 = vmul.f32 %v1550, %v2009
  %v2020 = vmul.f32 %v1555, %v2009
  %v2021 = vmul.f32 %v1937, %v2009
  %v2022 = vmul.f32 %v1565, %v2009
  %v2023 = vmul.f32 %v1570, %v2009
  %v2024 = vmul.f32 %v1942, %v2009
  %v2025 = vmul.f32 %v1580, %v2009
  %v2026 = vmul.f32 %v1585, %v2009
  %v2027 = vmul.f32 %v1947, %v2009
  %v2028 = vmul.f32 %v1595, %v2009
  %v2029 = vmul.f32 %v1600, %v2009
  %v2030 = vmul.f32 %v1952, %v2009
  %v2031 = vmul.f32 %v1610, %v2009
  %v2032 = vmul.f32 %v1615, %v2009
  %v2033 = vmul.f32 %v1957, %v2009
  %v2034 = vmul.f32 %v1625, %v2009
  %v2035 = vmul.f32 %v1630, %v2009
  %v2036 = vmul.f32 %v1962, %v2009
  %v2037 = vmul.f32 %v1640, %v2009
  %v2038 = vmul.f32 %v1645, %v2009
  %v2039 = vmul.f32 %v1967, %v2009
  %v2040 = vmul.f32 %v1655, %v2009
  %v2041 = vmul.f32 %v1660, %v2009
  %v2042 = vmul.f32 %v1972, %v2009
  %v2043 = vmul.f32 %v1670, %v2009
  %v2044 = vmul.f32 %v1675, %v2009
  %v2045 = vmul.f32 %v1977, %v2009
  %v2046 = vmul.f32 %v1685, %v2009
  %v2047 = vmul.f32 %v1690, %v2009
  %v2048 = vmul.f32 %v1982, %v2009
  %v2049 = vmul.f32 %v1700, %v2009
  %v2050 = vmul.f32 %v1705, %v2009
  %v2051 = vmul.f32 %v1987, %v2009
  %v2052 = vmul.f32 %v1715, %v2009
  %v2053 = vmul.f32 %v1720, %v2009
  %v2054 = vmul.f32 %v1992, %v2009
  %v2055 = vmul.f32 %v1730, %v2009
  %v2056 = vmul.f32 %v1735, %v2009
  %v2057 = vmul.f32 %v1997, %v2009
  %v2058 = vmul.f32 %v1745, %v2009
  %v2059 = vmul.f32 %v1750, %v2009
  %v2060 = vmul.f32 %v2002, %v2009
  %v2061 = vmul.f32 %v1760, %v2009
  %v2062 = vmul.f32 %v1765, %v2009
  %v2063 = vmul.f32 %v2007, %v2009
  %v2118 = vrot.slane %v2010, 1
  %v2119 = vrot.slane %v2011, 1
  %v2120 = vsel %vm758, %v2118, %v2119
  %v2121 = vrot.slane %v2012, 1
  %v2122 = vsel %vm758, %v2119, %v2121
  %v2123 = vrot.slane %v2013, 1
  %v2124 = vrot.slane %v2014, 1
  %v2125 = vsel %vm758, %v2123, %v2124
  %v2126 = vrot.slane %v2015, 1
  %v2127 = vsel %vm758, %v2124, %v2126
  %v2128 = vrot.slane %v2016, 1
  %v2129 = vrot.slane %v2017, 1
  %v2130 = vsel %vm758, %v2128, %v2129
  %v2131 = vrot.slane %v2018, 1
  %v2132 = vsel %vm758, %v2129, %v2131
  %v2133 = vrot.slane %v2019, 1
  %v2134 = vrot.slane %v2020, 1
  %v2135 = vsel %vm758, %v2133, %v2134
  %v2136 = vrot.slane %v2021, 1
  %v2137 = vsel %vm758, %v2134, %v2136
  %v2138 = vrot.slane %v2022, 1
  %v2139 = vrot.slane %v2023, 1
  %v2140 = vsel %vm758, %v2138, %v2139
  %v2141 = vrot.slane %v2024, 1
  %v2142 = vsel %vm758, %v2139, %v2141
  %v2143 = vrot.slane %v2025, 1
  %v2144 = vrot.slane %v2026, 1
  %v2145 = vsel %vm758, %v2143, %v2144
  %v2146 = vrot.slane %v2027, 1
  %v2147 = vsel %vm758, %v2144, %v2146
  %v2148 = vrot.slane %v2028, 1
  %v2149 = vrot.slane %v2029, 1
  %v2150 = vsel %vm758, %v2148, %v2149
  %v2151 = vrot.slane %v2030, 1
  %v2152 = vsel %vm758, %v2149, %v2151
  %v2153 = vrot.slane %v2031, 1
  %v2154 = vrot.slane %v2032, 1
  %v2155 = vsel %vm758, %v2153, %v2154
  %v2156 = vrot.slane %v2033, 1
  %v2157 = vsel %vm758, %v2154, %v2156
  %v2158 = vrot.slane %v2034, 1
  %v2159 = vrot.slane %v2035, 1
  %v2160 = vsel %vm758, %v2158, %v2159
  %v2161 = vrot.slane %v2036, 1
  %v2162 = vsel %vm758, %v2159, %v2161
  %v2163 = vrot.slane %v2037, 1
  %v2164 = vrot.slane %v2038, 1
  %v2165 = vsel %vm758, %v2163, %v2164
  %v2166 = vrot.slane %v2039, 1
  %v2167 = vsel %vm758, %v2164, %v2166
  %v2168 = vrot.slane %v2040, 1
  %v2169 = vrot.slane %v2041, 1
  %v2170 = vsel %vm758, %v2168, %v2169
  %v2171 = vrot.slane %v2042, 1
  %v2172 = vsel %vm758, %v2169, %v2171
  %v2173 = vrot.slane %v2043, 1
  %v2174 = vrot.slane %v2044, 1
  %v2175 = vsel %vm758, %v2173, %v2174
  %v2176 = vrot.slane %v2045, 1
  %v2177 = vsel %vm758, %v2174, %v2176
  %v2178 = vrot.slane %v2046, 1
  %v2179 = vrot.slane %v2047, 1
  %v2180 = vsel %vm758, %v2178, %v2179
  %v2181 = vrot.slane %v2048, 1
  %v2182 = vsel %vm758, %v2179, %v2181
  %v2183 = vrot.slane %v2049, 1
  %v2184 = vrot.slane %v2050, 1
  %v2185 = vsel %vm758, %v2183, %v2184
  %v2186 = vrot.slane %v2051, 1
  %v2187 = vsel %vm758, %v2184, %v2186
  %v2188 = vrot.slane %v2052, 1
  %v2189 = vrot.slane %v2053, 1
  %v2190 = vsel %vm758, %v2188, %v2189
  %v2191 = vrot.slane %v2054, 1
  %v2192 = vsel %vm758, %v2189, %v2191
  %v2193 = vrot.slane %v2055, 1
  %v2194 = vrot.slane %v2056, 1
  %v2195 = vsel %vm758, %v2193, %v2194
  %v2196 = vrot.slane %v2057, 1
  %v2197 = vsel %vm758, %v2194, %v2196
  %v2198 = vrot.slane %v2058, 1
  %v2199 = vrot.slane %v2059, 1
  %v2200 = vsel %vm758, %v2198, %v2199
  %v2201 = vrot.slane %v2060, 1
  %v2202 = vsel %vm758, %v2199, %v2201
  %v2203 = vrot.slane %v2061, 1
  %v2204 = vrot.slane %v2062, 1
  %v2205 = vsel %vm758, %v2203, %v2204
  %v2206 = vrot.slane %v2063, 1
  %v2207 = vsel %vm758, %v2204, %v2206
  %v2262 = vadd.f32 %v1827, %v2120
  %v2263 = vadd.f32 %v1828, %v2122
  %v2264 = vadd.f32 %v1829, %v2121
  %v2265 = vadd.f32 %v1830, %v2125
  %v2266 = vadd.f32 %v1831, %v2127
  %v2267 = vadd.f32 %v1832, %v2126
  %v2268 = vadd.f32 %v1833, %v2130
  %v2269 = vadd.f32 %v1834, %v2132
  %v2270 = vadd.f32 %v1835, %v2131
  %v2271 = vadd.f32 %v1836, %v2135
  %v2272 = vadd.f32 %v1837, %v2137
  %v2273 = vadd.f32 %v1838, %v2136
  %v2274 = vadd.f32 %v1839, %v2140
  %v2275 = vadd.f32 %v1840, %v2142
  %v2276 = vadd.f32 %v1841, %v2141
  %v2277 = vadd.f32 %v1842, %v2145
  %v2278 = vadd.f32 %v1843, %v2147
  %v2279 = vadd.f32 %v1844, %v2146
  %v2280 = vadd.f32 %v1845, %v2150
  %v2281 = vadd.f32 %v1846, %v2152
  %v2282 = vadd.f32 %v1847, %v2151
  %v2283 = vadd.f32 %v1848, %v2155
  %v2284 = vadd.f32 %v1849, %v2157
  %v2285 = vadd.f32 %v1850, %v2156
  %v2286 = vadd.f32 %v1851, %v2160
  %v2287 = vadd.f32 %v1852, %v2162
  %v2288 = vadd.f32 %v1853, %v2161
  %v2289 = vadd.f32 %v1854, %v2165
  %v2290 = vadd.f32 %v1855, %v2167
  %v2291 = vadd.f32 %v1856, %v2166
  %v2292 = vadd.f32 %v1857, %v2170
  %v2293 = vadd.f32 %v1858, %v2172
  %v2294 = vadd.f32 %v1859, %v2171
  %v2295 = vadd.f32 %v1860, %v2175
  %v2296 = vadd.f32 %v1861, %v2177
  %v2297 = vadd.f32 %v1862, %v2176
  %v2298 = vadd.f32 %v1863, %v2180
  %v2299 = vadd.f32 %v1864, %v2182
  %v2300 = vadd.f32 %v1865, %v2181
  %v2301 = vadd.f32 %v1866, %v2185
  %v2302 = vadd.f32 %v1867, %v2187
  %v2303 = vadd.f32 %v1868, %v2186
  %v2304 = vadd.f32 %v1869, %v2190
  %v2305 = vadd.f32 %v1870, %v2192
  %v2306 = vadd.f32 %v1871, %v2191
  %v2307 = vadd.f32 %v1872, %v2195
  %v2308 = vadd.f32 %v1873, %v2197
  %v2309 = vadd.f32 %v1874, %v2196
  %v2310 = vadd.f32 %v1875, %v2200
  %v2311 = vadd.f32 %v1876, %v2202
  %v2312 = vadd.f32 %v1877, %v2201
  %v2313 = vadd.f32 %v1878, %v2205
  %v2314 = vadd.f32 %v1879, %v2207
  %v2315 = vadd.f32 %v1880, %v2206
  %v2316 = vld [vmem:[%s1393] sm:$0xe]
  %v2317 = vld [vmem:[%s1393 + $0xc] sm:$0xe]
  %v2318 = vld [vmem:[%s1393 + $0x18] sm:$0xe]
  %v2319 = vld [vmem:[%s1393 + $0x24] sm:$0xe]
  %v2320 = vld [vmem:[%s1393 + $0x30] sm:$0xe]
  %v2321 = vld [vmem:[%s1393 + $0x3c] sm:$0xe]
  %v2322 = vld [vmem:[%s1393 + $0x48] sm:$0xe]
  %v2323 = vld [vmem:[%s1393 + $0x54] sm:$0xe]
  %v2324 = vld [vmem:[%s1393 + $0x60] sm:$0xe]
  %v2325 = vld [vmem:[%s1393 + $0x6c] sm:$0xe]
  %v2326 = vld [vmem:[%s1393 + $0x78] sm:$0xe]
  %v2327 = vld [vmem:[%s1393 + $0x84] sm:$0xe]
  %v2328 = vld [vmem:[%s1393 + $0x90] sm:$0xe]
  %v2329 = vld [vmem:[%s1393 + $0x9c] sm:$0xe]
  %v2330 = vld [vmem:[%s1393 + $0xa8] sm:$0xe]
  %v2331 = vld [vmem:[%s1393 + $0xb4] sm:$0xe]
  %v2332 = vld [vmem:[%s1393 + $0xc0] sm:$0xe]
  %v2333 = vld [vmem:[%s1393 + $0xcc] sm:$0xe]
  %v2334 = vunpack.c.l.bf16 %v2316
  %v2335 = vunpack.c.l.bf16 %v2317
  %v2336 = vunpack.c.l.bf16 %v2318
  %v2337 = vunpack.c.l.bf16 %v2319
  %v2338 = vunpack.c.l.bf16 %v2320
  %v2339 = vunpack.c.l.bf16 %v2321
  %v2340 = vunpack.c.l.bf16 %v2322
  %v2341 = vunpack.c.l.bf16 %v2323
  %v2342 = vunpack.c.l.bf16 %v2324
  %v2343 = vunpack.c.l.bf16 %v2325
  %v2344 = vunpack.c.l.bf16 %v2326
  %v2345 = vunpack.c.l.bf16 %v2327
  %v2346 = vunpack.c.l.bf16 %v2328
  %v2347 = vunpack.c.l.bf16 %v2329
  %v2348 = vunpack.c.l.bf16 %v2330
  %v2349 = vunpack.c.l.bf16 %v2331
  %v2350 = vunpack.c.l.bf16 %v2332
  %v2351 = vunpack.c.l.bf16 %v2333
  %2353 = vset.pattern.permute.xlu0 0
  %2354 = vperm.xlu0 %2353, %v2334
  %v2355 = vpop.permute.xlu0 %2354
  %2358 = vset.pattern.permute.xlu0 0
  %2359 = vperm.xlu0 %2358, %v2335
  %v2360 = vpop.permute.xlu0 %2359
  %2363 = vset.pattern.permute.xlu0 0
  %2364 = vperm.xlu0 %2363, %v2336
  %v2365 = vpop.permute.xlu0 %2364
  %2368 = vset.pattern.permute.xlu0 0
  %2369 = vperm.xlu0 %2368, %v2337
  %v2370 = vpop.permute.xlu0 %2369
  %2373 = vset.pattern.permute.xlu0 0
  %2374 = vperm.xlu0 %2373, %v2338
  %v2375 = vpop.permute.xlu0 %2374
  %2378 = vset.pattern.permute.xlu0 0
  %2379 = vperm.xlu0 %2378, %v2339
  %v2380 = vpop.permute.xlu0 %2379
  %2383 = vset.pattern.permute.xlu0 0
  %2384 = vperm.xlu0 %2383, %v2340
  %v2385 = vpop.permute.xlu0 %2384
  %2388 = vset.pattern.permute.xlu0 0
  %2389 = vperm.xlu0 %2388, %v2341
  %v2390 = vpop.permute.xlu0 %2389
  %2393 = vset.pattern.permute.xlu0 0
  %2394 = vperm.xlu0 %2393, %v2342
  %v2395 = vpop.permute.xlu0 %2394
  %2398 = vset.pattern.permute.xlu0 0
  %2399 = vperm.xlu0 %2398, %v2343
  %v2400 = vpop.permute.xlu0 %2399
  %2403 = vset.pattern.permute.xlu0 0
  %2404 = vperm.xlu0 %2403, %v2344
  %v2405 = vpop.permute.xlu0 %2404
  %2408 = vset.pattern.permute.xlu0 0
  %2409 = vperm.xlu0 %2408, %v2345
  %v2410 = vpop.permute.xlu0 %2409
  %2413 = vset.pattern.permute.xlu0 0
  %2414 = vperm.xlu0 %2413, %v2346
  %v2415 = vpop.permute.xlu0 %2414
  %2418 = vset.pattern.permute.xlu0 0
  %2419 = vperm.xlu0 %2418, %v2347
  %v2420 = vpop.permute.xlu0 %2419
  %2423 = vset.pattern.permute.xlu0 0
  %2424 = vperm.xlu0 %2423, %v2348
  %v2425 = vpop.permute.xlu0 %2424
  %2428 = vset.pattern.permute.xlu0 0
  %2429 = vperm.xlu0 %2428, %v2349
  %v2430 = vpop.permute.xlu0 %2429
  %2433 = vset.pattern.permute.xlu0 0
  %2434 = vperm.xlu0 %2433, %v2350
  %v2435 = vpop.permute.xlu0 %2434
  %2438 = vset.pattern.permute.xlu0 0
  %2439 = vperm.xlu0 %2438, %v2351
  %v2440 = vpop.permute.xlu0 %2439
  %v2442 = vperm.slane %v1918, 5
  %v2443 = vmul.f32 %v2355, %v2442
  %v2444 = vmul.f32 %v1510, %v2442
  %v2445 = vmul.f32 %v1922, %v2442
  %v2446 = vmul.f32 %v2360, %v2442
  %v2447 = vmul.f32 %v1525, %v2442
  %v2448 = vmul.f32 %v1927, %v2442
  %v2449 = vmul.f32 %v2365, %v2442
  %v2450 = vmul.f32 %v1540, %v2442
  %v2451 = vmul.f32 %v1932, %v2442
  %v2452 = vmul.f32 %v2370, %v2442
  %v2453 = vmul.f32 %v1555, %v2442
  %v2454 = vmul.f32 %v1937, %v2442
  %v2455 = vmul.f32 %v2375, %v2442
  %v2456 = vmul.f32 %v1570, %v2442
  %v2457 = vmul.f32 %v1942, %v2442
  %v2458 = vmul.f32 %v2380, %v2442
  %v2459 = vmul.f32 %v1585, %v2442
  %v2460 = vmul.f32 %v1947, %v2442
  %v2461 = vmul.f32 %v2385, %v2442
  %v2462 = vmul.f32 %v1600, %v2442
  %v2463 = vmul.f32 %v1952, %v2442
  %v2464 = vmul.f32 %v2390, %v2442
  %v2465 = vmul.f32 %v1615, %v2442
  %v2466 = vmul.f32 %v1957, %v2442
  %v2467 = vmul.f32 %v2395, %v2442
  %v2468 = vmul.f32 %v1630, %v2442
  %v2469 = vmul.f32 %v1962, %v2442
  %v2470 = vmul.f32 %v2400, %v2442
  %v2471 = vmul.f32 %v1645, %v2442
  %v2472 = vmul.f32 %v1967, %v2442
  %v2473 = vmul.f32 %v2405, %v2442
  %v2474 = vmul.f32 %v1660, %v2442
  %v2475 = vmul.f32 %v1972, %v2442
  %v2476 = vmul.f32 %v2410, %v2442
  %v2477 = vmul.f32 %v1675, %v2442
  %v2478 = vmul.f32 %v1977, %v2442
  %v2479 = vmul.f32 %v2415, %v2442
  %v2480 = vmul.f32 %v1690, %v2442
  %v2481 = vmul.f32 %v1982, %v2442
  %v2482 = vmul.f32 %v2420, %v2442
  %v2483 = vmul.f32 %v1705, %v2442
  %v2484 = vmul.f32 %v1987, %v2442
  %v2485 = vmul.f32 %v2425, %v2442
  %v2486 = vmul.f32 %v1720, %v2442
  %v2487 = vmul.f32 %v1992, %v2442
  %v2488 = vmul.f32 %v2430, %v2442
  %v2489 = vmul.f32 %v1735, %v2442
  %v2490 = vmul.f32 %v1997, %v2442
  %v2491 = vmul.f32 %v2435, %v2442
  %v2492 = vmul.f32 %v1750, %v2442
  %v2493 = vmul.f32 %v2002, %v2442
  %v2494 = vmul.f32 %v2440, %v2442
  %v2495 = vmul.f32 %v1765, %v2442
  %v2496 = vmul.f32 %v2007, %v2442
  %v2551 = vrot.slane %v2443, 2
  %v2552 = vrot.slane %v2444, 2
  %v2553 = vsel %vm1194, %v2551, %v2552
  %v2554 = vrot.slane %v2445, 2
  %v2555 = vsel %vm1194, %v2552, %v2554
  %v2556 = vrot.slane %v2446, 2
  %v2557 = vrot.slane %v2447, 2
  %v2558 = vsel %vm1194, %v2556, %v2557
  %v2559 = vrot.slane %v2448, 2
  %v2560 = vsel %vm1194, %v2557, %v2559
  %v2561 = vrot.slane %v2449, 2
  %v2562 = vrot.slane %v2450, 2
  %v2563 = vsel %vm1194, %v2561, %v2562
  %v2564 = vrot.slane %v2451, 2
  %v2565 = vsel %vm1194, %v2562, %v2564
  %v2566 = vrot.slane %v2452, 2
  %v2567 = vrot.slane %v2453, 2
  %v2568 = vsel %vm1194, %v2566, %v2567
  %v2569 = vrot.slane %v2454, 2
  %v2570 = vsel %vm1194, %v2567, %v2569
  %v2571 = vrot.slane %v2455, 2
  %v2572 = vrot.slane %v2456, 2
  %v2573 = vsel %vm1194, %v2571, %v2572
  %v2574 = vrot.slane %v2457, 2
  %v2575 = vsel %vm1194, %v2572, %v2574
  %v2576 = vrot.slane %v2458, 2
  %v2577 = vrot.slane %v2459, 2
  %v2578 = vsel %vm1194, %v2576, %v2577
  %v2579 = vrot.slane %v2460, 2
  %v2580 = vsel %vm1194, %v2577, %v2579
  %v2581 = vrot.slane %v2461, 2
  %v2582 = vrot.slane %v2462, 2
  %v2583 = vsel %vm1194, %v2581, %v2582
  %v2584 = vrot.slane %v2463, 2
  %v2585 = vsel %vm1194, %v2582, %v2584
  %v2586 = vrot.slane %v2464, 2
  %v2587 = vrot.slane %v2465, 2
  %v2588 = vsel %vm1194, %v2586, %v2587
  %v2589 = vrot.slane %v2466, 2
  %v2590 = vsel %vm1194, %v2587, %v2589
  %v2591 = vrot.slane %v2467, 2
  %v2592 = vrot.slane %v2468, 2
  %v2593 = vsel %vm1194, %v2591, %v2592
  %v2594 = vrot.slane %v2469, 2
  %v2595 = vsel %vm1194, %v2592, %v2594
  %v2596 = vrot.slane %v2470, 2
  %v2597 = vrot.slane %v2471, 2
  %v2598 = vsel %vm1194, %v2596, %v2597
  %v2599 = vrot.slane %v2472, 2
  %v2600 = vsel %vm1194, %v2597, %v2599
  %v2601 = vrot.slane %v2473, 2
  %v2602 = vrot.slane %v2474, 2
  %v2603 = vsel %vm1194, %v2601, %v2602
  %v2604 = vrot.slane %v2475, 2
  %v2605 = vsel %vm1194, %v2602, %v2604
  %v2606 = vrot.slane %v2476, 2
  %v2607 = vrot.slane %v2477, 2
  %v2608 = vsel %vm1194, %v2606, %v2607
  %v2609 = vrot.slane %v2478, 2
  %v2610 = vsel %vm1194, %v2607, %v2609
  %v2611 = vrot.slane %v2479, 2
  %v2612 = vrot.slane %v2480, 2
  %v2613 = vsel %vm1194, %v2611, %v2612
  %v2614 = vrot.slane %v2481, 2
  %v2615 = vsel %vm1194, %v2612, %v2614
  %v2616 = vrot.slane %v2482, 2
  %v2617 = vrot.slane %v2483, 2
  %v2618 = vsel %vm1194, %v2616, %v2617
  %v2619 = vrot.slane %v2484, 2
  %v2620 = vsel %vm1194, %v2617, %v2619
  %v2621 = vrot.slane %v2485, 2
  %v2622 = vrot.slane %v2486, 2
  %v2623 = vsel %vm1194, %v2621, %v2622
  %v2624 = vrot.slane %v2487, 2
  %v2625 = vsel %vm1194, %v2622, %v2624
  %v2626 = vrot.slane %v2488, 2
  %v2627 = vrot.slane %v2489, 2
  %v2628 = vsel %vm1194, %v2626, %v2627
  %v2629 = vrot.slane %v2490, 2
  %v2630 = vsel %vm1194, %v2627, %v2629
  %v2631 = vrot.slane %v2491, 2
  %v2632 = vrot.slane %v2492, 2
  %v2633 = vsel %vm1194, %v2631, %v2632
  %v2634 = vrot.slane %v2493, 2
  %v2635 = vsel %vm1194, %v2632, %v2634
  %v2636 = vrot.slane %v2494, 2
  %v2637 = vrot.slane %v2495, 2
  %v2638 = vsel %vm1194, %v2636, %v2637
  %v2639 = vrot.slane %v2496, 2
  %v2640 = vsel %vm1194, %v2637, %v2639
  %v2695 = vadd.f32 %v2262, %v2553
  %v2696 = vadd.f32 %v2263, %v2555
  %v2697 = vadd.f32 %v2264, %v2554
  %v2698 = vadd.f32 %v2265, %v2558
  %v2699 = vadd.f32 %v2266, %v2560
  %v2700 = vadd.f32 %v2267, %v2559
  %v2701 = vadd.f32 %v2268, %v2563
  %v2702 = vadd.f32 %v2269, %v2565
  %v2703 = vadd.f32 %v2270, %v2564
  %v2704 = vadd.f32 %v2271, %v2568
  %v2705 = vadd.f32 %v2272, %v2570
  %v2706 = vadd.f32 %v2273, %v2569
  %v2707 = vadd.f32 %v2274, %v2573
  %v2708 = vadd.f32 %v2275, %v2575
  %v2709 = vadd.f32 %v2276, %v2574
  %v2710 = vadd.f32 %v2277, %v2578
  %v2711 = vadd.f32 %v2278, %v2580
  %v2712 = vadd.f32 %v2279, %v2579
  %v2713 = vadd.f32 %v2280, %v2583
  %v2714 = vadd.f32 %v2281, %v2585
  %v2715 = vadd.f32 %v2282, %v2584
  %v2716 = vadd.f32 %v2283, %v2588
  %v2717 = vadd.f32 %v2284, %v2590
  %v2718 = vadd.f32 %v2285, %v2589
  %v2719 = vadd.f32 %v2286, %v2593
  %v2720 = vadd.f32 %v2287, %v2595
  %v2721 = vadd.f32 %v2288, %v2594
  %v2722 = vadd.f32 %v2289, %v2598
  %v2723 = vadd.f32 %v2290, %v2600
  %v2724 = vadd.f32 %v2291, %v2599
  %v2725 = vadd.f32 %v2292, %v2603
  %v2726 = vadd.f32 %v2293, %v2605
  %v2727 = vadd.f32 %v2294, %v2604
  %v2728 = vadd.f32 %v2295, %v2608
  %v2729 = vadd.f32 %v2296, %v2610
  %v2730 = vadd.f32 %v2297, %v2609
  %v2731 = vadd.f32 %v2298, %v2613
  %v2732 = vadd.f32 %v2299, %v2615
  %v2733 = vadd.f32 %v2300, %v2614
  %v2734 = vadd.f32 %v2301, %v2618
  %v2735 = vadd.f32 %v2302, %v2620
  %v2736 = vadd.f32 %v2303, %v2619
  %v2737 = vadd.f32 %v2304, %v2623
  %v2738 = vadd.f32 %v2305, %v2625
  %v2739 = vadd.f32 %v2306, %v2624
  %v2740 = vadd.f32 %v2307, %v2628
  %v2741 = vadd.f32 %v2308, %v2630
  %v2742 = vadd.f32 %v2309, %v2629
  %v2743 = vadd.f32 %v2310, %v2633
  %v2744 = vadd.f32 %v2311, %v2635
  %v2745 = vadd.f32 %v2312, %v2634
  %v2746 = vadd.f32 %v2313, %v2638
  %v2747 = vadd.f32 %v2314, %v2640
  %v2748 = vadd.f32 %v2315, %v2639
  %s2749 = scalar_lea.vmem %s0, 24
  %v2750 = vld [vmem:[%s2749] sm:$0xf]
  %v2751 = vld [vmem:[%s2749 + $0x4] sm:$0xf]
  %v2752 = vld [vmem:[%s2749 + $0x8] sm:$0x1]
  %v2753 = vld [vmem:[%s2749 + $0xc] sm:$0xf]
  %v2754 = vld [vmem:[%s2749 + $0x10] sm:$0xf]
  %v2755 = vld [vmem:[%s2749 + $0x14] sm:$0x1]
  %v2756 = vld [vmem:[%s2749 + $0x18] sm:$0xf]
  %v2757 = vld [vmem:[%s2749 + $0x1c] sm:$0xf]
  %v2758 = vld [vmem:[%s2749 + $0x20] sm:$0x1]
  %v2759 = vld [vmem:[%s2749 + $0x24] sm:$0xf]
  %v2760 = vld [vmem:[%s2749 + $0x28] sm:$0xf]
  %v2761 = vld [vmem:[%s2749 + $0x2c] sm:$0x1]
  %v2762 = vld [vmem:[%s2749 + $0x30] sm:$0xf]
  %v2763 = vld [vmem:[%s2749 + $0x34] sm:$0xf]
  %v2764 = vld [vmem:[%s2749 + $0x38] sm:$0x1]
  %v2765 = vld [vmem:[%s2749 + $0x3c] sm:$0xf]
  %v2766 = vld [vmem:[%s2749 + $0x40] sm:$0xf]
  %v2767 = vld [vmem:[%s2749 + $0x44] sm:$0x1]
  %v2768 = vld [vmem:[%s2749 + $0x48] sm:$0xf]
  %v2769 = vld [vmem:[%s2749 + $0x4c] sm:$0xf]
  %v2770 = vld [vmem:[%s2749 + $0x50] sm:$0x1]
  %v2771 = vld [vmem:[%s2749 + $0x54] sm:$0xf]
  %v2772 = vld [vmem:[%s2749 + $0x58] sm:$0xf]
  %v2773 = vld [vmem:[%s2749 + $0x5c] sm:$0x1]
  %v2774 = vld [vmem:[%s2749 + $0x60] sm:$0xf]
  %v2775 = vld [vmem:[%s2749 + $0x64] sm:$0xf]
  %v2776 = vld [vmem:[%s2749 + $0x68] sm:$0x1]
  %v2777 = vld [vmem:[%s2749 + $0x6c] sm:$0xf]
  %v2778 = vld [vmem:[%s2749 + $0x70] sm:$0xf]
  %v2779 = vld [vmem:[%s2749 + $0x74] sm:$0x1]
  %v2780 = vld [vmem:[%s2749 + $0x78] sm:$0xf]
  %v2781 = vld [vmem:[%s2749 + $0x7c] sm:$0xf]
  %v2782 = vld [vmem:[%s2749 + $0x80] sm:$0x1]
  %v2783 = vld [vmem:[%s2749 + $0x84] sm:$0xf]
  %v2784 = vld [vmem:[%s2749 + $0x88] sm:$0xf]
  %v2785 = vld [vmem:[%s2749 + $0x8c] sm:$0x1]
  %v2786 = vld [vmem:[%s2749 + $0x90] sm:$0xf]
  %v2787 = vld [vmem:[%s2749 + $0x94] sm:$0xf]
  %v2788 = vld [vmem:[%s2749 + $0x98] sm:$0x1]
  %v2789 = vld [vmem:[%s2749 + $0x9c] sm:$0xf]
  %v2790 = vld [vmem:[%s2749 + $0xa0] sm:$0xf]
  %v2791 = vld [vmem:[%s2749 + $0xa4] sm:$0x1]
  %v2792 = vld [vmem:[%s2749 + $0xa8] sm:$0xf]
  %v2793 = vld [vmem:[%s2749 + $0xac] sm:$0xf]
  %v2794 = vld [vmem:[%s2749 + $0xb0] sm:$0x1]
  %v2795 = vld [vmem:[%s2749 + $0xb4] sm:$0xf]
  %v2796 = vld [vmem:[%s2749 + $0xb8] sm:$0xf]
  %v2797 = vld [vmem:[%s2749 + $0xbc] sm:$0x1]
  %v2798 = vld [vmem:[%s2749 + $0xc0] sm:$0xf]
  %v2799 = vld [vmem:[%s2749 + $0xc4] sm:$0xf]
  %v2800 = vld [vmem:[%s2749 + $0xc8] sm:$0x1]
  %v2801 = vld [vmem:[%s2749 + $0xcc] sm:$0xf]
  %v2802 = vld [vmem:[%s2749 + $0xd0] sm:$0xf]
  %v2803 = vld [vmem:[%s2749 + $0xd4] sm:$0x1]
  %v2804 = vunpack.c.l.bf16 %v2750
  %v2805 = vunpack.c.l.bf16 %v2751
  %v2806 = vunpack.c.l.bf16 %v2752
  %v2807 = vunpack.c.l.bf16 %v2753
  %v2808 = vunpack.c.l.bf16 %v2754
  %v2809 = vunpack.c.l.bf16 %v2755
  %v2810 = vunpack.c.l.bf16 %v2756
  %v2811 = vunpack.c.l.bf16 %v2757
  %v2812 = vunpack.c.l.bf16 %v2758
  %v2813 = vunpack.c.l.bf16 %v2759
  %v2814 = vunpack.c.l.bf16 %v2760
  %v2815 = vunpack.c.l.bf16 %v2761
  %v2816 = vunpack.c.l.bf16 %v2762
  %v2817 = vunpack.c.l.bf16 %v2763
  %v2818 = vunpack.c.l.bf16 %v2764
  %v2819 = vunpack.c.l.bf16 %v2765
  %v2820 = vunpack.c.l.bf16 %v2766
  %v2821 = vunpack.c.l.bf16 %v2767
  %v2822 = vunpack.c.l.bf16 %v2768
  %v2823 = vunpack.c.l.bf16 %v2769
  %v2824 = vunpack.c.l.bf16 %v2770
  %v2825 = vunpack.c.l.bf16 %v2771
  %v2826 = vunpack.c.l.bf16 %v2772
  %v2827 = vunpack.c.l.bf16 %v2773
  %v2828 = vunpack.c.l.bf16 %v2774
  %v2829 = vunpack.c.l.bf16 %v2775
  %v2830 = vunpack.c.l.bf16 %v2776
  %v2831 = vunpack.c.l.bf16 %v2777
  %v2832 = vunpack.c.l.bf16 %v2778
  %v2833 = vunpack.c.l.bf16 %v2779
  %v2834 = vunpack.c.l.bf16 %v2780
  %v2835 = vunpack.c.l.bf16 %v2781
  %v2836 = vunpack.c.l.bf16 %v2782
  %v2837 = vunpack.c.l.bf16 %v2783
  %v2838 = vunpack.c.l.bf16 %v2784
  %v2839 = vunpack.c.l.bf16 %v2785
  %v2840 = vunpack.c.l.bf16 %v2786
  %v2841 = vunpack.c.l.bf16 %v2787
  %v2842 = vunpack.c.l.bf16 %v2788
  %v2843 = vunpack.c.l.bf16 %v2789
  %v2844 = vunpack.c.l.bf16 %v2790
  %v2845 = vunpack.c.l.bf16 %v2791
  %v2846 = vunpack.c.l.bf16 %v2792
  %v2847 = vunpack.c.l.bf16 %v2793
  %v2848 = vunpack.c.l.bf16 %v2794
  %v2849 = vunpack.c.l.bf16 %v2795
  %v2850 = vunpack.c.l.bf16 %v2796
  %v2851 = vunpack.c.l.bf16 %v2797
  %v2852 = vunpack.c.l.bf16 %v2798
  %v2853 = vunpack.c.l.bf16 %v2799
  %v2854 = vunpack.c.l.bf16 %v2800
  %v2855 = vunpack.c.l.bf16 %v2801
  %v2856 = vunpack.c.l.bf16 %v2802
  %v2857 = vunpack.c.l.bf16 %v2803
  %v2858 = vld [vmem:[%s1] sm:$0x8]
  %v2859 = vunpack.c.l.bf16 %v2858
  %2861 = vset.pattern.permute.xlu0 0
  %2862 = vperm.xlu0 %2861, %v2804
  %v2863 = vpop.permute.xlu0 %2862
  %2866 = vset.pattern.permute.xlu0 0
  %2867 = vperm.xlu0 %2866, %v2805
  %v2868 = vpop.permute.xlu0 %2867
  %2871 = vset.pattern.permute.xlu0 0
  %2872 = vperm.xlu0 %2871, %v2806
  %v2873 = vpop.permute.xlu0 %2872
  %2876 = vset.pattern.permute.xlu0 0
  %2877 = vperm.xlu0 %2876, %v2807
  %v2878 = vpop.permute.xlu0 %2877
  %2881 = vset.pattern.permute.xlu0 0
  %2882 = vperm.xlu0 %2881, %v2808
  %v2883 = vpop.permute.xlu0 %2882
  %2886 = vset.pattern.permute.xlu0 0
  %2887 = vperm.xlu0 %2886, %v2809
  %v2888 = vpop.permute.xlu0 %2887
  %2891 = vset.pattern.permute.xlu0 0
  %2892 = vperm.xlu0 %2891, %v2810
  %v2893 = vpop.permute.xlu0 %2892
  %2896 = vset.pattern.permute.xlu0 0
  %2897 = vperm.xlu0 %2896, %v2811
  %v2898 = vpop.permute.xlu0 %2897
  %2901 = vset.pattern.permute.xlu0 0
  %2902 = vperm.xlu0 %2901, %v2812
  %v2903 = vpop.permute.xlu0 %2902
  %2906 = vset.pattern.permute.xlu0 0
  %2907 = vperm.xlu0 %2906, %v2813
  %v2908 = vpop.permute.xlu0 %2907
  %2911 = vset.pattern.permute.xlu0 0
  %2912 = vperm.xlu0 %2911, %v2814
  %v2913 = vpop.permute.xlu0 %2912
  %2916 = vset.pattern.permute.xlu0 0
  %2917 = vperm.xlu0 %2916, %v2815
  %v2918 = vpop.permute.xlu0 %2917
  %2921 = vset.pattern.permute.xlu0 0
  %2922 = vperm.xlu0 %2921, %v2816
  %v2923 = vpop.permute.xlu0 %2922
  %2926 = vset.pattern.permute.xlu0 0
  %2927 = vperm.xlu0 %2926, %v2817
  %v2928 = vpop.permute.xlu0 %2927
  %2931 = vset.pattern.permute.xlu0 0
  %2932 = vperm.xlu0 %2931, %v2818
  %v2933 = vpop.permute.xlu0 %2932
  %2936 = vset.pattern.permute.xlu0 0
  %2937 = vperm.xlu0 %2936, %v2819
  %v2938 = vpop.permute.xlu0 %2937
  %2941 = vset.pattern.permute.xlu0 0
  %2942 = vperm.xlu0 %2941, %v2820
  %v2943 = vpop.permute.xlu0 %2942
  %2946 = vset.pattern.permute.xlu0 0
  %2947 = vperm.xlu0 %2946, %v2821
  %v2948 = vpop.permute.xlu0 %2947
  %2951 = vset.pattern.permute.xlu0 0
  %2952 = vperm.xlu0 %2951, %v2822
  %v2953 = vpop.permute.xlu0 %2952
  %2956 = vset.pattern.permute.xlu0 0
  %2957 = vperm.xlu0 %2956, %v2823
  %v2958 = vpop.permute.xlu0 %2957
  %2961 = vset.pattern.permute.xlu0 0
  %2962 = vperm.xlu0 %2961, %v2824
  %v2963 = vpop.permute.xlu0 %2962
  %2966 = vset.pattern.permute.xlu0 0
  %2967 = vperm.xlu0 %2966, %v2825
  %v2968 = vpop.permute.xlu0 %2967
  %2971 = vset.pattern.permute.xlu0 0
  %2972 = vperm.xlu0 %2971, %v2826
  %v2973 = vpop.permute.xlu0 %2972
  %2976 = vset.pattern.permute.xlu0 0
  %2977 = vperm.xlu0 %2976, %v2827
  %v2978 = vpop.permute.xlu0 %2977
  %2981 = vset.pattern.permute.xlu0 0
  %2982 = vperm.xlu0 %2981, %v2828
  %v2983 = vpop.permute.xlu0 %2982
  %2986 = vset.pattern.permute.xlu0 0
  %2987 = vperm.xlu0 %2986, %v2829
  %v2988 = vpop.permute.xlu0 %2987
  %2991 = vset.pattern.permute.xlu0 0
  %2992 = vperm.xlu0 %2991, %v2830
  %v2993 = vpop.permute.xlu0 %2992
  %2996 = vset.pattern.permute.xlu0 0
  %2997 = vperm.xlu0 %2996, %v2831
  %v2998 = vpop.permute.xlu0 %2997
  %3001 = vset.pattern.permute.xlu0 0
  %3002 = vperm.xlu0 %3001, %v2832
  %v3003 = vpop.permute.xlu0 %3002
  %3006 = vset.pattern.permute.xlu0 0
  %3007 = vperm.xlu0 %3006, %v2833
  %v3008 = vpop.permute.xlu0 %3007
  %3011 = vset.pattern.permute.xlu0 0
  %3012 = vperm.xlu0 %3011, %v2834
  %v3013 = vpop.permute.xlu0 %3012
  %3016 = vset.pattern.permute.xlu0 0
  %3017 = vperm.xlu0 %3016, %v2835
  %v3018 = vpop.permute.xlu0 %3017
  %3021 = vset.pattern.permute.xlu0 0
  %3022 = vperm.xlu0 %3021, %v2836
  %v3023 = vpop.permute.xlu0 %3022
  %3026 = vset.pattern.permute.xlu0 0
  %3027 = vperm.xlu0 %3026, %v2837
  %v3028 = vpop.permute.xlu0 %3027
  %3031 = vset.pattern.permute.xlu0 0
  %3032 = vperm.xlu0 %3031, %v2838
  %v3033 = vpop.permute.xlu0 %3032
  %3036 = vset.pattern.permute.xlu0 0
  %3037 = vperm.xlu0 %3036, %v2839
  %v3038 = vpop.permute.xlu0 %3037
  %3041 = vset.pattern.permute.xlu0 0
  %3042 = vperm.xlu0 %3041, %v2840
  %v3043 = vpop.permute.xlu0 %3042
  %3046 = vset.pattern.permute.xlu0 0
  %3047 = vperm.xlu0 %3046, %v2841
  %v3048 = vpop.permute.xlu0 %3047
  %3051 = vset.pattern.permute.xlu0 0
  %3052 = vperm.xlu0 %3051, %v2842
  %v3053 = vpop.permute.xlu0 %3052
  %3056 = vset.pattern.permute.xlu0 0
  %3057 = vperm.xlu0 %3056, %v2843
  %v3058 = vpop.permute.xlu0 %3057
  %3061 = vset.pattern.permute.xlu0 0
  %3062 = vperm.xlu0 %3061, %v2844
  %v3063 = vpop.permute.xlu0 %3062
  %3066 = vset.pattern.permute.xlu0 0
  %3067 = vperm.xlu0 %3066, %v2845
  %v3068 = vpop.permute.xlu0 %3067
  %3071 = vset.pattern.permute.xlu0 0
  %3072 = vperm.xlu0 %3071, %v2846
  %v3073 = vpop.permute.xlu0 %3072
  %3076 = vset.pattern.permute.xlu0 0
  %3077 = vperm.xlu0 %3076, %v2847
  %v3078 = vpop.permute.xlu0 %3077
  %3081 = vset.pattern.permute.xlu0 0
  %3082 = vperm.xlu0 %3081, %v2848
  %v3083 = vpop.permute.xlu0 %3082
  %3086 = vset.pattern.permute.xlu0 0
  %3087 = vperm.xlu0 %3086, %v2849
  %v3088 = vpop.permute.xlu0 %3087
  %3091 = vset.pattern.permute.xlu0 0
  %3092 = vperm.xlu0 %3091, %v2850
  %v3093 = vpop.permute.xlu0 %3092
  %3096 = vset.pattern.permute.xlu0 0
  %3097 = vperm.xlu0 %3096, %v2851
  %v3098 = vpop.permute.xlu0 %3097
  %3101 = vset.pattern.permute.xlu0 0
  %3102 = vperm.xlu0 %3101, %v2852
  %v3103 = vpop.permute.xlu0 %3102
  %3106 = vset.pattern.permute.xlu0 0
  %3107 = vperm.xlu0 %3106, %v2853
  %v3108 = vpop.permute.xlu0 %3107
  %3111 = vset.pattern.permute.xlu0 0
  %3112 = vperm.xlu0 %3111, %v2854
  %v3113 = vpop.permute.xlu0 %3112
  %3116 = vset.pattern.permute.xlu0 0
  %3117 = vperm.xlu0 %3116, %v2855
  %v3118 = vpop.permute.xlu0 %3117
  %3121 = vset.pattern.permute.xlu0 0
  %3122 = vperm.xlu0 %3121, %v2856
  %v3123 = vpop.permute.xlu0 %3122
  %3126 = vset.pattern.permute.xlu0 0
  %3127 = vperm.xlu0 %3126, %v2857
  %v3128 = vpop.permute.xlu0 %3127
  %v3130 = vperm.slane %v2859, 6
  %v3131 = vmul.f32 %v2863, %v3130
  %v3132 = vmul.f32 %v2868, %v3130
  %v3133 = vmul.f32 %v2873, %v3130
  %v3134 = vmul.f32 %v2878, %v3130
  %v3135 = vmul.f32 %v2883, %v3130
  %v3136 = vmul.f32 %v2888, %v3130
  %v3137 = vmul.f32 %v2893, %v3130
  %v3138 = vmul.f32 %v2898, %v3130
  %v3139 = vmul.f32 %v2903, %v3130
  %v3140 = vmul.f32 %v2908, %v3130
  %v3141 = vmul.f32 %v2913, %v3130
  %v3142 = vmul.f32 %v2918, %v3130
  %v3143 = vmul.f32 %v2923, %v3130
  %v3144 = vmul.f32 %v2928, %v3130
  %v3145 = vmul.f32 %v2933, %v3130
  %v3146 = vmul.f32 %v2938, %v3130
  %v3147 = vmul.f32 %v2943, %v3130
  %v3148 = vmul.f32 %v2948, %v3130
  %v3149 = vmul.f32 %v2953, %v3130
  %v3150 = vmul.f32 %v2958, %v3130
  %v3151 = vmul.f32 %v2963, %v3130
  %v3152 = vmul.f32 %v2968, %v3130
  %v3153 = vmul.f32 %v2973, %v3130
  %v3154 = vmul.f32 %v2978, %v3130
  %v3155 = vmul.f32 %v2983, %v3130
  %v3156 = vmul.f32 %v2988, %v3130
  %v3157 = vmul.f32 %v2993, %v3130
  %v3158 = vmul.f32 %v2998, %v3130
  %v3159 = vmul.f32 %v3003, %v3130
  %v3160 = vmul.f32 %v3008, %v3130
  %v3161 = vmul.f32 %v3013, %v3130
  %v3162 = vmul.f32 %v3018, %v3130
  %v3163 = vmul.f32 %v3023, %v3130
  %v3164 = vmul.f32 %v3028, %v3130
  %v3165 = vmul.f32 %v3033, %v3130
  %v3166 = vmul.f32 %v3038, %v3130
  %v3167 = vmul.f32 %v3043, %v3130
  %v3168 = vmul.f32 %v3048, %v3130
  %v3169 = vmul.f32 %v3053, %v3130
  %v3170 = vmul.f32 %v3058, %v3130
  %v3171 = vmul.f32 %v3063, %v3130
  %v3172 = vmul.f32 %v3068, %v3130
  %v3173 = vmul.f32 %v3073, %v3130
  %v3174 = vmul.f32 %v3078, %v3130
  %v3175 = vmul.f32 %v3083, %v3130
  %v3176 = vmul.f32 %v3088, %v3130
  %v3177 = vmul.f32 %v3093, %v3130
  %v3178 = vmul.f32 %v3098, %v3130
  %v3179 = vmul.f32 %v3103, %v3130
  %v3180 = vmul.f32 %v3108, %v3130
  %v3181 = vmul.f32 %v3113, %v3130
  %v3182 = vmul.f32 %v3118, %v3130
  %v3183 = vmul.f32 %v3123, %v3130
  %v3184 = vmul.f32 %v3128, %v3130
  %v3185 = vadd.f32 %v2695, %v3131
  %v3186 = vadd.f32 %v2696, %v3132
  %v3187 = vadd.f32 %v2697, %v3133
  %v3188 = vadd.f32 %v2698, %v3134
  %v3189 = vadd.f32 %v2699, %v3135
  %v3190 = vadd.f32 %v2700, %v3136
  %v3191 = vadd.f32 %v2701, %v3137
  %v3192 = vadd.f32 %v2702, %v3138
  %v3193 = vadd.f32 %v2703, %v3139
  %v3194 = vadd.f32 %v2704, %v3140
  %v3195 = vadd.f32 %v2705, %v3141
  %v3196 = vadd.f32 %v2706, %v3142
  %v3197 = vadd.f32 %v2707, %v3143
  %v3198 = vadd.f32 %v2708, %v3144
  %v3199 = vadd.f32 %v2709, %v3145
  %v3200 = vadd.f32 %v2710, %v3146
  %v3201 = vadd.f32 %v2711, %v3147
  %v3202 = vadd.f32 %v2712, %v3148
  %v3203 = vadd.f32 %v2713, %v3149
  %v3204 = vadd.f32 %v2714, %v3150
  %v3205 = vadd.f32 %v2715, %v3151
  %v3206 = vadd.f32 %v2716, %v3152
  %v3207 = vadd.f32 %v2717, %v3153
  %v3208 = vadd.f32 %v2718, %v3154
  %v3209 = vadd.f32 %v2719, %v3155
  %v3210 = vadd.f32 %v2720, %v3156
  %v3211 = vadd.f32 %v2721, %v3157
  %v3212 = vadd.f32 %v2722, %v3158
  %v3213 = vadd.f32 %v2723, %v3159
  %v3214 = vadd.f32 %v2724, %v3160
  %v3215 = vadd.f32 %v2725, %v3161
  %v3216 = vadd.f32 %v2726, %v3162
  %v3217 = vadd.f32 %v2727, %v3163
  %v3218 = vadd.f32 %v2728, %v3164
  %v3219 = vadd.f32 %v2729, %v3165
  %v3220 = vadd.f32 %v2730, %v3166
  %v3221 = vadd.f32 %v2731, %v3167
  %v3222 = vadd.f32 %v2732, %v3168
  %v3223 = vadd.f32 %v2733, %v3169
  %v3224 = vadd.f32 %v2734, %v3170
  %v3225 = vadd.f32 %v2735, %v3171
  %v3226 = vadd.f32 %v2736, %v3172
  %v3227 = vadd.f32 %v2737, %v3173
  %v3228 = vadd.f32 %v2738, %v3174
  %v3229 = vadd.f32 %v2739, %v3175
  %v3230 = vadd.f32 %v2740, %v3176
  %v3231 = vadd.f32 %v2741, %v3177
  %v3232 = vadd.f32 %v2742, %v3178
  %v3233 = vadd.f32 %v2743, %v3179
  %v3234 = vadd.f32 %v2744, %v3180
  %v3235 = vadd.f32 %v2745, %v3181
  %v3236 = vadd.f32 %v2746, %v3182
  %v3237 = vadd.f32 %v2747, %v3183
  %v3238 = vadd.f32 %v2748, %v3184
  %v3239 = vld [vmem:[%s2749 + $0x8] sm:$0x3]
  %v3240 = vld [vmem:[%s2749 + $0x14] sm:$0x3]
  %v3241 = vld [vmem:[%s2749 + $0x20] sm:$0x3]
  %v3242 = vld [vmem:[%s2749 + $0x2c] sm:$0x3]
  %v3243 = vld [vmem:[%s2749 + $0x38] sm:$0x3]
  %v3244 = vld [vmem:[%s2749 + $0x44] sm:$0x3]
  %v3245 = vld [vmem:[%s2749 + $0x50] sm:$0x3]
  %v3246 = vld [vmem:[%s2749 + $0x5c] sm:$0x3]
  %v3247 = vld [vmem:[%s2749 + $0x68] sm:$0x3]
  %v3248 = vld [vmem:[%s2749 + $0x74] sm:$0x3]
  %v3249 = vld [vmem:[%s2749 + $0x80] sm:$0x3]
  %v3250 = vld [vmem:[%s2749 + $0x8c] sm:$0x3]
  %v3251 = vld [vmem:[%s2749 + $0x98] sm:$0x3]
  %v3252 = vld [vmem:[%s2749 + $0xa4] sm:$0x3]
  %v3253 = vld [vmem:[%s2749 + $0xb0] sm:$0x3]
  %v3254 = vld [vmem:[%s2749 + $0xbc] sm:$0x3]
  %v3255 = vld [vmem:[%s2749 + $0xc8] sm:$0x3]
  %v3256 = vld [vmem:[%s2749 + $0xd4] sm:$0x3]
  %v3257 = vunpack.c.l.bf16 %v3239
  %v3258 = vunpack.c.l.bf16 %v3240
  %v3259 = vunpack.c.l.bf16 %v3241
  %v3260 = vunpack.c.l.bf16 %v3242
  %v3261 = vunpack.c.l.bf16 %v3243
  %v3262 = vunpack.c.l.bf16 %v3244
  %v3263 = vunpack.c.l.bf16 %v3245
  %v3264 = vunpack.c.l.bf16 %v3246
  %v3265 = vunpack.c.l.bf16 %v3247
  %v3266 = vunpack.c.l.bf16 %v3248
  %v3267 = vunpack.c.l.bf16 %v3249
  %v3268 = vunpack.c.l.bf16 %v3250
  %v3269 = vunpack.c.l.bf16 %v3251
  %v3270 = vunpack.c.l.bf16 %v3252
  %v3271 = vunpack.c.l.bf16 %v3253
  %v3272 = vunpack.c.l.bf16 %v3254
  %v3273 = vunpack.c.l.bf16 %v3255
  %v3274 = vunpack.c.l.bf16 %v3256
  %3276 = vset.pattern.permute.xlu0 0
  %3277 = vperm.xlu0 %3276, %v3257
  %v3278 = vpop.permute.xlu0 %3277
  %3281 = vset.pattern.permute.xlu0 0
  %3282 = vperm.xlu0 %3281, %v3258
  %v3283 = vpop.permute.xlu0 %3282
  %3286 = vset.pattern.permute.xlu0 0
  %3287 = vperm.xlu0 %3286, %v3259
  %v3288 = vpop.permute.xlu0 %3287
  %3291 = vset.pattern.permute.xlu0 0
  %3292 = vperm.xlu0 %3291, %v3260
  %v3293 = vpop.permute.xlu0 %3292
  %3296 = vset.pattern.permute.xlu0 0
  %3297 = vperm.xlu0 %3296, %v3261
  %v3298 = vpop.permute.xlu0 %3297
  %3301 = vset.pattern.permute.xlu0 0
  %3302 = vperm.xlu0 %3301, %v3262
  %v3303 = vpop.permute.xlu0 %3302
  %3306 = vset.pattern.permute.xlu0 0
  %3307 = vperm.xlu0 %3306, %v3263
  %v3308 = vpop.permute.xlu0 %3307
  %3311 = vset.pattern.permute.xlu0 0
  %3312 = vperm.xlu0 %3311, %v3264
  %v3313 = vpop.permute.xlu0 %3312
  %3316 = vset.pattern.permute.xlu0 0
  %3317 = vperm.xlu0 %3316, %v3265
  %v3318 = vpop.permute.xlu0 %3317
  %3321 = vset.pattern.permute.xlu0 0
  %3322 = vperm.xlu0 %3321, %v3266
  %v3323 = vpop.permute.xlu0 %3322
  %3326 = vset.pattern.permute.xlu0 0
  %3327 = vperm.xlu0 %3326, %v3267
  %v3328 = vpop.permute.xlu0 %3327
  %3331 = vset.pattern.permute.xlu0 0
  %3332 = vperm.xlu0 %3331, %v3268
  %v3333 = vpop.permute.xlu0 %3332
  %3336 = vset.pattern.permute.xlu0 0
  %3337 = vperm.xlu0 %3336, %v3269
  %v3338 = vpop.permute.xlu0 %3337
  %3341 = vset.pattern.permute.xlu0 0
  %3342 = vperm.xlu0 %3341, %v3270
  %v3343 = vpop.permute.xlu0 %3342
  %3346 = vset.pattern.permute.xlu0 0
  %3347 = vperm.xlu0 %3346, %v3271
  %v3348 = vpop.permute.xlu0 %3347
  %3351 = vset.pattern.permute.xlu0 0
  %3352 = vperm.xlu0 %3351, %v3272
  %v3353 = vpop.permute.xlu0 %3352
  %3356 = vset.pattern.permute.xlu0 0
  %3357 = vperm.xlu0 %3356, %v3273
  %v3358 = vpop.permute.xlu0 %3357
  %3361 = vset.pattern.permute.xlu0 0
  %3362 = vperm.xlu0 %3361, %v3274
  %v3363 = vpop.permute.xlu0 %3362
  %v3365 = vperm.slane %v2859, 7
  %v3366 = vmul.f32 %v2863, %v3365
  %v3367 = vmul.f32 %v2868, %v3365
  %v3368 = vmul.f32 %v3278, %v3365
  %v3369 = vmul.f32 %v2878, %v3365
  %v3370 = vmul.f32 %v2883, %v3365
  %v3371 = vmul.f32 %v3283, %v3365
  %v3372 = vmul.f32 %v2893, %v3365
  %v3373 = vmul.f32 %v2898, %v3365
  %v3374 = vmul.f32 %v3288, %v3365
  %v3375 = vmul.f32 %v2908, %v3365
  %v3376 = vmul.f32 %v2913, %v3365
  %v3377 = vmul.f32 %v3293, %v3365
  %v3378 = vmul.f32 %v2923, %v3365
  %v3379 = vmul.f32 %v2928, %v3365
  %v3380 = vmul.f32 %v3298, %v3365
  %v3381 = vmul.f32 %v2938, %v3365
  %v3382 = vmul.f32 %v2943, %v3365
  %v3383 = vmul.f32 %v3303, %v3365
  %v3384 = vmul.f32 %v2953, %v3365
  %v3385 = vmul.f32 %v2958, %v3365
  %v3386 = vmul.f32 %v3308, %v3365
  %v3387 = vmul.f32 %v2968, %v3365
  %v3388 = vmul.f32 %v2973, %v3365
  %v3389 = vmul.f32 %v3313, %v3365
  %v3390 = vmul.f32 %v2983, %v3365
  %v3391 = vmul.f32 %v2988, %v3365
  %v3392 = vmul.f32 %v3318, %v3365
  %v3393 = vmul.f32 %v2998, %v3365
  %v3394 = vmul.f32 %v3003, %v3365
  %v3395 = vmul.f32 %v3323, %v3365
  %v3396 = vmul.f32 %v3013, %v3365
  %v3397 = vmul.f32 %v3018, %v3365
  %v3398 = vmul.f32 %v3328, %v3365
  %v3399 = vmul.f32 %v3028, %v3365
  %v3400 = vmul.f32 %v3033, %v3365
  %v3401 = vmul.f32 %v3333, %v3365
  %v3402 = vmul.f32 %v3043, %v3365
  %v3403 = vmul.f32 %v3048, %v3365
  %v3404 = vmul.f32 %v3338, %v3365
  %v3405 = vmul.f32 %v3058, %v3365
  %v3406 = vmul.f32 %v3063, %v3365
  %v3407 = vmul.f32 %v3343, %v3365
  %v3408 = vmul.f32 %v3073, %v3365
  %v3409 = vmul.f32 %v3078, %v3365
  %v3410 = vmul.f32 %v3348, %v3365
  %v3411 = vmul.f32 %v3088, %v3365
  %v3412 = vmul.f32 %v3093, %v3365
  %v3413 = vmul.f32 %v3353, %v3365
  %v3414 = vmul.f32 %v3103, %v3365
  %v3415 = vmul.f32 %v3108, %v3365
  %v3416 = vmul.f32 %v3358, %v3365
  %v3417 = vmul.f32 %v3118, %v3365
  %v3418 = vmul.f32 %v3123, %v3365
  %v3419 = vmul.f32 %v3363, %v3365
  %v3474 = vrot.slane %v3366, 1
  %v3475 = vrot.slane %v3367, 1
  %v3476 = vsel %vm758, %v3474, %v3475
  %v3477 = vrot.slane %v3368, 1
  %v3478 = vsel %vm758, %v3475, %v3477
  %v3479 = vrot.slane %v3369, 1
  %v3480 = vrot.slane %v3370, 1
  %v3481 = vsel %vm758, %v3479, %v3480
  %v3482 = vrot.slane %v3371, 1
  %v3483 = vsel %vm758, %v3480, %v3482
  %v3484 = vrot.slane %v3372, 1
  %v3485 = vrot.slane %v3373, 1
  %v3486 = vsel %vm758, %v3484, %v3485
  %v3487 = vrot.slane %v3374, 1
  %v3488 = vsel %vm758, %v3485, %v3487
  %v3489 = vrot.slane %v3375, 1
  %v3490 = vrot.slane %v3376, 1
  %v3491 = vsel %vm758, %v3489, %v3490
  %v3492 = vrot.slane %v3377, 1
  %v3493 = vsel %vm758, %v3490, %v3492
  %v3494 = vrot.slane %v3378, 1
  %v3495 = vrot.slane %v3379, 1
  %v3496 = vsel %vm758, %v3494, %v3495
  %v3497 = vrot.slane %v3380, 1
  %v3498 = vsel %vm758, %v3495, %v3497
  %v3499 = vrot.slane %v3381, 1
  %v3500 = vrot.slane %v3382, 1
  %v3501 = vsel %vm758, %v3499, %v3500
  %v3502 = vrot.slane %v3383, 1
  %v3503 = vsel %vm758, %v3500, %v3502
  %v3504 = vrot.slane %v3384, 1
  %v3505 = vrot.slane %v3385, 1
  %v3506 = vsel %vm758, %v3504, %v3505
  %v3507 = vrot.slane %v3386, 1
  %v3508 = vsel %vm758, %v3505, %v3507
  %v3509 = vrot.slane %v3387, 1
  %v3510 = vrot.slane %v3388, 1
  %v3511 = vsel %vm758, %v3509, %v3510
  %v3512 = vrot.slane %v3389, 1
  %v3513 = vsel %vm758, %v3510, %v3512
  %v3514 = vrot.slane %v3390, 1
  %v3515 = vrot.slane %v3391, 1
  %v3516 = vsel %vm758, %v3514, %v3515
  %v3517 = vrot.slane %v3392, 1
  %v3518 = vsel %vm758, %v3515, %v3517
  %v3519 = vrot.slane %v3393, 1
  %v3520 = vrot.slane %v3394, 1
  %v3521 = vsel %vm758, %v3519, %v3520
  %v3522 = vrot.slane %v3395, 1
  %v3523 = vsel %vm758, %v3520, %v3522
  %v3524 = vrot.slane %v3396, 1
  %v3525 = vrot.slane %v3397, 1
  %v3526 = vsel %vm758, %v3524, %v3525
  %v3527 = vrot.slane %v3398, 1
  %v3528 = vsel %vm758, %v3525, %v3527
  %v3529 = vrot.slane %v3399, 1
  %v3530 = vrot.slane %v3400, 1
  %v3531 = vsel %vm758, %v3529, %v3530
  %v3532 = vrot.slane %v3401, 1
  %v3533 = vsel %vm758, %v3530, %v3532
  %v3534 = vrot.slane %v3402, 1
  %v3535 = vrot.slane %v3403, 1
  %v3536 = vsel %vm758, %v3534, %v3535
  %v3537 = vrot.slane %v3404, 1
  %v3538 = vsel %vm758, %v3535, %v3537
  %v3539 = vrot.slane %v3405, 1
  %v3540 = vrot.slane %v3406, 1
  %v3541 = vsel %vm758, %v3539, %v3540
  %v3542 = vrot.slane %v3407, 1
  %v3543 = vsel %vm758, %v3540, %v3542
  %v3544 = vrot.slane %v3408, 1
  %v3545 = vrot.slane %v3409, 1
  %v3546 = vsel %vm758, %v3544, %v3545
  %v3547 = vrot.slane %v3410, 1
  %v3548 = vsel %vm758, %v3545, %v3547
  %v3549 = vrot.slane %v3411, 1
  %v3550 = vrot.slane %v3412, 1
  %v3551 = vsel %vm758, %v3549, %v3550
  %v3552 = vrot.slane %v3413, 1
  %v3553 = vsel %vm758, %v3550, %v3552
  %v3554 = vrot.slane %v3414, 1
  %v3555 = vrot.slane %v3415, 1
  %v3556 = vsel %vm758, %v3554, %v3555
  %v3557 = vrot.slane %v3416, 1
  %v3558 = vsel %vm758, %v3555, %v3557
  %v3559 = vrot.slane %v3417, 1
  %v3560 = vrot.slane %v3418, 1
  %v3561 = vsel %vm758, %v3559, %v3560
  %v3562 = vrot.slane %v3419, 1
  %v3563 = vsel %vm758, %v3560, %v3562
  %v3618 = vadd.f32 %v3185, %v3476
  %v3619 = vadd.f32 %v3186, %v3478
  %v3620 = vadd.f32 %v3187, %v3477
  %v3621 = vadd.f32 %v3188, %v3481
  %v3622 = vadd.f32 %v3189, %v3483
  %v3623 = vadd.f32 %v3190, %v3482
  %v3624 = vadd.f32 %v3191, %v3486
  %v3625 = vadd.f32 %v3192, %v3488
  %v3626 = vadd.f32 %v3193, %v3487
  %v3627 = vadd.f32 %v3194, %v3491
  %v3628 = vadd.f32 %v3195, %v3493
  %v3629 = vadd.f32 %v3196, %v3492
  %v3630 = vadd.f32 %v3197, %v3496
  %v3631 = vadd.f32 %v3198, %v3498
  %v3632 = vadd.f32 %v3199, %v3497
  %v3633 = vadd.f32 %v3200, %v3501
  %v3634 = vadd.f32 %v3201, %v3503
  %v3635 = vadd.f32 %v3202, %v3502
  %v3636 = vadd.f32 %v3203, %v3506
  %v3637 = vadd.f32 %v3204, %v3508
  %v3638 = vadd.f32 %v3205, %v3507
  %v3639 = vadd.f32 %v3206, %v3511
  %v3640 = vadd.f32 %v3207, %v3513
  %v3641 = vadd.f32 %v3208, %v3512
  %v3642 = vadd.f32 %v3209, %v3516
  %v3643 = vadd.f32 %v3210, %v3518
  %v3644 = vadd.f32 %v3211, %v3517
  %v3645 = vadd.f32 %v3212, %v3521
  %v3646 = vadd.f32 %v3213, %v3523
  %v3647 = vadd.f32 %v3214, %v3522
  %v3648 = vadd.f32 %v3215, %v3526
  %v3649 = vadd.f32 %v3216, %v3528
  %v3650 = vadd.f32 %v3217, %v3527
  %v3651 = vadd.f32 %v3218, %v3531
  %v3652 = vadd.f32 %v3219, %v3533
  %v3653 = vadd.f32 %v3220, %v3532
  %v3654 = vadd.f32 %v3221, %v3536
  %v3655 = vadd.f32 %v3222, %v3538
  %v3656 = vadd.f32 %v3223, %v3537
  %v3657 = vadd.f32 %v3224, %v3541
  %v3658 = vadd.f32 %v3225, %v3543
  %v3659 = vadd.f32 %v3226, %v3542
  %v3660 = vadd.f32 %v3227, %v3546
  %v3661 = vadd.f32 %v3228, %v3548
  %v3662 = vadd.f32 %v3229, %v3547
  %v3663 = vadd.f32 %v3230, %v3551
  %v3664 = vadd.f32 %v3231, %v3553
  %v3665 = vadd.f32 %v3232, %v3552
  %v3666 = vadd.f32 %v3233, %v3556
  %v3667 = vadd.f32 %v3234, %v3558
  %v3668 = vadd.f32 %v3235, %v3557
  %v3669 = vadd.f32 %v3236, %v3561
  %v3670 = vadd.f32 %v3237, %v3563
  %v3671 = vadd.f32 %v3238, %v3562
  %v3672 = vld [vmem:[%s2749] sm:$0xe]
  %v3673 = vld [vmem:[%s2749 + $0xc] sm:$0xe]
  %v3674 = vld [vmem:[%s2749 + $0x18] sm:$0xe]
  %v3675 = vld [vmem:[%s2749 + $0x24] sm:$0xe]
  %v3676 = vld [vmem:[%s2749 + $0x30] sm:$0xe]
  %v3677 = vld [vmem:[%s2749 + $0x3c] sm:$0xe]
  %v3678 = vld [vmem:[%s2749 + $0x48] sm:$0xe]
  %v3679 = vld [vmem:[%s2749 + $0x54] sm:$0xe]
  %v3680 = vld [vmem:[%s2749 + $0x60] sm:$0xe]
  %v3681 = vld [vmem:[%s2749 + $0x6c] sm:$0xe]
  %v3682 = vld [vmem:[%s2749 + $0x78] sm:$0xe]
  %v3683 = vld [vmem:[%s2749 + $0x84] sm:$0xe]
  %v3684 = vld [vmem:[%s2749 + $0x90] sm:$0xe]
  %v3685 = vld [vmem:[%s2749 + $0x9c] sm:$0xe]
  %v3686 = vld [vmem:[%s2749 + $0xa8] sm:$0xe]
  %v3687 = vld [vmem:[%s2749 + $0xb4] sm:$0xe]
  %v3688 = vld [vmem:[%s2749 + $0xc0] sm:$0xe]
  %v3689 = vld [vmem:[%s2749 + $0xcc] sm:$0xe]
  %v3690 = vunpack.c.l.bf16 %v3672
  %v3691 = vunpack.c.l.bf16 %v3673
  %v3692 = vunpack.c.l.bf16 %v3674
  %v3693 = vunpack.c.l.bf16 %v3675
  %v3694 = vunpack.c.l.bf16 %v3676
  %v3695 = vunpack.c.l.bf16 %v3677
  %v3696 = vunpack.c.l.bf16 %v3678
  %v3697 = vunpack.c.l.bf16 %v3679
  %v3698 = vunpack.c.l.bf16 %v3680
  %v3699 = vunpack.c.l.bf16 %v3681
  %v3700 = vunpack.c.l.bf16 %v3682
  %v3701 = vunpack.c.l.bf16 %v3683
  %v3702 = vunpack.c.l.bf16 %v3684
  %v3703 = vunpack.c.l.bf16 %v3685
  %v3704 = vunpack.c.l.bf16 %v3686
  %v3705 = vunpack.c.l.bf16 %v3687
  %v3706 = vunpack.c.l.bf16 %v3688
  %v3707 = vunpack.c.l.bf16 %v3689
  %v3708 = vld [vmem:[%s1 + $0x4] sm:$0x1]
  %v3709 = vunpack.c.l.bf16 %v3708
  %3711 = vset.pattern.permute.xlu0 0
  %3712 = vperm.xlu0 %3711, %v3690
  %v3713 = vpop.permute.xlu0 %3712
  %3716 = vset.pattern.permute.xlu0 0
  %3717 = vperm.xlu0 %3716, %v3691
  %v3718 = vpop.permute.xlu0 %3717
  %3721 = vset.pattern.permute.xlu0 0
  %3722 = vperm.xlu0 %3721, %v3692
  %v3723 = vpop.permute.xlu0 %3722
  %3726 = vset.pattern.permute.xlu0 0
  %3727 = vperm.xlu0 %3726, %v3693
  %v3728 = vpop.permute.xlu0 %3727
  %3731 = vset.pattern.permute.xlu0 0
  %3732 = vperm.xlu0 %3731, %v3694
  %v3733 = vpop.permute.xlu0 %3732
  %3736 = vset.pattern.permute.xlu0 0
  %3737 = vperm.xlu0 %3736, %v3695
  %v3738 = vpop.permute.xlu0 %3737
  %3741 = vset.pattern.permute.xlu0 0
  %3742 = vperm.xlu0 %3741, %v3696
  %v3743 = vpop.permute.xlu0 %3742
  %3746 = vset.pattern.permute.xlu0 0
  %3747 = vperm.xlu0 %3746, %v3697
  %v3748 = vpop.permute.xlu0 %3747
  %3751 = vset.pattern.permute.xlu0 0
  %3752 = vperm.xlu0 %3751, %v3698
  %v3753 = vpop.permute.xlu0 %3752
  %3756 = vset.pattern.permute.xlu0 0
  %3757 = vperm.xlu0 %3756, %v3699
  %v3758 = vpop.permute.xlu0 %3757
  %3761 = vset.pattern.permute.xlu0 0
  %3762 = vperm.xlu0 %3761, %v3700
  %v3763 = vpop.permute.xlu0 %3762
  %3766 = vset.pattern.permute.xlu0 0
  %3767 = vperm.xlu0 %3766, %v3701
  %v3768 = vpop.permute.xlu0 %3767
  %3771 = vset.pattern.permute.xlu0 0
  %3772 = vperm.xlu0 %3771, %v3702
  %v3773 = vpop.permute.xlu0 %3772
  %3776 = vset.pattern.permute.xlu0 0
  %3777 = vperm.xlu0 %3776, %v3703
  %v3778 = vpop.permute.xlu0 %3777
  %3781 = vset.pattern.permute.xlu0 0
  %3782 = vperm.xlu0 %3781, %v3704
  %v3783 = vpop.permute.xlu0 %3782
  %3786 = vset.pattern.permute.xlu0 0
  %3787 = vperm.xlu0 %3786, %v3705
  %v3788 = vpop.permute.xlu0 %3787
  %3791 = vset.pattern.permute.xlu0 0
  %3792 = vperm.xlu0 %3791, %v3706
  %v3793 = vpop.permute.xlu0 %3792
  %3796 = vset.pattern.permute.xlu0 0
  %3797 = vperm.xlu0 %3796, %v3707
  %v3798 = vpop.permute.xlu0 %3797
  %v3800 = vperm.slane %v3709, 0
  %v3801 = vmul.f32 %v3713, %v3800
  %v3802 = vmul.f32 %v2868, %v3800
  %v3803 = vmul.f32 %v3278, %v3800
  %v3804 = vmul.f32 %v3718, %v3800
  %v3805 = vmul.f32 %v2883, %v3800
  %v3806 = vmul.f32 %v3283, %v3800
  %v3807 = vmul.f32 %v3723, %v3800
  %v3808 = vmul.f32 %v2898, %v3800
  %v3809 = vmul.f32 %v3288, %v3800
  %v3810 = vmul.f32 %v3728, %v3800
  %v3811 = vmul.f32 %v2913, %v3800
  %v3812 = vmul.f32 %v3293, %v3800
  %v3813 = vmul.f32 %v3733, %v3800
  %v3814 = vmul.f32 %v2928, %v3800
  %v3815 = vmul.f32 %v3298, %v3800
  %v3816 = vmul.f32 %v3738, %v3800
  %v3817 = vmul.f32 %v2943, %v3800
  %v3818 = vmul.f32 %v3303, %v3800
  %v3819 = vmul.f32 %v3743, %v3800
  %v3820 = vmul.f32 %v2958, %v3800
  %v3821 = vmul.f32 %v3308, %v3800
  %v3822 = vmul.f32 %v3748, %v3800
  %v3823 = vmul.f32 %v2973, %v3800
  %v3824 = vmul.f32 %v3313, %v3800
  %v3825 = vmul.f32 %v3753, %v3800
  %v3826 = vmul.f32 %v2988, %v3800
  %v3827 = vmul.f32 %v3318, %v3800
  %v3828 = vmul.f32 %v3758, %v3800
  %v3829 = vmul.f32 %v3003, %v3800
  %v3830 = vmul.f32 %v3323, %v3800
  %v3831 = vmul.f32 %v3763, %v3800
  %v3832 = vmul.f32 %v3018, %v3800
  %v3833 = vmul.f32 %v3328, %v3800
  %v3834 = vmul.f32 %v3768, %v3800
  %v3835 = vmul.f32 %v3033, %v3800
  %v3836 = vmul.f32 %v3333, %v3800
  %v3837 = vmul.f32 %v3773, %v3800
  %v3838 = vmul.f32 %v3048, %v3800
  %v3839 = vmul.f32 %v3338, %v3800
  %v3840 = vmul.f32 %v3778, %v3800
  %v3841 = vmul.f32 %v3063, %v3800
  %v3842 = vmul.f32 %v3343, %v3800
  %v3843 = vmul.f32 %v3783, %v3800
  %v3844 = vmul.f32 %v3078, %v3800
  %v3845 = vmul.f32 %v3348, %v3800
  %v3846 = vmul.f32 %v3788, %v3800
  %v3847 = vmul.f32 %v3093, %v3800
  %v3848 = vmul.f32 %v3353, %v3800
  %v3849 = vmul.f32 %v3793, %v3800
  %v3850 = vmul.f32 %v3108, %v3800
  %v3851 = vmul.f32 %v3358, %v3800
  %v3852 = vmul.f32 %v3798, %v3800
  %v3853 = vmul.f32 %v3123, %v3800
  %v3854 = vmul.f32 %v3363, %v3800
  %v3909 = vrot.slane %v3801, 2
  %v3910 = vrot.slane %v3802, 2
  %v3911 = vsel %vm1194, %v3909, %v3910
  %v3912 = vrot.slane %v3803, 2
  %v3913 = vsel %vm1194, %v3910, %v3912
  %v3914 = vrot.slane %v3804, 2
  %v3915 = vrot.slane %v3805, 2
  %v3916 = vsel %vm1194, %v3914, %v3915
  %v3917 = vrot.slane %v3806, 2
  %v3918 = vsel %vm1194, %v3915, %v3917
  %v3919 = vrot.slane %v3807, 2
  %v3920 = vrot.slane %v3808, 2
  %v3921 = vsel %vm1194, %v3919, %v3920
  %v3922 = vrot.slane %v3809, 2
  %v3923 = vsel %vm1194, %v3920, %v3922
  %v3924 = vrot.slane %v3810, 2
  %v3925 = vrot.slane %v3811, 2
  %v3926 = vsel %vm1194, %v3924, %v3925
  %v3927 = vrot.slane %v3812, 2
  %v3928 = vsel %vm1194, %v3925, %v3927
  %v3929 = vrot.slane %v3813, 2
  %v3930 = vrot.slane %v3814, 2
  %v3931 = vsel %vm1194, %v3929, %v3930
  %v3932 = vrot.slane %v3815, 2
  %v3933 = vsel %vm1194, %v3930, %v3932
  %v3934 = vrot.slane %v3816, 2
  %v3935 = vrot.slane %v3817, 2
  %v3936 = vsel %vm1194, %v3934, %v3935
  %v3937 = vrot.slane %v3818, 2
  %v3938 = vsel %vm1194, %v3935, %v3937
  %v3939 = vrot.slane %v3819, 2
  %v3940 = vrot.slane %v3820, 2
  %v3941 = vsel %vm1194, %v3939, %v3940
  %v3942 = vrot.slane %v3821, 2
  %v3943 = vsel %vm1194, %v3940, %v3942
  %v3944 = vrot.slane %v3822, 2
  %v3945 = vrot.slane %v3823, 2
  %v3946 = vsel %vm1194, %v3944, %v3945
  %v3947 = vrot.slane %v3824, 2
  %v3948 = vsel %vm1194, %v3945, %v3947
  %v3949 = vrot.slane %v3825, 2
  %v3950 = vrot.slane %v3826, 2
  %v3951 = vsel %vm1194, %v3949, %v3950
  %v3952 = vrot.slane %v3827, 2
  %v3953 = vsel %vm1194, %v3950, %v3952
  %v3954 = vrot.slane %v3828, 2
  %v3955 = vrot.slane %v3829, 2
  %v3956 = vsel %vm1194, %v3954, %v3955
  %v3957 = vrot.slane %v3830, 2
  %v3958 = vsel %vm1194, %v3955, %v3957
  %v3959 = vrot.slane %v3831, 2
  %v3960 = vrot.slane %v3832, 2
  %v3961 = vsel %vm1194, %v3959, %v3960
  %v3962 = vrot.slane %v3833, 2
  %v3963 = vsel %vm1194, %v3960, %v3962
  %v3964 = vrot.slane %v3834, 2
  %v3965 = vrot.slane %v3835, 2
  %v3966 = vsel %vm1194, %v3964, %v3965
  %v3967 = vrot.slane %v3836, 2
  %v3968 = vsel %vm1194, %v3965, %v3967
  %v3969 = vrot.slane %v3837, 2
  %v3970 = vrot.slane %v3838, 2
  %v3971 = vsel %vm1194, %v3969, %v3970
  %v3972 = vrot.slane %v3839, 2
  %v3973 = vsel %vm1194, %v3970, %v3972
  %v3974 = vrot.slane %v3840, 2
  %v3975 = vrot.slane %v3841, 2
  %v3976 = vsel %vm1194, %v3974, %v3975
  %v3977 = vrot.slane %v3842, 2
  %v3978 = vsel %vm1194, %v3975, %v3977
  %v3979 = vrot.slane %v3843, 2
  %v3980 = vrot.slane %v3844, 2
  %v3981 = vsel %vm1194, %v3979, %v3980
  %v3982 = vrot.slane %v3845, 2
  %v3983 = vsel %vm1194, %v3980, %v3982
  %v3984 = vrot.slane %v3846, 2
  %v3985 = vrot.slane %v3847, 2
  %v3986 = vsel %vm1194, %v3984, %v3985
  %v3987 = vrot.slane %v3848, 2
  %v3988 = vsel %vm1194, %v3985, %v3987
  %v3989 = vrot.slane %v3849, 2
  %v3990 = vrot.slane %v3850, 2
  %v3991 = vsel %vm1194, %v3989, %v3990
  %v3992 = vrot.slane %v3851, 2
  %v3993 = vsel %vm1194, %v3990, %v3992
  %v3994 = vrot.slane %v3852, 2
  %v3995 = vrot.slane %v3853, 2
  %v3996 = vsel %vm1194, %v3994, %v3995
  %v3997 = vrot.slane %v3854, 2
  %v3998 = vsel %vm1194, %v3995, %v3997
  %v4053 = vadd.f32 %v3618, %v3911
  %v4054 = vadd.f32 %v3619, %v3913
  %v4055 = vadd.f32 %v3620, %v3912
  %v4056 = vadd.f32 %v3621, %v3916
  %v4057 = vadd.f32 %v3622, %v3918
  %v4058 = vadd.f32 %v3623, %v3917
  %v4059 = vadd.f32 %v3624, %v3921
  %v4060 = vadd.f32 %v3625, %v3923
  %v4061 = vadd.f32 %v3626, %v3922
  %v4062 = vadd.f32 %v3627, %v3926
  %v4063 = vadd.f32 %v3628, %v3928
  %v4064 = vadd.f32 %v3629, %v3927
  %v4065 = vadd.f32 %v3630, %v3931
  %v4066 = vadd.f32 %v3631, %v3933
  %v4067 = vadd.f32 %v3632, %v3932
  %v4068 = vadd.f32 %v3633, %v3936
  %v4069 = vadd.f32 %v3634, %v3938
  %v4070 = vadd.f32 %v3635, %v3937
  %v4071 = vadd.f32 %v3636, %v3941
  %v4072 = vadd.f32 %v3637, %v3943
  %v4073 = vadd.f32 %v3638, %v3942
  %v4074 = vadd.f32 %v3639, %v3946
  %v4075 = vadd.f32 %v3640, %v3948
  %v4076 = vadd.f32 %v3641, %v3947
  %v4077 = vadd.f32 %v3642, %v3951
  %v4078 = vadd.f32 %v3643, %v3953
  %v4079 = vadd.f32 %v3644, %v3952
  %v4080 = vadd.f32 %v3645, %v3956
  %v4081 = vadd.f32 %v3646, %v3958
  %v4082 = vadd.f32 %v3647, %v3957
  %v4083 = vadd.f32 %v3648, %v3961
  %v4084 = vadd.f32 %v3649, %v3963
  %v4085 = vadd.f32 %v3650, %v3962
  %v4086 = vadd.f32 %v3651, %v3966
  %v4087 = vadd.f32 %v3652, %v3968
  %v4088 = vadd.f32 %v3653, %v3967
  %v4089 = vadd.f32 %v3654, %v3971
  %v4090 = vadd.f32 %v3655, %v3973
  %v4091 = vadd.f32 %v3656, %v3972
  %v4092 = vadd.f32 %v3657, %v3976
  %v4093 = vadd.f32 %v3658, %v3978
  %v4094 = vadd.f32 %v3659, %v3977
  %v4095 = vadd.f32 %v3660, %v3981
  %v4096 = vadd.f32 %v3661, %v3983
  %v4097 = vadd.f32 %v3662, %v3982
  %v4098 = vadd.f32 %v3663, %v3986
  %v4099 = vadd.f32 %v3664, %v3988
  %v4100 = vadd.f32 %v3665, %v3987
  %v4101 = vadd.f32 %v3666, %v3991
  %v4102 = vadd.f32 %v3667, %v3993
  %v4103 = vadd.f32 %v3668, %v3992
  %v4104 = vadd.f32 %v3669, %v3996
  %v4105 = vadd.f32 %v3670, %v3998
  %v4106 = vadd.f32 %v3671, %v3997
  %vm4107 = vcmp.gt.f32.partialorder %v4053, 0.0
  %vm4108 = vcmp.gt.f32.partialorder %v4054, 0.0
  %vm4109 = vcmp.gt.f32.partialorder %v4055, 0.0
  %vm4110 = vcmp.gt.f32.partialorder %v4056, 0.0
  %vm4111 = vcmp.gt.f32.partialorder %v4057, 0.0
  %vm4112 = vcmp.gt.f32.partialorder %v4058, 0.0
  %vm4113 = vcmp.gt.f32.partialorder %v4059, 0.0
  %vm4114 = vcmp.gt.f32.partialorder %v4060, 0.0
  %vm4115 = vcmp.gt.f32.partialorder %v4061, 0.0
  %vm4116 = vcmp.gt.f32.partialorder %v4062, 0.0
  %vm4117 = vcmp.gt.f32.partialorder %v4063, 0.0
  %vm4118 = vcmp.gt.f32.partialorder %v4064, 0.0
  %vm4119 = vcmp.gt.f32.partialorder %v4065, 0.0
  %vm4120 = vcmp.gt.f32.partialorder %v4066, 0.0
  %vm4121 = vcmp.gt.f32.partialorder %v4067, 0.0
  %vm4122 = vcmp.gt.f32.partialorder %v4068, 0.0
  %vm4123 = vcmp.gt.f32.partialorder %v4069, 0.0
  %vm4124 = vcmp.gt.f32.partialorder %v4070, 0.0
  %vm4125 = vcmp.gt.f32.partialorder %v4071, 0.0
  %vm4126 = vcmp.gt.f32.partialorder %v4072, 0.0
  %vm4127 = vcmp.gt.f32.partialorder %v4073, 0.0
  %vm4128 = vcmp.gt.f32.partialorder %v4074, 0.0
  %vm4129 = vcmp.gt.f32.partialorder %v4075, 0.0
  %vm4130 = vcmp.gt.f32.partialorder %v4076, 0.0
  %vm4131 = vcmp.gt.f32.partialorder %v4077, 0.0
  %vm4132 = vcmp.gt.f32.partialorder %v4078, 0.0
  %vm4133 = vcmp.gt.f32.partialorder %v4079, 0.0
  %vm4134 = vcmp.gt.f32.partialorder %v4080, 0.0
  %vm4135 = vcmp.gt.f32.partialorder %v4081, 0.0
  %vm4136 = vcmp.gt.f32.partialorder %v4082, 0.0
  %vm4137 = vcmp.gt.f32.partialorder %v4083, 0.0
  %vm4138 = vcmp.gt.f32.partialorder %v4084, 0.0
  %vm4139 = vcmp.gt.f32.partialorder %v4085, 0.0
  %vm4140 = vcmp.gt.f32.partialorder %v4086, 0.0
  %vm4141 = vcmp.gt.f32.partialorder %v4087, 0.0
  %vm4142 = vcmp.gt.f32.partialorder %v4088, 0.0
  %vm4143 = vcmp.gt.f32.partialorder %v4089, 0.0
  %vm4144 = vcmp.gt.f32.partialorder %v4090, 0.0
  %vm4145 = vcmp.gt.f32.partialorder %v4091, 0.0
  %vm4146 = vcmp.gt.f32.partialorder %v4092, 0.0
  %vm4147 = vcmp.gt.f32.partialorder %v4093, 0.0
  %vm4148 = vcmp.gt.f32.partialorder %v4094, 0.0
  %vm4149 = vcmp.gt.f32.partialorder %v4095, 0.0
  %vm4150 = vcmp.gt.f32.partialorder %v4096, 0.0
  %vm4151 = vcmp.gt.f32.partialorder %v4097, 0.0
  %vm4152 = vcmp.gt.f32.partialorder %v4098, 0.0
  %vm4153 = vcmp.gt.f32.partialorder %v4099, 0.0
  %vm4154 = vcmp.gt.f32.partialorder %v4100, 0.0
  %vm4155 = vcmp.gt.f32.partialorder %v4101, 0.0
  %vm4156 = vcmp.gt.f32.partialorder %v4102, 0.0
  %vm4157 = vcmp.gt.f32.partialorder %v4103, 0.0
  %vm4158 = vcmp.gt.f32.partialorder %v4104, 0.0
  %vm4159 = vcmp.gt.f32.partialorder %v4105, 0.0
  %vm4160 = vcmp.gt.f32.partialorder %v4106, 0.0
  %v4161 = vmul.f32 %v4053, 0.2
  %v4162 = vmul.f32 %v4054, 0.2
  %v4163 = vmul.f32 %v4055, 0.2
  %v4164 = vmul.f32 %v4056, 0.2
  %v4165 = vmul.f32 %v4057, 0.2
  %v4166 = vmul.f32 %v4058, 0.2
  %v4167 = vmul.f32 %v4059, 0.2
  %v4168 = vmul.f32 %v4060, 0.2
  %v4169 = vmul.f32 %v4061, 0.2
  %v4170 = vmul.f32 %v4062, 0.2
  %v4171 = vmul.f32 %v4063, 0.2
  %v4172 = vmul.f32 %v4064, 0.2
  %v4173 = vmul.f32 %v4065, 0.2
  %v4174 = vmul.f32 %v4066, 0.2
  %v4175 = vmul.f32 %v4067, 0.2
  %v4176 = vmul.f32 %v4068, 0.2
  %v4177 = vmul.f32 %v4069, 0.2
  %v4178 = vmul.f32 %v4070, 0.2
  %v4179 = vmul.f32 %v4071, 0.2
  %v4180 = vmul.f32 %v4072, 0.2
  %v4181 = vmul.f32 %v4073, 0.2
  %v4182 = vmul.f32 %v4074, 0.2
  %v4183 = vmul.f32 %v4075, 0.2
  %v4184 = vmul.f32 %v4076, 0.2
  %v4185 = vmul.f32 %v4077, 0.2
  %v4186 = vmul.f32 %v4078, 0.2
  %v4187 = vmul.f32 %v4079, 0.2
  %v4188 = vmul.f32 %v4080, 0.2
  %v4189 = vmul.f32 %v4081, 0.2
  %v4190 = vmul.f32 %v4082, 0.2
  %v4191 = vmul.f32 %v4083, 0.2
  %v4192 = vmul.f32 %v4084, 0.2
  %v4193 = vmul.f32 %v4085, 0.2
  %v4194 = vmul.f32 %v4086, 0.2
  %v4195 = vmul.f32 %v4087, 0.2
  %v4196 = vmul.f32 %v4088, 0.2
  %v4197 = vmul.f32 %v4089, 0.2
  %v4198 = vmul.f32 %v4090, 0.2
  %v4199 = vmul.f32 %v4091, 0.2
  %v4200 = vmul.f32 %v4092, 0.2
  %v4201 = vmul.f32 %v4093, 0.2
  %v4202 = vmul.f32 %v4094, 0.2
  %v4203 = vmul.f32 %v4095, 0.2
  %v4204 = vmul.f32 %v4096, 0.2
  %v4205 = vmul.f32 %v4097, 0.2
  %v4206 = vmul.f32 %v4098, 0.2
  %v4207 = vmul.f32 %v4099, 0.2
  %v4208 = vmul.f32 %v4100, 0.2
  %v4209 = vmul.f32 %v4101, 0.2
  %v4210 = vmul.f32 %v4102, 0.2
  %v4211 = vmul.f32 %v4103, 0.2
  %v4212 = vmul.f32 %v4104, 0.2
  %v4213 = vmul.f32 %v4105, 0.2
  %v4214 = vmul.f32 %v4106, 0.2
  %v4215 = vsel %vm4107, %v4053, %v4161
  %v4216 = vsel %vm4108, %v4054, %v4162
  %v4217 = vsel %vm4109, %v4055, %v4163
  %v4218 = vsel %vm4110, %v4056, %v4164
  %v4219 = vsel %vm4111, %v4057, %v4165
  %v4220 = vsel %vm4112, %v4058, %v4166
  %v4221 = vsel %vm4113, %v4059, %v4167
  %v4222 = vsel %vm4114, %v4060, %v4168
  %v4223 = vsel %vm4115, %v4061, %v4169
  %v4224 = vsel %vm4116, %v4062, %v4170
  %v4225 = vsel %vm4117, %v4063, %v4171
  %v4226 = vsel %vm4118, %v4064, %v4172
  %v4227 = vsel %vm4119, %v4065, %v4173
  %v4228 = vsel %vm4120, %v4066, %v4174
  %v4229 = vsel %vm4121, %v4067, %v4175
  %v4230 = vsel %vm4122, %v4068, %v4176
  %v4231 = vsel %vm4123, %v4069, %v4177
  %v4232 = vsel %vm4124, %v4070, %v4178
  %v4233 = vsel %vm4125, %v4071, %v4179
  %v4234 = vsel %vm4126, %v4072, %v4180
  %v4235 = vsel %vm4127, %v4073, %v4181
  %v4236 = vsel %vm4128, %v4074, %v4182
  %v4237 = vsel %vm4129, %v4075, %v4183
  %v4238 = vsel %vm4130, %v4076, %v4184
  %v4239 = vsel %vm4131, %v4077, %v4185
  %v4240 = vsel %vm4132, %v4078, %v4186
  %v4241 = vsel %vm4133, %v4079, %v4187
  %v4242 = vsel %vm4134, %v4080, %v4188
  %v4243 = vsel %vm4135, %v4081, %v4189
  %v4244 = vsel %vm4136, %v4082, %v4190
  %v4245 = vsel %vm4137, %v4083, %v4191
  %v4246 = vsel %vm4138, %v4084, %v4192
  %v4247 = vsel %vm4139, %v4085, %v4193
  %v4248 = vsel %vm4140, %v4086, %v4194
  %v4249 = vsel %vm4141, %v4087, %v4195
  %v4250 = vsel %vm4142, %v4088, %v4196
  %v4251 = vsel %vm4143, %v4089, %v4197
  %v4252 = vsel %vm4144, %v4090, %v4198
  %v4253 = vsel %vm4145, %v4091, %v4199
  %v4254 = vsel %vm4146, %v4092, %v4200
  %v4255 = vsel %vm4147, %v4093, %v4201
  %v4256 = vsel %vm4148, %v4094, %v4202
  %v4257 = vsel %vm4149, %v4095, %v4203
  %v4258 = vsel %vm4150, %v4096, %v4204
  %v4259 = vsel %vm4151, %v4097, %v4205
  %v4260 = vsel %vm4152, %v4098, %v4206
  %v4261 = vsel %vm4153, %v4099, %v4207
  %v4262 = vsel %vm4154, %v4100, %v4208
  %v4263 = vsel %vm4155, %v4101, %v4209
  %v4264 = vsel %vm4156, %v4102, %v4210
  %v4265 = vsel %vm4157, %v4103, %v4211
  %v4266 = vsel %vm4158, %v4104, %v4212
  %v4267 = vsel %vm4159, %v4105, %v4213
  %v4268 = vsel %vm4160, %v4106, %v4214
  %v4269 = vlaneseq
  %v4270 = vshrl.u32 %v4269, 7
  %v4271 = vadd.s32 %v4270, 8
  %v4272 = vadd.s32 %v4270, 16
  %s4273 = smul.u32 0, 16
  %s4274 = ssub.s32 %s4273, 1
  %v4275 = vstv %s4274
  %v4276 = vadd.s32 %v4275, 1
  %v4277 = vadd.s32 %v4275, 2
  %v4278 = vadd.s32 %v4275, 3
  %v4279 = vadd.s32 %v4275, 4
  %v4280 = vadd.s32 %v4275, 5
  %v4281 = vadd.s32 %v4275, 6
  %v4282 = vadd.s32 %v4275, 7
  %v4283 = vadd.s32 %v4275, 8
  %v4284 = vadd.s32 %v4275, 9
  %v4285 = vadd.s32 %v4275, 10
  %v4286 = vadd.s32 %v4275, 11
  %v4287 = vadd.s32 %v4275, 12
  %v4288 = vadd.s32 %v4275, 13
  %v4289 = vadd.s32 %v4275, 14
  %v4290 = vadd.s32 %v4275, 15
  %v4291 = vadd.s32 %v4275, 16
  %v4292 = vadd.s32 %v4275, 17
  %vm4293 = vcmp.ge.s32.totalorder %v4275, 0
  %vm4294 = vcmp.ge.s32.totalorder %v4276, 0
  %vm4295 = vcmp.ge.s32.totalorder %v4277, 0
  %vm4296 = vcmp.ge.s32.totalorder %v4278, 0
  %vm4297 = vcmp.ge.s32.totalorder %v4279, 0
  %vm4298 = vcmp.ge.s32.totalorder %v4280, 0
  %vm4299 = vcmp.ge.s32.totalorder %v4281, 0
  %vm4300 = vcmp.ge.s32.totalorder %v4282, 0
  %vm4301 = vcmp.ge.s32.totalorder %v4283, 0
  %vm4302 = vcmp.ge.s32.totalorder %v4284, 0
  %vm4303 = vcmp.ge.s32.totalorder %v4285, 0
  %vm4304 = vcmp.ge.s32.totalorder %v4286, 0
  %vm4305 = vcmp.ge.s32.totalorder %v4287, 0
  %vm4306 = vcmp.ge.s32.totalorder %v4288, 0
  %vm4307 = vcmp.ge.s32.totalorder %v4289, 0
  %vm4308 = vcmp.ge.s32.totalorder %v4290, 0
  %vm4309 = vcmp.ge.s32.totalorder %v4291, 0
  %vm4310 = vcmp.ge.s32.totalorder %v4292, 0
  %vm4311 = vcmp.lt.s32.totalorder %v4275, 16
  %vm4312 = vcmp.lt.s32.totalorder %v4276, 16
  %vm4313 = vcmp.lt.s32.totalorder %v4277, 16
  %vm4314 = vcmp.lt.s32.totalorder %v4278, 16
  %vm4315 = vcmp.lt.s32.totalorder %v4279, 16
  %vm4316 = vcmp.lt.s32.totalorder %v4280, 16
  %vm4317 = vcmp.lt.s32.totalorder %v4281, 16
  %vm4318 = vcmp.lt.s32.totalorder %v4282, 16
  %vm4319 = vcmp.lt.s32.totalorder %v4283, 16
  %vm4320 = vcmp.lt.s32.totalorder %v4284, 16
  %vm4321 = vcmp.lt.s32.totalorder %v4285, 16
  %vm4322 = vcmp.lt.s32.totalorder %v4286, 16
  %vm4323 = vcmp.lt.s32.totalorder %v4287, 16
  %vm4324 = vcmp.lt.s32.totalorder %v4288, 16
  %vm4325 = vcmp.lt.s32.totalorder %v4289, 16
  %vm4326 = vcmp.lt.s32.totalorder %v4290, 16
  %vm4327 = vcmp.lt.s32.totalorder %v4291, 16
  %vm4328 = vcmp.lt.s32.totalorder %v4292, 16
  %vm4329 = vmand %vm4293, %vm4311
  %vm4330 = vmand %vm4294, %vm4312
  %vm4331 = vmand %vm4295, %vm4313
  %vm4332 = vmand %vm4296, %vm4314
  %vm4333 = vmand %vm4297, %vm4315
  %vm4334 = vmand %vm4298, %vm4316
  %vm4335 = vmand %vm4299, %vm4317
  %vm4336 = vmand %vm4300, %vm4318
  %vm4337 = vmand %vm4301, %vm4319
  %vm4338 = vmand %vm4302, %vm4320
  %vm4339 = vmand %vm4303, %vm4321
  %vm4340 = vmand %vm4304, %vm4322
  %vm4341 = vmand %vm4305, %vm4323
  %vm4342 = vmand %vm4306, %vm4324
  %vm4343 = vmand %vm4307, %vm4325
  %vm4344 = vmand %vm4308, %vm4326
  %vm4345 = vmand %vm4309, %vm4327
  %vm4346 = vmand %vm4310, %vm4328
  %vm4347 = vcmp.ge.s32.totalorder %v4270, 1
  %vm4348 = vcmp.ge.s32.totalorder %v4271, 1
  %vm4349 = vcmp.ge.s32.totalorder %v4272, 1
  %vm4350 = vmand %vm4329, %vm4347
  %vm4351 = vmand %vm4329, %vm4348
  %vm4352 = vmand %vm4329, %vm4349
  %vm4353 = vmand %vm4330, %vm4347
  %vm4354 = vmand %vm4330, %vm4348
  %vm4355 = vmand %vm4330, %vm4349
  %vm4356 = vmand %vm4331, %vm4347
  %vm4357 = vmand %vm4331, %vm4348
  %vm4358 = vmand %vm4331, %vm4349
  %vm4359 = vmand %vm4332, %vm4347
  %vm4360 = vmand %vm4332, %vm4348
  %vm4361 = vmand %vm4332, %vm4349
  %vm4362 = vmand %vm4333, %vm4347
  %vm4363 = vmand %vm4333, %vm4348
  %vm4364 = vmand %vm4333, %vm4349
  %vm4365 = vmand %vm4334, %vm4347
  %vm4366 = vmand %vm4334, %vm4348
  %vm4367 = vmand %vm4334, %vm4349
  %vm4368 = vmand %vm4335, %vm4347
  %vm4369 = vmand %vm4335, %vm4348
  %vm4370 = vmand %vm4335, %vm4349
  %vm4371 = vmand %vm4336, %vm4347
  %vm4372 = vmand %vm4336, %vm4348
  %vm4373 = vmand %vm4336, %vm4349
  %vm4374 = vmand %vm4337, %vm4347
  %vm4375 = vmand %vm4337, %vm4348
  %vm4376 = vmand %vm4337, %vm4349
  %vm4377 = vmand %vm4338, %vm4347
  %vm4378 = vmand %vm4338, %vm4348
  %vm4379 = vmand %vm4338, %vm4349
  %vm4380 = vmand %vm4339, %vm4347
  %vm4381 = vmand %vm4339, %vm4348
  %vm4382 = vmand %vm4339, %vm4349
  %vm4383 = vmand %vm4340, %vm4347
  %vm4384 = vmand %vm4340, %vm4348
  %vm4385 = vmand %vm4340, %vm4349
  %vm4386 = vmand %vm4341, %vm4347
  %vm4387 = vmand %vm4341, %vm4348
  %vm4388 = vmand %vm4341, %vm4349
  %vm4389 = vmand %vm4342, %vm4347
  %vm4390 = vmand %vm4342, %vm4348
  %vm4391 = vmand %vm4342, %vm4349
  %vm4392 = vmand %vm4343, %vm4347
  %vm4393 = vmand %vm4343, %vm4348
  %vm4394 = vmand %vm4343, %vm4349
  %vm4395 = vmand %vm4344, %vm4347
  %vm4396 = vmand %vm4344, %vm4348
  %vm4397 = vmand %vm4344, %vm4349
  %vm4398 = vmand %vm4345, %vm4347
  %vm4399 = vmand %vm4345, %vm4348
  %vm4400 = vmand %vm4345, %vm4349
  %vm4401 = vmand %vm4346, %vm4347
  %vm4402 = vmand %vm4346, %vm4348
  %vm4403 = vmand %vm4346, %vm4349
  %vm4404 = vcmp.le.s32.totalorder %v4270, 16
  %vm4405 = vcmp.le.s32.totalorder %v4271, 16
  %vm4406 = vcmp.le.s32.totalorder %v4272, 16
  %vm4407 = vmand %vm4350, %vm4404
  %vm4408 = vmand %vm4351, %vm4405
  %vm4409 = vmand %vm4352, %vm4406
  %vm4410 = vmand %vm4353, %vm4404
  %vm4411 = vmand %vm4354, %vm4405
  %vm4412 = vmand %vm4355, %vm4406
  %vm4413 = vmand %vm4356, %vm4404
  %vm4414 = vmand %vm4357, %vm4405
  %vm4415 = vmand %vm4358, %vm4406
  %vm4416 = vmand %vm4359, %vm4404
  %vm4417 = vmand %vm4360, %vm4405
  %vm4418 = vmand %vm4361, %vm4406
  %vm4419 = vmand %vm4362, %vm4404
  %vm4420 = vmand %vm4363, %vm4405
  %vm4421 = vmand %vm4364, %vm4406
  %vm4422 = vmand %vm4365, %vm4404
  %vm4423 = vmand %vm4366, %vm4405
  %vm4424 = vmand %vm4367, %vm4406
  %vm4425 = vmand %vm4368, %vm4404
  %vm4426 = vmand %vm4369, %vm4405
  %vm4427 = vmand %vm4370, %vm4406
  %vm4428 = vmand %vm4371, %vm4404
  %vm4429 = vmand %vm4372, %vm4405
  %vm4430 = vmand %vm4373, %vm4406
  %vm4431 = vmand %vm4374, %vm4404
  %vm4432 = vmand %vm4375, %vm4405
  %vm4433 = vmand %vm4376, %vm4406
  %vm4434 = vmand %vm4377, %vm4404
  %vm4435 = vmand %vm4378, %vm4405
  %vm4436 = vmand %vm4379, %vm4406
  %vm4437 = vmand %vm4380, %vm4404
  %vm4438 = vmand %vm4381, %vm4405
  %vm4439 = vmand %vm4382, %vm4406
  %vm4440 = vmand %vm4383, %vm4404
  %vm4441 = vmand %vm4384, %vm4405
  %vm4442 = vmand %vm4385, %vm4406
  %vm4443 = vmand %vm4386, %vm4404
  %vm4444 = vmand %vm4387, %vm4405
  %vm4445 = vmand %vm4388, %vm4406
  %vm4446 = vmand %vm4389, %vm4404
  %vm4447 = vmand %vm4390, %vm4405
  %vm4448 = vmand %vm4391, %vm4406
  %vm4449 = vmand %vm4392, %vm4404
  %vm4450 = vmand %vm4393, %vm4405
  %vm4451 = vmand %vm4394, %vm4406
  %vm4452 = vmand %vm4395, %vm4404
  %vm4453 = vmand %vm4396, %vm4405
  %vm4454 = vmand %vm4397, %vm4406
  %vm4455 = vmand %vm4398, %vm4404
  %vm4456 = vmand %vm4399, %vm4405
  %vm4457 = vmand %vm4400, %vm4406
  %vm4458 = vmand %vm4401, %vm4404
  %vm4459 = vmand %vm4402, %vm4405
  %vm4460 = vmand %vm4403, %vm4406
  %v4461 = vsel %vm4407, 1, 0
  %v4462 = vsel %vm4408, 1, 0
  %v4463 = vsel %vm4409, 1, 0
  %v4464 = vsel %vm4410, 1, 0
  %v4465 = vsel %vm4411, 1, 0
  %v4466 = vsel %vm4412, 1, 0
  %v4467 = vsel %vm4413, 1, 0
  %v4468 = vsel %vm4414, 1, 0
  %v4469 = vsel %vm4415, 1, 0
  %v4470 = vsel %vm4416, 1, 0
  %v4471 = vsel %vm4417, 1, 0
  %v4472 = vsel %vm4418, 1, 0
  %v4473 = vsel %vm4419, 1, 0
  %v4474 = vsel %vm4420, 1, 0
  %v4475 = vsel %vm4421, 1, 0
  %v4476 = vsel %vm4422, 1, 0
  %v4477 = vsel %vm4423, 1, 0
  %v4478 = vsel %vm4424, 1, 0
  %v4479 = vsel %vm4425, 1, 0
  %v4480 = vsel %vm4426, 1, 0
  %v4481 = vsel %vm4427, 1, 0
  %v4482 = vsel %vm4428, 1, 0
  %v4483 = vsel %vm4429, 1, 0
  %v4484 = vsel %vm4430, 1, 0
  %v4485 = vsel %vm4431, 1, 0
  %v4486 = vsel %vm4432, 1, 0
  %v4487 = vsel %vm4433, 1, 0
  %v4488 = vsel %vm4434, 1, 0
  %v4489 = vsel %vm4435, 1, 0
  %v4490 = vsel %vm4436, 1, 0
  %v4491 = vsel %vm4437, 1, 0
  %v4492 = vsel %vm4438, 1, 0
  %v4493 = vsel %vm4439, 1, 0
  %v4494 = vsel %vm4440, 1, 0
  %v4495 = vsel %vm4441, 1, 0
  %v4496 = vsel %vm4442, 1, 0
  %v4497 = vsel %vm4443, 1, 0
  %v4498 = vsel %vm4444, 1, 0
  %v4499 = vsel %vm4445, 1, 0
  %v4500 = vsel %vm4446, 1, 0
  %v4501 = vsel %vm4447, 1, 0
  %v4502 = vsel %vm4448, 1, 0
  %v4503 = vsel %vm4449, 1, 0
  %v4504 = vsel %vm4450, 1, 0
  %v4505 = vsel %vm4451, 1, 0
  %v4506 = vsel %vm4452, 1, 0
  %v4507 = vsel %vm4453, 1, 0
  %v4508 = vsel %vm4454, 1, 0
  %v4509 = vsel %vm4455, 1, 0
  %v4510 = vsel %vm4456, 1, 0
  %v4511 = vsel %vm4457, 1, 0
  %v4512 = vsel %vm4458, 1, 0
  %v4513 = vsel %vm4459, 1, 0
  %v4514 = vsel %vm4460, 1, 0
  %vm4515 = vcmp.eq.s32.totalorder %v4461, 1
  %vm4516 = vcmp.eq.s32.totalorder %v4462, 1
  %vm4517 = vcmp.eq.s32.totalorder %v4463, 1
  %vm4518 = vcmp.eq.s32.totalorder %v4464, 1
  %vm4519 = vcmp.eq.s32.totalorder %v4465, 1
  %vm4520 = vcmp.eq.s32.totalorder %v4466, 1
  %vm4521 = vcmp.eq.s32.totalorder %v4467, 1
  %vm4522 = vcmp.eq.s32.totalorder %v4468, 1
  %vm4523 = vcmp.eq.s32.totalorder %v4469, 1
  %vm4524 = vcmp.eq.s32.totalorder %v4470, 1
  %vm4525 = vcmp.eq.s32.totalorder %v4471, 1
  %vm4526 = vcmp.eq.s32.totalorder %v4472, 1
  %vm4527 = vcmp.eq.s32.totalorder %v4473, 1
  %vm4528 = vcmp.eq.s32.totalorder %v4474, 1
  %vm4529 = vcmp.eq.s32.totalorder %v4475, 1
  %vm4530 = vcmp.eq.s32.totalorder %v4476, 1
  %vm4531 = vcmp.eq.s32.totalorder %v4477, 1
  %vm4532 = vcmp.eq.s32.totalorder %v4478, 1
  %vm4533 = vcmp.eq.s32.totalorder %v4479, 1
  %vm4534 = vcmp.eq.s32.totalorder %v4480, 1
  %vm4535 = vcmp.eq.s32.totalorder %v4481, 1
  %vm4536 = vcmp.eq.s32.totalorder %v4482, 1
  %vm4537 = vcmp.eq.s32.totalorder %v4483, 1
  %vm4538 = vcmp.eq.s32.totalorder %v4484, 1
  %vm4539 = vcmp.eq.s32.totalorder %v4485, 1
  %vm4540 = vcmp.eq.s32.totalorder %v4486, 1
  %vm4541 = vcmp.eq.s32.totalorder %v4487, 1
  %vm4542 = vcmp.eq.s32.totalorder %v4488, 1
  %vm4543 = vcmp.eq.s32.totalorder %v4489, 1
  %vm4544 = vcmp.eq.s32.totalorder %v4490, 1
  %vm4545 = vcmp.eq.s32.totalorder %v4491, 1
  %vm4546 = vcmp.eq.s32.totalorder %v4492, 1
  %vm4547 = vcmp.eq.s32.totalorder %v4493, 1
  %vm4548 = vcmp.eq.s32.totalorder %v4494, 1
  %vm4549 = vcmp.eq.s32.totalorder %v4495, 1
  %vm4550 = vcmp.eq.s32.totalorder %v4496, 1
  %vm4551 = vcmp.eq.s32.totalorder %v4497, 1
  %vm4552 = vcmp.eq.s32.totalorder %v4498, 1
  %vm4553 = vcmp.eq.s32.totalorder %v4499, 1
  %vm4554 = vcmp.eq.s32.totalorder %v4500, 1
  %vm4555 = vcmp.eq.s32.totalorder %v4501, 1
  %vm4556 = vcmp.eq.s32.totalorder %v4502, 1
  %vm4557 = vcmp.eq.s32.totalorder %v4503, 1
  %vm4558 = vcmp.eq.s32.totalorder %v4504, 1
  %vm4559 = vcmp.eq.s32.totalorder %v4505, 1
  %vm4560 = vcmp.eq.s32.totalorder %v4506, 1
  %vm4561 = vcmp.eq.s32.totalorder %v4507, 1
  %vm4562 = vcmp.eq.s32.totalorder %v4508, 1
  %vm4563 = vcmp.eq.s32.totalorder %v4509, 1
  %vm4564 = vcmp.eq.s32.totalorder %v4510, 1
  %vm4565 = vcmp.eq.s32.totalorder %v4511, 1
  %vm4566 = vcmp.eq.s32.totalorder %v4512, 1
  %vm4567 = vcmp.eq.s32.totalorder %v4513, 1
  %vm4568 = vcmp.eq.s32.totalorder %v4514, 1
  %v4569 = vsel %vm4515, %v4215, 0.0
  %v4570 = vsel %vm4516, %v4216, 0.0
  %v4571 = vsel %vm4517, %v4217, 0.0
  %v4572 = vsel %vm4518, %v4218, 0.0
  %v4573 = vsel %vm4519, %v4219, 0.0
  %v4574 = vsel %vm4520, %v4220, 0.0
  %v4575 = vsel %vm4521, %v4221, 0.0
  %v4576 = vsel %vm4522, %v4222, 0.0
  %v4577 = vsel %vm4523, %v4223, 0.0
  %v4578 = vsel %vm4524, %v4224, 0.0
  %v4579 = vsel %vm4525, %v4225, 0.0
  %v4580 = vsel %vm4526, %v4226, 0.0
  %v4581 = vsel %vm4527, %v4227, 0.0
  %v4582 = vsel %vm4528, %v4228, 0.0
  %v4583 = vsel %vm4529, %v4229, 0.0
  %v4584 = vsel %vm4530, %v4230, 0.0
  %v4585 = vsel %vm4531, %v4231, 0.0
  %v4586 = vsel %vm4532, %v4232, 0.0
  %v4587 = vsel %vm4533, %v4233, 0.0
  %v4588 = vsel %vm4534, %v4234, 0.0
  %v4589 = vsel %vm4535, %v4235, 0.0
  %v4590 = vsel %vm4536, %v4236, 0.0
  %v4591 = vsel %vm4537, %v4237, 0.0
  %v4592 = vsel %vm4538, %v4238, 0.0
  %v4593 = vsel %vm4539, %v4239, 0.0
  %v4594 = vsel %vm4540, %v4240, 0.0
  %v4595 = vsel %vm4541, %v4241, 0.0
  %v4596 = vsel %vm4542, %v4242, 0.0
  %v4597 = vsel %vm4543, %v4243, 0.0
  %v4598 = vsel %vm4544, %v4244, 0.0
  %v4599 = vsel %vm4545, %v4245, 0.0
  %v4600 = vsel %vm4546, %v4246, 0.0
  %v4601 = vsel %vm4547, %v4247, 0.0
  %v4602 = vsel %vm4548, %v4248, 0.0
  %v4603 = vsel %vm4549, %v4249, 0.0
  %v4604 = vsel %vm4550, %v4250, 0.0
  %v4605 = vsel %vm4551, %v4251, 0.0
  %v4606 = vsel %vm4552, %v4252, 0.0
  %v4607 = vsel %vm4553, %v4253, 0.0
  %v4608 = vsel %vm4554, %v4254, 0.0
  %v4609 = vsel %vm4555, %v4255, 0.0
  %v4610 = vsel %vm4556, %v4256, 0.0
  %v4611 = vsel %vm4557, %v4257, 0.0
  %v4612 = vsel %vm4558, %v4258, 0.0
  %v4613 = vsel %vm4559, %v4259, 0.0
  %v4614 = vsel %vm4560, %v4260, 0.0
  %v4615 = vsel %vm4561, %v4261, 0.0
  %v4616 = vsel %vm4562, %v4262, 0.0
  %v4617 = vsel %vm4563, %v4263, 0.0
  %v4618 = vsel %vm4564, %v4264, 0.0
  %v4619 = vsel %vm4565, %v4265, 0.0
  %v4620 = vsel %vm4566, %v4266, 0.0
  %v4621 = vsel %vm4567, %v4267, 0.0
  %v4622 = vsel %vm4568, %v4268, 0.0
  %v4623 = vpack.c.bf16 %v4569, %v4569
  %v4624 = vpack.c.bf16 %v4570, %v4570
  %v4625 = vpack.c.bf16 %v4571, %v4571
  %v4626 = vpack.c.bf16 %v4572, %v4572
  %v4627 = vpack.c.bf16 %v4573, %v4573
  %v4628 = vpack.c.bf16 %v4574, %v4574
  %v4629 = vpack.c.bf16 %v4575, %v4575
  %v4630 = vpack.c.bf16 %v4576, %v4576
  %v4631 = vpack.c.bf16 %v4577, %v4577
  %v4632 = vpack.c.bf16 %v4578, %v4578
  %v4633 = vpack.c.bf16 %v4579, %v4579
  %v4634 = vpack.c.bf16 %v4580, %v4580
  %v4635 = vpack.c.bf16 %v4581, %v4581
  %v4636 = vpack.c.bf16 %v4582, %v4582
  %v4637 = vpack.c.bf16 %v4583, %v4583
  %v4638 = vpack.c.bf16 %v4584, %v4584
  %v4639 = vpack.c.bf16 %v4585, %v4585
  %v4640 = vpack.c.bf16 %v4586, %v4586
  %v4641 = vpack.c.bf16 %v4587, %v4587
  %v4642 = vpack.c.bf16 %v4588, %v4588
  %v4643 = vpack.c.bf16 %v4589, %v4589
  %v4644 = vpack.c.bf16 %v4590, %v4590
  %v4645 = vpack.c.bf16 %v4591, %v4591
  %v4646 = vpack.c.bf16 %v4592, %v4592
  %v4647 = vpack.c.bf16 %v4593, %v4593
  %v4648 = vpack.c.bf16 %v4594, %v4594
  %v4649 = vpack.c.bf16 %v4595, %v4595
  %v4650 = vpack.c.bf16 %v4596, %v4596
  %v4651 = vpack.c.bf16 %v4597, %v4597
  %v4652 = vpack.c.bf16 %v4598, %v4598
  %v4653 = vpack.c.bf16 %v4599, %v4599
  %v4654 = vpack.c.bf16 %v4600, %v4600
  %v4655 = vpack.c.bf16 %v4601, %v4601
  %v4656 = vpack.c.bf16 %v4602, %v4602
  %v4657 = vpack.c.bf16 %v4603, %v4603
  %v4658 = vpack.c.bf16 %v4604, %v4604
  %v4659 = vpack.c.bf16 %v4605, %v4605
  %v4660 = vpack.c.bf16 %v4606, %v4606
  %v4661 = vpack.c.bf16 %v4607, %v4607
  %v4662 = vpack.c.bf16 %v4608, %v4608
  %v4663 = vpack.c.bf16 %v4609, %v4609
  %v4664 = vpack.c.bf16 %v4610, %v4610
  %v4665 = vpack.c.bf16 %v4611, %v4611
  %v4666 = vpack.c.bf16 %v4612, %v4612
  %v4667 = vpack.c.bf16 %v4613, %v4613
  %v4668 = vpack.c.bf16 %v4614, %v4614
  %v4669 = vpack.c.bf16 %v4615, %v4615
  %v4670 = vpack.c.bf16 %v4616, %v4616
  %v4671 = vpack.c.bf16 %v4617, %v4617
  %v4672 = vpack.c.bf16 %v4618, %v4618
  %v4673 = vpack.c.bf16 %v4619, %v4619
  %v4674 = vpack.c.bf16 %v4620, %v4620
  %v4675 = vpack.c.bf16 %v4621, %v4621
  %v4676 = vpack.c.bf16 %v4622, %v4622
  %vm4677 = vcmask 388096
  %4678 = vst.msk [vmem:[#allocation2] sm:$0xf] %vm4677, %v4623
  %4679 = vst.msk [vmem:[#allocation2 + $0x4] sm:$0xf] %vm4677, %v4624
  %vm4680 = vcmask 385024
  %4681 = vst.msk [vmem:[#allocation2 + $0x8] sm:$0x1] %vm4680, %v4625
  %4682 = vst.msk [vmem:[#allocation2 + $0xc] sm:$0xf] %vm4677, %v4626
  %4683 = vst.msk [vmem:[#allocation2 + $0x10] sm:$0xf] %vm4677, %v4627
  %4684 = vst.msk [vmem:[#allocation2 + $0x14] sm:$0x1] %vm4680, %v4628
  %4685 = vst.msk [vmem:[#allocation2 + $0x18] sm:$0xf] %vm4677, %v4629
  %4686 = vst.msk [vmem:[#allocation2 + $0x1c] sm:$0xf] %vm4677, %v4630
  %4687 = vst.msk [vmem:[#allocation2 + $0x20] sm:$0x1] %vm4680, %v4631
  %4688 = vst.msk [vmem:[#allocation2 + $0x24] sm:$0xf] %vm4677, %v4632
  %4689 = vst.msk [vmem:[#allocation2 + $0x28] sm:$0xf] %vm4677, %v4633
  %4690 = vst.msk [vmem:[#allocation2 + $0x2c] sm:$0x1] %vm4680, %v4634
  %4691 = vst.msk [vmem:[#allocation2 + $0x30] sm:$0xf] %vm4677, %v4635
  %4692 = vst.msk [vmem:[#allocation2 + $0x34] sm:$0xf] %vm4677, %v4636
  %4693 = vst.msk [vmem:[#allocation2 + $0x38] sm:$0x1] %vm4680, %v4637
  %4694 = vst.msk [vmem:[#allocation2 + $0x3c] sm:$0xf] %vm4677, %v4638
  %4695 = vst.msk [vmem:[#allocation2 + $0x40] sm:$0xf] %vm4677, %v4639
  %4696 = vst.msk [vmem:[#allocation2 + $0x44] sm:$0x1] %vm4680, %v4640
  %4697 = vst.msk [vmem:[#allocation2 + $0x48] sm:$0xf] %vm4677, %v4641
  %4698 = vst.msk [vmem:[#allocation2 + $0x4c] sm:$0xf] %vm4677, %v4642
  %4699 = vst.msk [vmem:[#allocation2 + $0x50] sm:$0x1] %vm4680, %v4643
  %4700 = vst.msk [vmem:[#allocation2 + $0x54] sm:$0xf] %vm4677, %v4644
  %4701 = vst.msk [vmem:[#allocation2 + $0x58] sm:$0xf] %vm4677, %v4645
  %4702 = vst.msk [vmem:[#allocation2 + $0x5c] sm:$0x1] %vm4680, %v4646
  %4703 = vst.msk [vmem:[#allocation2 + $0x60] sm:$0xf] %vm4677, %v4647
  %4704 = vst.msk [vmem:[#allocation2 + $0x64] sm:$0xf] %vm4677, %v4648
  %4705 = vst.msk [vmem:[#allocation2 + $0x68] sm:$0x1] %vm4680, %v4649
  %4706 = vst.msk [vmem:[#allocation2 + $0x6c] sm:$0xf] %vm4677, %v4650
  %4707 = vst.msk [vmem:[#allocation2 + $0x70] sm:$0xf] %vm4677, %v4651
  %4708 = vst.msk [vmem:[#allocation2 + $0x74] sm:$0x1] %vm4680, %v4652
  %4709 = vst.msk [vmem:[#allocation2 + $0x78] sm:$0xf] %vm4677, %v4653
  %4710 = vst.msk [vmem:[#allocation2 + $0x7c] sm:$0xf] %vm4677, %v4654
  %4711 = vst.msk [vmem:[#allocation2 + $0x80] sm:$0x1] %vm4680, %v4655
  %4712 = vst.msk [vmem:[#allocation2 + $0x84] sm:$0xf] %vm4677, %v4656
  %4713 = vst.msk [vmem:[#allocation2 + $0x88] sm:$0xf] %vm4677, %v4657
  %4714 = vst.msk [vmem:[#allocation2 + $0x8c] sm:$0x1] %vm4680, %v4658
  %4715 = vst.msk [vmem:[#allocation2 + $0x90] sm:$0xf] %vm4677, %v4659
  %4716 = vst.msk [vmem:[#allocation2 + $0x94] sm:$0xf] %vm4677, %v4660
  %4717 = vst.msk [vmem:[#allocation2 + $0x98] sm:$0x1] %vm4680, %v4661
  %4718 = vst.msk [vmem:[#allocation2 + $0x9c] sm:$0xf] %vm4677, %v4662
  %4719 = vst.msk [vmem:[#allocation2 + $0xa0] sm:$0xf] %vm4677, %v4663
  %4720 = vst.msk [vmem:[#allocation2 + $0xa4] sm:$0x1] %vm4680, %v4664
  %4721 = vst.msk [vmem:[#allocation2 + $0xa8] sm:$0xf] %vm4677, %v4665
  %4722 = vst.msk [vmem:[#allocation2 + $0xac] sm:$0xf] %vm4677, %v4666
  %4723 = vst.msk [vmem:[#allocation2 + $0xb0] sm:$0x1] %vm4680, %v4667
  %4724 = vst.msk [vmem:[#allocation2 + $0xb4] sm:$0xf] %vm4677, %v4668
  %4725 = vst.msk [vmem:[#allocation2 + $0xb8] sm:$0xf] %vm4677, %v4669
  %4726 = vst.msk [vmem:[#allocation2 + $0xbc] sm:$0x1] %vm4680, %v4670
  %4727 = vst.msk [vmem:[#allocation2 + $0xc0] sm:$0xf] %vm4677, %v4671
  %4728 = vst.msk [vmem:[#allocation2 + $0xc4] sm:$0xf] %vm4677, %v4672
  %4729 = vst.msk [vmem:[#allocation2 + $0xc8] sm:$0x1] %vm4680, %v4673
  %4730 = vst.msk [vmem:[#allocation2 + $0xcc] sm:$0xf] %vm4677, %v4674
  %4731 = vst.msk [vmem:[#allocation2 + $0xd0] sm:$0xf] %vm4677, %v4675
  %4732 = vst.msk [vmem:[#allocation2 + $0xd4] sm:$0x1] %vm4680, %v4676
  %v4733 = vld [vmem:[#allocation2] sm:$0xf]
  %v4734 = vld [vmem:[#allocation2 + $0x4] sm:$0xf]
  %v4735 = vld [vmem:[#allocation2 + $0xc] sm:$0xf]
  %v4736 = vld [vmem:[#allocation2 + $0x10] sm:$0xf]
  %v4737 = vld [vmem:[#allocation2 + $0x18] sm:$0xf]
  %v4738 = vld [vmem:[#allocation2 + $0x1c] sm:$0xf]
  %v4739 = vld [vmem:[#allocation2 + $0x24] sm:$0xf]
  %v4740 = vld [vmem:[#allocation2 + $0x28] sm:$0xf]
  %v4741 = vld [vmem:[#allocation2 + $0x30] sm:$0xf]
  %v4742 = vld [vmem:[#allocation2 + $0x34] sm:$0xf]
  %v4743 = vld [vmem:[#allocation2 + $0x3c] sm:$0xf]
  %v4744 = vld [vmem:[#allocation2 + $0x40] sm:$0xf]
  %v4745 = vld [vmem:[#allocation2 + $0x48] sm:$0xf]
  %v4746 = vld [vmem:[#allocation2 + $0x4c] sm:$0xf]
  %v4747 = vld [vmem:[#allocation2 + $0x54] sm:$0xf]
  %v4748 = vld [vmem:[#allocation2 + $0x58] sm:$0xf]
  %v4749 = vld [vmem:[#allocation2 + $0x60] sm:$0xf]
  %v4750 = vld [vmem:[#allocation2 + $0x64] sm:$0xf]
  %v4751 = vld [vmem:[#allocation2 + $0x6c] sm:$0xf]
  %v4752 = vld [vmem:[#allocation2 + $0x70] sm:$0xf]
  %v4753 = vld [vmem:[#allocation2 + $0x78] sm:$0xf]
  %v4754 = vld [vmem:[#allocation2 + $0x7c] sm:$0xf]
  %v4755 = vld [vmem:[#allocation2 + $0x84] sm:$0xf]
  %v4756 = vld [vmem:[#allocation2 + $0x88] sm:$0xf]
  %v4757 = vld [vmem:[#allocation2 + $0x90] sm:$0xf]
  %v4758 = vld [vmem:[#allocation2 + $0x94] sm:$0xf]
  %v4759 = vld [vmem:[#allocation2 + $0x9c] sm:$0xf]
  %v4760 = vld [vmem:[#allocation2 + $0xa0] sm:$0xf]
  %v4761 = vld [vmem:[#allocation2 + $0xa8] sm:$0xf]
  %v4762 = vld [vmem:[#allocation2 + $0xac] sm:$0xf]
  %v4763 = vld [vmem:[#allocation2 + $0xb4] sm:$0xf]
  %v4764 = vld [vmem:[#allocation2 + $0xb8] sm:$0xf]
  %v4765 = vld [vmem:[%s3] sm:$0xf]
  %v4766 = vld [vmem:[%s3 + $0x4] sm:$0xf]
  %v4767 = vld [vmem:[%s3 + $0x8] sm:$0xf]
  %v4768 = vld [vmem:[%s3 + $0xc] sm:$0xf]
  %v4769 = vld [vmem:[%s3 + $0x10] sm:$0xf]
  %v4770 = vld [vmem:[%s3 + $0x14] sm:$0xf]
  %v4771 = vld [vmem:[#allocation2 + $0x8] sm:$0x1]
  %v4772 = vld [vmem:[#allocation2 + $0x14] sm:$0x1]
  %v4773 = vld [vmem:[#allocation2 + $0x20] sm:$0x1]
  %v4774 = vld [vmem:[#allocation2 + $0x2c] sm:$0x1]
  %v4775 = vld [vmem:[#allocation2 + $0x38] sm:$0x1]
  %v4776 = vld [vmem:[#allocation2 + $0x44] sm:$0x1]
  %v4777 = vld [vmem:[#allocation2 + $0x50] sm:$0x1]
  %v4778 = vld [vmem:[#allocation2 + $0x5c] sm:$0x1]
  %v4779 = vld [vmem:[#allocation2 + $0x68] sm:$0x1]
  %v4780 = vld [vmem:[#allocation2 + $0x74] sm:$0x1]
  %v4781 = vld [vmem:[#allocation2 + $0x80] sm:$0x1]
  %v4782 = vld [vmem:[#allocation2 + $0x8c] sm:$0x1]
  %v4783 = vld [vmem:[#allocation2 + $0x98] sm:$0x1]
  %v4784 = vld [vmem:[#allocation2 + $0xa4] sm:$0x1]
  %v4785 = vld [vmem:[#allocation2 + $0xb0] sm:$0x1]
  %v4786 = vld [vmem:[#allocation2 + $0xbc] sm:$0x1]
  %vm4787 = vsmask.f32 3328
  %vm4788 = vsmask.f32 7440
  %vm4789 = vmor %vm4787, %vm4788
  %v4791 = vshrl.u32 %v4733, 16
  %v4793 = vrot.slane %v4791, 4
  %v4794 = vshll.u32 %v4733, 16
  %v4796 = vrot.slane %v4794, 5
  %v4797 = vor.u32 %v4793, %v4796
  %v4798 = vrot.slane %v4797, 4
  %v4800 = vshll.u32 %v4734, 16
  %v4802 = vrot.slane %v4800, 5
  %v4803 = vsel %vm4789, %v4798, %v4802
  %v4804 = vshrl.u32 %v4734, 16
  %v4806 = vrot.slane %v4804, 4
  %v4807 = vor.u32 %v4806, %v4802
  %v4808 = vrot.slane %v4807, 4
  %v4810 = vshll.u32 %v4771, 16
  %v4812 = vrot.slane %v4810, 5
  %v4813 = vsel %vm4789, %v4808, %v4812
  %v4815 = vshrl.u32 %v4735, 16
  %v4817 = vrot.slane %v4815, 4
  %v4818 = vshll.u32 %v4735, 16
  %v4820 = vrot.slane %v4818, 5
  %v4821 = vor.u32 %v4817, %v4820
  %v4822 = vrot.slane %v4821, 4
  %v4824 = vshll.u32 %v4736, 16
  %v4826 = vrot.slane %v4824, 5
  %v4827 = vsel %vm4789, %v4822, %v4826
  %v4828 = vshrl.u32 %v4736, 16
  %v4830 = vrot.slane %v4828, 4
  %v4831 = vor.u32 %v4830, %v4826
  %v4832 = vrot.slane %v4831, 4
  %v4834 = vshll.u32 %v4772, 16
  %v4836 = vrot.slane %v4834, 5
  %v4837 = vsel %vm4789, %v4832, %v4836
  %v4839 = vshrl.u32 %v4737, 16
  %v4841 = vrot.slane %v4839, 4
  %v4842 = vshll.u32 %v4737, 16
  %v4844 = vrot.slane %v4842, 5
  %v4845 = vor.u32 %v4841, %v4844
  %v4846 = vrot.slane %v4845, 4
  %v4848 = vshll.u32 %v4738, 16
  %v4850 = vrot.slane %v4848, 5
  %v4851 = vsel %vm4789, %v4846, %v4850
  %v4852 = vshrl.u32 %v4738, 16
  %v4854 = vrot.slane %v4852, 4
  %v4855 = vor.u32 %v4854, %v4850
  %v4856 = vrot.slane %v4855, 4
  %v4858 = vshll.u32 %v4773, 16
  %v4860 = vrot.slane %v4858, 5
  %v4861 = vsel %vm4789, %v4856, %v4860
  %v4863 = vshrl.u32 %v4739, 16
  %v4865 = vrot.slane %v4863, 4
  %v4866 = vshll.u32 %v4739, 16
  %v4868 = vrot.slane %v4866, 5
  %v4869 = vor.u32 %v4865, %v4868
  %v4870 = vrot.slane %v4869, 4
  %v4872 = vshll.u32 %v4740, 16
  %v4874 = vrot.slane %v4872, 5
  %v4875 = vsel %vm4789, %v4870, %v4874
  %v4876 = vshrl.u32 %v4740, 16
  %v4878 = vrot.slane %v4876, 4
  %v4879 = vor.u32 %v4878, %v4874
  %v4880 = vrot.slane %v4879, 4
  %v4882 = vshll.u32 %v4774, 16
  %v4884 = vrot.slane %v4882, 5
  %v4885 = vsel %vm4789, %v4880, %v4884
  %v4887 = vshrl.u32 %v4741, 16
  %v4889 = vrot.slane %v4887, 4
  %v4890 = vshll.u32 %v4741, 16
  %v4892 = vrot.slane %v4890, 5
  %v4893 = vor.u32 %v4889, %v4892
  %v4894 = vrot.slane %v4893, 4
  %v4896 = vshll.u32 %v4742, 16
  %v4898 = vrot.slane %v4896, 5
  %v4899 = vsel %vm4789, %v4894, %v4898
  %v4900 = vshrl.u32 %v4742, 16
  %v4902 = vrot.slane %v4900, 4
  %v4903 = vor.u32 %v4902, %v4898
  %v4904 = vrot.slane %v4903, 4
  %v4906 = vshll.u32 %v4775, 16
  %v4908 = vrot.slane %v4906, 5
  %v4909 = vsel %vm4789, %v4904, %v4908
  %v4911 = vshrl.u32 %v4743, 16
  %v4913 = vrot.slane %v4911, 4
  %v4914 = vshll.u32 %v4743, 16
  %v4916 = vrot.slane %v4914, 5
  %v4917 = vor.u32 %v4913, %v4916
  %v4918 = vrot.slane %v4917, 4
  %v4920 = vshll.u32 %v4744, 16
  %v4922 = vrot.slane %v4920, 5
  %v4923 = vsel %vm4789, %v4918, %v4922
  %v4924 = vshrl.u32 %v4744, 16
  %v4926 = vrot.slane %v4924, 4
  %v4927 = vor.u32 %v4926, %v4922
  %v4928 = vrot.slane %v4927, 4
  %v4930 = vshll.u32 %v4776, 16
  %v4932 = vrot.slane %v4930, 5
  %v4933 = vsel %vm4789, %v4928, %v4932
  %v4935 = vshrl.u32 %v4745, 16
  %v4937 = vrot.slane %v4935, 4
  %v4938 = vshll.u32 %v4745, 16
  %v4940 = vrot.slane %v4938, 5
  %v4941 = vor.u32 %v4937, %v4940
  %v4942 = vrot.slane %v4941, 4
  %v4944 = vshll.u32 %v4746, 16
  %v4946 = vrot.slane %v4944, 5
  %v4947 = vsel %vm4789, %v4942, %v4946
  %v4948 = vshrl.u32 %v4746, 16
  %v4950 = vrot.slane %v4948, 4
  %v4951 = vor.u32 %v4950, %v4946
  %v4952 = vrot.slane %v4951, 4
  %v4954 = vshll.u32 %v4777, 16
  %v4956 = vrot.slane %v4954, 5
  %v4957 = vsel %vm4789, %v4952, %v4956
  %v4959 = vshrl.u32 %v4747, 16
  %v4961 = vrot.slane %v4959, 4
  %v4962 = vshll.u32 %v4747, 16
  %v4964 = vrot.slane %v4962, 5
  %v4965 = vor.u32 %v4961, %v4964
  %v4966 = vrot.slane %v4965, 4
  %v4968 = vshll.u32 %v4748, 16
  %v4970 = vrot.slane %v4968, 5
  %v4971 = vsel %vm4789, %v4966, %v4970
  %v4972 = vshrl.u32 %v4748, 16
  %v4974 = vrot.slane %v4972, 4
  %v4975 = vor.u32 %v4974, %v4970
  %v4976 = vrot.slane %v4975, 4
  %v4978 = vshll.u32 %v4778, 16
  %v4980 = vrot.slane %v4978, 5
  %v4981 = vsel %vm4789, %v4976, %v4980
  %v4983 = vshrl.u32 %v4749, 16
  %v4985 = vrot.slane %v4983, 4
  %v4986 = vshll.u32 %v4749, 16
  %v4988 = vrot.slane %v4986, 5
  %v4989 = vor.u32 %v4985, %v4988
  %v4990 = vrot.slane %v4989, 4
  %v4992 = vshll.u32 %v4750, 16
  %v4994 = vrot.slane %v4992, 5
  %v4995 = vsel %vm4789, %v4990, %v4994
  %v4996 = vshrl.u32 %v4750, 16
  %v4998 = vrot.slane %v4996, 4
  %v4999 = vor.u32 %v4998, %v4994
  %v5000 = vrot.slane %v4999, 4
  %v5002 = vshll.u32 %v4779, 16
  %v5004 = vrot.slane %v5002, 5
  %v5005 = vsel %vm4789, %v5000, %v5004
  %v5007 = vshrl.u32 %v4751, 16
  %v5009 = vrot.slane %v5007, 4
  %v5010 = vshll.u32 %v4751, 16
  %v5012 = vrot.slane %v5010, 5
  %v5013 = vor.u32 %v5009, %v5012
  %v5014 = vrot.slane %v5013, 4
  %v5016 = vshll.u32 %v4752, 16
  %v5018 = vrot.slane %v5016, 5
  %v5019 = vsel %vm4789, %v5014, %v5018
  %v5020 = vshrl.u32 %v4752, 16
  %v5022 = vrot.slane %v5020, 4
  %v5023 = vor.u32 %v5022, %v5018
  %v5024 = vrot.slane %v5023, 4
  %v5026 = vshll.u32 %v4780, 16
  %v5028 = vrot.slane %v5026, 5
  %v5029 = vsel %vm4789, %v5024, %v5028
  %v5031 = vshrl.u32 %v4753, 16
  %v5033 = vrot.slane %v5031, 4
  %v5034 = vshll.u32 %v4753, 16
  %v5036 = vrot.slane %v5034, 5
  %v5037 = vor.u32 %v5033, %v5036
  %v5038 = vrot.slane %v5037, 4
  %v5040 = vshll.u32 %v4754, 16
  %v5042 = vrot.slane %v5040, 5
  %v5043 = vsel %vm4789, %v5038, %v5042
  %v5044 = vshrl.u32 %v4754, 16
  %v5046 = vrot.slane %v5044, 4
  %v5047 = vor.u32 %v5046, %v5042
  %v5048 = vrot.slane %v5047, 4
  %v5050 = vshll.u32 %v4781, 16
  %v5052 = vrot.slane %v5050, 5
  %v5053 = vsel %vm4789, %v5048, %v5052
  %v5055 = vshrl.u32 %v4755, 16
  %v5057 = vrot.slane %v5055, 4
  %v5058 = vshll.u32 %v4755, 16
  %v5060 = vrot.slane %v5058, 5
  %v5061 = vor.u32 %v5057, %v5060
  %v5062 = vrot.slane %v5061, 4
  %v5064 = vshll.u32 %v4756, 16
  %v5066 = vrot.slane %v5064, 5
  %v5067 = vsel %vm4789, %v5062, %v5066
  %v5068 = vshrl.u32 %v4756, 16
  %v5070 = vrot.slane %v5068, 4
  %v5071 = vor.u32 %v5070, %v5066
  %v5072 = vrot.slane %v5071, 4
  %v5074 = vshll.u32 %v4782, 16
  %v5076 = vrot.slane %v5074, 5
  %v5077 = vsel %vm4789, %v5072, %v5076
  %v5079 = vshrl.u32 %v4757, 16
  %v5081 = vrot.slane %v5079, 4
  %v5082 = vshll.u32 %v4757, 16
  %v5084 = vrot.slane %v5082, 5
  %v5085 = vor.u32 %v5081, %v5084
  %v5086 = vrot.slane %v5085, 4
  %v5088 = vshll.u32 %v4758, 16
  %v5090 = vrot.slane %v5088, 5
  %v5091 = vsel %vm4789, %v5086, %v5090
  %v5092 = vshrl.u32 %v4758, 16
  %v5094 = vrot.slane %v5092, 4
  %v5095 = vor.u32 %v5094, %v5090
  %v5096 = vrot.slane %v5095, 4
  %v5098 = vshll.u32 %v4783, 16
  %v5100 = vrot.slane %v5098, 5
  %v5101 = vsel %vm4789, %v5096, %v5100
  %v5103 = vshrl.u32 %v4759, 16
  %v5105 = vrot.slane %v5103, 4
  %v5106 = vshll.u32 %v4759, 16
  %v5108 = vrot.slane %v5106, 5
  %v5109 = vor.u32 %v5105, %v5108
  %v5110 = vrot.slane %v5109, 4
  %v5112 = vshll.u32 %v4760, 16
  %v5114 = vrot.slane %v5112, 5
  %v5115 = vsel %vm4789, %v5110, %v5114
  %v5116 = vshrl.u32 %v4760, 16
  %v5118 = vrot.slane %v5116, 4
  %v5119 = vor.u32 %v5118, %v5114
  %v5120 = vrot.slane %v5119, 4
  %v5122 = vshll.u32 %v4784, 16
  %v5124 = vrot.slane %v5122, 5
  %v5125 = vsel %vm4789, %v5120, %v5124
  %v5127 = vshrl.u32 %v4761, 16
  %v5129 = vrot.slane %v5127, 4
  %v5130 = vshll.u32 %v4761, 16
  %v5132 = vrot.slane %v5130, 5
  %v5133 = vor.u32 %v5129, %v5132
  %v5134 = vrot.slane %v5133, 4
  %v5136 = vshll.u32 %v4762, 16
  %v5138 = vrot.slane %v5136, 5
  %v5139 = vsel %vm4789, %v5134, %v5138
  %v5140 = vshrl.u32 %v4762, 16
  %v5142 = vrot.slane %v5140, 4
  %v5143 = vor.u32 %v5142, %v5138
  %v5144 = vrot.slane %v5143, 4
  %v5146 = vshll.u32 %v4785, 16
  %v5148 = vrot.slane %v5146, 5
  %v5149 = vsel %vm4789, %v5144, %v5148
  %v5151 = vshrl.u32 %v4763, 16
  %v5153 = vrot.slane %v5151, 4
  %v5154 = vshll.u32 %v4763, 16
  %v5156 = vrot.slane %v5154, 5
  %v5157 = vor.u32 %v5153, %v5156
  %v5158 = vrot.slane %v5157, 4
  %v5160 = vshll.u32 %v4764, 16
  %v5162 = vrot.slane %v5160, 5
  %v5163 = vsel %vm4789, %v5158, %v5162
  %v5164 = vshrl.u32 %v4764, 16
  %v5166 = vrot.slane %v5164, 4
  %v5167 = vor.u32 %v5166, %v5162
  %v5168 = vrot.slane %v5167, 4
  %v5170 = vshll.u32 %v4786, 16
  %v5172 = vrot.slane %v5170, 5
  %v5173 = vsel %vm4789, %v5168, %v5172
  %s5174 = scalar_lea.vmem %s3, 24
  %v5175 = vld [vmem:[%s5174] sm:$0xf]
  %v5176 = vld [vmem:[%s5174 + $0x4] sm:$0xf]
  %v5177 = vld [vmem:[%s5174 + $0x8] sm:$0xf]
  %v5178 = vld [vmem:[%s5174 + $0xc] sm:$0xf]
  %v5179 = vld [vmem:[%s5174 + $0x10] sm:$0xf]
  %v5180 = vld [vmem:[%s5174 + $0x14] sm:$0xf]
  %v5181 = vunpack.c.l.b16 %v4803
  %v5182 = vunpack.c.l.b16 %v4813
  %v5183 = vunpack.c.l.b16 %v4827
  %v5184 = vunpack.c.l.b16 %v4837
  %v5185 = vunpack.c.l.b16 %v4851
  %v5186 = vunpack.c.l.b16 %v4861
  %v5187 = vunpack.c.l.b16 %v4875
  %v5188 = vunpack.c.l.b16 %v4885
  %v5189 = vunpack.c.l.b16 %v4899
  %v5190 = vunpack.c.l.b16 %v4909
  %v5191 = vunpack.c.l.b16 %v4923
  %v5192 = vunpack.c.l.b16 %v4933
  %v5193 = vunpack.c.l.b16 %v4947
  %v5194 = vunpack.c.l.b16 %v4957
  %v5195 = vunpack.c.l.b16 %v4971
  %v5196 = vunpack.c.l.b16 %v4981
  %v5197 = vunpack.c.l.b16 %v4995
  %v5198 = vunpack.c.l.b16 %v5005
  %v5199 = vunpack.c.l.b16 %v5019
  %v5200 = vunpack.c.l.b16 %v5029
  %v5201 = vunpack.c.l.b16 %v5043
  %v5202 = vunpack.c.l.b16 %v5053
  %v5203 = vunpack.c.l.b16 %v5067
  %v5204 = vunpack.c.l.b16 %v5077
  %v5205 = vunpack.c.l.b16 %v5091
  %v5206 = vunpack.c.l.b16 %v5101
  %v5207 = vunpack.c.l.b16 %v5115
  %v5208 = vunpack.c.l.b16 %v5125
  %v5209 = vunpack.c.l.b16 %v5139
  %v5210 = vunpack.c.l.b16 %v5149
  %v5211 = vunpack.c.l.b16 %v5163
  %v5212 = vunpack.c.l.b16 %v5173
  %v5213 = vpack.c.b16 %v5182, %v5181
  %v5214 = vpack.c.b16 %v5184, %v5183
  %v5215 = vpack.c.b16 %v5186, %v5185
  %v5216 = vpack.c.b16 %v5188, %v5187
  %v5217 = vpack.c.b16 %v5190, %v5189
  %v5218 = vpack.c.b16 %v5192, %v5191
  %v5219 = vpack.c.b16 %v5194, %v5193
  %v5220 = vpack.c.b16 %v5196, %v5195
  %v5221 = vpack.c.b16 %v5198, %v5197
  %v5222 = vpack.c.b16 %v5200, %v5199
  %v5223 = vpack.c.b16 %v5202, %v5201
  %v5224 = vpack.c.b16 %v5204, %v5203
  %v5225 = vpack.c.b16 %v5206, %v5205
  %v5226 = vpack.c.b16 %v5208, %v5207
  %v5227 = vpack.c.b16 %v5210, %v5209
  %v5228 = vpack.c.b16 %v5212, %v5211
  %v5235 = vunpack.c.l.b16 %v5175
  %v5236 = vunpack.c.l.b16 %v5176
  %v5237 = vunpack.c.l.b16 %v5177
  %v5238 = vunpack.c.l.b16 %v5178
  %v5239 = vunpack.c.l.b16 %v5179
  %v5240 = vunpack.c.l.b16 %v5180
  %v5241 = vpack.c.b16 %v5236, %v5235
  %v5242 = vpack.c.b16 %v5238, %v5237
  %v5243 = vpack.c.b16 %v5240, %v5239
  %vm5247 = vcmask 392192
  %v5249 = vsel %vm5247, %v5213, 0
  %v5252 = vsel %vm5247, %v5214, 0
  %v5255 = vsel %vm5247, %v5215, 0
  %v5258 = vsel %vm5247, %v5216, 0
  %v5261 = vsel %vm5247, %v5217, 0
  %v5264 = vsel %vm5247, %v5218, 0
  %v5267 = vsel %vm5247, %v5219, 0
  %v5270 = vsel %vm5247, %v5220, 0
  %v5273 = vsel %vm5247, %v5221, 0
  %v5276 = vsel %vm5247, %v5222, 0
  %v5279 = vsel %vm5247, %v5223, 0
  %v5282 = vsel %vm5247, %v5224, 0
  %v5285 = vsel %vm5247, %v5225, 0
  %v5288 = vsel %vm5247, %v5226, 0
  %v5291 = vsel %vm5247, %v5227, 0
  %v5294 = vsel %vm5247, %v5228, 0
  %5296 = vmatpush.bf16.msra.mxu0 0
  %5297 = vmatpush.bf16.msra.mxu0 0
  %5298 = vmatpush.bf16.msra.mxu0 0
  %5299 = vmatpush.bf16.msra.mxu0 0
  %5300 = vmatpush.bf16.msra.mxu0 0
  %5301 = vmatpush.bf16.msra.mxu0 %v5243
  %5302 = vmatpush.bf16.msra.mxu0 %v5242
  %5303 = vmatpush.bf16.msra.mxu0 %v5241
  %5304 = vmatmul.bf16.gmra.mxu0 %v5249
  %v5305 = vpop.f32.mrf.mxu0
  %v5306 = vadd.f32 0.0, %v5305
  %v5307 = vpop.f32.mrf.mxu0
  %v5308 = vadd.f32 0.0, %v5307
  %5309 = vmatmul.bf16.gmra.mxu0 %v5252
  %v5310 = vpop.f32.mrf.mxu0
  %v5311 = vadd.f32 0.0, %v5310
  %v5312 = vpop.f32.mrf.mxu0
  %v5313 = vadd.f32 0.0, %v5312
  %5314 = vmatmul.bf16.gmra.mxu0 %v5255
  %v5315 = vpop.f32.mrf.mxu0
  %v5316 = vadd.f32 0.0, %v5315
  %v5317 = vpop.f32.mrf.mxu0
  %v5318 = vadd.f32 0.0, %v5317
  %5319 = vmatmul.bf16.gmra.mxu0 %v5258
  %v5320 = vpop.f32.mrf.mxu0
  %v5321 = vadd.f32 0.0, %v5320
  %v5322 = vpop.f32.mrf.mxu0
  %v5323 = vadd.f32 0.0, %v5322
  %5324 = vmatmul.bf16.gmra.mxu0 %v5261
  %v5325 = vpop.f32.mrf.mxu0
  %v5326 = vadd.f32 0.0, %v5325
  %v5327 = vpop.f32.mrf.mxu0
  %v5328 = vadd.f32 0.0, %v5327
  %5329 = vmatmul.bf16.gmra.mxu0 %v5264
  %v5330 = vpop.f32.mrf.mxu0
  %v5331 = vadd.f32 0.0, %v5330
  %v5332 = vpop.f32.mrf.mxu0
  %v5333 = vadd.f32 0.0, %v5332
  %5334 = vmatmul.bf16.gmra.mxu0 %v5267
  %v5335 = vpop.f32.mrf.mxu0
  %v5336 = vadd.f32 0.0, %v5335
  %v5337 = vpop.f32.mrf.mxu0
  %v5338 = vadd.f32 0.0, %v5337
  %5339 = vmatmul.bf16.gmra.mxu0 %v5270
  %v5340 = vpop.f32.mrf.mxu0
  %v5341 = vadd.f32 0.0, %v5340
  %v5342 = vpop.f32.mrf.mxu0
  %v5343 = vadd.f32 0.0, %v5342
  %5344 = vmatmul.bf16.gmra.mxu0 %v5273
  %v5345 = vpop.f32.mrf.mxu0
  %v5346 = vadd.f32 0.0, %v5345
  %v5347 = vpop.f32.mrf.mxu0
  %v5348 = vadd.f32 0.0, %v5347
  %5349 = vmatmul.bf16.gmra.mxu0 %v5276
  %v5350 = vpop.f32.mrf.mxu0
  %v5351 = vadd.f32 0.0, %v5350
  %v5352 = vpop.f32.mrf.mxu0
  %v5353 = vadd.f32 0.0, %v5352
  %5354 = vmatmul.bf16.gmra.mxu0 %v5279
  %v5355 = vpop.f32.mrf.mxu0
  %v5356 = vadd.f32 0.0, %v5355
  %v5357 = vpop.f32.mrf.mxu0
  %v5358 = vadd.f32 0.0, %v5357
  %5359 = vmatmul.bf16.gmra.mxu0 %v5282
  %v5360 = vpop.f32.mrf.mxu0
  %v5361 = vadd.f32 0.0, %v5360
  %v5362 = vpop.f32.mrf.mxu0
  %v5363 = vadd.f32 0.0, %v5362
  %5364 = vmatmul.bf16.gmra.mxu0 %v5285
  %v5365 = vpop.f32.mrf.mxu0
  %v5366 = vadd.f32 0.0, %v5365
  %v5367 = vpop.f32.mrf.mxu0
  %v5368 = vadd.f32 0.0, %v5367
  %5369 = vmatmul.bf16.gmra.mxu0 %v5288
  %v5370 = vpop.f32.mrf.mxu0
  %v5371 = vadd.f32 0.0, %v5370
  %v5372 = vpop.f32.mrf.mxu0
  %v5373 = vadd.f32 0.0, %v5372
  %5374 = vmatmul.bf16.gmra.mxu0 %v5291
  %v5375 = vpop.f32.mrf.mxu0
  %v5376 = vadd.f32 0.0, %v5375
  %v5377 = vpop.f32.mrf.mxu0
  %v5378 = vadd.f32 0.0, %v5377
  %5379 = vmatmul.bf16.gmra.mxu0 %v5294
  %v5380 = vpop.f32.mrf.mxu0
  %v5381 = vadd.f32 0.0, %v5380
  %v5382 = vpop.f32.mrf.mxu0
  %v5383 = vadd.f32 0.0, %v5382
  %5384 = vdwg.mxu0
  %v5417 = vunpack.c.l.b16 %v4733
  %v5418 = vunpack.c.l.b16 %v4734
  %v5419 = vunpack.c.l.b16 %v4735
  %v5420 = vunpack.c.l.b16 %v4736
  %v5421 = vunpack.c.l.b16 %v4737
  %v5422 = vunpack.c.l.b16 %v4738
  %v5423 = vunpack.c.l.b16 %v4739
  %v5424 = vunpack.c.l.b16 %v4740
  %v5425 = vunpack.c.l.b16 %v4741
  %v5426 = vunpack.c.l.b16 %v4742
  %v5427 = vunpack.c.l.b16 %v4743
  %v5428 = vunpack.c.l.b16 %v4744
  %v5429 = vunpack.c.l.b16 %v4745
  %v5430 = vunpack.c.l.b16 %v4746
  %v5431 = vunpack.c.l.b16 %v4747
  %v5432 = vunpack.c.l.b16 %v4748
  %v5433 = vunpack.c.l.b16 %v4749
  %v5434 = vunpack.c.l.b16 %v4750
  %v5435 = vunpack.c.l.b16 %v4751
  %v5436 = vunpack.c.l.b16 %v4752
  %v5437 = vunpack.c.l.b16 %v4753
  %v5438 = vunpack.c.l.b16 %v4754
  %v5439 = vunpack.c.l.b16 %v4755
  %v5440 = vunpack.c.l.b16 %v4756
  %v5441 = vunpack.c.l.b16 %v4757
  %v5442 = vunpack.c.l.b16 %v4758
  %v5443 = vunpack.c.l.b16 %v4759
  %v5444 = vunpack.c.l.b16 %v4760
  %v5445 = vunpack.c.l.b16 %v4761
  %v5446 = vunpack.c.l.b16 %v4762
  %v5447 = vunpack.c.l.b16 %v4763
  %v5448 = vunpack.c.l.b16 %v4764
  %v5449 = vpack.c.b16 %v5418, %v5417
  %v5450 = vpack.c.b16 %v5420, %v5419
  %v5451 = vpack.c.b16 %v5422, %v5421
  %v5452 = vpack.c.b16 %v5424, %v5423
  %v5453 = vpack.c.b16 %v5426, %v5425
  %v5454 = vpack.c.b16 %v5428, %v5427
  %v5455 = vpack.c.b16 %v5430, %v5429
  %v5456 = vpack.c.b16 %v5432, %v5431
  %v5457 = vpack.c.b16 %v5434, %v5433
  %v5458 = vpack.c.b16 %v5436, %v5435
  %v5459 = vpack.c.b16 %v5438, %v5437
  %v5460 = vpack.c.b16 %v5440, %v5439
  %v5461 = vpack.c.b16 %v5442, %v5441
  %v5462 = vpack.c.b16 %v5444, %v5443
  %v5463 = vpack.c.b16 %v5446, %v5445
  %v5464 = vpack.c.b16 %v5448, %v5447
  %v5471 = vunpack.c.l.b16 %v4765
  %v5472 = vunpack.c.l.b16 %v4766
  %v5473 = vunpack.c.l.b16 %v4767
  %v5474 = vunpack.c.l.b16 %v4768
  %v5475 = vunpack.c.l.b16 %v4769
  %v5476 = vunpack.c.l.b16 %v4770
  %v5477 = vpack.c.b16 %v5472, %v5471
  %v5478 = vpack.c.b16 %v5474, %v5473
  %v5479 = vpack.c.b16 %v5476, %v5475
  %v5484 = vsel %vm5247, %v5449, 0
  %v5487 = vsel %vm5247, %v5450, 0
  %v5490 = vsel %vm5247, %v5451, 0
  %v5493 = vsel %vm5247, %v5452, 0
  %v5496 = vsel %vm5247, %v5453, 0
  %v5499 = vsel %vm5247, %v5454, 0
  %v5502 = vsel %vm5247, %v5455, 0
  %v5505 = vsel %vm5247, %v5456, 0
  %v5508 = vsel %vm5247, %v5457, 0
  %v5511 = vsel %vm5247, %v5458, 0
  %v5514 = vsel %vm5247, %v5459, 0
  %v5517 = vsel %vm5247, %v5460, 0
  %v5520 = vsel %vm5247, %v5461, 0
  %v5523 = vsel %vm5247, %v5462, 0
  %v5526 = vsel %vm5247, %v5463, 0
  %v5529 = vsel %vm5247, %v5464, 0
  %5531 = vmatpush.bf16.msra.mxu0 0
  %5532 = vmatpush.bf16.msra.mxu0 0
  %5533 = vmatpush.bf16.msra.mxu0 0
  %5534 = vmatpush.bf16.msra.mxu0 0
  %5535 = vmatpush.bf16.msra.mxu0 0
  %5536 = vmatpush.bf16.msra.mxu0 %v5479
  %5537 = vmatpush.bf16.msra.mxu0 %v5478
  %5538 = vmatpush.bf16.msra.mxu0 %v5477
  %5539 = vmatmul.bf16.gmra.mxu0 %v5484
  %v5540 = vpop.f32.mrf.mxu0
  %v5541 = vadd.f32 %v5306, %v5540
  %v5542 = vpop.f32.mrf.mxu0
  %v5543 = vadd.f32 %v5308, %v5542
  %5544 = vmatmul.bf16.gmra.mxu0 %v5487
  %v5545 = vpop.f32.mrf.mxu0
  %v5546 = vadd.f32 %v5311, %v5545
  %v5547 = vpop.f32.mrf.mxu0
  %v5548 = vadd.f32 %v5313, %v5547
  %5549 = vmatmul.bf16.gmra.mxu0 %v5490
  %v5550 = vpop.f32.mrf.mxu0
  %v5551 = vadd.f32 %v5316, %v5550
  %v5552 = vpop.f32.mrf.mxu0
  %v5553 = vadd.f32 %v5318, %v5552
  %5554 = vmatmul.bf16.gmra.mxu0 %v5493
  %v5555 = vpop.f32.mrf.mxu0
  %v5556 = vadd.f32 %v5321, %v5555
  %v5557 = vpop.f32.mrf.mxu0
  %v5558 = vadd.f32 %v5323, %v5557
  %5559 = vmatmul.bf16.gmra.mxu0 %v5496
  %v5560 = vpop.f32.mrf.mxu0
  %v5561 = vadd.f32 %v5326, %v5560
  %v5562 = vpop.f32.mrf.mxu0
  %v5563 = vadd.f32 %v5328, %v5562
  %5564 = vmatmul.bf16.gmra.mxu0 %v5499
  %v5565 = vpop.f32.mrf.mxu0
  %v5566 = vadd.f32 %v5331, %v5565
  %v5567 = vpop.f32.mrf.mxu0
  %v5568 = vadd.f32 %v5333, %v5567
  %5569 = vmatmul.bf16.gmra.mxu0 %v5502
  %v5570 = vpop.f32.mrf.mxu0
  %v5571 = vadd.f32 %v5336, %v5570
  %v5572 = vpop.f32.mrf.mxu0
  %v5573 = vadd.f32 %v5338, %v5572
  %5574 = vmatmul.bf16.gmra.mxu0 %v5505
  %v5575 = vpop.f32.mrf.mxu0
  %v5576 = vadd.f32 %v5341, %v5575
  %v5577 = vpop.f32.mrf.mxu0
  %v5578 = vadd.f32 %v5343, %v5577
  %5579 = vmatmul.bf16.gmra.mxu0 %v5508
  %v5580 = vpop.f32.mrf.mxu0
  %v5581 = vadd.f32 %v5346, %v5580
  %v5582 = vpop.f32.mrf.mxu0
  %v5583 = vadd.f32 %v5348, %v5582
  %5584 = vmatmul.bf16.gmra.mxu0 %v5511
  %v5585 = vpop.f32.mrf.mxu0
  %v5586 = vadd.f32 %v5351, %v5585
  %v5587 = vpop.f32.mrf.mxu0
  %v5588 = vadd.f32 %v5353, %v5587
  %5589 = vmatmul.bf16.gmra.mxu0 %v5514
  %v5590 = vpop.f32.mrf.mxu0
  %v5591 = vadd.f32 %v5356, %v5590
  %v5592 = vpop.f32.mrf.mxu0
  %v5593 = vadd.f32 %v5358, %v5592
  %5594 = vmatmul.bf16.gmra.mxu0 %v5517
  %v5595 = vpop.f32.mrf.mxu0
  %v5596 = vadd.f32 %v5361, %v5595
  %v5597 = vpop.f32.mrf.mxu0
  %v5598 = vadd.f32 %v5363, %v5597
  %5599 = vmatmul.bf16.gmra.mxu0 %v5520
  %v5600 = vpop.f32.mrf.mxu0
  %v5601 = vadd.f32 %v5366, %v5600
  %v5602 = vpop.f32.mrf.mxu0
  %v5603 = vadd.f32 %v5368, %v5602
  %5604 = vmatmul.bf16.gmra.mxu0 %v5523
  %v5605 = vpop.f32.mrf.mxu0
  %v5606 = vadd.f32 %v5371, %v5605
  %v5607 = vpop.f32.mrf.mxu0
  %v5608 = vadd.f32 %v5373, %v5607
  %5609 = vmatmul.bf16.gmra.mxu0 %v5526
  %v5610 = vpop.f32.mrf.mxu0
  %v5611 = vadd.f32 %v5376, %v5610
  %v5612 = vpop.f32.mrf.mxu0
  %v5613 = vadd.f32 %v5378, %v5612
  %5614 = vmatmul.bf16.gmra.mxu0 %v5529
  %v5615 = vpop.f32.mrf.mxu0
  %v5616 = vadd.f32 %v5381, %v5615
  %v5617 = vpop.f32.mrf.mxu0
  %v5618 = vadd.f32 %v5383, %v5617
  %5619 = vdwg.mxu0
  %v5620 = vld [vmem:[#allocation2] sm:$0xe]
  %v5621 = vld [vmem:[#allocation2 + $0xc] sm:$0xe]
  %v5622 = vld [vmem:[#allocation2 + $0x18] sm:$0xe]
  %v5623 = vld [vmem:[#allocation2 + $0x24] sm:$0xe]
  %v5624 = vld [vmem:[#allocation2 + $0x30] sm:$0xe]
  %v5625 = vld [vmem:[#allocation2 + $0x3c] sm:$0xe]
  %v5626 = vld [vmem:[#allocation2 + $0x48] sm:$0xe]
  %v5627 = vld [vmem:[#allocation2 + $0x54] sm:$0xe]
  %v5628 = vld [vmem:[#allocation2 + $0x60] sm:$0xe]
  %v5629 = vld [vmem:[#allocation2 + $0x6c] sm:$0xe]
  %v5630 = vld [vmem:[#allocation2 + $0x78] sm:$0xe]
  %v5631 = vld [vmem:[#allocation2 + $0x84] sm:$0xe]
  %v5632 = vld [vmem:[#allocation2 + $0x90] sm:$0xe]
  %v5633 = vld [vmem:[#allocation2 + $0x9c] sm:$0xe]
  %v5634 = vld [vmem:[#allocation2 + $0xa8] sm:$0xe]
  %v5635 = vld [vmem:[#allocation2 + $0xb4] sm:$0xe]
  %vm5668 = vcmask 1042432
  %vm5669 = vcmask 1046532
  %vm5670 = vmor %vm5668, %vm5669
  %v5671 = vrot.slane %v5620, 5
  %v5672 = vrot.slane %v5671, 4
  %v5673 = vrot.slane %v4734, 5
  %v5674 = vsel %vm5670, %v5672, %v5673
  %v5675 = vrot.slane %v5673, 4
  %v5676 = vrot.slane %v4771, 5
  %v5677 = vsel %vm5670, %v5675, %v5676
  %v5678 = vrot.slane %v5621, 5
  %v5679 = vrot.slane %v5678, 4
  %v5680 = vrot.slane %v4736, 5
  %v5681 = vsel %vm5670, %v5679, %v5680
  %v5682 = vrot.slane %v5680, 4
  %v5683 = vrot.slane %v4772, 5
  %v5684 = vsel %vm5670, %v5682, %v5683
  %v5685 = vrot.slane %v5622, 5
  %v5686 = vrot.slane %v5685, 4
  %v5687 = vrot.slane %v4738, 5
  %v5688 = vsel %vm5670, %v5686, %v5687
  %v5689 = vrot.slane %v5687, 4
  %v5690 = vrot.slane %v4773, 5
  %v5691 = vsel %vm5670, %v5689, %v5690
  %v5692 = vrot.slane %v5623, 5
  %v5693 = vrot.slane %v5692, 4
  %v5694 = vrot.slane %v4740, 5
  %v5695 = vsel %vm5670, %v5693, %v5694
  %v5696 = vrot.slane %v5694, 4
  %v5697 = vrot.slane %v4774, 5
  %v5698 = vsel %vm5670, %v5696, %v5697
  %v5699 = vrot.slane %v5624, 5
  %v5700 = vrot.slane %v5699, 4
  %v5701 = vrot.slane %v4742, 5
  %v5702 = vsel %vm5670, %v5700, %v5701
  %v5703 = vrot.slane %v5701, 4
  %v5704 = vrot.slane %v4775, 5
  %v5705 = vsel %vm5670, %v5703, %v5704
  %v5706 = vrot.slane %v5625, 5
  %v5707 = vrot.slane %v5706, 4
  %v5708 = vrot.slane %v4744, 5
  %v5709 = vsel %vm5670, %v5707, %v5708
  %v5710 = vrot.slane %v5708, 4
  %v5711 = vrot.slane %v4776, 5
  %v5712 = vsel %vm5670, %v5710, %v5711
  %v5713 = vrot.slane %v5626, 5
  %v5714 = vrot.slane %v5713, 4
  %v5715 = vrot.slane %v4746, 5
  %v5716 = vsel %vm5670, %v5714, %v5715
  %v5717 = vrot.slane %v5715, 4
  %v5718 = vrot.slane %v4777, 5
  %v5719 = vsel %vm5670, %v5717, %v5718
  %v5720 = vrot.slane %v5627, 5
  %v5721 = vrot.slane %v5720, 4
  %v5722 = vrot.slane %v4748, 5
  %v5723 = vsel %vm5670, %v5721, %v5722
  %v5724 = vrot.slane %v5722, 4
  %v5725 = vrot.slane %v4778, 5
  %v5726 = vsel %vm5670, %v5724, %v5725
  %v5727 = vrot.slane %v5628, 5
  %v5728 = vrot.slane %v5727, 4
  %v5729 = vrot.slane %v4750, 5
  %v5730 = vsel %vm5670, %v5728, %v5729
  %v5731 = vrot.slane %v5729, 4
  %v5732 = vrot.slane %v4779, 5
  %v5733 = vsel %vm5670, %v5731, %v5732
  %v5734 = vrot.slane %v5629, 5
  %v5735 = vrot.slane %v5734, 4
  %v5736 = vrot.slane %v4752, 5
  %v5737 = vsel %vm5670, %v5735, %v5736
  %v5738 = vrot.slane %v5736, 4
  %v5739 = vrot.slane %v4780, 5
  %v5740 = vsel %vm5670, %v5738, %v5739
  %v5741 = vrot.slane %v5630, 5
  %v5742 = vrot.slane %v5741, 4
  %v5743 = vrot.slane %v4754, 5
  %v5744 = vsel %vm5670, %v5742, %v5743
  %v5745 = vrot.slane %v5743, 4
  %v5746 = vrot.slane %v4781, 5
  %v5747 = vsel %vm5670, %v5745, %v5746
  %v5748 = vrot.slane %v5631, 5
  %v5749 = vrot.slane %v5748, 4
  %v5750 = vrot.slane %v4756, 5
  %v5751 = vsel %vm5670, %v5749, %v5750
  %v5752 = vrot.slane %v5750, 4
  %v5753 = vrot.slane %v4782, 5
  %v5754 = vsel %vm5670, %v5752, %v5753
  %v5755 = vrot.slane %v5632, 5
  %v5756 = vrot.slane %v5755, 4
  %v5757 = vrot.slane %v4758, 5
  %v5758 = vsel %vm5670, %v5756, %v5757
  %v5759 = vrot.slane %v5757, 4
  %v5760 = vrot.slane %v4783, 5
  %v5761 = vsel %vm5670, %v5759, %v5760
  %v5762 = vrot.slane %v5633, 5
  %v5763 = vrot.slane %v5762, 4
  %v5764 = vrot.slane %v4760, 5
  %v5765 = vsel %vm5670, %v5763, %v5764
  %v5766 = vrot.slane %v5764, 4
  %v5767 = vrot.slane %v4784, 5
  %v5768 = vsel %vm5670, %v5766, %v5767
  %v5769 = vrot.slane %v5634, 5
  %v5770 = vrot.slane %v5769, 4
  %v5771 = vrot.slane %v4762, 5
  %v5772 = vsel %vm5670, %v5770, %v5771
  %v5773 = vrot.slane %v5771, 4
  %v5774 = vrot.slane %v4785, 5
  %v5775 = vsel %vm5670, %v5773, %v5774
  %v5776 = vrot.slane %v5635, 5
  %v5777 = vrot.slane %v5776, 4
  %v5778 = vrot.slane %v4764, 5
  %v5779 = vsel %vm5670, %v5777, %v5778
  %v5780 = vrot.slane %v5778, 4
  %v5781 = vrot.slane %v4786, 5
  %v5782 = vsel %vm5670, %v5780, %v5781
  %s5783 = scalar_lea.vmem %s3, 48
  %v5784 = vld [vmem:[%s5783] sm:$0xf]
  %v5785 = vld [vmem:[%s5783 + $0x4] sm:$0xf]
  %v5786 = vld [vmem:[%s5783 + $0x8] sm:$0xf]
  %v5787 = vld [vmem:[%s5783 + $0xc] sm:$0xf]
  %v5788 = vld [vmem:[%s5783 + $0x10] sm:$0xf]
  %v5789 = vld [vmem:[%s5783 + $0x14] sm:$0xf]
  %v5790 = vunpack.c.l.b16 %v5674
  %v5791 = vunpack.c.l.b16 %v5677
  %v5792 = vunpack.c.l.b16 %v5681
  %v5793 = vunpack.c.l.b16 %v5684
  %v5794 = vunpack.c.l.b16 %v5688
  %v5795 = vunpack.c.l.b16 %v5691
  %v5796 = vunpack.c.l.b16 %v5695
  %v5797 = vunpack.c.l.b16 %v5698
  %v5798 = vunpack.c.l.b16 %v5702
  %v5799 = vunpack.c.l.b16 %v5705
  %v5800 = vunpack.c.l.b16 %v5709
  %v5801 = vunpack.c.l.b16 %v5712
  %v5802 = vunpack.c.l.b16 %v5716
  %v5803 = vunpack.c.l.b16 %v5719
  %v5804 = vunpack.c.l.b16 %v5723
  %v5805 = vunpack.c.l.b16 %v5726
  %v5806 = vunpack.c.l.b16 %v5730
  %v5807 = vunpack.c.l.b16 %v5733
  %v5808 = vunpack.c.l.b16 %v5737
  %v5809 = vunpack.c.l.b16 %v5740
  %v5810 = vunpack.c.l.b16 %v5744
  %v5811 = vunpack.c.l.b16 %v5747
  %v5812 = vunpack.c.l.b16 %v5751
  %v5813 = vunpack.c.l.b16 %v5754
  %v5814 = vunpack.c.l.b16 %v5758
  %v5815 = vunpack.c.l.b16 %v5761
  %v5816 = vunpack.c.l.b16 %v5765
  %v5817 = vunpack.c.l.b16 %v5768
  %v5818 = vunpack.c.l.b16 %v5772
  %v5819 = vunpack.c.l.b16 %v5775
  %v5820 = vunpack.c.l.b16 %v5779
  %v5821 = vunpack.c.l.b16 %v5782
  %v5822 = vpack.c.b16 %v5791, %v5790
  %v5823 = vpack.c.b16 %v5793, %v5792
  %v5824 = vpack.c.b16 %v5795, %v5794
  %v5825 = vpack.c.b16 %v5797, %v5796
  %v5826 = vpack.c.b16 %v5799, %v5798
  %v5827 = vpack.c.b16 %v5801, %v5800
  %v5828 = vpack.c.b16 %v5803, %v5802
  %v5829 = vpack.c.b16 %v5805, %v5804
  %v5830 = vpack.c.b16 %v5807, %v5806
  %v5831 = vpack.c.b16 %v5809, %v5808
  %v5832 = vpack.c.b16 %v5811, %v5810
  %v5833 = vpack.c.b16 %v5813, %v5812
  %v5834 = vpack.c.b16 %v5815, %v5814
  %v5835 = vpack.c.b16 %v5817, %v5816
  %v5836 = vpack.c.b16 %v5819, %v5818
  %v5837 = vpack.c.b16 %v5821, %v5820
  %v5844 = vunpack.c.l.b16 %v5784
  %v5845 = vunpack.c.l.b16 %v5785
  %v5846 = vunpack.c.l.b16 %v5786
  %v5847 = vunpack.c.l.b16 %v5787
  %v5848 = vunpack.c.l.b16 %v5788
  %v5849 = vunpack.c.l.b16 %v5789
  %v5850 = vpack.c.b16 %v5845, %v5844
  %v5851 = vpack.c.b16 %v5847, %v5846
  %v5852 = vpack.c.b16 %v5849, %v5848
  %v5857 = vsel %vm5247, %v5822, 0
  %v5860 = vsel %vm5247, %v5823, 0
  %v5863 = vsel %vm5247, %v5824, 0
  %v5866 = vsel %vm5247, %v5825, 0
  %v5869 = vsel %vm5247, %v5826, 0
  %v5872 = vsel %vm5247, %v5827, 0
  %v5875 = vsel %vm5247, %v5828, 0
  %v5878 = vsel %vm5247, %v5829, 0
  %v5881 = vsel %vm5247, %v5830, 0
  %v5884 = vsel %vm5247, %v5831, 0
  %v5887 = vsel %vm5247, %v5832, 0
  %v5890 = vsel %vm5247, %v5833, 0
  %v5893 = vsel %vm5247, %v5834, 0
  %v5896 = vsel %vm5247, %v5835, 0
  %v5899 = vsel %vm5247, %v5836, 0
  %v5902 = vsel %vm5247, %v5837, 0
  %5904 = vmatpush.bf16.msra.mxu0 0
  %5905 = vmatpush.bf16.msra.mxu0 0
  %5906 = vmatpush.bf16.msra.mxu0 0
  %5907 = vmatpush.bf16.msra.mxu0 0
  %5908 = vmatpush.bf16.msra.mxu0 0
  %5909 = vmatpush.bf16.msra.mxu0 %v5852
  %5910 = vmatpush.bf16.msra.mxu0 %v5851
  %5911 = vmatpush.bf16.msra.mxu0 %v5850
  %5912 = vmatmul.bf16.gmra.mxu0 %v5857
  %v5913 = vpop.f32.mrf.mxu0
  %v5914 = vadd.f32 0.0, %v5913
  %v5915 = vpop.f32.mrf.mxu0
  %v5916 = vadd.f32 0.0, %v5915
  %5917 = vmatmul.bf16.gmra.mxu0 %v5860
  %v5918 = vpop.f32.mrf.mxu0
  %v5919 = vadd.f32 0.0, %v5918
  %v5920 = vpop.f32.mrf.mxu0
  %v5921 = vadd.f32 0.0, %v5920
  %5922 = vmatmul.bf16.gmra.mxu0 %v5863
  %v5923 = vpop.f32.mrf.mxu0
  %v5924 = vadd.f32 0.0, %v5923
  %v5925 = vpop.f32.mrf.mxu0
  %v5926 = vadd.f32 0.0, %v5925
  %5927 = vmatmul.bf16.gmra.mxu0 %v5866
  %v5928 = vpop.f32.mrf.mxu0
  %v5929 = vadd.f32 0.0, %v5928
  %v5930 = vpop.f32.mrf.mxu0
  %v5931 = vadd.f32 0.0, %v5930
  %5932 = vmatmul.bf16.gmra.mxu0 %v5869
  %v5933 = vpop.f32.mrf.mxu0
  %v5934 = vadd.f32 0.0, %v5933
  %v5935 = vpop.f32.mrf.mxu0
  %v5936 = vadd.f32 0.0, %v5935
  %5937 = vmatmul.bf16.gmra.mxu0 %v5872
  %v5938 = vpop.f32.mrf.mxu0
  %v5939 = vadd.f32 0.0, %v5938
  %v5940 = vpop.f32.mrf.mxu0
  %v5941 = vadd.f32 0.0, %v5940
  %5942 = vmatmul.bf16.gmra.mxu0 %v5875
  %v5943 = vpop.f32.mrf.mxu0
  %v5944 = vadd.f32 0.0, %v5943
  %v5945 = vpop.f32.mrf.mxu0
  %v5946 = vadd.f32 0.0, %v5945
  %5947 = vmatmul.bf16.gmra.mxu0 %v5878
  %v5948 = vpop.f32.mrf.mxu0
  %v5949 = vadd.f32 0.0, %v5948
  %v5950 = vpop.f32.mrf.mxu0
  %v5951 = vadd.f32 0.0, %v5950
  %5952 = vmatmul.bf16.gmra.mxu0 %v5881
  %v5953 = vpop.f32.mrf.mxu0
  %v5954 = vadd.f32 0.0, %v5953
  %v5955 = vpop.f32.mrf.mxu0
  %v5956 = vadd.f32 0.0, %v5955
  %5957 = vmatmul.bf16.gmra.mxu0 %v5884
  %v5958 = vpop.f32.mrf.mxu0
  %v5959 = vadd.f32 0.0, %v5958
  %v5960 = vpop.f32.mrf.mxu0
  %v5961 = vadd.f32 0.0, %v5960
  %5962 = vmatmul.bf16.gmra.mxu0 %v5887
  %v5963 = vpop.f32.mrf.mxu0
  %v5964 = vadd.f32 0.0, %v5963
  %v5965 = vpop.f32.mrf.mxu0
  %v5966 = vadd.f32 0.0, %v5965
  %5967 = vmatmul.bf16.gmra.mxu0 %v5890
  %v5968 = vpop.f32.mrf.mxu0
  %v5969 = vadd.f32 0.0, %v5968
  %v5970 = vpop.f32.mrf.mxu0
  %v5971 = vadd.f32 0.0, %v5970
  %5972 = vmatmul.bf16.gmra.mxu0 %v5893
  %v5973 = vpop.f32.mrf.mxu0
  %v5974 = vadd.f32 0.0, %v5973
  %v5975 = vpop.f32.mrf.mxu0
  %v5976 = vadd.f32 0.0, %v5975
  %5977 = vmatmul.bf16.gmra.mxu0 %v5896
  %v5978 = vpop.f32.mrf.mxu0
  %v5979 = vadd.f32 0.0, %v5978
  %v5980 = vpop.f32.mrf.mxu0
  %v5981 = vadd.f32 0.0, %v5980
  %5982 = vmatmul.bf16.gmra.mxu0 %v5899
  %v5983 = vpop.f32.mrf.mxu0
  %v5984 = vadd.f32 0.0, %v5983
  %v5985 = vpop.f32.mrf.mxu0
  %v5986 = vadd.f32 0.0, %v5985
  %5987 = vmatmul.bf16.gmra.mxu0 %v5902
  %v5988 = vpop.f32.mrf.mxu0
  %v5989 = vadd.f32 0.0, %v5988
  %v5990 = vpop.f32.mrf.mxu0
  %v5991 = vadd.f32 0.0, %v5990
  %5992 = vdwg.mxu0
  %v5993 = vadd.f32 %v5541, %v5914
  %v5994 = vadd.f32 %v5543, %v5916
  %v5995 = vadd.f32 %v5546, %v5919
  %v5996 = vadd.f32 %v5548, %v5921
  %v5997 = vadd.f32 %v5551, %v5924
  %v5998 = vadd.f32 %v5553, %v5926
  %v5999 = vadd.f32 %v5556, %v5929
  %v6000 = vadd.f32 %v5558, %v5931
  %v6001 = vadd.f32 %v5561, %v5934
  %v6002 = vadd.f32 %v5563, %v5936
  %v6003 = vadd.f32 %v5566, %v5939
  %v6004 = vadd.f32 %v5568, %v5941
  %v6005 = vadd.f32 %v5571, %v5944
  %v6006 = vadd.f32 %v5573, %v5946
  %v6007 = vadd.f32 %v5576, %v5949
  %v6008 = vadd.f32 %v5578, %v5951
  %v6009 = vadd.f32 %v5581, %v5954
  %v6010 = vadd.f32 %v5583, %v5956
  %v6011 = vadd.f32 %v5586, %v5959
  %v6012 = vadd.f32 %v5588, %v5961
  %v6013 = vadd.f32 %v5591, %v5964
  %v6014 = vadd.f32 %v5593, %v5966
  %v6015 = vadd.f32 %v5596, %v5969
  %v6016 = vadd.f32 %v5598, %v5971
  %v6017 = vadd.f32 %v5601, %v5974
  %v6018 = vadd.f32 %v5603, %v5976
  %v6019 = vadd.f32 %v5606, %v5979
  %v6020 = vadd.f32 %v5608, %v5981
  %v6021 = vadd.f32 %v5611, %v5984
  %v6022 = vadd.f32 %v5613, %v5986
  %v6023 = vadd.f32 %v5616, %v5989
  %v6024 = vadd.f32 %v5618, %v5991
  %s6025 = scalar_lea.vmem [#allocation2], 12
  %v6026 = vld [vmem:[%s6025] sm:$0xf]
  %v6027 = vld [vmem:[%s6025 + $0x4] sm:$0xf]
  %v6028 = vld [vmem:[%s6025 + $0xc] sm:$0xf]
  %v6029 = vld [vmem:[%s6025 + $0x10] sm:$0xf]
  %v6030 = vld [vmem:[%s6025 + $0x18] sm:$0xf]
  %v6031 = vld [vmem:[%s6025 + $0x1c] sm:$0xf]
  %v6032 = vld [vmem:[%s6025 + $0x24] sm:$0xf]
  %v6033 = vld [vmem:[%s6025 + $0x28] sm:$0xf]
  %v6034 = vld [vmem:[%s6025 + $0x30] sm:$0xf]
  %v6035 = vld [vmem:[%s6025 + $0x34] sm:$0xf]
  %v6036 = vld [vmem:[%s6025 + $0x3c] sm:$0xf]
  %v6037 = vld [vmem:[%s6025 + $0x40] sm:$0xf]
  %v6038 = vld [vmem:[%s6025 + $0x48] sm:$0xf]
  %v6039 = vld [vmem:[%s6025 + $0x4c] sm:$0xf]
  %v6040 = vld [vmem:[%s6025 + $0x54] sm:$0xf]
  %v6041 = vld [vmem:[%s6025 + $0x58] sm:$0xf]
  %v6042 = vld [vmem:[%s6025 + $0x60] sm:$0xf]
  %v6043 = vld [vmem:[%s6025 + $0x64] sm:$0xf]
  %v6044 = vld [vmem:[%s6025 + $0x6c] sm:$0xf]
  %v6045 = vld [vmem:[%s6025 + $0x70] sm:$0xf]
  %v6046 = vld [vmem:[%s6025 + $0x78] sm:$0xf]
  %v6047 = vld [vmem:[%s6025 + $0x7c] sm:$0xf]
  %v6048 = vld [vmem:[%s6025 + $0x84] sm:$0xf]
  %v6049 = vld [vmem:[%s6025 + $0x88] sm:$0xf]
  %v6050 = vld [vmem:[%s6025 + $0x90] sm:$0xf]
  %v6051 = vld [vmem:[%s6025 + $0x94] sm:$0xf]
  %v6052 = vld [vmem:[%s6025 + $0x9c] sm:$0xf]
  %v6053 = vld [vmem:[%s6025 + $0xa0] sm:$0xf]
  %v6054 = vld [vmem:[%s6025 + $0xa8] sm:$0xf]
  %v6055 = vld [vmem:[%s6025 + $0xac] sm:$0xf]
  %v6056 = vld [vmem:[%s6025 + $0xb4] sm:$0xf]
  %v6057 = vld [vmem:[%s6025 + $0xb8] sm:$0xf]
  %s6058 = scalar_lea.vmem %s3, 72
  %v6059 = vld [vmem:[%s6058] sm:$0xf]
  %v6060 = vld [vmem:[%s6058 + $0x4] sm:$0xf]
  %v6061 = vld [vmem:[%s6058 + $0x8] sm:$0xf]
  %v6062 = vld [vmem:[%s6058 + $0xc] sm:$0xf]
  %v6063 = vld [vmem:[%s6058 + $0x10] sm:$0xf]
  %v6064 = vld [vmem:[%s6058 + $0x14] sm:$0xf]
  %v6097 = vunpack.c.l.b16 %v6026
  %v6098 = vunpack.c.l.b16 %v6027
  %v6099 = vunpack.c.l.b16 %v6028
  %v6100 = vunpack.c.l.b16 %v6029
  %v6101 = vunpack.c.l.b16 %v6030
  %v6102 = vunpack.c.l.b16 %v6031
  %v6103 = vunpack.c.l.b16 %v6032
  %v6104 = vunpack.c.l.b16 %v6033
  %v6105 = vunpack.c.l.b16 %v6034
  %v6106 = vunpack.c.l.b16 %v6035
  %v6107 = vunpack.c.l.b16 %v6036
  %v6108 = vunpack.c.l.b16 %v6037
  %v6109 = vunpack.c.l.b16 %v6038
  %v6110 = vunpack.c.l.b16 %v6039
  %v6111 = vunpack.c.l.b16 %v6040
  %v6112 = vunpack.c.l.b16 %v6041
  %v6113 = vunpack.c.l.b16 %v6042
  %v6114 = vunpack.c.l.b16 %v6043
  %v6115 = vunpack.c.l.b16 %v6044
  %v6116 = vunpack.c.l.b16 %v6045
  %v6117 = vunpack.c.l.b16 %v6046
  %v6118 = vunpack.c.l.b16 %v6047
  %v6119 = vunpack.c.l.b16 %v6048
  %v6120 = vunpack.c.l.b16 %v6049
  %v6121 = vunpack.c.l.b16 %v6050
  %v6122 = vunpack.c.l.b16 %v6051
  %v6123 = vunpack.c.l.b16 %v6052
  %v6124 = vunpack.c.l.b16 %v6053
  %v6125 = vunpack.c.l.b16 %v6054
  %v6126 = vunpack.c.l.b16 %v6055
  %v6127 = vunpack.c.l.b16 %v6056
  %v6128 = vunpack.c.l.b16 %v6057
  %v6129 = vpack.c.b16 %v6098, %v6097
  %v6130 = vpack.c.b16 %v6100, %v6099
  %v6131 = vpack.c.b16 %v6102, %v6101
  %v6132 = vpack.c.b16 %v6104, %v6103
  %v6133 = vpack.c.b16 %v6106, %v6105
  %v6134 = vpack.c.b16 %v6108, %v6107
  %v6135 = vpack.c.b16 %v6110, %v6109
  %v6136 = vpack.c.b16 %v6112, %v6111
  %v6137 = vpack.c.b16 %v6114, %v6113
  %v6138 = vpack.c.b16 %v6116, %v6115
  %v6139 = vpack.c.b16 %v6118, %v6117
  %v6140 = vpack.c.b16 %v6120, %v6119
  %v6141 = vpack.c.b16 %v6122, %v6121
  %v6142 = vpack.c.b16 %v6124, %v6123
  %v6143 = vpack.c.b16 %v6126, %v6125
  %v6144 = vpack.c.b16 %v6128, %v6127
  %v6151 = vunpack.c.l.b16 %v6059
  %v6152 = vunpack.c.l.b16 %v6060
  %v6153 = vunpack.c.l.b16 %v6061
  %v6154 = vunpack.c.l.b16 %v6062
  %v6155 = vunpack.c.l.b16 %v6063
  %v6156 = vunpack.c.l.b16 %v6064
  %v6157 = vpack.c.b16 %v6152, %v6151
  %v6158 = vpack.c.b16 %v6154, %v6153
  %v6159 = vpack.c.b16 %v6156, %v6155
  %v6164 = vsel %vm5247, %v6129, 0
  %v6167 = vsel %vm5247, %v6130, 0
  %v6170 = vsel %vm5247, %v6131, 0
  %v6173 = vsel %vm5247, %v6132, 0
  %v6176 = vsel %vm5247, %v6133, 0
  %v6179 = vsel %vm5247, %v6134, 0
  %v6182 = vsel %vm5247, %v6135, 0
  %v6185 = vsel %vm5247, %v6136, 0
  %v6188 = vsel %vm5247, %v6137, 0
  %v6191 = vsel %vm5247, %v6138, 0
  %v6194 = vsel %vm5247, %v6139, 0
  %v6197 = vsel %vm5247, %v6140, 0
  %v6200 = vsel %vm5247, %v6141, 0
  %v6203 = vsel %vm5247, %v6142, 0
  %v6206 = vsel %vm5247, %v6143, 0
  %v6209 = vsel %vm5247, %v6144, 0
  %6211 = vmatpush.bf16.msra.mxu0 0
  %6212 = vmatpush.bf16.msra.mxu0 0
  %6213 = vmatpush.bf16.msra.mxu0 0
  %6214 = vmatpush.bf16.msra.mxu0 0
  %6215 = vmatpush.bf16.msra.mxu0 0
  %6216 = vmatpush.bf16.msra.mxu0 %v6159
  %6217 = vmatpush.bf16.msra.mxu0 %v6158
  %6218 = vmatpush.bf16.msra.mxu0 %v6157
  %6219 = vmatmul.bf16.gmra.mxu0 %v6164
  %v6220 = vpop.f32.mrf.mxu0
  %v6221 = vadd.f32 0.0, %v6220
  %v6222 = vpop.f32.mrf.mxu0
  %v6223 = vadd.f32 0.0, %v6222
  %6224 = vmatmul.bf16.gmra.mxu0 %v6167
  %v6225 = vpop.f32.mrf.mxu0
  %v6226 = vadd.f32 0.0, %v6225
  %v6227 = vpop.f32.mrf.mxu0
  %v6228 = vadd.f32 0.0, %v6227
  %6229 = vmatmul.bf16.gmra.mxu0 %v6170
  %v6230 = vpop.f32.mrf.mxu0
  %v6231 = vadd.f32 0.0, %v6230
  %v6232 = vpop.f32.mrf.mxu0
  %v6233 = vadd.f32 0.0, %v6232
  %6234 = vmatmul.bf16.gmra.mxu0 %v6173
  %v6235 = vpop.f32.mrf.mxu0
  %v6236 = vadd.f32 0.0, %v6235
  %v6237 = vpop.f32.mrf.mxu0
  %v6238 = vadd.f32 0.0, %v6237
  %6239 = vmatmul.bf16.gmra.mxu0 %v6176
  %v6240 = vpop.f32.mrf.mxu0
  %v6241 = vadd.f32 0.0, %v6240
  %v6242 = vpop.f32.mrf.mxu0
  %v6243 = vadd.f32 0.0, %v6242
  %6244 = vmatmul.bf16.gmra.mxu0 %v6179
  %v6245 = vpop.f32.mrf.mxu0
  %v6246 = vadd.f32 0.0, %v6245
  %v6247 = vpop.f32.mrf.mxu0
  %v6248 = vadd.f32 0.0, %v6247
  %6249 = vmatmul.bf16.gmra.mxu0 %v6182
  %v6250 = vpop.f32.mrf.mxu0
  %v6251 = vadd.f32 0.0, %v6250
  %v6252 = vpop.f32.mrf.mxu0
  %v6253 = vadd.f32 0.0, %v6252
  %6254 = vmatmul.bf16.gmra.mxu0 %v6185
  %v6255 = vpop.f32.mrf.mxu0
  %v6256 = vadd.f32 0.0, %v6255
  %v6257 = vpop.f32.mrf.mxu0
  %v6258 = vadd.f32 0.0, %v6257
  %6259 = vmatmul.bf16.gmra.mxu0 %v6188
  %v6260 = vpop.f32.mrf.mxu0
  %v6261 = vadd.f32 0.0, %v6260
  %v6262 = vpop.f32.mrf.mxu0
  %v6263 = vadd.f32 0.0, %v6262
  %6264 = vmatmul.bf16.gmra.mxu0 %v6191
  %v6265 = vpop.f32.mrf.mxu0
  %v6266 = vadd.f32 0.0, %v6265
  %v6267 = vpop.f32.mrf.mxu0
  %v6268 = vadd.f32 0.0, %v6267
  %6269 = vmatmul.bf16.gmra.mxu0 %v6194
  %v6270 = vpop.f32.mrf.mxu0
  %v6271 = vadd.f32 0.0, %v6270
  %v6272 = vpop.f32.mrf.mxu0
  %v6273 = vadd.f32 0.0, %v6272
  %6274 = vmatmul.bf16.gmra.mxu0 %v6197
  %v6275 = vpop.f32.mrf.mxu0
  %v6276 = vadd.f32 0.0, %v6275
  %v6277 = vpop.f32.mrf.mxu0
  %v6278 = vadd.f32 0.0, %v6277
  %6279 = vmatmul.bf16.gmra.mxu0 %v6200
  %v6280 = vpop.f32.mrf.mxu0
  %v6281 = vadd.f32 0.0, %v6280
  %v6282 = vpop.f32.mrf.mxu0
  %v6283 = vadd.f32 0.0, %v6282
  %6284 = vmatmul.bf16.gmra.mxu0 %v6203
  %v6285 = vpop.f32.mrf.mxu0
  %v6286 = vadd.f32 0.0, %v6285
  %v6287 = vpop.f32.mrf.mxu0
  %v6288 = vadd.f32 0.0, %v6287
  %6289 = vmatmul.bf16.gmra.mxu0 %v6206
  %v6290 = vpop.f32.mrf.mxu0
  %v6291 = vadd.f32 0.0, %v6290
  %v6292 = vpop.f32.mrf.mxu0
  %v6293 = vadd.f32 0.0, %v6292
  %6294 = vmatmul.bf16.gmra.mxu0 %v6209
  %v6295 = vpop.f32.mrf.mxu0
  %v6296 = vadd.f32 0.0, %v6295
  %v6297 = vpop.f32.mrf.mxu0
  %v6298 = vadd.f32 0.0, %v6297
  %6299 = vdwg.mxu0
  %v6300 = vadd.f32 %v5993, %v6221
  %v6301 = vadd.f32 %v5994, %v6223
  %v6302 = vadd.f32 %v5995, %v6226
  %v6303 = vadd.f32 %v5996, %v6228
  %v6304 = vadd.f32 %v5997, %v6231
  %v6305 = vadd.f32 %v5998, %v6233
  %v6306 = vadd.f32 %v5999, %v6236
  %v6307 = vadd.f32 %v6000, %v6238
  %v6308 = vadd.f32 %v6001, %v6241
  %v6309 = vadd.f32 %v6002, %v6243
  %v6310 = vadd.f32 %v6003, %v6246
  %v6311 = vadd.f32 %v6004, %v6248
  %v6312 = vadd.f32 %v6005, %v6251
  %v6313 = vadd.f32 %v6006, %v6253
  %v6314 = vadd.f32 %v6007, %v6256
  %v6315 = vadd.f32 %v6008, %v6258
  %v6316 = vadd.f32 %v6009, %v6261
  %v6317 = vadd.f32 %v6010, %v6263
  %v6318 = vadd.f32 %v6011, %v6266
  %v6319 = vadd.f32 %v6012, %v6268
  %v6320 = vadd.f32 %v6013, %v6271
  %v6321 = vadd.f32 %v6014, %v6273
  %v6322 = vadd.f32 %v6015, %v6276
  %v6323 = vadd.f32 %v6016, %v6278
  %v6324 = vadd.f32 %v6017, %v6281
  %v6325 = vadd.f32 %v6018, %v6283
  %v6326 = vadd.f32 %v6019, %v6286
  %v6327 = vadd.f32 %v6020, %v6288
  %v6328 = vadd.f32 %v6021, %v6291
  %v6329 = vadd.f32 %v6022, %v6293
  %v6330 = vadd.f32 %v6023, %v6296
  %v6331 = vadd.f32 %v6024, %v6298
  %v6332 = vld [vmem:[%s6025] sm:$0xf]
  %v6333 = vld [vmem:[%s6025 + $0x4] sm:$0xf]
  %v6334 = vld [vmem:[%s6025 + $0x8] sm:$0x1]
  %v6335 = vld [vmem:[%s6025 + $0xc] sm:$0xf]
  %v6336 = vld [vmem:[%s6025 + $0x10] sm:$0xf]
  %v6337 = vld [vmem:[%s6025 + $0x14] sm:$0x1]
  %v6338 = vld [vmem:[%s6025 + $0x18] sm:$0xf]
  %v6339 = vld [vmem:[%s6025 + $0x1c] sm:$0xf]
  %v6340 = vld [vmem:[%s6025 + $0x20] sm:$0x1]
  %v6341 = vld [vmem:[%s6025 + $0x24] sm:$0xf]
  %v6342 = vld [vmem:[%s6025 + $0x28] sm:$0xf]
  %v6343 = vld [vmem:[%s6025 + $0x2c] sm:$0x1]
  %v6344 = vld [vmem:[%s6025 + $0x30] sm:$0xf]
  %v6345 = vld [vmem:[%s6025 + $0x34] sm:$0xf]
  %v6346 = vld [vmem:[%s6025 + $0x38] sm:$0x1]
  %v6347 = vld [vmem:[%s6025 + $0x3c] sm:$0xf]
  %v6348 = vld [vmem:[%s6025 + $0x40] sm:$0xf]
  %v6349 = vld [vmem:[%s6025 + $0x44] sm:$0x1]
  %v6350 = vld [vmem:[%s6025 + $0x48] sm:$0xf]
  %v6351 = vld [vmem:[%s6025 + $0x4c] sm:$0xf]
  %v6352 = vld [vmem:[%s6025 + $0x50] sm:$0x1]
  %v6353 = vld [vmem:[%s6025 + $0x54] sm:$0xf]
  %v6354 = vld [vmem:[%s6025 + $0x58] sm:$0xf]
  %v6355 = vld [vmem:[%s6025 + $0x5c] sm:$0x1]
  %v6356 = vld [vmem:[%s6025 + $0x60] sm:$0xf]
  %v6357 = vld [vmem:[%s6025 + $0x64] sm:$0xf]
  %v6358 = vld [vmem:[%s6025 + $0x68] sm:$0x1]
  %v6359 = vld [vmem:[%s6025 + $0x6c] sm:$0xf]
  %v6360 = vld [vmem:[%s6025 + $0x70] sm:$0xf]
  %v6361 = vld [vmem:[%s6025 + $0x74] sm:$0x1]
  %v6362 = vld [vmem:[%s6025 + $0x78] sm:$0xf]
  %v6363 = vld [vmem:[%s6025 + $0x7c] sm:$0xf]
  %v6364 = vld [vmem:[%s6025 + $0x80] sm:$0x1]
  %v6365 = vld [vmem:[%s6025 + $0x84] sm:$0xf]
  %v6366 = vld [vmem:[%s6025 + $0x88] sm:$0xf]
  %v6367 = vld [vmem:[%s6025 + $0x8c] sm:$0x1]
  %v6368 = vld [vmem:[%s6025 + $0x90] sm:$0xf]
  %v6369 = vld [vmem:[%s6025 + $0x94] sm:$0xf]
  %v6370 = vld [vmem:[%s6025 + $0x98] sm:$0x1]
  %v6371 = vld [vmem:[%s6025 + $0x9c] sm:$0xf]
  %v6372 = vld [vmem:[%s6025 + $0xa0] sm:$0xf]
  %v6373 = vld [vmem:[%s6025 + $0xa4] sm:$0x1]
  %v6374 = vld [vmem:[%s6025 + $0xa8] sm:$0xf]
  %v6375 = vld [vmem:[%s6025 + $0xac] sm:$0xf]
  %v6376 = vld [vmem:[%s6025 + $0xb0] sm:$0x1]
  %v6377 = vld [vmem:[%s6025 + $0xb4] sm:$0xf]
  %v6378 = vld [vmem:[%s6025 + $0xb8] sm:$0xf]
  %v6379 = vld [vmem:[%s6025 + $0xbc] sm:$0x1]
  %v6381 = vshrl.u32 %v6332, 16
  %v6383 = vrot.slane %v6381, 4
  %v6384 = vshll.u32 %v6332, 16
  %v6386 = vrot.slane %v6384, 5
  %v6387 = vor.u32 %v6383, %v6386
  %v6388 = vrot.slane %v6387, 4
  %v6390 = vshll.u32 %v6333, 16
  %v6392 = vrot.slane %v6390, 5
  %v6393 = vsel %vm4789, %v6388, %v6392
  %v6394 = vshrl.u32 %v6333, 16
  %v6396 = vrot.slane %v6394, 4
  %v6397 = vor.u32 %v6396, %v6392
  %v6398 = vrot.slane %v6397, 4
  %v6400 = vshll.u32 %v6334, 16
  %v6402 = vrot.slane %v6400, 5
  %v6403 = vsel %vm4789, %v6398, %v6402
  %v6405 = vshrl.u32 %v6335, 16
  %v6407 = vrot.slane %v6405, 4
  %v6408 = vshll.u32 %v6335, 16
  %v6410 = vrot.slane %v6408, 5
  %v6411 = vor.u32 %v6407, %v6410
  %v6412 = vrot.slane %v6411, 4
  %v6414 = vshll.u32 %v6336, 16
  %v6416 = vrot.slane %v6414, 5
  %v6417 = vsel %vm4789, %v6412, %v6416
  %v6418 = vshrl.u32 %v6336, 16
  %v6420 = vrot.slane %v6418, 4
  %v6421 = vor.u32 %v6420, %v6416
  %v6422 = vrot.slane %v6421, 4
  %v6424 = vshll.u32 %v6337, 16
  %v6426 = vrot.slane %v6424, 5
  %v6427 = vsel %vm4789, %v6422, %v6426
  %v6429 = vshrl.u32 %v6338, 16
  %v6431 = vrot.slane %v6429, 4
  %v6432 = vshll.u32 %v6338, 16
  %v6434 = vrot.slane %v6432, 5
  %v6435 = vor.u32 %v6431, %v6434
  %v6436 = vrot.slane %v6435, 4
  %v6438 = vshll.u32 %v6339, 16
  %v6440 = vrot.slane %v6438, 5
  %v6441 = vsel %vm4789, %v6436, %v6440
  %v6442 = vshrl.u32 %v6339, 16
  %v6444 = vrot.slane %v6442, 4
  %v6445 = vor.u32 %v6444, %v6440
  %v6446 = vrot.slane %v6445, 4
  %v6448 = vshll.u32 %v6340, 16
  %v6450 = vrot.slane %v6448, 5
  %v6451 = vsel %vm4789, %v6446, %v6450
  %v6453 = vshrl.u32 %v6341, 16
  %v6455 = vrot.slane %v6453, 4
  %v6456 = vshll.u32 %v6341, 16
  %v6458 = vrot.slane %v6456, 5
  %v6459 = vor.u32 %v6455, %v6458
  %v6460 = vrot.slane %v6459, 4
  %v6462 = vshll.u32 %v6342, 16
  %v6464 = vrot.slane %v6462, 5
  %v6465 = vsel %vm4789, %v6460, %v6464
  %v6466 = vshrl.u32 %v6342, 16
  %v6468 = vrot.slane %v6466, 4
  %v6469 = vor.u32 %v6468, %v6464
  %v6470 = vrot.slane %v6469, 4
  %v6472 = vshll.u32 %v6343, 16
  %v6474 = vrot.slane %v6472, 5
  %v6475 = vsel %vm4789, %v6470, %v6474
  %v6477 = vshrl.u32 %v6344, 16
  %v6479 = vrot.slane %v6477, 4
  %v6480 = vshll.u32 %v6344, 16
  %v6482 = vrot.slane %v6480, 5
  %v6483 = vor.u32 %v6479, %v6482
  %v6484 = vrot.slane %v6483, 4
  %v6486 = vshll.u32 %v6345, 16
  %v6488 = vrot.slane %v6486, 5
  %v6489 = vsel %vm4789, %v6484, %v6488
  %v6490 = vshrl.u32 %v6345, 16
  %v6492 = vrot.slane %v6490, 4
  %v6493 = vor.u32 %v6492, %v6488
  %v6494 = vrot.slane %v6493, 4
  %v6496 = vshll.u32 %v6346, 16
  %v6498 = vrot.slane %v6496, 5
  %v6499 = vsel %vm4789, %v6494, %v6498
  %v6501 = vshrl.u32 %v6347, 16
  %v6503 = vrot.slane %v6501, 4
  %v6504 = vshll.u32 %v6347, 16
  %v6506 = vrot.slane %v6504, 5
  %v6507 = vor.u32 %v6503, %v6506
  %v6508 = vrot.slane %v6507, 4
  %v6510 = vshll.u32 %v6348, 16
  %v6512 = vrot.slane %v6510, 5
  %v6513 = vsel %vm4789, %v6508, %v6512
  %v6514 = vshrl.u32 %v6348, 16
  %v6516 = vrot.slane %v6514, 4
  %v6517 = vor.u32 %v6516, %v6512
  %v6518 = vrot.slane %v6517, 4
  %v6520 = vshll.u32 %v6349, 16
  %v6522 = vrot.slane %v6520, 5
  %v6523 = vsel %vm4789, %v6518, %v6522
  %v6525 = vshrl.u32 %v6350, 16
  %v6527 = vrot.slane %v6525, 4
  %v6528 = vshll.u32 %v6350, 16
  %v6530 = vrot.slane %v6528, 5
  %v6531 = vor.u32 %v6527, %v6530
  %v6532 = vrot.slane %v6531, 4
  %v6534 = vshll.u32 %v6351, 16
  %v6536 = vrot.slane %v6534, 5
  %v6537 = vsel %vm4789, %v6532, %v6536
  %v6538 = vshrl.u32 %v6351, 16
  %v6540 = vrot.slane %v6538, 4
  %v6541 = vor.u32 %v6540, %v6536
  %v6542 = vrot.slane %v6541, 4
  %v6544 = vshll.u32 %v6352, 16
  %v6546 = vrot.slane %v6544, 5
  %v6547 = vsel %vm4789, %v6542, %v6546
  %v6549 = vshrl.u32 %v6353, 16
  %v6551 = vrot.slane %v6549, 4
  %v6552 = vshll.u32 %v6353, 16
  %v6554 = vrot.slane %v6552, 5
  %v6555 = vor.u32 %v6551, %v6554
  %v6556 = vrot.slane %v6555, 4
  %v6558 = vshll.u32 %v6354, 16
  %v6560 = vrot.slane %v6558, 5
  %v6561 = vsel %vm4789, %v6556, %v6560
  %v6562 = vshrl.u32 %v6354, 16
  %v6564 = vrot.slane %v6562, 4
  %v6565 = vor.u32 %v6564, %v6560
  %v6566 = vrot.slane %v6565, 4
  %v6568 = vshll.u32 %v6355, 16
  %v6570 = vrot.slane %v6568, 5
  %v6571 = vsel %vm4789, %v6566, %v6570
  %v6573 = vshrl.u32 %v6356, 16
  %v6575 = vrot.slane %v6573, 4
  %v6576 = vshll.u32 %v6356, 16
  %v6578 = vrot.slane %v6576, 5
  %v6579 = vor.u32 %v6575, %v6578
  %v6580 = vrot.slane %v6579, 4
  %v6582 = vshll.u32 %v6357, 16
  %v6584 = vrot.slane %v6582, 5
  %v6585 = vsel %vm4789, %v6580, %v6584
  %v6586 = vshrl.u32 %v6357, 16
  %v6588 = vrot.slane %v6586, 4
  %v6589 = vor.u32 %v6588, %v6584
  %v6590 = vrot.slane %v6589, 4
  %v6592 = vshll.u32 %v6358, 16
  %v6594 = vrot.slane %v6592, 5
  %v6595 = vsel %vm4789, %v6590, %v6594
  %v6597 = vshrl.u32 %v6359, 16
  %v6599 = vrot.slane %v6597, 4
  %v6600 = vshll.u32 %v6359, 16
  %v6602 = vrot.slane %v6600, 5
  %v6603 = vor.u32 %v6599, %v6602
  %v6604 = vrot.slane %v6603, 4
  %v6606 = vshll.u32 %v6360, 16
  %v6608 = vrot.slane %v6606, 5
  %v6609 = vsel %vm4789, %v6604, %v6608
  %v6610 = vshrl.u32 %v6360, 16
  %v6612 = vrot.slane %v6610, 4
  %v6613 = vor.u32 %v6612, %v6608
  %v6614 = vrot.slane %v6613, 4
  %v6616 = vshll.u32 %v6361, 16
  %v6618 = vrot.slane %v6616, 5
  %v6619 = vsel %vm4789, %v6614, %v6618
  %v6621 = vshrl.u32 %v6362, 16
  %v6623 = vrot.slane %v6621, 4
  %v6624 = vshll.u32 %v6362, 16
  %v6626 = vrot.slane %v6624, 5
  %v6627 = vor.u32 %v6623, %v6626
  %v6628 = vrot.slane %v6627, 4
  %v6630 = vshll.u32 %v6363, 16
  %v6632 = vrot.slane %v6630, 5
  %v6633 = vsel %vm4789, %v6628, %v6632
  %v6634 = vshrl.u32 %v6363, 16
  %v6636 = vrot.slane %v6634, 4
  %v6637 = vor.u32 %v6636, %v6632
  %v6638 = vrot.slane %v6637, 4
  %v6640 = vshll.u32 %v6364, 16
  %v6642 = vrot.slane %v6640, 5
  %v6643 = vsel %vm4789, %v6638, %v6642
  %v6645 = vshrl.u32 %v6365, 16
  %v6647 = vrot.slane %v6645, 4
  %v6648 = vshll.u32 %v6365, 16
  %v6650 = vrot.slane %v6648, 5
  %v6651 = vor.u32 %v6647, %v6650
  %v6652 = vrot.slane %v6651, 4
  %v6654 = vshll.u32 %v6366, 16
  %v6656 = vrot.slane %v6654, 5
  %v6657 = vsel %vm4789, %v6652, %v6656
  %v6658 = vshrl.u32 %v6366, 16
  %v6660 = vrot.slane %v6658, 4
  %v6661 = vor.u32 %v6660, %v6656
  %v6662 = vrot.slane %v6661, 4
  %v6664 = vshll.u32 %v6367, 16
  %v6666 = vrot.slane %v6664, 5
  %v6667 = vsel %vm4789, %v6662, %v6666
  %v6669 = vshrl.u32 %v6368, 16
  %v6671 = vrot.slane %v6669, 4
  %v6672 = vshll.u32 %v6368, 16
  %v6674 = vrot.slane %v6672, 5
  %v6675 = vor.u32 %v6671, %v6674
  %v6676 = vrot.slane %v6675, 4
  %v6678 = vshll.u32 %v6369, 16
  %v6680 = vrot.slane %v6678, 5
  %v6681 = vsel %vm4789, %v6676, %v6680
  %v6682 = vshrl.u32 %v6369, 16
  %v6684 = vrot.slane %v6682, 4
  %v6685 = vor.u32 %v6684, %v6680
  %v6686 = vrot.slane %v6685, 4
  %v6688 = vshll.u32 %v6370, 16
  %v6690 = vrot.slane %v6688, 5
  %v6691 = vsel %vm4789, %v6686, %v6690
  %v6693 = vshrl.u32 %v6371, 16
  %v6695 = vrot.slane %v6693, 4
  %v6696 = vshll.u32 %v6371, 16
  %v6698 = vrot.slane %v6696, 5
  %v6699 = vor.u32 %v6695, %v6698
  %v6700 = vrot.slane %v6699, 4
  %v6702 = vshll.u32 %v6372, 16
  %v6704 = vrot.slane %v6702, 5
  %v6705 = vsel %vm4789, %v6700, %v6704
  %v6706 = vshrl.u32 %v6372, 16
  %v6708 = vrot.slane %v6706, 4
  %v6709 = vor.u32 %v6708, %v6704
  %v6710 = vrot.slane %v6709, 4
  %v6712 = vshll.u32 %v6373, 16
  %v6714 = vrot.slane %v6712, 5
  %v6715 = vsel %vm4789, %v6710, %v6714
  %v6717 = vshrl.u32 %v6374, 16
  %v6719 = vrot.slane %v6717, 4
  %v6720 = vshll.u32 %v6374, 16
  %v6722 = vrot.slane %v6720, 5
  %v6723 = vor.u32 %v6719, %v6722
  %v6724 = vrot.slane %v6723, 4
  %v6726 = vshll.u32 %v6375, 16
  %v6728 = vrot.slane %v6726, 5
  %v6729 = vsel %vm4789, %v6724, %v6728
  %v6730 = vshrl.u32 %v6375, 16
  %v6732 = vrot.slane %v6730, 4
  %v6733 = vor.u32 %v6732, %v6728
  %v6734 = vrot.slane %v6733, 4
  %v6736 = vshll.u32 %v6376, 16
  %v6738 = vrot.slane %v6736, 5
  %v6739 = vsel %vm4789, %v6734, %v6738
  %v6741 = vshrl.u32 %v6377, 16
  %v6743 = vrot.slane %v6741, 4
  %v6744 = vshll.u32 %v6377, 16
  %v6746 = vrot.slane %v6744, 5
  %v6747 = vor.u32 %v6743, %v6746
  %v6748 = vrot.slane %v6747, 4
  %v6750 = vshll.u32 %v6378, 16
  %v6752 = vrot.slane %v6750, 5
  %v6753 = vsel %vm4789, %v6748, %v6752
  %v6754 = vshrl.u32 %v6378, 16
  %v6756 = vrot.slane %v6754, 4
  %v6757 = vor.u32 %v6756, %v6752
  %v6758 = vrot.slane %v6757, 4
  %v6760 = vshll.u32 %v6379, 16
  %v6762 = vrot.slane %v6760, 5
  %v6763 = vsel %vm4789, %v6758, %v6762
  %s6764 = scalar_lea.vmem %s3, 96
  %v6765 = vld [vmem:[%s6764] sm:$0xf]
  %v6766 = vld [vmem:[%s6764 + $0x4] sm:$0xf]
  %v6767 = vld [vmem:[%s6764 + $0x8] sm:$0xf]
  %v6768 = vld [vmem:[%s6764 + $0xc] sm:$0xf]
  %v6769 = vld [vmem:[%s6764 + $0x10] sm:$0xf]
  %v6770 = vld [vmem:[%s6764 + $0x14] sm:$0xf]
  %v6771 = vunpack.c.l.b16 %v6393
  %v6772 = vunpack.c.l.b16 %v6403
  %v6773 = vunpack.c.l.b16 %v6417
  %v6774 = vunpack.c.l.b16 %v6427
  %v6775 = vunpack.c.l.b16 %v6441
  %v6776 = vunpack.c.l.b16 %v6451
  %v6777 = vunpack.c.l.b16 %v6465
  %v6778 = vunpack.c.l.b16 %v6475
  %v6779 = vunpack.c.l.b16 %v6489
  %v6780 = vunpack.c.l.b16 %v6499
  %v6781 = vunpack.c.l.b16 %v6513
  %v6782 = vunpack.c.l.b16 %v6523
  %v6783 = vunpack.c.l.b16 %v6537
  %v6784 = vunpack.c.l.b16 %v6547
  %v6785 = vunpack.c.l.b16 %v6561
  %v6786 = vunpack.c.l.b16 %v6571
  %v6787 = vunpack.c.l.b16 %v6585
  %v6788 = vunpack.c.l.b16 %v6595
  %v6789 = vunpack.c.l.b16 %v6609
  %v6790 = vunpack.c.l.b16 %v6619
  %v6791 = vunpack.c.l.b16 %v6633
  %v6792 = vunpack.c.l.b16 %v6643
  %v6793 = vunpack.c.l.b16 %v6657
  %v6794 = vunpack.c.l.b16 %v6667
  %v6795 = vunpack.c.l.b16 %v6681
  %v6796 = vunpack.c.l.b16 %v6691
  %v6797 = vunpack.c.l.b16 %v6705
  %v6798 = vunpack.c.l.b16 %v6715
  %v6799 = vunpack.c.l.b16 %v6729
  %v6800 = vunpack.c.l.b16 %v6739
  %v6801 = vunpack.c.l.b16 %v6753
  %v6802 = vunpack.c.l.b16 %v6763
  %v6803 = vpack.c.b16 %v6772, %v6771
  %v6804 = vpack.c.b16 %v6774, %v6773
  %v6805 = vpack.c.b16 %v6776, %v6775
  %v6806 = vpack.c.b16 %v6778, %v6777
  %v6807 = vpack.c.b16 %v6780, %v6779
  %v6808 = vpack.c.b16 %v6782, %v6781
  %v6809 = vpack.c.b16 %v6784, %v6783
  %v6810 = vpack.c.b16 %v6786, %v6785
  %v6811 = vpack.c.b16 %v6788, %v6787
  %v6812 = vpack.c.b16 %v6790, %v6789
  %v6813 = vpack.c.b16 %v6792, %v6791
  %v6814 = vpack.c.b16 %v6794, %v6793
  %v6815 = vpack.c.b16 %v6796, %v6795
  %v6816 = vpack.c.b16 %v6798, %v6797
  %v6817 = vpack.c.b16 %v6800, %v6799
  %v6818 = vpack.c.b16 %v6802, %v6801
  %v6825 = vunpack.c.l.b16 %v6765
  %v6826 = vunpack.c.l.b16 %v6766
  %v6827 = vunpack.c.l.b16 %v6767
  %v6828 = vunpack.c.l.b16 %v6768
  %v6829 = vunpack.c.l.b16 %v6769
  %v6830 = vunpack.c.l.b16 %v6770
  %v6831 = vpack.c.b16 %v6826, %v6825
  %v6832 = vpack.c.b16 %v6828, %v6827
  %v6833 = vpack.c.b16 %v6830, %v6829
  %v6838 = vsel %vm5247, %v6803, 0
  %v6841 = vsel %vm5247, %v6804, 0
  %v6844 = vsel %vm5247, %v6805, 0
  %v6847 = vsel %vm5247, %v6806, 0
  %v6850 = vsel %vm5247, %v6807, 0
  %v6853 = vsel %vm5247, %v6808, 0
  %v6856 = vsel %vm5247, %v6809, 0
  %v6859 = vsel %vm5247, %v6810, 0
  %v6862 = vsel %vm5247, %v6811, 0
  %v6865 = vsel %vm5247, %v6812, 0
  %v6868 = vsel %vm5247, %v6813, 0
  %v6871 = vsel %vm5247, %v6814, 0
  %v6874 = vsel %vm5247, %v6815, 0
  %v6877 = vsel %vm5247, %v6816, 0
  %v6880 = vsel %vm5247, %v6817, 0
  %v6883 = vsel %vm5247, %v6818, 0
  %6885 = vmatpush.bf16.msra.mxu0 0
  %6886 = vmatpush.bf16.msra.mxu0 0
  %6887 = vmatpush.bf16.msra.mxu0 0
  %6888 = vmatpush.bf16.msra.mxu0 0
  %6889 = vmatpush.bf16.msra.mxu0 0
  %6890 = vmatpush.bf16.msra.mxu0 %v6833
  %6891 = vmatpush.bf16.msra.mxu0 %v6832
  %6892 = vmatpush.bf16.msra.mxu0 %v6831
  %6893 = vmatmul.bf16.gmra.mxu0 %v6838
  %v6894 = vpop.f32.mrf.mxu0
  %v6895 = vadd.f32 0.0, %v6894
  %v6896 = vpop.f32.mrf.mxu0
  %v6897 = vadd.f32 0.0, %v6896
  %6898 = vmatmul.bf16.gmra.mxu0 %v6841
  %v6899 = vpop.f32.mrf.mxu0
  %v6900 = vadd.f32 0.0, %v6899
  %v6901 = vpop.f32.mrf.mxu0
  %v6902 = vadd.f32 0.0, %v6901
  %6903 = vmatmul.bf16.gmra.mxu0 %v6844
  %v6904 = vpop.f32.mrf.mxu0
  %v6905 = vadd.f32 0.0, %v6904
  %v6906 = vpop.f32.mrf.mxu0
  %v6907 = vadd.f32 0.0, %v6906
  %6908 = vmatmul.bf16.gmra.mxu0 %v6847
  %v6909 = vpop.f32.mrf.mxu0
  %v6910 = vadd.f32 0.0, %v6909
  %v6911 = vpop.f32.mrf.mxu0
  %v6912 = vadd.f32 0.0, %v6911
  %6913 = vmatmul.bf16.gmra.mxu0 %v6850
  %v6914 = vpop.f32.mrf.mxu0
  %v6915 = vadd.f32 0.0, %v6914
  %v6916 = vpop.f32.mrf.mxu0
  %v6917 = vadd.f32 0.0, %v6916
  %6918 = vmatmul.bf16.gmra.mxu0 %v6853
  %v6919 = vpop.f32.mrf.mxu0
  %v6920 = vadd.f32 0.0, %v6919
  %v6921 = vpop.f32.mrf.mxu0
  %v6922 = vadd.f32 0.0, %v6921
  %6923 = vmatmul.bf16.gmra.mxu0 %v6856
  %v6924 = vpop.f32.mrf.mxu0
  %v6925 = vadd.f32 0.0, %v6924
  %v6926 = vpop.f32.mrf.mxu0
  %v6927 = vadd.f32 0.0, %v6926
  %6928 = vmatmul.bf16.gmra.mxu0 %v6859
  %v6929 = vpop.f32.mrf.mxu0
  %v6930 = vadd.f32 0.0, %v6929
  %v6931 = vpop.f32.mrf.mxu0
  %v6932 = vadd.f32 0.0, %v6931
  %6933 = vmatmul.bf16.gmra.mxu0 %v6862
  %v6934 = vpop.f32.mrf.mxu0
  %v6935 = vadd.f32 0.0, %v6934
  %v6936 = vpop.f32.mrf.mxu0
  %v6937 = vadd.f32 0.0, %v6936
  %6938 = vmatmul.bf16.gmra.mxu0 %v6865
  %v6939 = vpop.f32.mrf.mxu0
  %v6940 = vadd.f32 0.0, %v6939
  %v6941 = vpop.f32.mrf.mxu0
  %v6942 = vadd.f32 0.0, %v6941
  %6943 = vmatmul.bf16.gmra.mxu0 %v6868
  %v6944 = vpop.f32.mrf.mxu0
  %v6945 = vadd.f32 0.0, %v6944
  %v6946 = vpop.f32.mrf.mxu0
  %v6947 = vadd.f32 0.0, %v6946
  %6948 = vmatmul.bf16.gmra.mxu0 %v6871
  %v6949 = vpop.f32.mrf.mxu0
  %v6950 = vadd.f32 0.0, %v6949
  %v6951 = vpop.f32.mrf.mxu0
  %v6952 = vadd.f32 0.0, %v6951
  %6953 = vmatmul.bf16.gmra.mxu0 %v6874
  %v6954 = vpop.f32.mrf.mxu0
  %v6955 = vadd.f32 0.0, %v6954
  %v6956 = vpop.f32.mrf.mxu0
  %v6957 = vadd.f32 0.0, %v6956
  %6958 = vmatmul.bf16.gmra.mxu0 %v6877
  %v6959 = vpop.f32.mrf.mxu0
  %v6960 = vadd.f32 0.0, %v6959
  %v6961 = vpop.f32.mrf.mxu0
  %v6962 = vadd.f32 0.0, %v6961
  %6963 = vmatmul.bf16.gmra.mxu0 %v6880
  %v6964 = vpop.f32.mrf.mxu0
  %v6965 = vadd.f32 0.0, %v6964
  %v6966 = vpop.f32.mrf.mxu0
  %v6967 = vadd.f32 0.0, %v6966
  %6968 = vmatmul.bf16.gmra.mxu0 %v6883
  %v6969 = vpop.f32.mrf.mxu0
  %v6970 = vadd.f32 0.0, %v6969
  %v6971 = vpop.f32.mrf.mxu0
  %v6972 = vadd.f32 0.0, %v6971
  %6973 = vdwg.mxu0
  %v6974 = vadd.f32 %v6300, %v6895
  %v6975 = vadd.f32 %v6301, %v6897
  %v6976 = vadd.f32 %v6302, %v6900
  %v6977 = vadd.f32 %v6303, %v6902
  %v6978 = vadd.f32 %v6304, %v6905
  %v6979 = vadd.f32 %v6305, %v6907
  %v6980 = vadd.f32 %v6306, %v6910
  %v6981 = vadd.f32 %v6307, %v6912
  %v6982 = vadd.f32 %v6308, %v6915
  %v6983 = vadd.f32 %v6309, %v6917
  %v6984 = vadd.f32 %v6310, %v6920
  %v6985 = vadd.f32 %v6311, %v6922
  %v6986 = vadd.f32 %v6312, %v6925
  %v6987 = vadd.f32 %v6313, %v6927
  %v6988 = vadd.f32 %v6314, %v6930
  %v6989 = vadd.f32 %v6315, %v6932
  %v6990 = vadd.f32 %v6316, %v6935
  %v6991 = vadd.f32 %v6317, %v6937
  %v6992 = vadd.f32 %v6318, %v6940
  %v6993 = vadd.f32 %v6319, %v6942
  %v6994 = vadd.f32 %v6320, %v6945
  %v6995 = vadd.f32 %v6321, %v6947
  %v6996 = vadd.f32 %v6322, %v6950
  %v6997 = vadd.f32 %v6323, %v6952
  %v6998 = vadd.f32 %v6324, %v6955
  %v6999 = vadd.f32 %v6325, %v6957
  %v7000 = vadd.f32 %v6326, %v6960
  %v7001 = vadd.f32 %v6327, %v6962
  %v7002 = vadd.f32 %v6328, %v6965
  %v7003 = vadd.f32 %v6329, %v6967
  %v7004 = vadd.f32 %v6330, %v6970
  %v7005 = vadd.f32 %v6331, %v6972
  %v7006 = vld [vmem:[%s6025] sm:$0xe]
  %v7007 = vld [vmem:[%s6025 + $0xc] sm:$0xe]
  %v7008 = vld [vmem:[%s6025 + $0x18] sm:$0xe]
  %v7009 = vld [vmem:[%s6025 + $0x24] sm:$0xe]
  %v7010 = vld [vmem:[%s6025 + $0x30] sm:$0xe]
  %v7011 = vld [vmem:[%s6025 + $0x3c] sm:$0xe]
  %v7012 = vld [vmem:[%s6025 + $0x48] sm:$0xe]
  %v7013 = vld [vmem:[%s6025 + $0x54] sm:$0xe]
  %v7014 = vld [vmem:[%s6025 + $0x60] sm:$0xe]
  %v7015 = vld [vmem:[%s6025 + $0x6c] sm:$0xe]
  %v7016 = vld [vmem:[%s6025 + $0x78] sm:$0xe]
  %v7017 = vld [vmem:[%s6025 + $0x84] sm:$0xe]
  %v7018 = vld [vmem:[%s6025 + $0x90] sm:$0xe]
  %v7019 = vld [vmem:[%s6025 + $0x9c] sm:$0xe]
  %v7020 = vld [vmem:[%s6025 + $0xa8] sm:$0xe]
  %v7021 = vld [vmem:[%s6025 + $0xb4] sm:$0xe]
  %v7070 = vrot.slane %v7006, 5
  %v7071 = vrot.slane %v7070, 4
  %v7072 = vrot.slane %v6333, 5
  %v7073 = vsel %vm5670, %v7071, %v7072
  %v7074 = vrot.slane %v7072, 4
  %v7075 = vrot.slane %v6334, 5
  %v7076 = vsel %vm5670, %v7074, %v7075
  %v7077 = vrot.slane %v7007, 5
  %v7078 = vrot.slane %v7077, 4
  %v7079 = vrot.slane %v6336, 5
  %v7080 = vsel %vm5670, %v7078, %v7079
  %v7081 = vrot.slane %v7079, 4
  %v7082 = vrot.slane %v6337, 5
  %v7083 = vsel %vm5670, %v7081, %v7082
  %v7084 = vrot.slane %v7008, 5
  %v7085 = vrot.slane %v7084, 4
  %v7086 = vrot.slane %v6339, 5
  %v7087 = vsel %vm5670, %v7085, %v7086
  %v7088 = vrot.slane %v7086, 4
  %v7089 = vrot.slane %v6340, 5
  %v7090 = vsel %vm5670, %v7088, %v7089
  %v7091 = vrot.slane %v7009, 5
  %v7092 = vrot.slane %v7091, 4
  %v7093 = vrot.slane %v6342, 5
  %v7094 = vsel %vm5670, %v7092, %v7093
  %v7095 = vrot.slane %v7093, 4
  %v7096 = vrot.slane %v6343, 5
  %v7097 = vsel %vm5670, %v7095, %v7096
  %v7098 = vrot.slane %v7010, 5
  %v7099 = vrot.slane %v7098, 4
  %v7100 = vrot.slane %v6345, 5
  %v7101 = vsel %vm5670, %v7099, %v7100
  %v7102 = vrot.slane %v7100, 4
  %v7103 = vrot.slane %v6346, 5
  %v7104 = vsel %vm5670, %v7102, %v7103
  %v7105 = vrot.slane %v7011, 5
  %v7106 = vrot.slane %v7105, 4
  %v7107 = vrot.slane %v6348, 5
  %v7108 = vsel %vm5670, %v7106, %v7107
  %v7109 = vrot.slane %v7107, 4
  %v7110 = vrot.slane %v6349, 5
  %v7111 = vsel %vm5670, %v7109, %v7110
  %v7112 = vrot.slane %v7012, 5
  %v7113 = vrot.slane %v7112, 4
  %v7114 = vrot.slane %v6351, 5
  %v7115 = vsel %vm5670, %v7113, %v7114
  %v7116 = vrot.slane %v7114, 4
  %v7117 = vrot.slane %v6352, 5
  %v7118 = vsel %vm5670, %v7116, %v7117
  %v7119 = vrot.slane %v7013, 5
  %v7120 = vrot.slane %v7119, 4
  %v7121 = vrot.slane %v6354, 5
  %v7122 = vsel %vm5670, %v7120, %v7121
  %v7123 = vrot.slane %v7121, 4
  %v7124 = vrot.slane %v6355, 5
  %v7125 = vsel %vm5670, %v7123, %v7124
  %v7126 = vrot.slane %v7014, 5
  %v7127 = vrot.slane %v7126, 4
  %v7128 = vrot.slane %v6357, 5
  %v7129 = vsel %vm5670, %v7127, %v7128
  %v7130 = vrot.slane %v7128, 4
  %v7131 = vrot.slane %v6358, 5
  %v7132 = vsel %vm5670, %v7130, %v7131
  %v7133 = vrot.slane %v7015, 5
  %v7134 = vrot.slane %v7133, 4
  %v7135 = vrot.slane %v6360, 5
  %v7136 = vsel %vm5670, %v7134, %v7135
  %v7137 = vrot.slane %v7135, 4
  %v7138 = vrot.slane %v6361, 5
  %v7139 = vsel %vm5670, %v7137, %v7138
  %v7140 = vrot.slane %v7016, 5
  %v7141 = vrot.slane %v7140, 4
  %v7142 = vrot.slane %v6363, 5
  %v7143 = vsel %vm5670, %v7141, %v7142
  %v7144 = vrot.slane %v7142, 4
  %v7145 = vrot.slane %v6364, 5
  %v7146 = vsel %vm5670, %v7144, %v7145
  %v7147 = vrot.slane %v7017, 5
  %v7148 = vrot.slane %v7147, 4
  %v7149 = vrot.slane %v6366, 5
  %v7150 = vsel %vm5670, %v7148, %v7149
  %v7151 = vrot.slane %v7149, 4
  %v7152 = vrot.slane %v6367, 5
  %v7153 = vsel %vm5670, %v7151, %v7152
  %v7154 = vrot.slane %v7018, 5
  %v7155 = vrot.slane %v7154, 4
  %v7156 = vrot.slane %v6369, 5
  %v7157 = vsel %vm5670, %v7155, %v7156
  %v7158 = vrot.slane %v7156, 4
  %v7159 = vrot.slane %v6370, 5
  %v7160 = vsel %vm5670, %v7158, %v7159
  %v7161 = vrot.slane %v7019, 5
  %v7162 = vrot.slane %v7161, 4
  %v7163 = vrot.slane %v6372, 5
  %v7164 = vsel %vm5670, %v7162, %v7163
  %v7165 = vrot.slane %v7163, 4
  %v7166 = vrot.slane %v6373, 5
  %v7167 = vsel %vm5670, %v7165, %v7166
  %v7168 = vrot.slane %v7020, 5
  %v7169 = vrot.slane %v7168, 4
  %v7170 = vrot.slane %v6375, 5
  %v7171 = vsel %vm5670, %v7169, %v7170
  %v7172 = vrot.slane %v7170, 4
  %v7173 = vrot.slane %v6376, 5
  %v7174 = vsel %vm5670, %v7172, %v7173
  %v7175 = vrot.slane %v7021, 5
  %v7176 = vrot.slane %v7175, 4
  %v7177 = vrot.slane %v6378, 5
  %v7178 = vsel %vm5670, %v7176, %v7177
  %v7179 = vrot.slane %v7177, 4
  %v7180 = vrot.slane %v6379, 5
  %v7181 = vsel %vm5670, %v7179, %v7180
  %s7182 = scalar_lea.vmem %s3, 120
  %v7183 = vld [vmem:[%s7182] sm:$0xf]
  %v7184 = vld [vmem:[%s7182 + $0x4] sm:$0xf]
  %v7185 = vld [vmem:[%s7182 + $0x8] sm:$0xf]
  %v7186 = vld [vmem:[%s7182 + $0xc] sm:$0xf]
  %v7187 = vld [vmem:[%s7182 + $0x10] sm:$0xf]
  %v7188 = vld [vmem:[%s7182 + $0x14] sm:$0xf]
  %v7189 = vunpack.c.l.b16 %v7073
  %v7190 = vunpack.c.l.b16 %v7076
  %v7191 = vunpack.c.l.b16 %v7080
  %v7192 = vunpack.c.l.b16 %v7083
  %v7193 = vunpack.c.l.b16 %v7087
  %v7194 = vunpack.c.l.b16 %v7090
  %v7195 = vunpack.c.l.b16 %v7094
  %v7196 = vunpack.c.l.b16 %v7097
  %v7197 = vunpack.c.l.b16 %v7101
  %v7198 = vunpack.c.l.b16 %v7104
  %v7199 = vunpack.c.l.b16 %v7108
  %v7200 = vunpack.c.l.b16 %v7111
  %v7201 = vunpack.c.l.b16 %v7115
  %v7202 = vunpack.c.l.b16 %v7118
  %v7203 = vunpack.c.l.b16 %v7122
  %v7204 = vunpack.c.l.b16 %v7125
  %v7205 = vunpack.c.l.b16 %v7129
  %v7206 = vunpack.c.l.b16 %v7132
  %v7207 = vunpack.c.l.b16 %v7136
  %v7208 = vunpack.c.l.b16 %v7139
  %v7209 = vunpack.c.l.b16 %v7143
  %v7210 = vunpack.c.l.b16 %v7146
  %v7211 = vunpack.c.l.b16 %v7150
  %v7212 = vunpack.c.l.b16 %v7153
  %v7213 = vunpack.c.l.b16 %v7157
  %v7214 = vunpack.c.l.b16 %v7160
  %v7215 = vunpack.c.l.b16 %v7164
  %v7216 = vunpack.c.l.b16 %v7167
  %v7217 = vunpack.c.l.b16 %v7171
  %v7218 = vunpack.c.l.b16 %v7174
  %v7219 = vunpack.c.l.b16 %v7178
  %v7220 = vunpack.c.l.b16 %v7181
  %v7221 = vpack.c.b16 %v7190, %v7189
  %v7222 = vpack.c.b16 %v7192, %v7191
  %v7223 = vpack.c.b16 %v7194, %v7193
  %v7224 = vpack.c.b16 %v7196, %v7195
  %v7225 = vpack.c.b16 %v7198, %v7197
  %v7226 = vpack.c.b16 %v7200, %v7199
  %v7227 = vpack.c.b16 %v7202, %v7201
  %v7228 = vpack.c.b16 %v7204, %v7203
  %v7229 = vpack.c.b16 %v7206, %v7205
  %v7230 = vpack.c.b16 %v7208, %v7207
  %v7231 = vpack.c.b16 %v7210, %v7209
  %v7232 = vpack.c.b16 %v7212, %v7211
  %v7233 = vpack.c.b16 %v7214, %v7213
  %v7234 = vpack.c.b16 %v7216, %v7215
  %v7235 = vpack.c.b16 %v7218, %v7217
  %v7236 = vpack.c.b16 %v7220, %v7219
  %v7243 = vunpack.c.l.b16 %v7183
  %v7244 = vunpack.c.l.b16 %v7184
  %v7245 = vunpack.c.l.b16 %v7185
  %v7246 = vunpack.c.l.b16 %v7186
  %v7247 = vunpack.c.l.b16 %v7187
  %v7248 = vunpack.c.l.b16 %v7188
  %v7249 = vpack.c.b16 %v7244, %v7243
  %v7250 = vpack.c.b16 %v7246, %v7245
  %v7251 = vpack.c.b16 %v7248, %v7247
  %v7256 = vsel %vm5247, %v7221, 0
  %v7259 = vsel %vm5247, %v7222, 0
  %v7262 = vsel %vm5247, %v7223, 0
  %v7265 = vsel %vm5247, %v7224, 0
  %v7268 = vsel %vm5247, %v7225, 0
  %v7271 = vsel %vm5247, %v7226, 0
  %v7274 = vsel %vm5247, %v7227, 0
  %v7277 = vsel %vm5247, %v7228, 0
  %v7280 = vsel %vm5247, %v7229, 0
  %v7283 = vsel %vm5247, %v7230, 0
  %v7286 = vsel %vm5247, %v7231, 0
  %v7289 = vsel %vm5247, %v7232, 0
  %v7292 = vsel %vm5247, %v7233, 0
  %v7295 = vsel %vm5247, %v7234, 0
  %v7298 = vsel %vm5247, %v7235, 0
  %v7301 = vsel %vm5247, %v7236, 0
  %7303 = vmatpush.bf16.msra.mxu0 0
  %7304 = vmatpush.bf16.msra.mxu0 0
  %7305 = vmatpush.bf16.msra.mxu0 0
  %7306 = vmatpush.bf16.msra.mxu0 0
  %7307 = vmatpush.bf16.msra.mxu0 0
  %7308 = vmatpush.bf16.msra.mxu0 %v7251
  %7309 = vmatpush.bf16.msra.mxu0 %v7250
  %7310 = vmatpush.bf16.msra.mxu0 %v7249
  %7311 = vmatmul.bf16.gmra.mxu0 %v7256
  %v7312 = vpop.f32.mrf.mxu0
  %v7313 = vadd.f32 0.0, %v7312
  %v7314 = vpop.f32.mrf.mxu0
  %v7315 = vadd.f32 0.0, %v7314
  %7316 = vmatmul.bf16.gmra.mxu0 %v7259
  %v7317 = vpop.f32.mrf.mxu0
  %v7318 = vadd.f32 0.0, %v7317
  %v7319 = vpop.f32.mrf.mxu0
  %v7320 = vadd.f32 0.0, %v7319
  %7321 = vmatmul.bf16.gmra.mxu0 %v7262
  %v7322 = vpop.f32.mrf.mxu0
  %v7323 = vadd.f32 0.0, %v7322
  %v7324 = vpop.f32.mrf.mxu0
  %v7325 = vadd.f32 0.0, %v7324
  %7326 = vmatmul.bf16.gmra.mxu0 %v7265
  %v7327 = vpop.f32.mrf.mxu0
  %v7328 = vadd.f32 0.0, %v7327
  %v7329 = vpop.f32.mrf.mxu0
  %v7330 = vadd.f32 0.0, %v7329
  %7331 = vmatmul.bf16.gmra.mxu0 %v7268
  %v7332 = vpop.f32.mrf.mxu0
  %v7333 = vadd.f32 0.0, %v7332
  %v7334 = vpop.f32.mrf.mxu0
  %v7335 = vadd.f32 0.0, %v7334
  %7336 = vmatmul.bf16.gmra.mxu0 %v7271
  %v7337 = vpop.f32.mrf.mxu0
  %v7338 = vadd.f32 0.0, %v7337
  %v7339 = vpop.f32.mrf.mxu0
  %v7340 = vadd.f32 0.0, %v7339
  %7341 = vmatmul.bf16.gmra.mxu0 %v7274
  %v7342 = vpop.f32.mrf.mxu0
  %v7343 = vadd.f32 0.0, %v7342
  %v7344 = vpop.f32.mrf.mxu0
  %v7345 = vadd.f32 0.0, %v7344
  %7346 = vmatmul.bf16.gmra.mxu0 %v7277
  %v7347 = vpop.f32.mrf.mxu0
  %v7348 = vadd.f32 0.0, %v7347
  %v7349 = vpop.f32.mrf.mxu0
  %v7350 = vadd.f32 0.0, %v7349
  %7351 = vmatmul.bf16.gmra.mxu0 %v7280
  %v7352 = vpop.f32.mrf.mxu0
  %v7353 = vadd.f32 0.0, %v7352
  %v7354 = vpop.f32.mrf.mxu0
  %v7355 = vadd.f32 0.0, %v7354
  %7356 = vmatmul.bf16.gmra.mxu0 %v7283
  %v7357 = vpop.f32.mrf.mxu0
  %v7358 = vadd.f32 0.0, %v7357
  %v7359 = vpop.f32.mrf.mxu0
  %v7360 = vadd.f32 0.0, %v7359
  %7361 = vmatmul.bf16.gmra.mxu0 %v7286
  %v7362 = vpop.f32.mrf.mxu0
  %v7363 = vadd.f32 0.0, %v7362
  %v7364 = vpop.f32.mrf.mxu0
  %v7365 = vadd.f32 0.0, %v7364
  %7366 = vmatmul.bf16.gmra.mxu0 %v7289
  %v7367 = vpop.f32.mrf.mxu0
  %v7368 = vadd.f32 0.0, %v7367
  %v7369 = vpop.f32.mrf.mxu0
  %v7370 = vadd.f32 0.0, %v7369
  %7371 = vmatmul.bf16.gmra.mxu0 %v7292
  %v7372 = vpop.f32.mrf.mxu0
  %v7373 = vadd.f32 0.0, %v7372
  %v7374 = vpop.f32.mrf.mxu0
  %v7375 = vadd.f32 0.0, %v7374
  %7376 = vmatmul.bf16.gmra.mxu0 %v7295
  %v7377 = vpop.f32.mrf.mxu0
  %v7378 = vadd.f32 0.0, %v7377
  %v7379 = vpop.f32.mrf.mxu0
  %v7380 = vadd.f32 0.0, %v7379
  %7381 = vmatmul.bf16.gmra.mxu0 %v7298
  %v7382 = vpop.f32.mrf.mxu0
  %v7383 = vadd.f32 0.0, %v7382
  %v7384 = vpop.f32.mrf.mxu0
  %v7385 = vadd.f32 0.0, %v7384
  %7386 = vmatmul.bf16.gmra.mxu0 %v7301
  %v7387 = vpop.f32.mrf.mxu0
  %v7388 = vadd.f32 0.0, %v7387
  %v7389 = vpop.f32.mrf.mxu0
  %v7390 = vadd.f32 0.0, %v7389
  %7391 = vdwg.mxu0
  %v7392 = vadd.f32 %v6974, %v7313
  %v7393 = vadd.f32 %v6975, %v7315
  %v7394 = vadd.f32 %v6976, %v7318
  %v7395 = vadd.f32 %v6977, %v7320
  %v7396 = vadd.f32 %v6978, %v7323
  %v7397 = vadd.f32 %v6979, %v7325
  %v7398 = vadd.f32 %v6980, %v7328
  %v7399 = vadd.f32 %v6981, %v7330
  %v7400 = vadd.f32 %v6982, %v7333
  %v7401 = vadd.f32 %v6983, %v7335
  %v7402 = vadd.f32 %v6984, %v7338
  %v7403 = vadd.f32 %v6985, %v7340
  %v7404 = vadd.f32 %v6986, %v7343
  %v7405 = vadd.f32 %v6987, %v7345
  %v7406 = vadd.f32 %v6988, %v7348
  %v7407 = vadd.f32 %v6989, %v7350
  %v7408 = vadd.f32 %v6990, %v7353
  %v7409 = vadd.f32 %v6991, %v7355
  %v7410 = vadd.f32 %v6992, %v7358
  %v7411 = vadd.f32 %v6993, %v7360
  %v7412 = vadd.f32 %v6994, %v7363
  %v7413 = vadd.f32 %v6995, %v7365
  %v7414 = vadd.f32 %v6996, %v7368
  %v7415 = vadd.f32 %v6997, %v7370
  %v7416 = vadd.f32 %v6998, %v7373
  %v7417 = vadd.f32 %v6999, %v7375
  %v7418 = vadd.f32 %v7000, %v7378
  %v7419 = vadd.f32 %v7001, %v7380
  %v7420 = vadd.f32 %v7002, %v7383
  %v7421 = vadd.f32 %v7003, %v7385
  %v7422 = vadd.f32 %v7004, %v7388
  %v7423 = vadd.f32 %v7005, %v7390
  %s7424 = scalar_lea.vmem [#allocation2], 24
  %v7425 = vld [vmem:[%s7424] sm:$0xf]
  %v7426 = vld [vmem:[%s7424 + $0x4] sm:$0xf]
  %v7427 = vld [vmem:[%s7424 + $0xc] sm:$0xf]
  %v7428 = vld [vmem:[%s7424 + $0x10] sm:$0xf]
  %v7429 = vld [vmem:[%s7424 + $0x18] sm:$0xf]
  %v7430 = vld [vmem:[%s7424 + $0x1c] sm:$0xf]
  %v7431 = vld [vmem:[%s7424 + $0x24] sm:$0xf]
  %v7432 = vld [vmem:[%s7424 + $0x28] sm:$0xf]
  %v7433 = vld [vmem:[%s7424 + $0x30] sm:$0xf]
  %v7434 = vld [vmem:[%s7424 + $0x34] sm:$0xf]
  %v7435 = vld [vmem:[%s7424 + $0x3c] sm:$0xf]
  %v7436 = vld [vmem:[%s7424 + $0x40] sm:$0xf]
  %v7437 = vld [vmem:[%s7424 + $0x48] sm:$0xf]
  %v7438 = vld [vmem:[%s7424 + $0x4c] sm:$0xf]
  %v7439 = vld [vmem:[%s7424 + $0x54] sm:$0xf]
  %v7440 = vld [vmem:[%s7424 + $0x58] sm:$0xf]
  %v7441 = vld [vmem:[%s7424 + $0x60] sm:$0xf]
  %v7442 = vld [vmem:[%s7424 + $0x64] sm:$0xf]
  %v7443 = vld [vmem:[%s7424 + $0x6c] sm:$0xf]
  %v7444 = vld [vmem:[%s7424 + $0x70] sm:$0xf]
  %v7445 = vld [vmem:[%s7424 + $0x78] sm:$0xf]
  %v7446 = vld [vmem:[%s7424 + $0x7c] sm:$0xf]
  %v7447 = vld [vmem:[%s7424 + $0x84] sm:$0xf]
  %v7448 = vld [vmem:[%s7424 + $0x88] sm:$0xf]
  %v7449 = vld [vmem:[%s7424 + $0x90] sm:$0xf]
  %v7450 = vld [vmem:[%s7424 + $0x94] sm:$0xf]
  %v7451 = vld [vmem:[%s7424 + $0x9c] sm:$0xf]
  %v7452 = vld [vmem:[%s7424 + $0xa0] sm:$0xf]
  %v7453 = vld [vmem:[%s7424 + $0xa8] sm:$0xf]
  %v7454 = vld [vmem:[%s7424 + $0xac] sm:$0xf]
  %v7455 = vld [vmem:[%s7424 + $0xb4] sm:$0xf]
  %v7456 = vld [vmem:[%s7424 + $0xb8] sm:$0xf]
  %s7457 = scalar_lea.vmem %s3, 144
  %v7458 = vld [vmem:[%s7457] sm:$0xf]
  %v7459 = vld [vmem:[%s7457 + $0x4] sm:$0xf]
  %v7460 = vld [vmem:[%s7457 + $0x8] sm:$0xf]
  %v7461 = vld [vmem:[%s7457 + $0xc] sm:$0xf]
  %v7462 = vld [vmem:[%s7457 + $0x10] sm:$0xf]
  %v7463 = vld [vmem:[%s7457 + $0x14] sm:$0xf]
  %v7496 = vunpack.c.l.b16 %v7425
  %v7497 = vunpack.c.l.b16 %v7426
  %v7498 = vunpack.c.l.b16 %v7427
  %v7499 = vunpack.c.l.b16 %v7428
  %v7500 = vunpack.c.l.b16 %v7429
  %v7501 = vunpack.c.l.b16 %v7430
  %v7502 = vunpack.c.l.b16 %v7431
  %v7503 = vunpack.c.l.b16 %v7432
  %v7504 = vunpack.c.l.b16 %v7433
  %v7505 = vunpack.c.l.b16 %v7434
  %v7506 = vunpack.c.l.b16 %v7435
  %v7507 = vunpack.c.l.b16 %v7436
  %v7508 = vunpack.c.l.b16 %v7437
  %v7509 = vunpack.c.l.b16 %v7438
  %v7510 = vunpack.c.l.b16 %v7439
  %v7511 = vunpack.c.l.b16 %v7440
  %v7512 = vunpack.c.l.b16 %v7441
  %v7513 = vunpack.c.l.b16 %v7442
  %v7514 = vunpack.c.l.b16 %v7443
  %v7515 = vunpack.c.l.b16 %v7444
  %v7516 = vunpack.c.l.b16 %v7445
  %v7517 = vunpack.c.l.b16 %v7446
  %v7518 = vunpack.c.l.b16 %v7447
  %v7519 = vunpack.c.l.b16 %v7448
  %v7520 = vunpack.c.l.b16 %v7449
  %v7521 = vunpack.c.l.b16 %v7450
  %v7522 = vunpack.c.l.b16 %v7451
  %v7523 = vunpack.c.l.b16 %v7452
  %v7524 = vunpack.c.l.b16 %v7453
  %v7525 = vunpack.c.l.b16 %v7454
  %v7526 = vunpack.c.l.b16 %v7455
  %v7527 = vunpack.c.l.b16 %v7456
  %v7528 = vpack.c.b16 %v7497, %v7496
  %v7529 = vpack.c.b16 %v7499, %v7498
  %v7530 = vpack.c.b16 %v7501, %v7500
  %v7531 = vpack.c.b16 %v7503, %v7502
  %v7532 = vpack.c.b16 %v7505, %v7504
  %v7533 = vpack.c.b16 %v7507, %v7506
  %v7534 = vpack.c.b16 %v7509, %v7508
  %v7535 = vpack.c.b16 %v7511, %v7510
  %v7536 = vpack.c.b16 %v7513, %v7512
  %v7537 = vpack.c.b16 %v7515, %v7514
  %v7538 = vpack.c.b16 %v7517, %v7516
  %v7539 = vpack.c.b16 %v7519, %v7518
  %v7540 = vpack.c.b16 %v7521, %v7520
  %v7541 = vpack.c.b16 %v7523, %v7522
  %v7542 = vpack.c.b16 %v7525, %v7524
  %v7543 = vpack.c.b16 %v7527, %v7526
  %v7550 = vunpack.c.l.b16 %v7458
  %v7551 = vunpack.c.l.b16 %v7459
  %v7552 = vunpack.c.l.b16 %v7460
  %v7553 = vunpack.c.l.b16 %v7461
  %v7554 = vunpack.c.l.b16 %v7462
  %v7555 = vunpack.c.l.b16 %v7463
  %v7556 = vpack.c.b16 %v7551, %v7550
  %v7557 = vpack.c.b16 %v7553, %v7552
  %v7558 = vpack.c.b16 %v7555, %v7554
  %v7563 = vsel %vm5247, %v7528, 0
  %v7566 = vsel %vm5247, %v7529, 0
  %v7569 = vsel %vm5247, %v7530, 0
  %v7572 = vsel %vm5247, %v7531, 0
  %v7575 = vsel %vm5247, %v7532, 0
  %v7578 = vsel %vm5247, %v7533, 0
  %v7581 = vsel %vm5247, %v7534, 0
  %v7584 = vsel %vm5247, %v7535, 0
  %v7587 = vsel %vm5247, %v7536, 0
  %v7590 = vsel %vm5247, %v7537, 0
  %v7593 = vsel %vm5247, %v7538, 0
  %v7596 = vsel %vm5247, %v7539, 0
  %v7599 = vsel %vm5247, %v7540, 0
  %v7602 = vsel %vm5247, %v7541, 0
  %v7605 = vsel %vm5247, %v7542, 0
  %v7608 = vsel %vm5247, %v7543, 0
  %7610 = vmatpush.bf16.msra.mxu0 0
  %7611 = vmatpush.bf16.msra.mxu0 0
  %7612 = vmatpush.bf16.msra.mxu0 0
  %7613 = vmatpush.bf16.msra.mxu0 0
  %7614 = vmatpush.bf16.msra.mxu0 0
  %7615 = vmatpush.bf16.msra.mxu0 %v7558
  %7616 = vmatpush.bf16.msra.mxu0 %v7557
  %7617 = vmatpush.bf16.msra.mxu0 %v7556
  %7618 = vmatmul.bf16.gmra.mxu0 %v7563
  %v7619 = vpop.f32.mrf.mxu0
  %v7620 = vadd.f32 0.0, %v7619
  %v7621 = vpop.f32.mrf.mxu0
  %v7622 = vadd.f32 0.0, %v7621
  %7623 = vmatmul.bf16.gmra.mxu0 %v7566
  %v7624 = vpop.f32.mrf.mxu0
  %v7625 = vadd.f32 0.0, %v7624
  %v7626 = vpop.f32.mrf.mxu0
  %v7627 = vadd.f32 0.0, %v7626
  %7628 = vmatmul.bf16.gmra.mxu0 %v7569
  %v7629 = vpop.f32.mrf.mxu0
  %v7630 = vadd.f32 0.0, %v7629
  %v7631 = vpop.f32.mrf.mxu0
  %v7632 = vadd.f32 0.0, %v7631
  %7633 = vmatmul.bf16.gmra.mxu0 %v7572
  %v7634 = vpop.f32.mrf.mxu0
  %v7635 = vadd.f32 0.0, %v7634
  %v7636 = vpop.f32.mrf.mxu0
  %v7637 = vadd.f32 0.0, %v7636
  %7638 = vmatmul.bf16.gmra.mxu0 %v7575
  %v7639 = vpop.f32.mrf.mxu0
  %v7640 = vadd.f32 0.0, %v7639
  %v7641 = vpop.f32.mrf.mxu0
  %v7642 = vadd.f32 0.0, %v7641
  %7643 = vmatmul.bf16.gmra.mxu0 %v7578
  %v7644 = vpop.f32.mrf.mxu0
  %v7645 = vadd.f32 0.0, %v7644
  %v7646 = vpop.f32.mrf.mxu0
  %v7647 = vadd.f32 0.0, %v7646
  %7648 = vmatmul.bf16.gmra.mxu0 %v7581
  %v7649 = vpop.f32.mrf.mxu0
  %v7650 = vadd.f32 0.0, %v7649
  %v7651 = vpop.f32.mrf.mxu0
  %v7652 = vadd.f32 0.0, %v7651
  %7653 = vmatmul.bf16.gmra.mxu0 %v7584
  %v7654 = vpop.f32.mrf.mxu0
  %v7655 = vadd.f32 0.0, %v7654
  %v7656 = vpop.f32.mrf.mxu0
  %v7657 = vadd.f32 0.0, %v7656
  %7658 = vmatmul.bf16.gmra.mxu0 %v7587
  %v7659 = vpop.f32.mrf.mxu0
  %v7660 = vadd.f32 0.0, %v7659
  %v7661 = vpop.f32.mrf.mxu0
  %v7662 = vadd.f32 0.0, %v7661
  %7663 = vmatmul.bf16.gmra.mxu0 %v7590
  %v7664 = vpop.f32.mrf.mxu0
  %v7665 = vadd.f32 0.0, %v7664
  %v7666 = vpop.f32.mrf.mxu0
  %v7667 = vadd.f32 0.0, %v7666
  %7668 = vmatmul.bf16.gmra.mxu0 %v7593
  %v7669 = vpop.f32.mrf.mxu0
  %v7670 = vadd.f32 0.0, %v7669
  %v7671 = vpop.f32.mrf.mxu0
  %v7672 = vadd.f32 0.0, %v7671
  %7673 = vmatmul.bf16.gmra.mxu0 %v7596
  %v7674 = vpop.f32.mrf.mxu0
  %v7675 = vadd.f32 0.0, %v7674
  %v7676 = vpop.f32.mrf.mxu0
  %v7677 = vadd.f32 0.0, %v7676
  %7678 = vmatmul.bf16.gmra.mxu0 %v7599
  %v7679 = vpop.f32.mrf.mxu0
  %v7680 = vadd.f32 0.0, %v7679
  %v7681 = vpop.f32.mrf.mxu0
  %v7682 = vadd.f32 0.0, %v7681
  %7683 = vmatmul.bf16.gmra.mxu0 %v7602
  %v7684 = vpop.f32.mrf.mxu0
  %v7685 = vadd.f32 0.0, %v7684
  %v7686 = vpop.f32.mrf.mxu0
  %v7687 = vadd.f32 0.0, %v7686
  %7688 = vmatmul.bf16.gmra.mxu0 %v7605
  %v7689 = vpop.f32.mrf.mxu0
  %v7690 = vadd.f32 0.0, %v7689
  %v7691 = vpop.f32.mrf.mxu0
  %v7692 = vadd.f32 0.0, %v7691
  %7693 = vmatmul.bf16.gmra.mxu0 %v7608
  %v7694 = vpop.f32.mrf.mxu0
  %v7695 = vadd.f32 0.0, %v7694
  %v7696 = vpop.f32.mrf.mxu0
  %v7697 = vadd.f32 0.0, %v7696
  %7698 = vdwg.mxu0
  %v7699 = vadd.f32 %v7392, %v7620
  %v7700 = vadd.f32 %v7393, %v7622
  %v7701 = vadd.f32 %v7394, %v7625
  %v7702 = vadd.f32 %v7395, %v7627
  %v7703 = vadd.f32 %v7396, %v7630
  %v7704 = vadd.f32 %v7397, %v7632
  %v7705 = vadd.f32 %v7398, %v7635
  %v7706 = vadd.f32 %v7399, %v7637
  %v7707 = vadd.f32 %v7400, %v7640
  %v7708 = vadd.f32 %v7401, %v7642
  %v7709 = vadd.f32 %v7402, %v7645
  %v7710 = vadd.f32 %v7403, %v7647
  %v7711 = vadd.f32 %v7404, %v7650
  %v7712 = vadd.f32 %v7405, %v7652
  %v7713 = vadd.f32 %v7406, %v7655
  %v7714 = vadd.f32 %v7407, %v7657
  %v7715 = vadd.f32 %v7408, %v7660
  %v7716 = vadd.f32 %v7409, %v7662
  %v7717 = vadd.f32 %v7410, %v7665
  %v7718 = vadd.f32 %v7411, %v7667
  %v7719 = vadd.f32 %v7412, %v7670
  %v7720 = vadd.f32 %v7413, %v7672
  %v7721 = vadd.f32 %v7414, %v7675
  %v7722 = vadd.f32 %v7415, %v7677
  %v7723 = vadd.f32 %v7416, %v7680
  %v7724 = vadd.f32 %v7417, %v7682
  %v7725 = vadd.f32 %v7418, %v7685
  %v7726 = vadd.f32 %v7419, %v7687
  %v7727 = vadd.f32 %v7420, %v7690
  %v7728 = vadd.f32 %v7421, %v7692
  %v7729 = vadd.f32 %v7422, %v7695
  %v7730 = vadd.f32 %v7423, %v7697
  %v7731 = vld [vmem:[%s7424] sm:$0xf]
  %v7732 = vld [vmem:[%s7424 + $0x4] sm:$0xf]
  %v7733 = vld [vmem:[%s7424 + $0x8] sm:$0x1]
  %v7734 = vld [vmem:[%s7424 + $0xc] sm:$0xf]
  %v7735 = vld [vmem:[%s7424 + $0x10] sm:$0xf]
  %v7736 = vld [vmem:[%s7424 + $0x14] sm:$0x1]
  %v7737 = vld [vmem:[%s7424 + $0x18] sm:$0xf]
  %v7738 = vld [vmem:[%s7424 + $0x1c] sm:$0xf]
  %v7739 = vld [vmem:[%s7424 + $0x20] sm:$0x1]
  %v7740 = vld [vmem:[%s7424 + $0x24] sm:$0xf]
  %v7741 = vld [vmem:[%s7424 + $0x28] sm:$0xf]
  %v7742 = vld [vmem:[%s7424 + $0x2c] sm:$0x1]
  %v7743 = vld [vmem:[%s7424 + $0x30] sm:$0xf]
  %v7744 = vld [vmem:[%s7424 + $0x34] sm:$0xf]
  %v7745 = vld [vmem:[%s7424 + $0x38] sm:$0x1]
  %v7746 = vld [vmem:[%s7424 + $0x3c] sm:$0xf]
  %v7747 = vld [vmem:[%s7424 + $0x40] sm:$0xf]
  %v7748 = vld [vmem:[%s7424 + $0x44] sm:$0x1]
  %v7749 = vld [vmem:[%s7424 + $0x48] sm:$0xf]
  %v7750 = vld [vmem:[%s7424 + $0x4c] sm:$0xf]
  %v7751 = vld [vmem:[%s7424 + $0x50] sm:$0x1]
  %v7752 = vld [vmem:[%s7424 + $0x54] sm:$0xf]
  %v7753 = vld [vmem:[%s7424 + $0x58] sm:$0xf]
  %v7754 = vld [vmem:[%s7424 + $0x5c] sm:$0x1]
  %v7755 = vld [vmem:[%s7424 + $0x60] sm:$0xf]
  %v7756 = vld [vmem:[%s7424 + $0x64] sm:$0xf]
  %v7757 = vld [vmem:[%s7424 + $0x68] sm:$0x1]
  %v7758 = vld [vmem:[%s7424 + $0x6c] sm:$0xf]
  %v7759 = vld [vmem:[%s7424 + $0x70] sm:$0xf]
  %v7760 = vld [vmem:[%s7424 + $0x74] sm:$0x1]
  %v7761 = vld [vmem:[%s7424 + $0x78] sm:$0xf]
  %v7762 = vld [vmem:[%s7424 + $0x7c] sm:$0xf]
  %v7763 = vld [vmem:[%s7424 + $0x80] sm:$0x1]
  %v7764 = vld [vmem:[%s7424 + $0x84] sm:$0xf]
  %v7765 = vld [vmem:[%s7424 + $0x88] sm:$0xf]
  %v7766 = vld [vmem:[%s7424 + $0x8c] sm:$0x1]
  %v7767 = vld [vmem:[%s7424 + $0x90] sm:$0xf]
  %v7768 = vld [vmem:[%s7424 + $0x94] sm:$0xf]
  %v7769 = vld [vmem:[%s7424 + $0x98] sm:$0x1]
  %v7770 = vld [vmem:[%s7424 + $0x9c] sm:$0xf]
  %v7771 = vld [vmem:[%s7424 + $0xa0] sm:$0xf]
  %v7772 = vld [vmem:[%s7424 + $0xa4] sm:$0x1]
  %v7773 = vld [vmem:[%s7424 + $0xa8] sm:$0xf]
  %v7774 = vld [vmem:[%s7424 + $0xac] sm:$0xf]
  %v7775 = vld [vmem:[%s7424 + $0xb0] sm:$0x1]
  %v7776 = vld [vmem:[%s7424 + $0xb4] sm:$0xf]
  %v7777 = vld [vmem:[%s7424 + $0xb8] sm:$0xf]
  %v7778 = vld [vmem:[%s7424 + $0xbc] sm:$0x1]
  %v7780 = vshrl.u32 %v7731, 16
  %v7782 = vrot.slane %v7780, 4
  %v7783 = vshll.u32 %v7731, 16
  %v7785 = vrot.slane %v7783, 5
  %v7786 = vor.u32 %v7782, %v7785
  %v7787 = vrot.slane %v7786, 4
  %v7789 = vshll.u32 %v7732, 16
  %v7791 = vrot.slane %v7789, 5
  %v7792 = vsel %vm4789, %v7787, %v7791
  %v7793 = vshrl.u32 %v7732, 16
  %v7795 = vrot.slane %v7793, 4
  %v7796 = vor.u32 %v7795, %v7791
  %v7797 = vrot.slane %v7796, 4
  %v7799 = vshll.u32 %v7733, 16
  %v7801 = vrot.slane %v7799, 5
  %v7802 = vsel %vm4789, %v7797, %v7801
  %v7804 = vshrl.u32 %v7734, 16
  %v7806 = vrot.slane %v7804, 4
  %v7807 = vshll.u32 %v7734, 16
  %v7809 = vrot.slane %v7807, 5
  %v7810 = vor.u32 %v7806, %v7809
  %v7811 = vrot.slane %v7810, 4
  %v7813 = vshll.u32 %v7735, 16
  %v7815 = vrot.slane %v7813, 5
  %v7816 = vsel %vm4789, %v7811, %v7815
  %v7817 = vshrl.u32 %v7735, 16
  %v7819 = vrot.slane %v7817, 4
  %v7820 = vor.u32 %v7819, %v7815
  %v7821 = vrot.slane %v7820, 4
  %v7823 = vshll.u32 %v7736, 16
  %v7825 = vrot.slane %v7823, 5
  %v7826 = vsel %vm4789, %v7821, %v7825
  %v7828 = vshrl.u32 %v7737, 16
  %v7830 = vrot.slane %v7828, 4
  %v7831 = vshll.u32 %v7737, 16
  %v7833 = vrot.slane %v7831, 5
  %v7834 = vor.u32 %v7830, %v7833
  %v7835 = vrot.slane %v7834, 4
  %v7837 = vshll.u32 %v7738, 16
  %v7839 = vrot.slane %v7837, 5
  %v7840 = vsel %vm4789, %v7835, %v7839
  %v7841 = vshrl.u32 %v7738, 16
  %v7843 = vrot.slane %v7841, 4
  %v7844 = vor.u32 %v7843, %v7839
  %v7845 = vrot.slane %v7844, 4
  %v7847 = vshll.u32 %v7739, 16
  %v7849 = vrot.slane %v7847, 5
  %v7850 = vsel %vm4789, %v7845, %v7849
  %v7852 = vshrl.u32 %v7740, 16
  %v7854 = vrot.slane %v7852, 4
  %v7855 = vshll.u32 %v7740, 16
  %v7857 = vrot.slane %v7855, 5
  %v7858 = vor.u32 %v7854, %v7857
  %v7859 = vrot.slane %v7858, 4
  %v7861 = vshll.u32 %v7741, 16
  %v7863 = vrot.slane %v7861, 5
  %v7864 = vsel %vm4789, %v7859, %v7863
  %v7865 = vshrl.u32 %v7741, 16
  %v7867 = vrot.slane %v7865, 4
  %v7868 = vor.u32 %v7867, %v7863
  %v7869 = vrot.slane %v7868, 4
  %v7871 = vshll.u32 %v7742, 16
  %v7873 = vrot.slane %v7871, 5
  %v7874 = vsel %vm4789, %v7869, %v7873
  %v7876 = vshrl.u32 %v7743, 16
  %v7878 = vrot.slane %v7876, 4
  %v7879 = vshll.u32 %v7743, 16
  %v7881 = vrot.slane %v7879, 5
  %v7882 = vor.u32 %v7878, %v7881
  %v7883 = vrot.slane %v7882, 4
  %v7885 = vshll.u32 %v7744, 16
  %v7887 = vrot.slane %v7885, 5
  %v7888 = vsel %vm4789, %v7883, %v7887
  %v7889 = vshrl.u32 %v7744, 16
  %v7891 = vrot.slane %v7889, 4
  %v7892 = vor.u32 %v7891, %v7887
  %v7893 = vrot.slane %v7892, 4
  %v7895 = vshll.u32 %v7745, 16
  %v7897 = vrot.slane %v7895, 5
  %v7898 = vsel %vm4789, %v7893, %v7897
  %v7900 = vshrl.u32 %v7746, 16
  %v7902 = vrot.slane %v7900, 4
  %v7903 = vshll.u32 %v7746, 16
  %v7905 = vrot.slane %v7903, 5
  %v7906 = vor.u32 %v7902, %v7905
  %v7907 = vrot.slane %v7906, 4
  %v7909 = vshll.u32 %v7747, 16
  %v7911 = vrot.slane %v7909, 5
  %v7912 = vsel %vm4789, %v7907, %v7911
  %v7913 = vshrl.u32 %v7747, 16
  %v7915 = vrot.slane %v7913, 4
  %v7916 = vor.u32 %v7915, %v7911
  %v7917 = vrot.slane %v7916, 4
  %v7919 = vshll.u32 %v7748, 16
  %v7921 = vrot.slane %v7919, 5
  %v7922 = vsel %vm4789, %v7917, %v7921
  %v7924 = vshrl.u32 %v7749, 16
  %v7926 = vrot.slane %v7924, 4
  %v7927 = vshll.u32 %v7749, 16
  %v7929 = vrot.slane %v7927, 5
  %v7930 = vor.u32 %v7926, %v7929
  %v7931 = vrot.slane %v7930, 4
  %v7933 = vshll.u32 %v7750, 16
  %v7935 = vrot.slane %v7933, 5
  %v7936 = vsel %vm4789, %v7931, %v7935
  %v7937 = vshrl.u32 %v7750, 16
  %v7939 = vrot.slane %v7937, 4
  %v7940 = vor.u32 %v7939, %v7935
  %v7941 = vrot.slane %v7940, 4
  %v7943 = vshll.u32 %v7751, 16
  %v7945 = vrot.slane %v7943, 5
  %v7946 = vsel %vm4789, %v7941, %v7945
  %v7948 = vshrl.u32 %v7752, 16
  %v7950 = vrot.slane %v7948, 4
  %v7951 = vshll.u32 %v7752, 16
  %v7953 = vrot.slane %v7951, 5
  %v7954 = vor.u32 %v7950, %v7953
  %v7955 = vrot.slane %v7954, 4
  %v7957 = vshll.u32 %v7753, 16
  %v7959 = vrot.slane %v7957, 5
  %v7960 = vsel %vm4789, %v7955, %v7959
  %v7961 = vshrl.u32 %v7753, 16
  %v7963 = vrot.slane %v7961, 4
  %v7964 = vor.u32 %v7963, %v7959
  %v7965 = vrot.slane %v7964, 4
  %v7967 = vshll.u32 %v7754, 16
  %v7969 = vrot.slane %v7967, 5
  %v7970 = vsel %vm4789, %v7965, %v7969
  %v7972 = vshrl.u32 %v7755, 16
  %v7974 = vrot.slane %v7972, 4
  %v7975 = vshll.u32 %v7755, 16
  %v7977 = vrot.slane %v7975, 5
  %v7978 = vor.u32 %v7974, %v7977
  %v7979 = vrot.slane %v7978, 4
  %v7981 = vshll.u32 %v7756, 16
  %v7983 = vrot.slane %v7981, 5
  %v7984 = vsel %vm4789, %v7979, %v7983
  %v7985 = vshrl.u32 %v7756, 16
  %v7987 = vrot.slane %v7985, 4
  %v7988 = vor.u32 %v7987, %v7983
  %v7989 = vrot.slane %v7988, 4
  %v7991 = vshll.u32 %v7757, 16
  %v7993 = vrot.slane %v7991, 5
  %v7994 = vsel %vm4789, %v7989, %v7993
  %v7996 = vshrl.u32 %v7758, 16
  %v7998 = vrot.slane %v7996, 4
  %v7999 = vshll.u32 %v7758, 16
  %v8001 = vrot.slane %v7999, 5
  %v8002 = vor.u32 %v7998, %v8001
  %v8003 = vrot.slane %v8002, 4
  %v8005 = vshll.u32 %v7759, 16
  %v8007 = vrot.slane %v8005, 5
  %v8008 = vsel %vm4789, %v8003, %v8007
  %v8009 = vshrl.u32 %v7759, 16
  %v8011 = vrot.slane %v8009, 4
  %v8012 = vor.u32 %v8011, %v8007
  %v8013 = vrot.slane %v8012, 4
  %v8015 = vshll.u32 %v7760, 16
  %v8017 = vrot.slane %v8015, 5
  %v8018 = vsel %vm4789, %v8013, %v8017
  %v8020 = vshrl.u32 %v7761, 16
  %v8022 = vrot.slane %v8020, 4
  %v8023 = vshll.u32 %v7761, 16
  %v8025 = vrot.slane %v8023, 5
  %v8026 = vor.u32 %v8022, %v8025
  %v8027 = vrot.slane %v8026, 4
  %v8029 = vshll.u32 %v7762, 16
  %v8031 = vrot.slane %v8029, 5
  %v8032 = vsel %vm4789, %v8027, %v8031
  %v8033 = vshrl.u32 %v7762, 16
  %v8035 = vrot.slane %v8033, 4
  %v8036 = vor.u32 %v8035, %v8031
  %v8037 = vrot.slane %v8036, 4
  %v8039 = vshll.u32 %v7763, 16
  %v8041 = vrot.slane %v8039, 5
  %v8042 = vsel %vm4789, %v8037, %v8041
  %v8044 = vshrl.u32 %v7764, 16
  %v8046 = vrot.slane %v8044, 4
  %v8047 = vshll.u32 %v7764, 16
  %v8049 = vrot.slane %v8047, 5
  %v8050 = vor.u32 %v8046, %v8049
  %v8051 = vrot.slane %v8050, 4
  %v8053 = vshll.u32 %v7765, 16
  %v8055 = vrot.slane %v8053, 5
  %v8056 = vsel %vm4789, %v8051, %v8055
  %v8057 = vshrl.u32 %v7765, 16
  %v8059 = vrot.slane %v8057, 4
  %v8060 = vor.u32 %v8059, %v8055
  %v8061 = vrot.slane %v8060, 4
  %v8063 = vshll.u32 %v7766, 16
  %v8065 = vrot.slane %v8063, 5
  %v8066 = vsel %vm4789, %v8061, %v8065
  %v8068 = vshrl.u32 %v7767, 16
  %v8070 = vrot.slane %v8068, 4
  %v8071 = vshll.u32 %v7767, 16
  %v8073 = vrot.slane %v8071, 5
  %v8074 = vor.u32 %v8070, %v8073
  %v8075 = vrot.slane %v8074, 4
  %v8077 = vshll.u32 %v7768, 16
  %v8079 = vrot.slane %v8077, 5
  %v8080 = vsel %vm4789, %v8075, %v8079
  %v8081 = vshrl.u32 %v7768, 16
  %v8083 = vrot.slane %v8081, 4
  %v8084 = vor.u32 %v8083, %v8079
  %v8085 = vrot.slane %v8084, 4
  %v8087 = vshll.u32 %v7769, 16
  %v8089 = vrot.slane %v8087, 5
  %v8090 = vsel %vm4789, %v8085, %v8089
  %v8092 = vshrl.u32 %v7770, 16
  %v8094 = vrot.slane %v8092, 4
  %v8095 = vshll.u32 %v7770, 16
  %v8097 = vrot.slane %v8095, 5
  %v8098 = vor.u32 %v8094, %v8097
  %v8099 = vrot.slane %v8098, 4
  %v8101 = vshll.u32 %v7771, 16
  %v8103 = vrot.slane %v8101, 5
  %v8104 = vsel %vm4789, %v8099, %v8103
  %v8105 = vshrl.u32 %v7771, 16
  %v8107 = vrot.slane %v8105, 4
  %v8108 = vor.u32 %v8107, %v8103
  %v8109 = vrot.slane %v8108, 4
  %v8111 = vshll.u32 %v7772, 16
  %v8113 = vrot.slane %v8111, 5
  %v8114 = vsel %vm4789, %v8109, %v8113
  %v8116 = vshrl.u32 %v7773, 16
  %v8118 = vrot.slane %v8116, 4
  %v8119 = vshll.u32 %v7773, 16
  %v8121 = vrot.slane %v8119, 5
  %v8122 = vor.u32 %v8118, %v8121
  %v8123 = vrot.slane %v8122, 4
  %v8125 = vshll.u32 %v7774, 16
  %v8127 = vrot.slane %v8125, 5
  %v8128 = vsel %vm4789, %v8123, %v8127
  %v8129 = vshrl.u32 %v7774, 16
  %v8131 = vrot.slane %v8129, 4
  %v8132 = vor.u32 %v8131, %v8127
  %v8133 = vrot.slane %v8132, 4
  %v8135 = vshll.u32 %v7775, 16
  %v8137 = vrot.slane %v8135, 5
  %v8138 = vsel %vm4789, %v8133, %v8137
  %v8140 = vshrl.u32 %v7776, 16
  %v8142 = vrot.slane %v8140, 4
  %v8143 = vshll.u32 %v7776, 16
  %v8145 = vrot.slane %v8143, 5
  %v8146 = vor.u32 %v8142, %v8145
  %v8147 = vrot.slane %v8146, 4
  %v8149 = vshll.u32 %v7777, 16
  %v8151 = vrot.slane %v8149, 5
  %v8152 = vsel %vm4789, %v8147, %v8151
  %v8153 = vshrl.u32 %v7777, 16
  %v8155 = vrot.slane %v8153, 4
  %v8156 = vor.u32 %v8155, %v8151
  %v8157 = vrot.slane %v8156, 4
  %v8159 = vshll.u32 %v7778, 16
  %v8161 = vrot.slane %v8159, 5
  %v8162 = vsel %vm4789, %v8157, %v8161
  %s8163 = scalar_lea.vmem %s3, 168
  %v8164 = vld [vmem:[%s8163] sm:$0xf]
  %v8165 = vld [vmem:[%s8163 + $0x4] sm:$0xf]
  %v8166 = vld [vmem:[%s8163 + $0x8] sm:$0xf]
  %v8167 = vld [vmem:[%s8163 + $0xc] sm:$0xf]
  %v8168 = vld [vmem:[%s8163 + $0x10] sm:$0xf]
  %v8169 = vld [vmem:[%s8163 + $0x14] sm:$0xf]
  %v8170 = vunpack.c.l.b16 %v7792
  %v8171 = vunpack.c.l.b16 %v7802
  %v8172 = vunpack.c.l.b16 %v7816
  %v8173 = vunpack.c.l.b16 %v7826
  %v8174 = vunpack.c.l.b16 %v7840
  %v8175 = vunpack.c.l.b16 %v7850
  %v8176 = vunpack.c.l.b16 %v7864
  %v8177 = vunpack.c.l.b16 %v7874
  %v8178 = vunpack.c.l.b16 %v7888
  %v8179 = vunpack.c.l.b16 %v7898
  %v8180 = vunpack.c.l.b16 %v7912
  %v8181 = vunpack.c.l.b16 %v7922
  %v8182 = vunpack.c.l.b16 %v7936
  %v8183 = vunpack.c.l.b16 %v7946
  %v8184 = vunpack.c.l.b16 %v7960
  %v8185 = vunpack.c.l.b16 %v7970
  %v8186 = vunpack.c.l.b16 %v7984
  %v8187 = vunpack.c.l.b16 %v7994
  %v8188 = vunpack.c.l.b16 %v8008
  %v8189 = vunpack.c.l.b16 %v8018
  %v8190 = vunpack.c.l.b16 %v8032
  %v8191 = vunpack.c.l.b16 %v8042
  %v8192 = vunpack.c.l.b16 %v8056
  %v8193 = vunpack.c.l.b16 %v8066
  %v8194 = vunpack.c.l.b16 %v8080
  %v8195 = vunpack.c.l.b16 %v8090
  %v8196 = vunpack.c.l.b16 %v8104
  %v8197 = vunpack.c.l.b16 %v8114
  %v8198 = vunpack.c.l.b16 %v8128
  %v8199 = vunpack.c.l.b16 %v8138
  %v8200 = vunpack.c.l.b16 %v8152
  %v8201 = vunpack.c.l.b16 %v8162
  %v8202 = vpack.c.b16 %v8171, %v8170
  %v8203 = vpack.c.b16 %v8173, %v8172
  %v8204 = vpack.c.b16 %v8175, %v8174
  %v8205 = vpack.c.b16 %v8177, %v8176
  %v8206 = vpack.c.b16 %v8179, %v8178
  %v8207 = vpack.c.b16 %v8181, %v8180
  %v8208 = vpack.c.b16 %v8183, %v8182
  %v8209 = vpack.c.b16 %v8185, %v8184
  %v8210 = vpack.c.b16 %v8187, %v8186
  %v8211 = vpack.c.b16 %v8189, %v8188
  %v8212 = vpack.c.b16 %v8191, %v8190
  %v8213 = vpack.c.b16 %v8193, %v8192
  %v8214 = vpack.c.b16 %v8195, %v8194
  %v8215 = vpack.c.b16 %v8197, %v8196
  %v8216 = vpack.c.b16 %v8199, %v8198
  %v8217 = vpack.c.b16 %v8201, %v8200
  %v8224 = vunpack.c.l.b16 %v8164
  %v8225 = vunpack.c.l.b16 %v8165
  %v8226 = vunpack.c.l.b16 %v8166
  %v8227 = vunpack.c.l.b16 %v8167
  %v8228 = vunpack.c.l.b16 %v8168
  %v8229 = vunpack.c.l.b16 %v8169
  %v8230 = vpack.c.b16 %v8225, %v8224
  %v8231 = vpack.c.b16 %v8227, %v8226
  %v8232 = vpack.c.b16 %v8229, %v8228
  %v8237 = vsel %vm5247, %v8202, 0
  %v8240 = vsel %vm5247, %v8203, 0
  %v8243 = vsel %vm5247, %v8204, 0
  %v8246 = vsel %vm5247, %v8205, 0
  %v8249 = vsel %vm5247, %v8206, 0
  %v8252 = vsel %vm5247, %v8207, 0
  %v8255 = vsel %vm5247, %v8208, 0
  %v8258 = vsel %vm5247, %v8209, 0
  %v8261 = vsel %vm5247, %v8210, 0
  %v8264 = vsel %vm5247, %v8211, 0
  %v8267 = vsel %vm5247, %v8212, 0
  %v8270 = vsel %vm5247, %v8213, 0
  %v8273 = vsel %vm5247, %v8214, 0
  %v8276 = vsel %vm5247, %v8215, 0
  %v8279 = vsel %vm5247, %v8216, 0
  %v8282 = vsel %vm5247, %v8217, 0
  %8284 = vmatpush.bf16.msra.mxu0 0
  %8285 = vmatpush.bf16.msra.mxu0 0
  %8286 = vmatpush.bf16.msra.mxu0 0
  %8287 = vmatpush.bf16.msra.mxu0 0
  %8288 = vmatpush.bf16.msra.mxu0 0
  %8289 = vmatpush.bf16.msra.mxu0 %v8232
  %8290 = vmatpush.bf16.msra.mxu0 %v8231
  %8291 = vmatpush.bf16.msra.mxu0 %v8230
  %8292 = vmatmul.bf16.gmra.mxu0 %v8237
  %v8293 = vpop.f32.mrf.mxu0
  %v8294 = vadd.f32 0.0, %v8293
  %v8295 = vpop.f32.mrf.mxu0
  %v8296 = vadd.f32 0.0, %v8295
  %8297 = vmatmul.bf16.gmra.mxu0 %v8240
  %v8298 = vpop.f32.mrf.mxu0
  %v8299 = vadd.f32 0.0, %v8298
  %v8300 = vpop.f32.mrf.mxu0
  %v8301 = vadd.f32 0.0, %v8300
  %8302 = vmatmul.bf16.gmra.mxu0 %v8243
  %v8303 = vpop.f32.mrf.mxu0
  %v8304 = vadd.f32 0.0, %v8303
  %v8305 = vpop.f32.mrf.mxu0
  %v8306 = vadd.f32 0.0, %v8305
  %8307 = vmatmul.bf16.gmra.mxu0 %v8246
  %v8308 = vpop.f32.mrf.mxu0
  %v8309 = vadd.f32 0.0, %v8308
  %v8310 = vpop.f32.mrf.mxu0
  %v8311 = vadd.f32 0.0, %v8310
  %8312 = vmatmul.bf16.gmra.mxu0 %v8249
  %v8313 = vpop.f32.mrf.mxu0
  %v8314 = vadd.f32 0.0, %v8313
  %v8315 = vpop.f32.mrf.mxu0
  %v8316 = vadd.f32 0.0, %v8315
  %8317 = vmatmul.bf16.gmra.mxu0 %v8252
  %v8318 = vpop.f32.mrf.mxu0
  %v8319 = vadd.f32 0.0, %v8318
  %v8320 = vpop.f32.mrf.mxu0
  %v8321 = vadd.f32 0.0, %v8320
  %8322 = vmatmul.bf16.gmra.mxu0 %v8255
  %v8323 = vpop.f32.mrf.mxu0
  %v8324 = vadd.f32 0.0, %v8323
  %v8325 = vpop.f32.mrf.mxu0
  %v8326 = vadd.f32 0.0, %v8325
  %8327 = vmatmul.bf16.gmra.mxu0 %v8258
  %v8328 = vpop.f32.mrf.mxu0
  %v8329 = vadd.f32 0.0, %v8328
  %v8330 = vpop.f32.mrf.mxu0
  %v8331 = vadd.f32 0.0, %v8330
  %8332 = vmatmul.bf16.gmra.mxu0 %v8261
  %v8333 = vpop.f32.mrf.mxu0
  %v8334 = vadd.f32 0.0, %v8333
  %v8335 = vpop.f32.mrf.mxu0
  %v8336 = vadd.f32 0.0, %v8335
  %8337 = vmatmul.bf16.gmra.mxu0 %v8264
  %v8338 = vpop.f32.mrf.mxu0
  %v8339 = vadd.f32 0.0, %v8338
  %v8340 = vpop.f32.mrf.mxu0
  %v8341 = vadd.f32 0.0, %v8340
  %8342 = vmatmul.bf16.gmra.mxu0 %v8267
  %v8343 = vpop.f32.mrf.mxu0
  %v8344 = vadd.f32 0.0, %v8343
  %v8345 = vpop.f32.mrf.mxu0
  %v8346 = vadd.f32 0.0, %v8345
  %8347 = vmatmul.bf16.gmra.mxu0 %v8270
  %v8348 = vpop.f32.mrf.mxu0
  %v8349 = vadd.f32 0.0, %v8348
  %v8350 = vpop.f32.mrf.mxu0
  %v8351 = vadd.f32 0.0, %v8350
  %8352 = vmatmul.bf16.gmra.mxu0 %v8273
  %v8353 = vpop.f32.mrf.mxu0
  %v8354 = vadd.f32 0.0, %v8353
  %v8355 = vpop.f32.mrf.mxu0
  %v8356 = vadd.f32 0.0, %v8355
  %8357 = vmatmul.bf16.gmra.mxu0 %v8276
  %v8358 = vpop.f32.mrf.mxu0
  %v8359 = vadd.f32 0.0, %v8358
  %v8360 = vpop.f32.mrf.mxu0
  %v8361 = vadd.f32 0.0, %v8360
  %8362 = vmatmul.bf16.gmra.mxu0 %v8279
  %v8363 = vpop.f32.mrf.mxu0
  %v8364 = vadd.f32 0.0, %v8363
  %v8365 = vpop.f32.mrf.mxu0
  %v8366 = vadd.f32 0.0, %v8365
  %8367 = vmatmul.bf16.gmra.mxu0 %v8282
  %v8368 = vpop.f32.mrf.mxu0
  %v8369 = vadd.f32 0.0, %v8368
  %v8370 = vpop.f32.mrf.mxu0
  %v8371 = vadd.f32 0.0, %v8370
  %8372 = vdwg.mxu0
  %v8373 = vadd.f32 %v7699, %v8294
  %v8374 = vadd.f32 %v7700, %v8296
  %v8375 = vadd.f32 %v7701, %v8299
  %v8376 = vadd.f32 %v7702, %v8301
  %v8377 = vadd.f32 %v7703, %v8304
  %v8378 = vadd.f32 %v7704, %v8306
  %v8379 = vadd.f32 %v7705, %v8309
  %v8380 = vadd.f32 %v7706, %v8311
  %v8381 = vadd.f32 %v7707, %v8314
  %v8382 = vadd.f32 %v7708, %v8316
  %v8383 = vadd.f32 %v7709, %v8319
  %v8384 = vadd.f32 %v7710, %v8321
  %v8385 = vadd.f32 %v7711, %v8324
  %v8386 = vadd.f32 %v7712, %v8326
  %v8387 = vadd.f32 %v7713, %v8329
  %v8388 = vadd.f32 %v7714, %v8331
  %v8389 = vadd.f32 %v7715, %v8334
  %v8390 = vadd.f32 %v7716, %v8336
  %v8391 = vadd.f32 %v7717, %v8339
  %v8392 = vadd.f32 %v7718, %v8341
  %v8393 = vadd.f32 %v7719, %v8344
  %v8394 = vadd.f32 %v7720, %v8346
  %v8395 = vadd.f32 %v7721, %v8349
  %v8396 = vadd.f32 %v7722, %v8351
  %v8397 = vadd.f32 %v7723, %v8354
  %v8398 = vadd.f32 %v7724, %v8356
  %v8399 = vadd.f32 %v7725, %v8359
  %v8400 = vadd.f32 %v7726, %v8361
  %v8401 = vadd.f32 %v7727, %v8364
  %v8402 = vadd.f32 %v7728, %v8366
  %v8403 = vadd.f32 %v7729, %v8369
  %v8404 = vadd.f32 %v7730, %v8371
  %v8405 = vld [vmem:[%s7424] sm:$0xe]
  %v8406 = vld [vmem:[%s7424 + $0xc] sm:$0xe]
  %v8407 = vld [vmem:[%s7424 + $0x18] sm:$0xe]
  %v8408 = vld [vmem:[%s7424 + $0x24] sm:$0xe]
  %v8409 = vld [vmem:[%s7424 + $0x30] sm:$0xe]
  %v8410 = vld [vmem:[%s7424 + $0x3c] sm:$0xe]
  %v8411 = vld [vmem:[%s7424 + $0x48] sm:$0xe]
  %v8412 = vld [vmem:[%s7424 + $0x54] sm:$0xe]
  %v8413 = vld [vmem:[%s7424 + $0x60] sm:$0xe]
  %v8414 = vld [vmem:[%s7424 + $0x6c] sm:$0xe]
  %v8415 = vld [vmem:[%s7424 + $0x78] sm:$0xe]
  %v8416 = vld [vmem:[%s7424 + $0x84] sm:$0xe]
  %v8417 = vld [vmem:[%s7424 + $0x90] sm:$0xe]
  %v8418 = vld [vmem:[%s7424 + $0x9c] sm:$0xe]
  %v8419 = vld [vmem:[%s7424 + $0xa8] sm:$0xe]
  %v8420 = vld [vmem:[%s7424 + $0xb4] sm:$0xe]
  %v8469 = vrot.slane %v8405, 5
  %v8470 = vrot.slane %v8469, 4
  %v8471 = vrot.slane %v7732, 5
  %v8472 = vsel %vm5670, %v8470, %v8471
  %v8473 = vrot.slane %v8471, 4
  %v8474 = vrot.slane %v7733, 5
  %v8475 = vsel %vm5670, %v8473, %v8474
  %v8476 = vrot.slane %v8406, 5
  %v8477 = vrot.slane %v8476, 4
  %v8478 = vrot.slane %v7735, 5
  %v8479 = vsel %vm5670, %v8477, %v8478
  %v8480 = vrot.slane %v8478, 4
  %v8481 = vrot.slane %v7736, 5
  %v8482 = vsel %vm5670, %v8480, %v8481
  %v8483 = vrot.slane %v8407, 5
  %v8484 = vrot.slane %v8483, 4
  %v8485 = vrot.slane %v7738, 5
  %v8486 = vsel %vm5670, %v8484, %v8485
  %v8487 = vrot.slane %v8485, 4
  %v8488 = vrot.slane %v7739, 5
  %v8489 = vsel %vm5670, %v8487, %v8488
  %v8490 = vrot.slane %v8408, 5
  %v8491 = vrot.slane %v8490, 4
  %v8492 = vrot.slane %v7741, 5
  %v8493 = vsel %vm5670, %v8491, %v8492
  %v8494 = vrot.slane %v8492, 4
  %v8495 = vrot.slane %v7742, 5
  %v8496 = vsel %vm5670, %v8494, %v8495
  %v8497 = vrot.slane %v8409, 5
  %v8498 = vrot.slane %v8497, 4
  %v8499 = vrot.slane %v7744, 5
  %v8500 = vsel %vm5670, %v8498, %v8499
  %v8501 = vrot.slane %v8499, 4
  %v8502 = vrot.slane %v7745, 5
  %v8503 = vsel %vm5670, %v8501, %v8502
  %v8504 = vrot.slane %v8410, 5
  %v8505 = vrot.slane %v8504, 4
  %v8506 = vrot.slane %v7747, 5
  %v8507 = vsel %vm5670, %v8505, %v8506
  %v8508 = vrot.slane %v8506, 4
  %v8509 = vrot.slane %v7748, 5
  %v8510 = vsel %vm5670, %v8508, %v8509
  %v8511 = vrot.slane %v8411, 5
  %v8512 = vrot.slane %v8511, 4
  %v8513 = vrot.slane %v7750, 5
  %v8514 = vsel %vm5670, %v8512, %v8513
  %v8515 = vrot.slane %v8513, 4
  %v8516 = vrot.slane %v7751, 5
  %v8517 = vsel %vm5670, %v8515, %v8516
  %v8518 = vrot.slane %v8412, 5
  %v8519 = vrot.slane %v8518, 4
  %v8520 = vrot.slane %v7753, 5
  %v8521 = vsel %vm5670, %v8519, %v8520
  %v8522 = vrot.slane %v8520, 4
  %v8523 = vrot.slane %v7754, 5
  %v8524 = vsel %vm5670, %v8522, %v8523
  %v8525 = vrot.slane %v8413, 5
  %v8526 = vrot.slane %v8525, 4
  %v8527 = vrot.slane %v7756, 5
  %v8528 = vsel %vm5670, %v8526, %v8527
  %v8529 = vrot.slane %v8527, 4
  %v8530 = vrot.slane %v7757, 5
  %v8531 = vsel %vm5670, %v8529, %v8530
  %v8532 = vrot.slane %v8414, 5
  %v8533 = vrot.slane %v8532, 4
  %v8534 = vrot.slane %v7759, 5
  %v8535 = vsel %vm5670, %v8533, %v8534
  %v8536 = vrot.slane %v8534, 4
  %v8537 = vrot.slane %v7760, 5
  %v8538 = vsel %vm5670, %v8536, %v8537
  %v8539 = vrot.slane %v8415, 5
  %v8540 = vrot.slane %v8539, 4
  %v8541 = vrot.slane %v7762, 5
  %v8542 = vsel %vm5670, %v8540, %v8541
  %v8543 = vrot.slane %v8541, 4
  %v8544 = vrot.slane %v7763, 5
  %v8545 = vsel %vm5670, %v8543, %v8544
  %v8546 = vrot.slane %v8416, 5
  %v8547 = vrot.slane %v8546, 4
  %v8548 = vrot.slane %v7765, 5
  %v8549 = vsel %vm5670, %v8547, %v8548
  %v8550 = vrot.slane %v8548, 4
  %v8551 = vrot.slane %v7766, 5
  %v8552 = vsel %vm5670, %v8550, %v8551
  %v8553 = vrot.slane %v8417, 5
  %v8554 = vrot.slane %v8553, 4
  %v8555 = vrot.slane %v7768, 5
  %v8556 = vsel %vm5670, %v8554, %v8555
  %v8557 = vrot.slane %v8555, 4
  %v8558 = vrot.slane %v7769, 5
  %v8559 = vsel %vm5670, %v8557, %v8558
  %v8560 = vrot.slane %v8418, 5
  %v8561 = vrot.slane %v8560, 4
  %v8562 = vrot.slane %v7771, 5
  %v8563 = vsel %vm5670, %v8561, %v8562
  %v8564 = vrot.slane %v8562, 4
  %v8565 = vrot.slane %v7772, 5
  %v8566 = vsel %vm5670, %v8564, %v8565
  %v8567 = vrot.slane %v8419, 5
  %v8568 = vrot.slane %v8567, 4
  %v8569 = vrot.slane %v7774, 5
  %v8570 = vsel %vm5670, %v8568, %v8569
  %v8571 = vrot.slane %v8569, 4
  %v8572 = vrot.slane %v7775, 5
  %v8573 = vsel %vm5670, %v8571, %v8572
  %v8574 = vrot.slane %v8420, 5
  %v8575 = vrot.slane %v8574, 4
  %v8576 = vrot.slane %v7777, 5
  %v8577 = vsel %vm5670, %v8575, %v8576
  %v8578 = vrot.slane %v8576, 4
  %v8579 = vrot.slane %v7778, 5
  %v8580 = vsel %vm5670, %v8578, %v8579
  %s8581 = scalar_lea.vmem %s3, 192
  %v8582 = vld [vmem:[%s8581] sm:$0xf]
  %v8583 = vld [vmem:[%s8581 + $0x4] sm:$0xf]
  %v8584 = vld [vmem:[%s8581 + $0x8] sm:$0xf]
  %v8585 = vld [vmem:[%s8581 + $0xc] sm:$0xf]
  %v8586 = vld [vmem:[%s8581 + $0x10] sm:$0xf]
  %v8587 = vld [vmem:[%s8581 + $0x14] sm:$0xf]
  %v8588 = vunpack.c.l.b16 %v8472
  %v8589 = vunpack.c.l.b16 %v8475
  %v8590 = vunpack.c.l.b16 %v8479
  %v8591 = vunpack.c.l.b16 %v8482
  %v8592 = vunpack.c.l.b16 %v8486
  %v8593 = vunpack.c.l.b16 %v8489
  %v8594 = vunpack.c.l.b16 %v8493
  %v8595 = vunpack.c.l.b16 %v8496
  %v8596 = vunpack.c.l.b16 %v8500
  %v8597 = vunpack.c.l.b16 %v8503
  %v8598 = vunpack.c.l.b16 %v8507
  %v8599 = vunpack.c.l.b16 %v8510
  %v8600 = vunpack.c.l.b16 %v8514
  %v8601 = vunpack.c.l.b16 %v8517
  %v8602 = vunpack.c.l.b16 %v8521
  %v8603 = vunpack.c.l.b16 %v8524
  %v8604 = vunpack.c.l.b16 %v8528
  %v8605 = vunpack.c.l.b16 %v8531
  %v8606 = vunpack.c.l.b16 %v8535
  %v8607 = vunpack.c.l.b16 %v8538
  %v8608 = vunpack.c.l.b16 %v8542
  %v8609 = vunpack.c.l.b16 %v8545
  %v8610 = vunpack.c.l.b16 %v8549
  %v8611 = vunpack.c.l.b16 %v8552
  %v8612 = vunpack.c.l.b16 %v8556
  %v8613 = vunpack.c.l.b16 %v8559
  %v8614 = vunpack.c.l.b16 %v8563
  %v8615 = vunpack.c.l.b16 %v8566
  %v8616 = vunpack.c.l.b16 %v8570
  %v8617 = vunpack.c.l.b16 %v8573
  %v8618 = vunpack.c.l.b16 %v8577
  %v8619 = vunpack.c.l.b16 %v8580
  %v8620 = vpack.c.b16 %v8589, %v8588
  %v8621 = vpack.c.b16 %v8591, %v8590
  %v8622 = vpack.c.b16 %v8593, %v8592
  %v8623 = vpack.c.b16 %v8595, %v8594
  %v8624 = vpack.c.b16 %v8597, %v8596
  %v8625 = vpack.c.b16 %v8599, %v8598
  %v8626 = vpack.c.b16 %v8601, %v8600
  %v8627 = vpack.c.b16 %v8603, %v8602
  %v8628 = vpack.c.b16 %v8605, %v8604
  %v8629 = vpack.c.b16 %v8607, %v8606
  %v8630 = vpack.c.b16 %v8609, %v8608
  %v8631 = vpack.c.b16 %v8611, %v8610
  %v8632 = vpack.c.b16 %v8613, %v8612
  %v8633 = vpack.c.b16 %v8615, %v8614
  %v8634 = vpack.c.b16 %v8617, %v8616
  %v8635 = vpack.c.b16 %v8619, %v8618
  %v8642 = vunpack.c.l.b16 %v8582
  %v8643 = vunpack.c.l.b16 %v8583
  %v8644 = vunpack.c.l.b16 %v8584
  %v8645 = vunpack.c.l.b16 %v8585
  %v8646 = vunpack.c.l.b16 %v8586
  %v8647 = vunpack.c.l.b16 %v8587
  %v8648 = vpack.c.b16 %v8643, %v8642
  %v8649 = vpack.c.b16 %v8645, %v8644
  %v8650 = vpack.c.b16 %v8647, %v8646
  %v8655 = vsel %vm5247, %v8620, 0
  %v8658 = vsel %vm5247, %v8621, 0
  %v8661 = vsel %vm5247, %v8622, 0
  %v8664 = vsel %vm5247, %v8623, 0
  %v8667 = vsel %vm5247, %v8624, 0
  %v8670 = vsel %vm5247, %v8625, 0
  %v8673 = vsel %vm5247, %v8626, 0
  %v8676 = vsel %vm5247, %v8627, 0
  %v8679 = vsel %vm5247, %v8628, 0
  %v8682 = vsel %vm5247, %v8629, 0
  %v8685 = vsel %vm5247, %v8630, 0
  %v8688 = vsel %vm5247, %v8631, 0
  %v8691 = vsel %vm5247, %v8632, 0
  %v8694 = vsel %vm5247, %v8633, 0
  %v8697 = vsel %vm5247, %v8634, 0
  %v8700 = vsel %vm5247, %v8635, 0
  %8702 = vmatpush.bf16.msra.mxu0 0
  %8703 = vmatpush.bf16.msra.mxu0 0
  %8704 = vmatpush.bf16.msra.mxu0 0
  %8705 = vmatpush.bf16.msra.mxu0 0
  %8706 = vmatpush.bf16.msra.mxu0 0
  %8707 = vmatpush.bf16.msra.mxu0 %v8650
  %8708 = vmatpush.bf16.msra.mxu0 %v8649
  %8709 = vmatpush.bf16.msra.mxu0 %v8648
  %8710 = vmatmul.bf16.gmra.mxu0 %v8655
  %v8711 = vpop.f32.mrf.mxu0
  %v8712 = vadd.f32 0.0, %v8711
  %v8713 = vpop.f32.mrf.mxu0
  %v8714 = vadd.f32 0.0, %v8713
  %8715 = vmatmul.bf16.gmra.mxu0 %v8658
  %v8716 = vpop.f32.mrf.mxu0
  %v8717 = vadd.f32 0.0, %v8716
  %v8718 = vpop.f32.mrf.mxu0
  %v8719 = vadd.f32 0.0, %v8718
  %8720 = vmatmul.bf16.gmra.mxu0 %v8661
  %v8721 = vpop.f32.mrf.mxu0
  %v8722 = vadd.f32 0.0, %v8721
  %v8723 = vpop.f32.mrf.mxu0
  %v8724 = vadd.f32 0.0, %v8723
  %8725 = vmatmul.bf16.gmra.mxu0 %v8664
  %v8726 = vpop.f32.mrf.mxu0
  %v8727 = vadd.f32 0.0, %v8726
  %v8728 = vpop.f32.mrf.mxu0
  %v8729 = vadd.f32 0.0, %v8728
  %8730 = vmatmul.bf16.gmra.mxu0 %v8667
  %v8731 = vpop.f32.mrf.mxu0
  %v8732 = vadd.f32 0.0, %v8731
  %v8733 = vpop.f32.mrf.mxu0
  %v8734 = vadd.f32 0.0, %v8733
  %8735 = vmatmul.bf16.gmra.mxu0 %v8670
  %v8736 = vpop.f32.mrf.mxu0
  %v8737 = vadd.f32 0.0, %v8736
  %v8738 = vpop.f32.mrf.mxu0
  %v8739 = vadd.f32 0.0, %v8738
  %8740 = vmatmul.bf16.gmra.mxu0 %v8673
  %v8741 = vpop.f32.mrf.mxu0
  %v8742 = vadd.f32 0.0, %v8741
  %v8743 = vpop.f32.mrf.mxu0
  %v8744 = vadd.f32 0.0, %v8743
  %8745 = vmatmul.bf16.gmra.mxu0 %v8676
  %v8746 = vpop.f32.mrf.mxu0
  %v8747 = vadd.f32 0.0, %v8746
  %v8748 = vpop.f32.mrf.mxu0
  %v8749 = vadd.f32 0.0, %v8748
  %8750 = vmatmul.bf16.gmra.mxu0 %v8679
  %v8751 = vpop.f32.mrf.mxu0
  %v8752 = vadd.f32 0.0, %v8751
  %v8753 = vpop.f32.mrf.mxu0
  %v8754 = vadd.f32 0.0, %v8753
  %8755 = vmatmul.bf16.gmra.mxu0 %v8682
  %v8756 = vpop.f32.mrf.mxu0
  %v8757 = vadd.f32 0.0, %v8756
  %v8758 = vpop.f32.mrf.mxu0
  %v8759 = vadd.f32 0.0, %v8758
  %8760 = vmatmul.bf16.gmra.mxu0 %v8685
  %v8761 = vpop.f32.mrf.mxu0
  %v8762 = vadd.f32 0.0, %v8761
  %v8763 = vpop.f32.mrf.mxu0
  %v8764 = vadd.f32 0.0, %v8763
  %8765 = vmatmul.bf16.gmra.mxu0 %v8688
  %v8766 = vpop.f32.mrf.mxu0
  %v8767 = vadd.f32 0.0, %v8766
  %v8768 = vpop.f32.mrf.mxu0
  %v8769 = vadd.f32 0.0, %v8768
  %8770 = vmatmul.bf16.gmra.mxu0 %v8691
  %v8771 = vpop.f32.mrf.mxu0
  %v8772 = vadd.f32 0.0, %v8771
  %v8773 = vpop.f32.mrf.mxu0
  %v8774 = vadd.f32 0.0, %v8773
  %8775 = vmatmul.bf16.gmra.mxu0 %v8694
  %v8776 = vpop.f32.mrf.mxu0
  %v8777 = vadd.f32 0.0, %v8776
  %v8778 = vpop.f32.mrf.mxu0
  %v8779 = vadd.f32 0.0, %v8778
  %8780 = vmatmul.bf16.gmra.mxu0 %v8697
  %v8781 = vpop.f32.mrf.mxu0
  %v8782 = vadd.f32 0.0, %v8781
  %v8783 = vpop.f32.mrf.mxu0
  %v8784 = vadd.f32 0.0, %v8783
  %8785 = vmatmul.bf16.gmra.mxu0 %v8700
  %v8786 = vpop.f32.mrf.mxu0
  %v8787 = vadd.f32 0.0, %v8786
  %v8788 = vpop.f32.mrf.mxu0
  %v8789 = vadd.f32 0.0, %v8788
  %8790 = vdwg.mxu0
  %v8791 = vadd.f32 %v8373, %v8712
  %v8792 = vadd.f32 %v8374, %v8714
  %v8793 = vadd.f32 %v8375, %v8717
  %v8794 = vadd.f32 %v8376, %v8719
  %v8795 = vadd.f32 %v8377, %v8722
  %v8796 = vadd.f32 %v8378, %v8724
  %v8797 = vadd.f32 %v8379, %v8727
  %v8798 = vadd.f32 %v8380, %v8729
  %v8799 = vadd.f32 %v8381, %v8732
  %v8800 = vadd.f32 %v8382, %v8734
  %v8801 = vadd.f32 %v8383, %v8737
  %v8802 = vadd.f32 %v8384, %v8739
  %v8803 = vadd.f32 %v8385, %v8742
  %v8804 = vadd.f32 %v8386, %v8744
  %v8805 = vadd.f32 %v8387, %v8747
  %v8806 = vadd.f32 %v8388, %v8749
  %v8807 = vadd.f32 %v8389, %v8752
  %v8808 = vadd.f32 %v8390, %v8754
  %v8809 = vadd.f32 %v8391, %v8757
  %v8810 = vadd.f32 %v8392, %v8759
  %v8811 = vadd.f32 %v8393, %v8762
  %v8812 = vadd.f32 %v8394, %v8764
  %v8813 = vadd.f32 %v8395, %v8767
  %v8814 = vadd.f32 %v8396, %v8769
  %v8815 = vadd.f32 %v8397, %v8772
  %v8816 = vadd.f32 %v8398, %v8774
  %v8817 = vadd.f32 %v8399, %v8777
  %v8818 = vadd.f32 %v8400, %v8779
  %v8819 = vadd.f32 %v8401, %v8782
  %v8820 = vadd.f32 %v8402, %v8784
  %v8821 = vadd.f32 %v8403, %v8787
  %v8822 = vadd.f32 %v8404, %v8789
  %v8823 = vld [vmem:[%s4] sm:$0x1]
  %v8825 = vperm.slane %v8823, 0
  %v8827 = vadd.f32 %v8791, %v8825
  %v8828 = vadd.f32 %v8792, %v8825
  %v8829 = vadd.f32 %v8793, %v8825
  %v8830 = vadd.f32 %v8794, %v8825
  %v8831 = vadd.f32 %v8795, %v8825
  %v8832 = vadd.f32 %v8796, %v8825
  %v8833 = vadd.f32 %v8797, %v8825
  %v8834 = vadd.f32 %v8798, %v8825
  %v8835 = vadd.f32 %v8799, %v8825
  %v8836 = vadd.f32 %v8800, %v8825
  %v8837 = vadd.f32 %v8801, %v8825
  %v8838 = vadd.f32 %v8802, %v8825
  %v8839 = vadd.f32 %v8803, %v8825
  %v8840 = vadd.f32 %v8804, %v8825
  %v8841 = vadd.f32 %v8805, %v8825
  %v8842 = vadd.f32 %v8806, %v8825
  %v8843 = vadd.f32 %v8807, %v8825
  %v8844 = vadd.f32 %v8808, %v8825
  %v8845 = vadd.f32 %v8809, %v8825
  %v8846 = vadd.f32 %v8810, %v8825
  %v8847 = vadd.f32 %v8811, %v8825
  %v8848 = vadd.f32 %v8812, %v8825
  %v8849 = vadd.f32 %v8813, %v8825
  %v8850 = vadd.f32 %v8814, %v8825
  %v8851 = vadd.f32 %v8815, %v8825
  %v8852 = vadd.f32 %v8816, %v8825
  %v8853 = vadd.f32 %v8817, %v8825
  %v8854 = vadd.f32 %v8818, %v8825
  %v8855 = vadd.f32 %v8819, %v8825
  %v8856 = vadd.f32 %v8820, %v8825
  %v8857 = vadd.f32 %v8821, %v8825
  %v8858 = vadd.f32 %v8822, %v8825
  %vm8859 = vcmp.gt.f32.partialorder %v8827, 0.0
  %vm8860 = vcmp.gt.f32.partialorder %v8828, 0.0
  %vm8861 = vcmp.gt.f32.partialorder %v8829, 0.0
  %vm8862 = vcmp.gt.f32.partialorder %v8830, 0.0
  %vm8863 = vcmp.gt.f32.partialorder %v8831, 0.0
  %vm8864 = vcmp.gt.f32.partialorder %v8832, 0.0
  %vm8865 = vcmp.gt.f32.partialorder %v8833, 0.0
  %vm8866 = vcmp.gt.f32.partialorder %v8834, 0.0
  %vm8867 = vcmp.gt.f32.partialorder %v8835, 0.0
  %vm8868 = vcmp.gt.f32.partialorder %v8836, 0.0
  %vm8869 = vcmp.gt.f32.partialorder %v8837, 0.0
  %vm8870 = vcmp.gt.f32.partialorder %v8838, 0.0
  %vm8871 = vcmp.gt.f32.partialorder %v8839, 0.0
  %vm8872 = vcmp.gt.f32.partialorder %v8840, 0.0
  %vm8873 = vcmp.gt.f32.partialorder %v8841, 0.0
  %vm8874 = vcmp.gt.f32.partialorder %v8842, 0.0
  %vm8875 = vcmp.gt.f32.partialorder %v8843, 0.0
  %vm8876 = vcmp.gt.f32.partialorder %v8844, 0.0
  %vm8877 = vcmp.gt.f32.partialorder %v8845, 0.0
  %vm8878 = vcmp.gt.f32.partialorder %v8846, 0.0
  %vm8879 = vcmp.gt.f32.partialorder %v8847, 0.0
  %vm8880 = vcmp.gt.f32.partialorder %v8848, 0.0
  %vm8881 = vcmp.gt.f32.partialorder %v8849, 0.0
  %vm8882 = vcmp.gt.f32.partialorder %v8850, 0.0
  %vm8883 = vcmp.gt.f32.partialorder %v8851, 0.0
  %vm8884 = vcmp.gt.f32.partialorder %v8852, 0.0
  %vm8885 = vcmp.gt.f32.partialorder %v8853, 0.0
  %vm8886 = vcmp.gt.f32.partialorder %v8854, 0.0
  %vm8887 = vcmp.gt.f32.partialorder %v8855, 0.0
  %vm8888 = vcmp.gt.f32.partialorder %v8856, 0.0
  %vm8889 = vcmp.gt.f32.partialorder %v8857, 0.0
  %vm8890 = vcmp.gt.f32.partialorder %v8858, 0.0
  %v8891 = vmul.f32 %v8827, 0.2
  %v8892 = vmul.f32 %v8828, 0.2
  %v8893 = vmul.f32 %v8829, 0.2
  %v8894 = vmul.f32 %v8830, 0.2
  %v8895 = vmul.f32 %v8831, 0.2
  %v8896 = vmul.f32 %v8832, 0.2
  %v8897 = vmul.f32 %v8833, 0.2
  %v8898 = vmul.f32 %v8834, 0.2
  %v8899 = vmul.f32 %v8835, 0.2
  %v8900 = vmul.f32 %v8836, 0.2
  %v8901 = vmul.f32 %v8837, 0.2
  %v8902 = vmul.f32 %v8838, 0.2
  %v8903 = vmul.f32 %v8839, 0.2
  %v8904 = vmul.f32 %v8840, 0.2
  %v8905 = vmul.f32 %v8841, 0.2
  %v8906 = vmul.f32 %v8842, 0.2
  %v8907 = vmul.f32 %v8843, 0.2
  %v8908 = vmul.f32 %v8844, 0.2
  %v8909 = vmul.f32 %v8845, 0.2
  %v8910 = vmul.f32 %v8846, 0.2
  %v8911 = vmul.f32 %v8847, 0.2
  %v8912 = vmul.f32 %v8848, 0.2
  %v8913 = vmul.f32 %v8849, 0.2
  %v8914 = vmul.f32 %v8850, 0.2
  %v8915 = vmul.f32 %v8851, 0.2
  %v8916 = vmul.f32 %v8852, 0.2
  %v8917 = vmul.f32 %v8853, 0.2
  %v8918 = vmul.f32 %v8854, 0.2
  %v8919 = vmul.f32 %v8855, 0.2
  %v8920 = vmul.f32 %v8856, 0.2
  %v8921 = vmul.f32 %v8857, 0.2
  %v8922 = vmul.f32 %v8858, 0.2
  %v8923 = vsel %vm8859, %v8827, %v8891
  %v8924 = vsel %vm8860, %v8828, %v8892
  %v8925 = vsel %vm8861, %v8829, %v8893
  %v8926 = vsel %vm8862, %v8830, %v8894
  %v8927 = vsel %vm8863, %v8831, %v8895
  %v8928 = vsel %vm8864, %v8832, %v8896
  %v8929 = vsel %vm8865, %v8833, %v8897
  %v8930 = vsel %vm8866, %v8834, %v8898
  %v8931 = vsel %vm8867, %v8835, %v8899
  %v8932 = vsel %vm8868, %v8836, %v8900
  %v8933 = vsel %vm8869, %v8837, %v8901
  %v8934 = vsel %vm8870, %v8838, %v8902
  %v8935 = vsel %vm8871, %v8839, %v8903
  %v8936 = vsel %vm8872, %v8840, %v8904
  %v8937 = vsel %vm8873, %v8841, %v8905
  %v8938 = vsel %vm8874, %v8842, %v8906
  %v8939 = vsel %vm8875, %v8843, %v8907
  %v8940 = vsel %vm8876, %v8844, %v8908
  %v8941 = vsel %vm8877, %v8845, %v8909
  %v8942 = vsel %vm8878, %v8846, %v8910
  %v8943 = vsel %vm8879, %v8847, %v8911
  %v8944 = vsel %vm8880, %v8848, %v8912
  %v8945 = vsel %vm8881, %v8849, %v8913
  %v8946 = vsel %vm8882, %v8850, %v8914
  %v8947 = vsel %vm8883, %v8851, %v8915
  %v8948 = vsel %vm8884, %v8852, %v8916
  %v8949 = vsel %vm8885, %v8853, %v8917
  %v8950 = vsel %vm8886, %v8854, %v8918
  %v8951 = vsel %vm8887, %v8855, %v8919
  %v8952 = vsel %vm8888, %v8856, %v8920
  %v8953 = vsel %vm8889, %v8857, %v8921
  %v8954 = vsel %vm8890, %v8858, %v8922
  %v8955 = vpack.c.bf16 %v8924, %v8923
  %v8956 = vpack.c.bf16 %v8926, %v8925
  %v8957 = vpack.c.bf16 %v8928, %v8927
  %v8958 = vpack.c.bf16 %v8930, %v8929
  %v8959 = vpack.c.bf16 %v8932, %v8931
  %v8960 = vpack.c.bf16 %v8934, %v8933
  %v8961 = vpack.c.bf16 %v8936, %v8935
  %v8962 = vpack.c.bf16 %v8938, %v8937
  %v8963 = vpack.c.bf16 %v8940, %v8939
  %v8964 = vpack.c.bf16 %v8942, %v8941
  %v8965 = vpack.c.bf16 %v8944, %v8943
  %v8966 = vpack.c.bf16 %v8946, %v8945
  %v8967 = vpack.c.bf16 %v8948, %v8947
  %v8968 = vpack.c.bf16 %v8950, %v8949
  %v8969 = vpack.c.bf16 %v8952, %v8951
  %v8970 = vpack.c.bf16 %v8954, %v8953
  %v8971 = vld [vmem:[%s5] sm:$0xf]
  %v8972 = vld [vmem:[%s5 + $0x4] sm:$0xf]
  %v8973 = vld [vmem:[%s5 + $0x8] sm:$0xf]
  %v8974 = vld [vmem:[%s5 + $0xc] sm:$0xf]
  %v8975 = vld [vmem:[%s5 + $0x10] sm:$0xf]
  %v8976 = vld [vmem:[%s5 + $0x14] sm:$0xf]
  %v8977 = vld [vmem:[#allocation3] sm:$0x1]
  %v8979 = vperm.slane %v8977, 0
  %v8987 = vunpack.c.l.b16 %v8971
  %v8988 = vunpack.c.l.b16 %v8972
  %v8989 = vunpack.c.l.b16 %v8973
  %v8990 = vunpack.c.l.b16 %v8974
  %v8991 = vunpack.c.l.b16 %v8975
  %v8992 = vunpack.c.l.b16 %v8976
  %v8993 = vpack.c.b16 %v8988, %v8987
  %v8994 = vpack.c.b16 %v8990, %v8989
  %v8995 = vpack.c.b16 %v8992, %v8991
  %v9000 = vsel %vm5247, %v8955, 0
  %v9003 = vsel %vm5247, %v8956, 0
  %v9006 = vsel %vm5247, %v8957, 0
  %v9009 = vsel %vm5247, %v8958, 0
  %v9012 = vsel %vm5247, %v8959, 0
  %v9015 = vsel %vm5247, %v8960, 0
  %v9018 = vsel %vm5247, %v8961, 0
  %v9021 = vsel %vm5247, %v8962, 0
  %v9024 = vsel %vm5247, %v8963, 0
  %v9027 = vsel %vm5247, %v8964, 0
  %v9030 = vsel %vm5247, %v8965, 0
  %v9033 = vsel %vm5247, %v8966, 0
  %v9036 = vsel %vm5247, %v8967, 0
  %v9039 = vsel %vm5247, %v8968, 0
  %v9042 = vsel %vm5247, %v8969, 0
  %v9045 = vsel %vm5247, %v8970, 0
  %9047 = vmatpush.bf16.msra.mxu0 0
  %9048 = vmatpush.bf16.msra.mxu0 0
  %9049 = vmatpush.bf16.msra.mxu0 0
  %9050 = vmatpush.bf16.msra.mxu0 0
  %9051 = vmatpush.bf16.msra.mxu0 0
  %9052 = vmatpush.bf16.msra.mxu0 %v8995
  %9053 = vmatpush.bf16.msra.mxu0 %v8994
  %9054 = vmatpush.bf16.msra.mxu0 %v8993
  %9055 = vmatmul.bf16.gmra.mxu0 %v9000
  %v9056 = vpop.f32.mrf.mxu0
  %v9057 = vadd.f32 %v8979, %v9056
  %v9058 = vpop.f32.mrf.mxu0
  %v9059 = vadd.f32 %v8979, %v9058
  %9060 = vmatmul.bf16.gmra.mxu0 %v9003
  %v9061 = vpop.f32.mrf.mxu0
  %v9062 = vadd.f32 %v8979, %v9061
  %v9063 = vpop.f32.mrf.mxu0
  %v9064 = vadd.f32 %v8979, %v9063
  %9065 = vmatmul.bf16.gmra.mxu0 %v9006
  %v9066 = vpop.f32.mrf.mxu0
  %v9067 = vadd.f32 %v8979, %v9066
  %v9068 = vpop.f32.mrf.mxu0
  %v9069 = vadd.f32 %v8979, %v9068
  %9070 = vmatmul.bf16.gmra.mxu0 %v9009
  %v9071 = vpop.f32.mrf.mxu0
  %v9072 = vadd.f32 %v8979, %v9071
  %v9073 = vpop.f32.mrf.mxu0
  %v9074 = vadd.f32 %v8979, %v9073
  %9075 = vmatmul.bf16.gmra.mxu0 %v9012
  %v9076 = vpop.f32.mrf.mxu0
  %v9077 = vadd.f32 %v8979, %v9076
  %v9078 = vpop.f32.mrf.mxu0
  %v9079 = vadd.f32 %v8979, %v9078
  %9080 = vmatmul.bf16.gmra.mxu0 %v9015
  %v9081 = vpop.f32.mrf.mxu0
  %v9082 = vadd.f32 %v8979, %v9081
  %v9083 = vpop.f32.mrf.mxu0
  %v9084 = vadd.f32 %v8979, %v9083
  %9085 = vmatmul.bf16.gmra.mxu0 %v9018
  %v9086 = vpop.f32.mrf.mxu0
  %v9087 = vadd.f32 %v8979, %v9086
  %v9088 = vpop.f32.mrf.mxu0
  %v9089 = vadd.f32 %v8979, %v9088
  %9090 = vmatmul.bf16.gmra.mxu0 %v9021
  %v9091 = vpop.f32.mrf.mxu0
  %v9092 = vadd.f32 %v8979, %v9091
  %v9093 = vpop.f32.mrf.mxu0
  %v9094 = vadd.f32 %v8979, %v9093
  %9095 = vmatmul.bf16.gmra.mxu0 %v9024
  %v9096 = vpop.f32.mrf.mxu0
  %v9097 = vadd.f32 %v8979, %v9096
  %v9098 = vpop.f32.mrf.mxu0
  %v9099 = vadd.f32 %v8979, %v9098
  %9100 = vmatmul.bf16.gmra.mxu0 %v9027
  %v9101 = vpop.f32.mrf.mxu0
  %v9102 = vadd.f32 %v8979, %v9101
  %v9103 = vpop.f32.mrf.mxu0
  %v9104 = vadd.f32 %v8979, %v9103
  %9105 = vmatmul.bf16.gmra.mxu0 %v9030
  %v9106 = vpop.f32.mrf.mxu0
  %v9107 = vadd.f32 %v8979, %v9106
  %v9108 = vpop.f32.mrf.mxu0
  %v9109 = vadd.f32 %v8979, %v9108
  %9110 = vmatmul.bf16.gmra.mxu0 %v9033
  %v9111 = vpop.f32.mrf.mxu0
  %v9112 = vadd.f32 %v8979, %v9111
  %v9113 = vpop.f32.mrf.mxu0
  %v9114 = vadd.f32 %v8979, %v9113
  %9115 = vmatmul.bf16.gmra.mxu0 %v9036
  %v9116 = vpop.f32.mrf.mxu0
  %v9117 = vadd.f32 %v8979, %v9116
  %v9118 = vpop.f32.mrf.mxu0
  %v9119 = vadd.f32 %v8979, %v9118
  %9120 = vmatmul.bf16.gmra.mxu0 %v9039
  %v9121 = vpop.f32.mrf.mxu0
  %v9122 = vadd.f32 %v8979, %v9121
  %v9123 = vpop.f32.mrf.mxu0
  %v9124 = vadd.f32 %v8979, %v9123
  %9125 = vmatmul.bf16.gmra.mxu0 %v9042
  %v9126 = vpop.f32.mrf.mxu0
  %v9127 = vadd.f32 %v8979, %v9126
  %v9128 = vpop.f32.mrf.mxu0
  %v9129 = vadd.f32 %v8979, %v9128
  %9130 = vmatmul.bf16.gmra.mxu0 %v9045
  %v9131 = vpop.f32.mrf.mxu0
  %v9132 = vadd.f32 %v8979, %v9131
  %v9133 = vpop.f32.mrf.mxu0
  %v9134 = vadd.f32 %v8979, %v9133
  %9135 = vdwg.mxu0
  %vm9136 = vcmask 7168
  %9137 = vst.msk [vmem:[%s7] sm:$0xff] %vm9136, %v9057
  %9138 = vst.msk [vmem:[%s7 + $0x8] sm:$0xff] %vm9136, %v9059
  %9139 = vst.msk [vmem:[%s7 + $0x10] sm:$0xff] %vm9136, %v9062
  %9140 = vst.msk [vmem:[%s7 + $0x18] sm:$0xff] %vm9136, %v9064
  %9141 = vst.msk [vmem:[%s7 + $0x20] sm:$0xff] %vm9136, %v9067
  %9142 = vst.msk [vmem:[%s7 + $0x28] sm:$0xff] %vm9136, %v9069
  %9143 = vst.msk [vmem:[%s7 + $0x30] sm:$0xff] %vm9136, %v9072
  %9144 = vst.msk [vmem:[%s7 + $0x38] sm:$0xff] %vm9136, %v9074
  %9145 = vst.msk [vmem:[%s7 + $0x40] sm:$0xff] %vm9136, %v9077
  %9146 = vst.msk [vmem:[%s7 + $0x48] sm:$0xff] %vm9136, %v9079
  %9147 = vst.msk [vmem:[%s7 + $0x50] sm:$0xff] %vm9136, %v9082
  %9148 = vst.msk [vmem:[%s7 + $0x58] sm:$0xff] %vm9136, %v9084
  %9149 = vst.msk [vmem:[%s7 + $0x60] sm:$0xff] %vm9136, %v9087
  %9150 = vst.msk [vmem:[%s7 + $0x68] sm:$0xff] %vm9136, %v9089
  %9151 = vst.msk [vmem:[%s7 + $0x70] sm:$0xff] %vm9136, %v9092
  %9152 = vst.msk [vmem:[%s7 + $0x78] sm:$0xff] %vm9136, %v9094
  %9153 = vst.msk [vmem:[%s7 + $0x80] sm:$0xff] %vm9136, %v9097
  %9154 = vst.msk [vmem:[%s7 + $0x88] sm:$0xff] %vm9136, %v9099
  %9155 = vst.msk [vmem:[%s7 + $0x90] sm:$0xff] %vm9136, %v9102
  %9156 = vst.msk [vmem:[%s7 + $0x98] sm:$0xff] %vm9136, %v9104
  %9157 = vst.msk [vmem:[%s7 + $0xa0] sm:$0xff] %vm9136, %v9107
  %9158 = vst.msk [vmem:[%s7 + $0xa8] sm:$0xff] %vm9136, %v9109
  %9159 = vst.msk [vmem:[%s7 + $0xb0] sm:$0xff] %vm9136, %v9112
  %9160 = vst.msk [vmem:[%s7 + $0xb8] sm:$0xff] %vm9136, %v9114
  %9161 = vst.msk [vmem:[%s7 + $0xc0] sm:$0xff] %vm9136, %v9117
  %9162 = vst.msk [vmem:[%s7 + $0xc8] sm:$0xff] %vm9136, %v9119
  %9163 = vst.msk [vmem:[%s7 + $0xd0] sm:$0xff] %vm9136, %v9122
  %9164 = vst.msk [vmem:[%s7 + $0xd8] sm:$0xff] %vm9136, %v9124
  %9165 = vst.msk [vmem:[%s7 + $0xe0] sm:$0xff] %vm9136, %v9127
  %9166 = vst.msk [vmem:[%s7 + $0xe8] sm:$0xff] %vm9136, %v9129
  %9167 = vst.msk [vmem:[%s7 + $0xf0] sm:$0xff] %vm9136, %v9132
  %9168 = vst.msk [vmem:[%s7 + $0xf8] sm:$0xff] %vm9136, %v9134
  // Predicated region
  $region30: #{network_forward.1} parent=0 // pred_check
    _
  $region31: #{network_forward.1} parent=0 // pred_check_branch
    %9170 = sbr.rel (0) target = $region33
  $region32: #{network_forward.1} parent=0 // pred_region
    _
  $region33: #{network_forward.1} parent=0 // pred_fallthru
    _
  // Predicated region
  $region34: #{network_forward.1} parent=0 // pred_check
    _
  $region35: #{network_forward.1} parent=0 // pred_check_branch
    %9172 = sbr.rel (0) target = $region37
  $region36: #{network_forward.1} parent=0 // pred_region
    _
  $region37: #{network_forward.1} parent=0 // pred_fallthru
    _

</llo_original>
